<compile_context>
chip_gen: v7x
topology: tpu7x:2x2x1
jax: 0.10.0
libtpu: 0.0.40
codegen_flags: <defaults>
</compile_context>

<pallas_src>
import functools

import jax
import jax.numpy as jnp
import numpy as np
from jax.experimental import pallas as pl
from jax.experimental.pallas import tpu as pltpu


# ------------------------------ Pallas kernel ------------------------------ #

def _bilstm_embed_kernel(x_ref, wih_ref, bih_ref, whh_blk_ref,
                         wemb_ref, bemb_ref,
                         out_ref,
                         gin_ref, slab_ref,
                         *, seq_len, batch, hidden):
    """Fused bi-LSTM (PyTorch gate order i,f,g,o) + embedding linear."""
    T, N, H = seq_len, batch, hidden

    # (1) Hoisted input projection, both directions, one bf16 matmul:
    #     gin[:, :4H] = x @ W_ih_f^T + (b_ih_f + b_hh_f)   (forward gates-in)
    #     gin[:, 4H:] = x @ W_ih_b^T + (b_ih_b + b_hh_b)   (backward gates-in)
    gin_ref[...] = (jnp.dot(x_ref[...], wih_ref[...],
                            preferred_element_type=jnp.float32)
                    + bih_ref[...])

    def sigmoid(v):
        # single EUP push per sigmoid (vs exp + reciprocal)
        return 0.5 * jnp.tanh(0.5 * v) + 0.5

    def lstm_gate(gates, c):
        i_g = sigmoid(gates[:, 0 * H:1 * H])
        f_g = sigmoid(gates[:, 1 * H:2 * H])
        g_g = jnp.tanh(gates[:, 2 * H:3 * H])
        o_g = sigmoid(gates[:, 3 * H:4 * H])
        c_new = f_g * c + i_g * g_g
        h_new = o_g * jnp.tanh(c_new)
        return h_new, c_new

    # h carried in bf16 (it only feeds the bf16 MXU matmul and the bf16 slab);
    # cell state c stays f32 for accuracy.
    h_f = jnp.zeros((N, H), jnp.bfloat16)
    h_b = jnp.zeros((N, H), jnp.bfloat16)
    c_f = jnp.zeros((N, H), jnp.float32)
    c_b = jnp.zeros((N, H), jnp.float32)

    # (2) Serial recurrence: ONE block-diagonal h@W_hh matmul + elementwise per
    #     step.  Forward handles time t, backward handles time T-1-t.
    for t in range(T):
        rf = t * N
        rb = (T - 1 - t) * N

        h_cat = jnp.concatenate([h_f, h_b], axis=1)          # (N, 2H) bf16
        g_all = jnp.dot(h_cat, whh_blk_ref[...],
                        preferred_element_type=jnp.float32)  # (N, 8H)

        g_f = gin_ref[rf:rf + N, 0:4 * H] + g_all[:, 0:4 * H]
        g_b = gin_ref[rb:rb + N, 4 * H:8 * H] + g_all[:, 4 * H:8 * H]

        hf32, c_f = lstm_gate(g_f, c_f)
        hb32, c_b = lstm_gate(g_b, c_b)
        h_f = hf32.astype(jnp.bfloat16)
        h_b = hb32.astype(jnp.bfloat16)

        # concat(h_fwd, h_bwd) laid out as one (T*N, 2H) slab for the embedding
        slab_ref[rf:rf + N, 0:H] = h_f.astype(slab_ref.dtype)
        slab_ref[rb:rb + N, H:2 * H] = h_b.astype(slab_ref.dtype)

    # (3) Fused embedding: concat(h_fwd, h_bwd) @ W_emb^T + b (lane-padded out)
    out_ref[...] = (jnp.dot(slab_ref[...].astype(jnp.bfloat16), wemb_ref[...],
                            preferred_element_type=jnp.float32)
                    + bemb_ref[...])


# ------------------------------ wrapper (glue) ------------------------------ #

def prepare_weights(params):
    """One-time weight preparation (transpose/concat/block-diag/cast/pad)."""
    H = params["w_hh_f"].shape[1]
    OUT = params["w_emb"].shape[0]
    OUT_PAD = ((OUT + 127) // 128) * 128              # lane-dense output slab

    wih = jnp.concatenate([params["w_ih_f"].T, params["w_ih_b"].T],
                          axis=1).astype(jnp.bfloat16)                # (I, 8H)
    bih = jnp.concatenate([params["b_ih_f"] + params["b_hh_f"],
                           params["b_ih_b"] + params["b_hh_b"]]
                          ).reshape(1, 8 * H).astype(jnp.float32)     # (1, 8H)
    # Block-diagonal recurrent weight: [ W_hh_f^T   0       ]
    #                                  [ 0          W_hh_b^T]   -> (2H, 8H)
    whh_blk = jnp.zeros((2 * H, 8 * H), jnp.bfloat16)
    whh_blk = whh_blk.at[0:H, 0:4 * H].set(params["w_hh_f"].T.astype(jnp.bfloat16))
    whh_blk = whh_blk.at[H:2 * H, 4 * H:8 * H].set(params["w_hh_b"].T.astype(jnp.bfloat16))

    wemb = jnp.zeros((2 * H, OUT_PAD), jnp.bfloat16).at[:, :OUT].set(
        params["w_emb"].T.astype(jnp.bfloat16))                       # (2H, Opad)
    bemb = jnp.zeros((1, OUT_PAD), jnp.float32).at[0, :OUT].set(
        params["b_emb"].astype(jnp.float32))                          # (1, Opad)

    prepped = dict(wih=wih, bih=bih, whh_blk=whh_blk, wemb=wemb, bemb=bemb)
    prepped = jax.tree_util.tree_map(jax.block_until_ready, prepped)  # cache now
    return prepped, OUT


@functools.partial(jax.jit, static_argnames=("out_dim",))
def bidirectional_forward(x, prepped, *, out_dim):
    """Pallas implementation of Bidirectional.forward (bi-LSTM + Linear)."""
    T, N, I = x.shape
    H = prepped["whh_blk"].shape[0] // 2
    OUT_PAD = prepped["wemb"].shape[1]

    assert N % 8 == 0 and I % 128 == 0 and H % 128 == 0, (N, I, H)

    # bf16 slab needs 16-row (bf16 sublane tile) aligned per-step stores.
    slab_dtype = jnp.bfloat16 if (N % 16 == 0) else jnp.float32

    x_flat = x.reshape(T * N, I).astype(jnp.bfloat16)

    kernel = functools.partial(_bilstm_embed_kernel,
                               seq_len=T, batch=N, hidden=H)

    out_pad = pl.pallas_call(
        kernel,
        out_shape=jax.ShapeDtypeStruct((T * N, OUT_PAD), jnp.float32),
        grid_spec=pltpu.PrefetchScalarGridSpec(
            num_scalar_prefetch=0,
            grid=(1,),
            in_specs=[
                pl.BlockSpec((T * N, I), lambda i: (0, 0)),          # x
                pl.BlockSpec((I, 8 * H), lambda i: (0, 0)),          # W_ih fwd|bwd
                pl.BlockSpec((1, 8 * H), lambda i: (0, 0)),          # folded biases
                pl.BlockSpec((2 * H, 8 * H), lambda i: (0, 0)),      # W_hh blockdiag
                pl.BlockSpec((2 * H, OUT_PAD), lambda i: (0, 0)),    # W_emb
                pl.BlockSpec((1, OUT_PAD), lambda i: (0, 0)),        # b_emb
            ],
            out_specs=pl.BlockSpec((T * N, OUT_PAD), lambda i: (0, 0)),
            scratch_shapes=[
                pltpu.VMEM((T * N, 8 * H), jnp.float32),  # hoisted gate inputs
                pltpu.VMEM((T * N, 2 * H), slab_dtype),   # concat(h_fwd, h_bwd)
            ],
        ),
        compiler_params=pltpu.CompilerParams(
            dimension_semantics=("arbitrary",)),
    )(x_flat, prepped["wih"], prepped["bih"], prepped["whh_blk"],
      prepped["wemb"], prepped["bemb"])

    return out_pad[:, :out_dim].reshape(T, N, out_dim)


# ------------------------- params & pure-JAX reference ---------------------- #

def init_params(key, inp, hidden, out):
    """Deterministic synthetic params, PyTorch nn.LSTM / nn.Linear shapes."""
    k = 1.0 / np.sqrt(hidden)
    keys = jax.random.split(key, 10)
    u = lambda kk, shape: jax.random.uniform(kk, shape, jnp.float32, -k, k)
    return dict(
        w_ih_f=u(keys[0], (4 * hidden, inp)),
        w_hh_f=u(keys[1], (4 * hidden, hidden)),
        b_ih_f=u(keys[2], (4 * hidden,)),
        b_hh_f=u(keys[3], (4 * hidden,)),
        w_ih_b=u(keys[4], (4 * hidden, inp)),
        w_hh_b=u(keys[5], (4 * hidden, hidden)),
        b_ih_b=u(keys[6], (4 * hidden,)),
        b_hh_b=u(keys[7], (4 * hidden,)),
        w_emb=u(keys[8], (out, 2 * hidden)),
        b_emb=u(keys[9], (out,)),
    )


def ref_forward(x, params):
    """Pure-JAX reference identical to PyTorch Bidirectional.forward."""
    def lstm_scan(x_seq, w_ih, w_hh, b_ih, b_hh):
        Hh = w_hh.shape[1]
        N = x_seq.shape[1]

        def step(carry, xt):
            h, c = carry
            g = xt @ w_ih.T + h @ w_hh.T + b_ih + b_hh
            i, f, gg, o = jnp.split(g, 4, axis=-1)
            c = jax.nn.sigmoid(f) * c + jax.nn.sigmoid(i) * jnp.tanh(gg)
            h = jax.nn.sigmoid(o) * jnp.tanh(c)
            return (h, c), h

        init = (jnp.zeros((N, Hh), jnp.float32), jnp.zeros((N, Hh), jnp.float32))
        _, hs = jax.lax.scan(step, init, x_seq)
        return hs

    hf = lstm_scan(x, params["w_ih_f"], params["w_hh_f"],
                   params["b_ih_f"], params["b_hh_f"])
    hb = lstm_scan(x[::-1], params["w_ih_b"], params["w_hh_b"],
                   params["b_ih_b"], params["b_hh_b"])[::-1]
    rec = jnp.concatenate([hf, hb], axis=-1)
    return rec @ params["w_emb"].T + params["b_emb"]


# ----------------------------------- main ----------------------------------- #

if __name__ == "__main__":
    # Small shapes consistent with Bidirectional(inp, hidden, out): X is (T, N, inp).
    T, N, INP, HIDDEN, OUT = 8, 16, 128, 128, 37   # OUT ~ num_class + 1 (CTC blank)

    key = jax.random.PRNGKey(0)
    kx, kp = jax.random.split(key)
    x = jax.random.normal(kx, (T, N, INP), jnp.float32)
    params = init_params(kp, INP, HIDDEN, OUT)

    prepped, out_dim = prepare_weights(params)       # one-time weight prep

    out = jax.block_until_ready(
        bidirectional_forward(x, prepped, out_dim=out_dim))
    ref = jax.block_until_ready(ref_forward(x, params))

    assert out.shape == (T, N, OUT), out.shape
    np.testing.assert_allclose(np.asarray(out), np.asarray(ref),
                               rtol=3e-2, atol=3e-2)
    print("KERNEL_OK")
</pallas_src>

<mosaic_0001>
module attributes {stable_mosaic.version = 11 : i64} {
  func.func @_bilstm_embed_kernel(%arg0: i32, %arg1: memref<128x128xbf16, #tpu.memory_space<vmem>>, %arg2: memref<128x1024xbf16, #tpu.memory_space<vmem>>, %arg3: memref<1x1024xf32, #tpu.memory_space<vmem>>, %arg4: memref<256x1024xbf16, #tpu.memory_space<vmem>>, %arg5: memref<256x128xbf16, #tpu.memory_space<vmem>>, %arg6: memref<1x128xf32, #tpu.memory_space<vmem>>, %arg7: memref<128x128xf32, #tpu.memory_space<vmem>>, %arg8: memref<128x1024xf32, #tpu.memory_space<vmem>>, %arg9: memref<128x256xbf16, #tpu.memory_space<vmem>>) attributes {dimension_semantics = [#tpu.dimension_semantics<arbitrary>], iteration_bounds = array<i64: 1>, scalar_prefetch = 0 : i64, scratch_operands = 2 : i64, tpu.core_type = #tpu.core_type<tc>, window_params = [{pipeline_mode = #tpu.pipeline_mode<synchronous>, transform_indices = @transform_0, window_bounds = array<i64: 128, 128>}, {pipeline_mode = #tpu.pipeline_mode<synchronous>, transform_indices = @transform_1, window_bounds = array<i64: 128, 1024>}, {pipeline_mode = #tpu.pipeline_mode<synchronous>, transform_indices = @transform_2, window_bounds = array<i64: 1, 1024>}, {pipeline_mode = #tpu.pipeline_mode<synchronous>, transform_indices = @transform_3, window_bounds = array<i64: 256, 1024>}, {pipeline_mode = #tpu.pipeline_mode<synchronous>, transform_indices = @transform_4, window_bounds = array<i64: 256, 128>}, {pipeline_mode = #tpu.pipeline_mode<synchronous>, transform_indices = @transform_5, window_bounds = array<i64: 1, 128>}, {pipeline_mode = #tpu.pipeline_mode<synchronous>, transform_indices = @transform_6, window_bounds = array<i64: 128, 128>}]} {
    %c0 = arith.constant 0 : index
    %c0_0 = arith.constant 0 : index
    %0 = vector.load %arg1[%c0, %c0_0] : memref<128x128xbf16, #tpu.memory_space<vmem>>, vector<128x128xbf16>
    %c0_1 = arith.constant 0 : index
    %c0_2 = arith.constant 0 : index
    %1 = vector.load %arg2[%c0_1, %c0_2] : memref<128x1024xbf16, #tpu.memory_space<vmem>>, vector<128x1024xbf16>
    %cst = arith.constant dense<0.000000e+00> : vector<128x1024xf32>
    %2 = tpu.matmul %0, %1, %cst {dimension_numbers = #tpu.dot_dimension_numbers<[1], [0], [0], [1], [0, 0, 1, 1], [], []>} : vector<128x128xbf16>, vector<128x1024xbf16>, vector<128x1024xf32> -> vector<128x1024xf32>
    %c0_3 = arith.constant 0 : index
    %c0_4 = arith.constant 0 : index
    %3 = vector.load %arg3[%c0_3, %c0_4] : memref<1x1024xf32, #tpu.memory_space<vmem>>, vector<1x1024xf32>
    %4 = vector.broadcast %3 : vector<1x1024xf32> to vector<128x1024xf32>
    %5 = arith.addf %2, %4 : vector<128x1024xf32>
    %c0_5 = arith.constant 0 : index
    %c0_6 = arith.constant 0 : index
    %6 = vector.load %arg8[%c0_5, %c0_6] : memref<128x1024xf32, #tpu.memory_space<vmem>>, vector<128x1024xf32>
    tpu.vector_store %arg8[%c0_5, %c0_6], %5 {strides = array<i32>} : memref<128x1024xf32, #tpu.memory_space<vmem>>, vector<128x1024xf32>,
    %cst_7 = arith.constant 0.000000e+00 : bf16
    %7 = vector.broadcast %cst_7 : bf16 to vector<16x128xbf16>
    %cst_8 = arith.constant 0.000000e+00 : bf16
    %8 = vector.broadcast %cst_8 : bf16 to vector<16x128xbf16>
    %cst_9 = arith.constant 0.000000e+00 : f32
    %9 = vector.broadcast %cst_9 : f32 to vector<16x128xf32>
    %cst_10 = arith.constant 0.000000e+00 : f32
    %10 = vector.broadcast %cst_10 : f32 to vector<16x128xf32>
    %11 = tpu.concatenate %7, %8 in 1 : vector<16x128xbf16>, vector<16x128xbf16> -> vector<16x256xbf16>
    %c0_11 = arith.constant 0 : index
    %c0_12 = arith.constant 0 : index
    %12 = vector.load %arg4[%c0_11, %c0_12] : memref<256x1024xbf16, #tpu.memory_space<vmem>>, vector<256x1024xbf16>
    %cst_13 = arith.constant dense<0.000000e+00> : vector<16x1024xf32>
    %13 = tpu.matmul %11, %12, %cst_13 {dimension_numbers = #tpu.dot_dimension_numbers<[1], [0], [0], [1], [0, 0, 1, 1], [], []>} : vector<16x256xbf16>, vector<256x1024xbf16>, vector<16x1024xf32> -> vector<16x1024xf32>
    %c0_14 = arith.constant 0 : index
    %c0_15 = arith.constant 0 : index
    %14 = vector.load %arg8[%c0_14, %c0_15] : memref<128x1024xf32, #tpu.memory_space<vmem>>, vector<16x512xf32>
    %15 = vector.extract_strided_slice %13 {offsets = [0, 0], sizes = [16, 512], strides = [1, 1]} : vector<16x1024xf32> to vector<16x512xf32>
    %16 = arith.addf %14, %15 : vector<16x512xf32>
    %c112 = arith.constant 112 : index
    %c512 = arith.constant 512 : index
    %17 = vector.load %arg8[%c112, %c512] : memref<128x1024xf32, #tpu.memory_space<vmem>>, vector<16x512xf32>
    %18 = vector.extract_strided_slice %13 {offsets = [0, 512], sizes = [16, 512], strides = [1, 1]} : vector<16x1024xf32> to vector<16x512xf32>
    %19 = arith.addf %17, %18 : vector<16x512xf32>
    %20 = vector.extract_strided_slice %16 {offsets = [0, 0], sizes = [16, 128], strides = [1, 1]} : vector<16x512xf32> to vector<16x128xf32>
    %cst_16 = arith.constant 5.000000e-01 : f32
    %21 = vector.broadcast %cst_16 : f32 to vector<16x128xf32>
    %22 = arith.mulf %21, %20 : vector<16x128xf32>
    %23 = math.tanh %22 : vector<16x128xf32>
    %cst_17 = arith.constant 5.000000e-01 : f32
    %24 = vector.broadcast %cst_17 : f32 to vector<16x128xf32>
    %25 = arith.mulf %24, %23 : vector<16x128xf32>
    %cst_18 = arith.constant 5.000000e-01 : f32
    %26 = vector.broadcast %cst_18 : f32 to vector<16x128xf32>
    %27 = arith.addf %25, %26 : vector<16x128xf32>
    %28 = vector.extract_strided_slice %16 {offsets = [0, 128], sizes = [16, 128], strides = [1, 1]} : vector<16x512xf32> to vector<16x128xf32>
    %cst_19 = arith.constant 5.000000e-01 : f32
    %29 = vector.broadcast %cst_19 : f32 to vector<16x128xf32>
    %30 = arith.mulf %29, %28 : vector<16x128xf32>
    %31 = math.tanh %30 : vector<16x128xf32>
    %cst_20 = arith.constant 5.000000e-01 : f32
    %32 = vector.broadcast %cst_20 : f32 to vector<16x128xf32>
    %33 = arith.mulf %32, %31 : vector<16x128xf32>
    %cst_21 = arith.constant 5.000000e-01 : f32
    %34 = vector.broadcast %cst_21 : f32 to vector<16x128xf32>
    %35 = arith.addf %33, %34 : vector<16x128xf32>
    %36 = vector.extract_strided_slice %16 {offsets = [0, 256], sizes = [16, 128], strides = [1, 1]} : vector<16x512xf32> to vector<16x128xf32>
    %37 = math.tanh %36 : vector<16x128xf32>
    %38 = vector.extract_strided_slice %16 {offsets = [0, 384], sizes = [16, 128], strides = [1, 1]} : vector<16x512xf32> to vector<16x128xf32>
    %cst_22 = arith.constant 5.000000e-01 : f32
    %39 = vector.broadcast %cst_22 : f32 to vector<16x128xf32>
    %40 = arith.mulf %39, %38 : vector<16x128xf32>
    %41 = math.tanh %40 : vector<16x128xf32>
    %cst_23 = arith.constant 5.000000e-01 : f32
    %42 = vector.broadcast %cst_23 : f32 to vector<16x128xf32>
    %43 = arith.mulf %42, %41 : vector<16x128xf32>
    %cst_24 = arith.constant 5.000000e-01 : f32
    %44 = vector.broadcast %cst_24 : f32 to vector<16x128xf32>
    %45 = arith.addf %43, %44 : vector<16x128xf32>
    %46 = arith.mulf %35, %9 : vector<16x128xf32>
    %47 = arith.mulf %27, %37 : vector<16x128xf32>
    %48 = arith.addf %46, %47 : vector<16x128xf32>
    %49 = math.tanh %48 : vector<16x128xf32>
    %50 = arith.mulf %45, %49 : vector<16x128xf32>
    %51 = vector.extract_strided_slice %19 {offsets = [0, 0], sizes = [16, 128], strides = [1, 1]} : vector<16x512xf32> to vector<16x128xf32>
    %cst_25 = arith.constant 5.000000e-01 : f32
    %52 = vector.broadcast %cst_25 : f32 to vector<16x128xf32>
    %53 = arith.mulf %52, %51 : vector<16x128xf32>
    %54 = math.tanh %53 : vector<16x128xf32>
    %cst_26 = arith.constant 5.000000e-01 : f32
    %55 = vector.broadcast %cst_26 : f32 to vector<16x128xf32>
    %56 = arith.mulf %55, %54 : vector<16x128xf32>
    %cst_27 = arith.constant 5.000000e-01 : f32
    %57 = vector.broadcast %cst_27 : f32 to vector<16x128xf32>
    %58 = arith.addf %56, %57 : vector<16x128xf32>
    %59 = vector.extract_strided_slice %19 {offsets = [0, 128], sizes = [16, 128], strides = [1, 1]} : vector<16x512xf32> to vector<16x128xf32>
    %cst_28 = arith.constant 5.000000e-01 : f32
    %60 = vector.broadcast %cst_28 : f32 to vector<16x128xf32>
    %61 = arith.mulf %60, %59 : vector<16x128xf32>
    %62 = math.tanh %61 : vector<16x128xf32>
    %cst_29 = arith.constant 5.000000e-01 : f32
    %63 = vector.broadcast %cst_29 : f32 to vector<16x128xf32>
    %64 = arith.mulf %63, %62 : vector<16x128xf32>
    %cst_30 = arith.constant 5.000000e-01 : f32
    %65 = vector.broadcast %cst_30 : f32 to vector<16x128xf32>
    %66 = arith.addf %64, %65 : vector<16x128xf32>
    %67 = vector.extract_strided_slice %19 {offsets = [0, 256], sizes = [16, 128], strides = [1, 1]} : vector<16x512xf32> to vector<16x128xf32>
    %68 = math.tanh %67 : vector<16x128xf32>
    %69 = vector.extract_strided_slice %19 {offsets = [0, 384], sizes = [16, 128], strides = [1, 1]} : vector<16x512xf32> to vector<16x128xf32>
    %cst_31 = arith.constant 5.000000e-01 : f32
    %70 = vector.broadcast %cst_31 : f32 to vector<16x128xf32>
    %71 = arith.mulf %70, %69 : vector<16x128xf32>
    %72 = math.tanh %71 : vector<16x128xf32>
    %cst_32 = arith.constant 5.000000e-01 : f32
    %73 = vector.broadcast %cst_32 : f32 to vector<16x128xf32>
    %74 = arith.mulf %73, %72 : vector<16x128xf32>
    %cst_33 = arith.constant 5.000000e-01 : f32
    %75 = vector.broadcast %cst_33 : f32 to vector<16x128xf32>
    %76 = arith.addf %74, %75 : vector<16x128xf32>
    %77 = arith.mulf %66, %10 : vector<16x128xf32>
    %78 = arith.mulf %58, %68 : vector<16x128xf32>
    %79 = arith.addf %77, %78 : vector<16x128xf32>
    %80 = math.tanh %79 : vector<16x128xf32>
    %81 = arith.mulf %76, %80 : vector<16x128xf32>
    %82 = arith.truncf %50 : vector<16x128xf32> to vector<16x128xbf16>
    %83 = arith.truncf %81 : vector<16x128xf32> to vector<16x128xbf16>
    %c0_34 = arith.constant 0 : index
    %c0_35 = arith.constant 0 : index
    %84 = vector.load %arg9[%c0_34, %c0_35] : memref<128x256xbf16, #tpu.memory_space<vmem>>, vector<16x128xbf16>
    tpu.vector_store %arg9[%c0_34, %c0_35], %82 {strides = array<i32>} : memref<128x256xbf16, #tpu.memory_space<vmem>>, vector<16x128xbf16>,
    %c112_36 = arith.constant 112 : index
    %c128 = arith.constant 128 : index
    %85 = vector.load %arg9[%c112_36, %c128] : memref<128x256xbf16, #tpu.memory_space<vmem>>, vector<16x128xbf16>
    tpu.vector_store %arg9[%c112_36, %c128], %83 {strides = array<i32>} : memref<128x256xbf16, #tpu.memory_space<vmem>>, vector<16x128xbf16>,
    %86 = tpu.concatenate %82, %83 in 1 : vector<16x128xbf16>, vector<16x128xbf16> -> vector<16x256xbf16>
    %c0_37 = arith.constant 0 : index
    %c0_38 = arith.constant 0 : index
    %87 = vector.load %arg4[%c0_37, %c0_38] : memref<256x1024xbf16, #tpu.memory_space<vmem>>, vector<256x1024xbf16>
    %cst_39 = arith.constant dense<0.000000e+00> : vector<16x1024xf32>
    %88 = tpu.matmul %86, %87, %cst_39 {dimension_numbers = #tpu.dot_dimension_numbers<[1], [0], [0], [1], [0, 0, 1, 1], [], []>} : vector<16x256xbf16>, vector<256x1024xbf16>, vector<16x1024xf32> -> vector<16x1024xf32>
    %c16 = arith.constant 16 : index
    %c0_40 = arith.constant 0 : index
    %89 = vector.load %arg8[%c16, %c0_40] : memref<128x1024xf32, #tpu.memory_space<vmem>>, vector<16x512xf32>
    %90 = vector.extract_strided_slice %88 {offsets = [0, 0], sizes = [16, 512], strides = [1, 1]} : vector<16x1024xf32> to vector<16x512xf32>
    %91 = arith.addf %89, %90 : vector<16x512xf32>
    %c96 = arith.constant 96 : index
    %c512_41 = arith.constant 512 : index
    %92 = vector.load %arg8[%c96, %c512_41] : memref<128x1024xf32, #tpu.memory_space<vmem>>, vector<16x512xf32>
    %93 = vector.extract_strided_slice %88 {offsets = [0, 512], sizes = [16, 512], strides = [1, 1]} : vector<16x1024xf32> to vector<16x512xf32>
    %94 = arith.addf %92, %93 : vector<16x512xf32>
    %95 = vector.extract_strided_slice %91 {offsets = [0, 0], sizes = [16, 128], strides = [1, 1]} : vector<16x512xf32> to vector<16x128xf32>
    %cst_42 = arith.constant 5.000000e-01 : f32
    %96 = vector.broadcast %cst_42 : f32 to vector<16x128xf32>
    %97 = arith.mulf %96, %95 : vector<16x128xf32>
    %98 = math.tanh %97 : vector<16x128xf32>
    %cst_43 = arith.constant 5.000000e-01 : f32
    %99 = vector.broadcast %cst_43 : f32 to vector<16x128xf32>
    %100 = arith.mulf %99, %98 : vector<16x128xf32>
    %cst_44 = arith.constant 5.000000e-01 : f32
    %101 = vector.broadcast %cst_44 : f32 to vector<16x128xf32>
    %102 = arith.addf %100, %101 : vector<16x128xf32>
    %103 = vector.extract_strided_slice %91 {offsets = [0, 128], sizes = [16, 128], strides = [1, 1]} : vector<16x512xf32> to vector<16x128xf32>
    %cst_45 = arith.constant 5.000000e-01 : f32
    %104 = vector.broadcast %cst_45 : f32 to vector<16x128xf32>
    %105 = arith.mulf %104, %103 : vector<16x128xf32>
    %106 = math.tanh %105 : vector<16x128xf32>
    %cst_46 = arith.constant 5.000000e-01 : f32
    %107 = vector.broadcast %cst_46 : f32 to vector<16x128xf32>
    %108 = arith.mulf %107, %106 : vector<16x128xf32>
    %cst_47 = arith.constant 5.000000e-01 : f32
    %109 = vector.broadcast %cst_47 : f32 to vector<16x128xf32>
    %110 = arith.addf %108, %109 : vector<16x128xf32>
    %111 = vector.extract_strided_slice %91 {offsets = [0, 256], sizes = [16, 128], strides = [1, 1]} : vector<16x512xf32> to vector<16x128xf32>
    %112 = math.tanh %111 : vector<16x128xf32>
    %113 = vector.extract_strided_slice %91 {offsets = [0, 384], sizes = [16, 128], strides = [1, 1]} : vector<16x512xf32> to vector<16x128xf32>
    %cst_48 = arith.constant 5.000000e-01 : f32
    %114 = vector.broadcast %cst_48 : f32 to vector<16x128xf32>
    %115 = arith.mulf %114, %113 : vector<16x128xf32>
    %116 = math.tanh %115 : vector<16x128xf32>
    %cst_49 = arith.constant 5.000000e-01 : f32
    %117 = vector.broadcast %cst_49 : f32 to vector<16x128xf32>
    %118 = arith.mulf %117, %116 : vector<16x128xf32>
    %cst_50 = arith.constant 5.000000e-01 : f32
    %119 = vector.broadcast %cst_50 : f32 to vector<16x128xf32>
    %120 = arith.addf %118, %119 : vector<16x128xf32>
    %121 = arith.mulf %110, %48 : vector<16x128xf32>
    %122 = arith.mulf %102, %112 : vector<16x128xf32>
    %123 = arith.addf %121, %122 : vector<16x128xf32>
    %124 = math.tanh %123 : vector<16x128xf32>
    %125 = arith.mulf %120, %124 : vector<16x128xf32>
    %126 = vector.extract_strided_slice %94 {offsets = [0, 0], sizes = [16, 128], strides = [1, 1]} : vector<16x512xf32> to vector<16x128xf32>
    %cst_51 = arith.constant 5.000000e-01 : f32
    %127 = vector.broadcast %cst_51 : f32 to vector<16x128xf32>
    %128 = arith.mulf %127, %126 : vector<16x128xf32>
    %129 = math.tanh %128 : vector<16x128xf32>
    %cst_52 = arith.constant 5.000000e-01 : f32
    %130 = vector.broadcast %cst_52 : f32 to vector<16x128xf32>
    %131 = arith.mulf %130, %129 : vector<16x128xf32>
    %cst_53 = arith.constant 5.000000e-01 : f32
    %132 = vector.broadcast %cst_53 : f32 to vector<16x128xf32>
    %133 = arith.addf %131, %132 : vector<16x128xf32>
    %134 = vector.extract_strided_slice %94 {offsets = [0, 128], sizes = [16, 128], strides = [1, 1]} : vector<16x512xf32> to vector<16x128xf32>
    %cst_54 = arith.constant 5.000000e-01 : f32
    %135 = vector.broadcast %cst_54 : f32 to vector<16x128xf32>
    %136 = arith.mulf %135, %134 : vector<16x128xf32>
    %137 = math.tanh %136 : vector<16x128xf32>
    %cst_55 = arith.constant 5.000000e-01 : f32
    %138 = vector.broadcast %cst_55 : f32 to vector<16x128xf32>
    %139 = arith.mulf %138, %137 : vector<16x128xf32>
    %cst_56 = arith.constant 5.000000e-01 : f32
    %140 = vector.broadcast %cst_56 : f32 to vector<16x128xf32>
    %141 = arith.addf %139, %140 : vector<16x128xf32>
    %142 = vector.extract_strided_slice %94 {offsets = [0, 256], sizes = [16, 128], strides = [1, 1]} : vector<16x512xf32> to vector<16x128xf32>
    %143 = math.tanh %142 : vector<16x128xf32>
    %144 = vector.extract_strided_slice %94 {offsets = [0, 384], sizes = [16, 128], strides = [1, 1]} : vector<16x512xf32> to vector<16x128xf32>
    %cst_57 = arith.constant 5.000000e-01 : f32
    %145 = vector.broadcast %cst_57 : f32 to vector<16x128xf32>
    %146 = arith.mulf %145, %144 : vector<16x128xf32>
    %147 = math.tanh %146 : vector<16x128xf32>
    %cst_58 = arith.constant 5.000000e-01 : f32
    %148 = vector.broadcast %cst_58 : f32 to vector<16x128xf32>
    %149 = arith.mulf %148, %147 : vector<16x128xf32>
    %cst_59 = arith.constant 5.000000e-01 : f32
    %150 = vector.broadcast %cst_59 : f32 to vector<16x128xf32>
    %151 = arith.addf %149, %150 : vector<16x128xf32>
    %152 = arith.mulf %141, %79 : vector<16x128xf32>
    %153 = arith.mulf %133, %143 : vector<16x128xf32>
    %154 = arith.addf %152, %153 : vector<16x128xf32>
    %155 = math.tanh %154 : vector<16x128xf32>
    %156 = arith.mulf %151, %155 : vector<16x128xf32>
    %157 = arith.truncf %125 : vector<16x128xf32> to vector<16x128xbf16>
    %158 = arith.truncf %156 : vector<16x128xf32> to vector<16x128xbf16>
    %c16_60 = arith.constant 16 : index
    %c0_61 = arith.constant 0 : index
    %159 = vector.load %arg9[%c16_60, %c0_61] : memref<128x256xbf16, #tpu.memory_space<vmem>>, vector<16x128xbf16>
    tpu.vector_store %arg9[%c16_60, %c0_61], %157 {strides = array<i32>} : memref<128x256xbf16, #tpu.memory_space<vmem>>, vector<16x128xbf16>,
    %c96_62 = arith.constant 96 : index
    %c128_63 = arith.constant 128 : index
    %160 = vector.load %arg9[%c96_62, %c128_63] : memref<128x256xbf16, #tpu.memory_space<vmem>>, vector<16x128xbf16>
    tpu.vector_store %arg9[%c96_62, %c128_63], %158 {strides = array<i32>} : memref<128x256xbf16, #tpu.memory_space<vmem>>, vector<16x128xbf16>,
    %161 = tpu.concatenate %157, %158 in 1 : vector<16x128xbf16>, vector<16x128xbf16> -> vector<16x256xbf16>
    %c0_64 = arith.constant 0 : index
    %c0_65 = arith.constant 0 : index
    %162 = vector.load %arg4[%c0_64, %c0_65] : memref<256x1024xbf16, #tpu.memory_space<vmem>>, vector<256x1024xbf16>
    %cst_66 = arith.constant dense<0.000000e+00> : vector<16x1024xf32>
    %163 = tpu.matmul %161, %162, %cst_66 {dimension_numbers = #tpu.dot_dimension_numbers<[1], [0], [0], [1], [0, 0, 1, 1], [], []>} : vector<16x256xbf16>, vector<256x1024xbf16>, vector<16x1024xf32> -> vector<16x1024xf32>
    %c32 = arith.constant 32 : index
    %c0_67 = arith.constant 0 : index
    %164 = vector.load %arg8[%c32, %c0_67] : memref<128x1024xf32, #tpu.memory_space<vmem>>, vector<16x512xf32>
    %165 = vector.extract_strided_slice %163 {offsets = [0, 0], sizes = [16, 512], strides = [1, 1]} : vector<16x1024xf32> to vector<16x512xf32>
    %166 = arith.addf %164, %165 : vector<16x512xf32>
    %c80 = arith.constant 80 : index
    %c512_68 = arith.constant 512 : index
    %167 = vector.load %arg8[%c80, %c512_68] : memref<128x1024xf32, #tpu.memory_space<vmem>>, vector<16x512xf32>
    %168 = vector.extract_strided_slice %163 {offsets = [0, 512], sizes = [16, 512], strides = [1, 1]} : vector<16x1024xf32> to vector<16x512xf32>
    %169 = arith.addf %167, %168 : vector<16x512xf32>
    %170 = vector.extract_strided_slice %166 {offsets = [0, 0], sizes = [16, 128], strides = [1, 1]} : vector<16x512xf32> to vector<16x128xf32>
    %cst_69 = arith.constant 5.000000e-01 : f32
    %171 = vector.broadcast %cst_69 : f32 to vector<16x128xf32>
    %172 = arith.mulf %171, %170 : vector<16x128xf32>
    %173 = math.tanh %172 : vector<16x128xf32>
    %cst_70 = arith.constant 5.000000e-01 : f32
    %174 = vector.broadcast %cst_70 : f32 to vector<16x128xf32>
    %175 = arith.mulf %174, %173 : vector<16x128xf32>
    %cst_71 = arith.constant 5.000000e-01 : f32
    %176 = vector.broadcast %cst_71 : f32 to vector<16x128xf32>
    %177 = arith.addf %175, %176 : vector<16x128xf32>
    %178 = vector.extract_strided_slice %166 {offsets = [0, 128], sizes = [16, 128], strides = [1, 1]} : vector<16x512xf32> to vector<16x128xf32>
    %cst_72 = arith.constant 5.000000e-01 : f32
    %179 = vector.broadcast %cst_72 : f32 to vector<16x128xf32>
    %180 = arith.mulf %179, %178 : vector<16x128xf32>
    %181 = math.tanh %180 : vector<16x128xf32>
    %cst_73 = arith.constant 5.000000e-01 : f32
    %182 = vector.broadcast %cst_73 : f32 to vector<16x128xf32>
    %183 = arith.mulf %182, %181 : vector<16x128xf32>
    %cst_74 = arith.constant 5.000000e-01 : f32
    %184 = vector.broadcast %cst_74 : f32 to vector<16x128xf32>
    %185 = arith.addf %183, %184 : vector<16x128xf32>
    %186 = vector.extract_strided_slice %166 {offsets = [0, 256], sizes = [16, 128], strides = [1, 1]} : vector<16x512xf32> to vector<16x128xf32>
    %187 = math.tanh %186 : vector<16x128xf32>
    %188 = vector.extract_strided_slice %166 {offsets = [0, 384], sizes = [16, 128], strides = [1, 1]} : vector<16x512xf32> to vector<16x128xf32>
    %cst_75 = arith.constant 5.000000e-01 : f32
    %189 = vector.broadcast %cst_75 : f32 to vector<16x128xf32>
    %190 = arith.mulf %189, %188 : vector<16x128xf32>
    %191 = math.tanh %190 : vector<16x128xf32>
    %cst_76 = arith.constant 5.000000e-01 : f32
    %192 = vector.broadcast %cst_76 : f32 to vector<16x128xf32>
    %193 = arith.mulf %192, %191 : vector<16x128xf32>
    %cst_77 = arith.constant 5.000000e-01 : f32
    %194 = vector.broadcast %cst_77 : f32 to vector<16x128xf32>
    %195 = arith.addf %193, %194 : vector<16x128xf32>
    %196 = arith.mulf %185, %123 : vector<16x128xf32>
    %197 = arith.mulf %177, %187 : vector<16x128xf32>
    %198 = arith.addf %196, %197 : vector<16x128xf32>
    %199 = math.tanh %198 : vector<16x128xf32>
    %200 = arith.mulf %195, %199 : vector<16x128xf32>
    %201 = vector.extract_strided_slice %169 {offsets = [0, 0], sizes = [16, 128], strides = [1, 1]} : vector<16x512xf32> to vector<16x128xf32>
    %cst_78 = arith.constant 5.000000e-01 : f32
    %202 = vector.broadcast %cst_78 : f32 to vector<16x128xf32>
    %203 = arith.mulf %202, %201 : vector<16x128xf32>
    %204 = math.tanh %203 : vector<16x128xf32>
    %cst_79 = arith.constant 5.000000e-01 : f32
    %205 = vector.broadcast %cst_79 : f32 to vector<16x128xf32>
    %206 = arith.mulf %205, %204 : vector<16x128xf32>
    %cst_80 = arith.constant 5.000000e-01 : f32
    %207 = vector.broadcast %cst_80 : f32 to vector<16x128xf32>
    %208 = arith.addf %206, %207 : vector<16x128xf32>
    %209 = vector.extract_strided_slice %169 {offsets = [0, 128], sizes = [16, 128], strides = [1, 1]} : vector<16x512xf32> to vector<16x128xf32>
    %cst_81 = arith.constant 5.000000e-01 : f32
    %210 = vector.broadcast %cst_81 : f32 to vector<16x128xf32>
    %211 = arith.mulf %210, %209 : vector<16x128xf32>
    %212 = math.tanh %211 : vector<16x128xf32>
    %cst_82 = arith.constant 5.000000e-01 : f32
    %213 = vector.broadcast %cst_82 : f32 to vector<16x128xf32>
    %214 = arith.mulf %213, %212 : vector<16x128xf32>
    %cst_83 = arith.constant 5.000000e-01 : f32
    %215 = vector.broadcast %cst_83 : f32 to vector<16x128xf32>
    %216 = arith.addf %214, %215 : vector<16x128xf32>
    %217 = vector.extract_strided_slice %169 {offsets = [0, 256], sizes = [16, 128], strides = [1, 1]} : vector<16x512xf32> to vector<16x128xf32>
    %218 = math.tanh %217 : vector<16x128xf32>
    %219 = vector.extract_strided_slice %169 {offsets = [0, 384], sizes = [16, 128], strides = [1, 1]} : vector<16x512xf32> to vector<16x128xf32>
    %cst_84 = arith.constant 5.000000e-01 : f32
    %220 = vector.broadcast %cst_84 : f32 to vector<16x128xf32>
    %221 = arith.mulf %220, %219 : vector<16x128xf32>
    %222 = math.tanh %221 : vector<16x128xf32>
    %cst_85 = arith.constant 5.000000e-01 : f32
    %223 = vector.broadcast %cst_85 : f32 to vector<16x128xf32>
    %224 = arith.mulf %223, %222 : vector<16x128xf32>
    %cst_86 = arith.constant 5.000000e-01 : f32
    %225 = vector.broadcast %cst_86 : f32 to vector<16x128xf32>
    %226 = arith.addf %224, %225 : vector<16x128xf32>
    %227 = arith.mulf %216, %154 : vector<16x128xf32>
    %228 = arith.mulf %208, %218 : vector<16x128xf32>
    %229 = arith.addf %227, %228 : vector<16x128xf32>
    %230 = math.tanh %229 : vector<16x128xf32>
    %231 = arith.mulf %226, %230 : vector<16x128xf32>
    %232 = arith.truncf %200 : vector<16x128xf32> to vector<16x128xbf16>
    %233 = arith.truncf %231 : vector<16x128xf32> to vector<16x128xbf16>
    %c32_87 = arith.constant 32 : index
    %c0_88 = arith.constant 0 : index
    %234 = vector.load %arg9[%c32_87, %c0_88] : memref<128x256xbf16, #tpu.memory_space<vmem>>, vector<16x128xbf16>
    tpu.vector_store %arg9[%c32_87, %c0_88], %232 {strides = array<i32>} : memref<128x256xbf16, #tpu.memory_space<vmem>>, vector<16x128xbf16>,
    %c80_89 = arith.constant 80 : index
    %c128_90 = arith.constant 128 : index
    %235 = vector.load %arg9[%c80_89, %c128_90] : memref<128x256xbf16, #tpu.memory_space<vmem>>, vector<16x128xbf16>
    tpu.vector_store %arg9[%c80_89, %c128_90], %233 {strides = array<i32>} : memref<128x256xbf16, #tpu.memory_space<vmem>>, vector<16x128xbf16>,
    %236 = tpu.concatenate %232, %233 in 1 : vector<16x128xbf16>, vector<16x128xbf16> -> vector<16x256xbf16>
    %c0_91 = arith.constant 0 : index
    %c0_92 = arith.constant 0 : index
    %237 = vector.load %arg4[%c0_91, %c0_92] : memref<256x1024xbf16, #tpu.memory_space<vmem>>, vector<256x1024xbf16>
    %cst_93 = arith.constant dense<0.000000e+00> : vector<16x1024xf32>
    %238 = tpu.matmul %236, %237, %cst_93 {dimension_numbers = #tpu.dot_dimension_numbers<[1], [0], [0], [1], [0, 0, 1, 1], [], []>} : vector<16x256xbf16>, vector<256x1024xbf16>, vector<16x1024xf32> -> vector<16x1024xf32>
    %c48 = arith.constant 48 : index
    %c0_94 = arith.constant 0 : index
    %239 = vector.load %arg8[%c48, %c0_94] : memref<128x1024xf32, #tpu.memory_space<vmem>>, vector<16x512xf32>
    %240 = vector.extract_strided_slice %238 {offsets = [0, 0], sizes = [16, 512], strides = [1, 1]} : vector<16x1024xf32> to vector<16x512xf32>
    %241 = arith.addf %239, %240 : vector<16x512xf32>
    %c64 = arith.constant 64 : index
    %c512_95 = arith.constant 512 : index
    %242 = vector.load %arg8[%c64, %c512_95] : memref<128x1024xf32, #tpu.memory_space<vmem>>, vector<16x512xf32>
    %243 = vector.extract_strided_slice %238 {offsets = [0, 512], sizes = [16, 512], strides = [1, 1]} : vector<16x1024xf32> to vector<16x512xf32>
    %244 = arith.addf %242, %243 : vector<16x512xf32>
    %245 = vector.extract_strided_slice %241 {offsets = [0, 0], sizes = [16, 128], strides = [1, 1]} : vector<16x512xf32> to vector<16x128xf32>
    %cst_96 = arith.constant 5.000000e-01 : f32
    %246 = vector.broadcast %cst_96 : f32 to vector<16x128xf32>
    %247 = arith.mulf %246, %245 : vector<16x128xf32>
    %248 = math.tanh %247 : vector<16x128xf32>
    %cst_97 = arith.constant 5.000000e-01 : f32
    %249 = vector.broadcast %cst_97 : f32 to vector<16x128xf32>
    %250 = arith.mulf %249, %248 : vector<16x128xf32>
    %cst_98 = arith.constant 5.000000e-01 : f32
    %251 = vector.broadcast %cst_98 : f32 to vector<16x128xf32>
    %252 = arith.addf %250, %251 : vector<16x128xf32>
    %253 = vector.extract_strided_slice %241 {offsets = [0, 128], sizes = [16, 128], strides = [1, 1]} : vector<16x512xf32> to vector<16x128xf32>
    %cst_99 = arith.constant 5.000000e-01 : f32
    %254 = vector.broadcast %cst_99 : f32 to vector<16x128xf32>
    %255 = arith.mulf %254, %253 : vector<16x128xf32>
    %256 = math.tanh %255 : vector<16x128xf32>
    %cst_100 = arith.constant 5.000000e-01 : f32
    %257 = vector.broadcast %cst_100 : f32 to vector<16x128xf32>
    %258 = arith.mulf %257, %256 : vector<16x128xf32>
    %cst_101 = arith.constant 5.000000e-01 : f32
    %259 = vector.broadcast %cst_101 : f32 to vector<16x128xf32>
    %260 = arith.addf %258, %259 : vector<16x128xf32>
    %261 = vector.extract_strided_slice %241 {offsets = [0, 256], sizes = [16, 128], strides = [1, 1]} : vector<16x512xf32> to vector<16x128xf32>
    %262 = math.tanh %261 : vector<16x128xf32>
    %263 = vector.extract_strided_slice %241 {offsets = [0, 384], sizes = [16, 128], strides = [1, 1]} : vector<16x512xf32> to vector<16x128xf32>
    %cst_102 = arith.constant 5.000000e-01 : f32
    %264 = vector.broadcast %cst_102 : f32 to vector<16x128xf32>
    %265 = arith.mulf %264, %263 : vector<16x128xf32>
    %266 = math.tanh %265 : vector<16x128xf32>
    %cst_103 = arith.constant 5.000000e-01 : f32
    %267 = vector.broadcast %cst_103 : f32 to vector<16x128xf32>
    %268 = arith.mulf %267, %266 : vector<16x128xf32>
    %cst_104 = arith.constant 5.000000e-01 : f32
    %269 = vector.broadcast %cst_104 : f32 to vector<16x128xf32>
    %270 = arith.addf %268, %269 : vector<16x128xf32>
    %271 = arith.mulf %260, %198 : vector<16x128xf32>
    %272 = arith.mulf %252, %262 : vector<16x128xf32>
    %273 = arith.addf %271, %272 : vector<16x128xf32>
    %274 = math.tanh %273 : vector<16x128xf32>
    %275 = arith.mulf %270, %274 : vector<16x128xf32>
    %276 = vector.extract_strided_slice %244 {offsets = [0, 0], sizes = [16, 128], strides = [1, 1]} : vector<16x512xf32> to vector<16x128xf32>
    %cst_105 = arith.constant 5.000000e-01 : f32
    %277 = vector.broadcast %cst_105 : f32 to vector<16x128xf32>
    %278 = arith.mulf %277, %276 : vector<16x128xf32>
    %279 = math.tanh %278 : vector<16x128xf32>
    %cst_106 = arith.constant 5.000000e-01 : f32
    %280 = vector.broadcast %cst_106 : f32 to vector<16x128xf32>
    %281 = arith.mulf %280, %279 : vector<16x128xf32>
    %cst_107 = arith.constant 5.000000e-01 : f32
    %282 = vector.broadcast %cst_107 : f32 to vector<16x128xf32>
    %283 = arith.addf %281, %282 : vector<16x128xf32>
    %284 = vector.extract_strided_slice %244 {offsets = [0, 128], sizes = [16, 128], strides = [1, 1]} : vector<16x512xf32> to vector<16x128xf32>
    %cst_108 = arith.constant 5.000000e-01 : f32
    %285 = vector.broadcast %cst_108 : f32 to vector<16x128xf32>
    %286 = arith.mulf %285, %284 : vector<16x128xf32>
    %287 = math.tanh %286 : vector<16x128xf32>
    %cst_109 = arith.constant 5.000000e-01 : f32
    %288 = vector.broadcast %cst_109 : f32 to vector<16x128xf32>
    %289 = arith.mulf %288, %287 : vector<16x128xf32>
    %cst_110 = arith.constant 5.000000e-01 : f32
    %290 = vector.broadcast %cst_110 : f32 to vector<16x128xf32>
    %291 = arith.addf %289, %290 : vector<16x128xf32>
    %292 = vector.extract_strided_slice %244 {offsets = [0, 256], sizes = [16, 128], strides = [1, 1]} : vector<16x512xf32> to vector<16x128xf32>
    %293 = math.tanh %292 : vector<16x128xf32>
    %294 = vector.extract_strided_slice %244 {offsets = [0, 384], sizes = [16, 128], strides = [1, 1]} : vector<16x512xf32> to vector<16x128xf32>
    %cst_111 = arith.constant 5.000000e-01 : f32
    %295 = vector.broadcast %cst_111 : f32 to vector<16x128xf32>
    %296 = arith.mulf %295, %294 : vector<16x128xf32>
    %297 = math.tanh %296 : vector<16x128xf32>
    %cst_112 = arith.constant 5.000000e-01 : f32
    %298 = vector.broadcast %cst_112 : f32 to vector<16x128xf32>
    %299 = arith.mulf %298, %297 : vector<16x128xf32>
    %cst_113 = arith.constant 5.000000e-01 : f32
    %300 = vector.broadcast %cst_113 : f32 to vector<16x128xf32>
    %301 = arith.addf %299, %300 : vector<16x128xf32>
    %302 = arith.mulf %291, %229 : vector<16x128xf32>
    %303 = arith.mulf %283, %293 : vector<16x128xf32>
    %304 = arith.addf %302, %303 : vector<16x128xf32>
    %305 = math.tanh %304 : vector<16x128xf32>
    %306 = arith.mulf %301, %305 : vector<16x128xf32>
    %307 = arith.truncf %275 : vector<16x128xf32> to vector<16x128xbf16>
    %308 = arith.truncf %306 : vector<16x128xf32> to vector<16x128xbf16>
    %c48_114 = arith.constant 48 : index
    %c0_115 = arith.constant 0 : index
    %309 = vector.load %arg9[%c48_114, %c0_115] : memref<128x256xbf16, #tpu.memory_space<vmem>>, vector<16x128xbf16>
    tpu.vector_store %arg9[%c48_114, %c0_115], %307 {strides = array<i32>} : memref<128x256xbf16, #tpu.memory_space<vmem>>, vector<16x128xbf16>,
    %c64_116 = arith.constant 64 : index
    %c128_117 = arith.constant 128 : index
    %310 = vector.load %arg9[%c64_116, %c128_117] : memref<128x256xbf16, #tpu.memory_space<vmem>>, vector<16x128xbf16>
    tpu.vector_store %arg9[%c64_116, %c128_117], %308 {strides = array<i32>} : memref<128x256xbf16, #tpu.memory_space<vmem>>, vector<16x128xbf16>,
    %311 = tpu.concatenate %307, %308 in 1 : vector<16x128xbf16>, vector<16x128xbf16> -> vector<16x256xbf16>
    %c0_118 = arith.constant 0 : index
    %c0_119 = arith.constant 0 : index
    %312 = vector.load %arg4[%c0_118, %c0_119] : memref<256x1024xbf16, #tpu.memory_space<vmem>>, vector<256x1024xbf16>
    %cst_120 = arith.constant dense<0.000000e+00> : vector<16x1024xf32>
    %313 = tpu.matmul %311, %312, %cst_120 {dimension_numbers = #tpu.dot_dimension_numbers<[1], [0], [0], [1], [0, 0, 1, 1], [], []>} : vector<16x256xbf16>, vector<256x1024xbf16>, vector<16x1024xf32> -> vector<16x1024xf32>
    %c64_121 = arith.constant 64 : index
    %c0_122 = arith.constant 0 : index
    %314 = vector.load %arg8[%c64_121, %c0_122] : memref<128x1024xf32, #tpu.memory_space<vmem>>, vector<16x512xf32>
    %315 = vector.extract_strided_slice %313 {offsets = [0, 0], sizes = [16, 512], strides = [1, 1]} : vector<16x1024xf32> to vector<16x512xf32>
    %316 = arith.addf %314, %315 : vector<16x512xf32>
    %c48_123 = arith.constant 48 : index
    %c512_124 = arith.constant 512 : index
    %317 = vector.load %arg8[%c48_123, %c512_124] : memref<128x1024xf32, #tpu.memory_space<vmem>>, vector<16x512xf32>
    %318 = vector.extract_strided_slice %313 {offsets = [0, 512], sizes = [16, 512], strides = [1, 1]} : vector<16x1024xf32> to vector<16x512xf32>
    %319 = arith.addf %317, %318 : vector<16x512xf32>
    %320 = vector.extract_strided_slice %316 {offsets = [0, 0], sizes = [16, 128], strides = [1, 1]} : vector<16x512xf32> to vector<16x128xf32>
    %cst_125 = arith.constant 5.000000e-01 : f32
    %321 = vector.broadcast %cst_125 : f32 to vector<16x128xf32>
    %322 = arith.mulf %321, %320 : vector<16x128xf32>
    %323 = math.tanh %322 : vector<16x128xf32>
    %cst_126 = arith.constant 5.000000e-01 : f32
    %324 = vector.broadcast %cst_126 : f32 to vector<16x128xf32>
    %325 = arith.mulf %324, %323 : vector<16x128xf32>
    %cst_127 = arith.constant 5.000000e-01 : f32
    %326 = vector.broadcast %cst_127 : f32 to vector<16x128xf32>
    %327 = arith.addf %325, %326 : vector<16x128xf32>
    %328 = vector.extract_strided_slice %316 {offsets = [0, 128], sizes = [16, 128], strides = [1, 1]} : vector<16x512xf32> to vector<16x128xf32>
    %cst_128 = arith.constant 5.000000e-01 : f32
    %329 = vector.broadcast %cst_128 : f32 to vector<16x128xf32>
    %330 = arith.mulf %329, %328 : vector<16x128xf32>
    %331 = math.tanh %330 : vector<16x128xf32>
    %cst_129 = arith.constant 5.000000e-01 : f32
    %332 = vector.broadcast %cst_129 : f32 to vector<16x128xf32>
    %333 = arith.mulf %332, %331 : vector<16x128xf32>
    %cst_130 = arith.constant 5.000000e-01 : f32
    %334 = vector.broadcast %cst_130 : f32 to vector<16x128xf32>
    %335 = arith.addf %333, %334 : vector<16x128xf32>
    %336 = vector.extract_strided_slice %316 {offsets = [0, 256], sizes = [16, 128], strides = [1, 1]} : vector<16x512xf32> to vector<16x128xf32>
    %337 = math.tanh %336 : vector<16x128xf32>
    %338 = vector.extract_strided_slice %316 {offsets = [0, 384], sizes = [16, 128], strides = [1, 1]} : vector<16x512xf32> to vector<16x128xf32>
    %cst_131 = arith.constant 5.000000e-01 : f32
    %339 = vector.broadcast %cst_131 : f32 to vector<16x128xf32>
    %340 = arith.mulf %339, %338 : vector<16x128xf32>
    %341 = math.tanh %340 : vector<16x128xf32>
    %cst_132 = arith.constant 5.000000e-01 : f32
    %342 = vector.broadcast %cst_132 : f32 to vector<16x128xf32>
    %343 = arith.mulf %342, %341 : vector<16x128xf32>
    %cst_133 = arith.constant 5.000000e-01 : f32
    %344 = vector.broadcast %cst_133 : f32 to vector<16x128xf32>
    %345 = arith.addf %343, %344 : vector<16x128xf32>
    %346 = arith.mulf %335, %273 : vector<16x128xf32>
    %347 = arith.mulf %327, %337 : vector<16x128xf32>
    %348 = arith.addf %346, %347 : vector<16x128xf32>
    %349 = math.tanh %348 : vector<16x128xf32>
    %350 = arith.mulf %345, %349 : vector<16x128xf32>
    %351 = vector.extract_strided_slice %319 {offsets = [0, 0], sizes = [16, 128], strides = [1, 1]} : vector<16x512xf32> to vector<16x128xf32>
    %cst_134 = arith.constant 5.000000e-01 : f32
    %352 = vector.broadcast %cst_134 : f32 to vector<16x128xf32>
    %353 = arith.mulf %352, %351 : vector<16x128xf32>
    %354 = math.tanh %353 : vector<16x128xf32>
    %cst_135 = arith.constant 5.000000e-01 : f32
    %355 = vector.broadcast %cst_135 : f32 to vector<16x128xf32>
    %356 = arith.mulf %355, %354 : vector<16x128xf32>
    %cst_136 = arith.constant 5.000000e-01 : f32
    %357 = vector.broadcast %cst_136 : f32 to vector<16x128xf32>
    %358 = arith.addf %356, %357 : vector<16x128xf32>
    %359 = vector.extract_strided_slice %319 {offsets = [0, 128], sizes = [16, 128], strides = [1, 1]} : vector<16x512xf32> to vector<16x128xf32>
    %cst_137 = arith.constant 5.000000e-01 : f32
    %360 = vector.broadcast %cst_137 : f32 to vector<16x128xf32>
    %361 = arith.mulf %360, %359 : vector<16x128xf32>
    %362 = math.tanh %361 : vector<16x128xf32>
    %cst_138 = arith.constant 5.000000e-01 : f32
    %363 = vector.broadcast %cst_138 : f32 to vector<16x128xf32>
    %364 = arith.mulf %363, %362 : vector<16x128xf32>
    %cst_139 = arith.constant 5.000000e-01 : f32
    %365 = vector.broadcast %cst_139 : f32 to vector<16x128xf32>
    %366 = arith.addf %364, %365 : vector<16x128xf32>
    %367 = vector.extract_strided_slice %319 {offsets = [0, 256], sizes = [16, 128], strides = [1, 1]} : vector<16x512xf32> to vector<16x128xf32>
    %368 = math.tanh %367 : vector<16x128xf32>
    %369 = vector.extract_strided_slice %319 {offsets = [0, 384], sizes = [16, 128], strides = [1, 1]} : vector<16x512xf32> to vector<16x128xf32>
    %cst_140 = arith.constant 5.000000e-01 : f32
    %370 = vector.broadcast %cst_140 : f32 to vector<16x128xf32>
    %371 = arith.mulf %370, %369 : vector<16x128xf32>
    %372 = math.tanh %371 : vector<16x128xf32>
    %cst_141 = arith.constant 5.000000e-01 : f32
    %373 = vector.broadcast %cst_141 : f32 to vector<16x128xf32>
    %374 = arith.mulf %373, %372 : vector<16x128xf32>
    %cst_142 = arith.constant 5.000000e-01 : f32
    %375 = vector.broadcast %cst_142 : f32 to vector<16x128xf32>
    %376 = arith.addf %374, %375 : vector<16x128xf32>
    %377 = arith.mulf %366, %304 : vector<16x128xf32>
    %378 = arith.mulf %358, %368 : vector<16x128xf32>
    %379 = arith.addf %377, %378 : vector<16x128xf32>
    %380 = math.tanh %379 : vector<16x128xf32>
    %381 = arith.mulf %376, %380 : vector<16x128xf32>
    %382 = arith.truncf %350 : vector<16x128xf32> to vector<16x128xbf16>
    %383 = arith.truncf %381 : vector<16x128xf32> to vector<16x128xbf16>
    %c64_143 = arith.constant 64 : index
    %c0_144 = arith.constant 0 : index
    %384 = vector.load %arg9[%c64_143, %c0_144] : memref<128x256xbf16, #tpu.memory_space<vmem>>, vector<16x128xbf16>
    tpu.vector_store %arg9[%c64_143, %c0_144], %382 {strides = array<i32>} : memref<128x256xbf16, #tpu.memory_space<vmem>>, vector<16x128xbf16>,
    %c48_145 = arith.constant 48 : index
    %c128_146 = arith.constant 128 : index
    %385 = vector.load %arg9[%c48_145, %c128_146] : memref<128x256xbf16, #tpu.memory_space<vmem>>, vector<16x128xbf16>
    tpu.vector_store %arg9[%c48_145, %c128_146], %383 {strides = array<i32>} : memref<128x256xbf16, #tpu.memory_space<vmem>>, vector<16x128xbf16>,
    %386 = tpu.concatenate %382, %383 in 1 : vector<16x128xbf16>, vector<16x128xbf16> -> vector<16x256xbf16>
    %c0_147 = arith.constant 0 : index
    %c0_148 = arith.constant 0 : index
    %387 = vector.load %arg4[%c0_147, %c0_148] : memref<256x1024xbf16, #tpu.memory_space<vmem>>, vector<256x1024xbf16>
    %cst_149 = arith.constant dense<0.000000e+00> : vector<16x1024xf32>
    %388 = tpu.matmul %386, %387, %cst_149 {dimension_numbers = #tpu.dot_dimension_numbers<[1], [0], [0], [1], [0, 0, 1, 1], [], []>} : vector<16x256xbf16>, vector<256x1024xbf16>, vector<16x1024xf32> -> vector<16x1024xf32>
    %c80_150 = arith.constant 80 : index
    %c0_151 = arith.constant 0 : index
    %389 = vector.load %arg8[%c80_150, %c0_151] : memref<128x1024xf32, #tpu.memory_space<vmem>>, vector<16x512xf32>
    %390 = vector.extract_strided_slice %388 {offsets = [0, 0], sizes = [16, 512], strides = [1, 1]} : vector<16x1024xf32> to vector<16x512xf32>
    %391 = arith.addf %389, %390 : vector<16x512xf32>
    %c32_152 = arith.constant 32 : index
    %c512_153 = arith.constant 512 : index
    %392 = vector.load %arg8[%c32_152, %c512_153] : memref<128x1024xf32, #tpu.memory_space<vmem>>, vector<16x512xf32>
    %393 = vector.extract_strided_slice %388 {offsets = [0, 512], sizes = [16, 512], strides = [1, 1]} : vector<16x1024xf32> to vector<16x512xf32>
    %394 = arith.addf %392, %393 : vector<16x512xf32>
    %395 = vector.extract_strided_slice %391 {offsets = [0, 0], sizes = [16, 128], strides = [1, 1]} : vector<16x512xf32> to vector<16x128xf32>
    %cst_154 = arith.constant 5.000000e-01 : f32
    %396 = vector.broadcast %cst_154 : f32 to vector<16x128xf32>
    %397 = arith.mulf %396, %395 : vector<16x128xf32>
    %398 = math.tanh %397 : vector<16x128xf32>
    %cst_155 = arith.constant 5.000000e-01 : f32
    %399 = vector.broadcast %cst_155 : f32 to vector<16x128xf32>
    %400 = arith.mulf %399, %398 : vector<16x128xf32>
    %cst_156 = arith.constant 5.000000e-01 : f32
    %401 = vector.broadcast %cst_156 : f32 to vector<16x128xf32>
    %402 = arith.addf %400, %401 : vector<16x128xf32>
    %403 = vector.extract_strided_slice %391 {offsets = [0, 128], sizes = [16, 128], strides = [1, 1]} : vector<16x512xf32> to vector<16x128xf32>
    %cst_157 = arith.constant 5.000000e-01 : f32
    %404 = vector.broadcast %cst_157 : f32 to vector<16x128xf32>
    %405 = arith.mulf %404, %403 : vector<16x128xf32>
    %406 = math.tanh %405 : vector<16x128xf32>
    %cst_158 = arith.constant 5.000000e-01 : f32
    %407 = vector.broadcast %cst_158 : f32 to vector<16x128xf32>
    %408 = arith.mulf %407, %406 : vector<16x128xf32>
    %cst_159 = arith.constant 5.000000e-01 : f32
    %409 = vector.broadcast %cst_159 : f32 to vector<16x128xf32>
    %410 = arith.addf %408, %409 : vector<16x128xf32>
    %411 = vector.extract_strided_slice %391 {offsets = [0, 256], sizes = [16, 128], strides = [1, 1]} : vector<16x512xf32> to vector<16x128xf32>
    %412 = math.tanh %411 : vector<16x128xf32>
    %413 = vector.extract_strided_slice %391 {offsets = [0, 384], sizes = [16, 128], strides = [1, 1]} : vector<16x512xf32> to vector<16x128xf32>
    %cst_160 = arith.constant 5.000000e-01 : f32
    %414 = vector.broadcast %cst_160 : f32 to vector<16x128xf32>
    %415 = arith.mulf %414, %413 : vector<16x128xf32>
    %416 = math.tanh %415 : vector<16x128xf32>
    %cst_161 = arith.constant 5.000000e-01 : f32
    %417 = vector.broadcast %cst_161 : f32 to vector<16x128xf32>
    %418 = arith.mulf %417, %416 : vector<16x128xf32>
    %cst_162 = arith.constant 5.000000e-01 : f32
    %419 = vector.broadcast %cst_162 : f32 to vector<16x128xf32>
    %420 = arith.addf %418, %419 : vector<16x128xf32>
    %421 = arith.mulf %410, %348 : vector<16x128xf32>
    %422 = arith.mulf %402, %412 : vector<16x128xf32>
    %423 = arith.addf %421, %422 : vector<16x128xf32>
    %424 = math.tanh %423 : vector<16x128xf32>
    %425 = arith.mulf %420, %424 : vector<16x128xf32>
    %426 = vector.extract_strided_slice %394 {offsets = [0, 0], sizes = [16, 128], strides = [1, 1]} : vector<16x512xf32> to vector<16x128xf32>
    %cst_163 = arith.constant 5.000000e-01 : f32
    %427 = vector.broadcast %cst_163 : f32 to vector<16x128xf32>
    %428 = arith.mulf %427, %426 : vector<16x128xf32>
    %429 = math.tanh %428 : vector<16x128xf32>
    %cst_164 = arith.constant 5.000000e-01 : f32
    %430 = vector.broadcast %cst_164 : f32 to vector<16x128xf32>
    %431 = arith.mulf %430, %429 : vector<16x128xf32>
    %cst_165 = arith.constant 5.000000e-01 : f32
    %432 = vector.broadcast %cst_165 : f32 to vector<16x128xf32>
    %433 = arith.addf %431, %432 : vector<16x128xf32>
    %434 = vector.extract_strided_slice %394 {offsets = [0, 128], sizes = [16, 128], strides = [1, 1]} : vector<16x512xf32> to vector<16x128xf32>
    %cst_166 = arith.constant 5.000000e-01 : f32
    %435 = vector.broadcast %cst_166 : f32 to vector<16x128xf32>
    %436 = arith.mulf %435, %434 : vector<16x128xf32>
    %437 = math.tanh %436 : vector<16x128xf32>
    %cst_167 = arith.constant 5.000000e-01 : f32
    %438 = vector.broadcast %cst_167 : f32 to vector<16x128xf32>
    %439 = arith.mulf %438, %437 : vector<16x128xf32>
    %cst_168 = arith.constant 5.000000e-01 : f32
    %440 = vector.broadcast %cst_168 : f32 to vector<16x128xf32>
    %441 = arith.addf %439, %440 : vector<16x128xf32>
    %442 = vector.extract_strided_slice %394 {offsets = [0, 256], sizes = [16, 128], strides = [1, 1]} : vector<16x512xf32> to vector<16x128xf32>
    %443 = math.tanh %442 : vector<16x128xf32>
    %444 = vector.extract_strided_slice %394 {offsets = [0, 384], sizes = [16, 128], strides = [1, 1]} : vector<16x512xf32> to vector<16x128xf32>
    %cst_169 = arith.constant 5.000000e-01 : f32
    %445 = vector.broadcast %cst_169 : f32 to vector<16x128xf32>
    %446 = arith.mulf %445, %444 : vector<16x128xf32>
    %447 = math.tanh %446 : vector<16x128xf32>
    %cst_170 = arith.constant 5.000000e-01 : f32
    %448 = vector.broadcast %cst_170 : f32 to vector<16x128xf32>
    %449 = arith.mulf %448, %447 : vector<16x128xf32>
    %cst_171 = arith.constant 5.000000e-01 : f32
    %450 = vector.broadcast %cst_171 : f32 to vector<16x128xf32>
    %451 = arith.addf %449, %450 : vector<16x128xf32>
    %452 = arith.mulf %441, %379 : vector<16x128xf32>
    %453 = arith.mulf %433, %443 : vector<16x128xf32>
    %454 = arith.addf %452, %453 : vector<16x128xf32>
    %455 = math.tanh %454 : vector<16x128xf32>
    %456 = arith.mulf %451, %455 : vector<16x128xf32>
    %457 = arith.truncf %425 : vector<16x128xf32> to vector<16x128xbf16>
    %458 = arith.truncf %456 : vector<16x128xf32> to vector<16x128xbf16>
    %c80_172 = arith.constant 80 : index
    %c0_173 = arith.constant 0 : index
    %459 = vector.load %arg9[%c80_172, %c0_173] : memref<128x256xbf16, #tpu.memory_space<vmem>>, vector<16x128xbf16>
    tpu.vector_store %arg9[%c80_172, %c0_173], %457 {strides = array<i32>} : memref<128x256xbf16, #tpu.memory_space<vmem>>, vector<16x128xbf16>,
    %c32_174 = arith.constant 32 : index
    %c128_175 = arith.constant 128 : index
    %460 = vector.load %arg9[%c32_174, %c128_175] : memref<128x256xbf16, #tpu.memory_space<vmem>>, vector<16x128xbf16>
    tpu.vector_store %arg9[%c32_174, %c128_175], %458 {strides = array<i32>} : memref<128x256xbf16, #tpu.memory_space<vmem>>, vector<16x128xbf16>,
    %461 = tpu.concatenate %457, %458 in 1 : vector<16x128xbf16>, vector<16x128xbf16> -> vector<16x256xbf16>
    %c0_176 = arith.constant 0 : index
    %c0_177 = arith.constant 0 : index
    %462 = vector.load %arg4[%c0_176, %c0_177] : memref<256x1024xbf16, #tpu.memory_space<vmem>>, vector<256x1024xbf16>
    %cst_178 = arith.constant dense<0.000000e+00> : vector<16x1024xf32>
    %463 = tpu.matmul %461, %462, %cst_178 {dimension_numbers = #tpu.dot_dimension_numbers<[1], [0], [0], [1], [0, 0, 1, 1], [], []>} : vector<16x256xbf16>, vector<256x1024xbf16>, vector<16x1024xf32> -> vector<16x1024xf32>
    %c96_179 = arith.constant 96 : index
    %c0_180 = arith.constant 0 : index
    %464 = vector.load %arg8[%c96_179, %c0_180] : memref<128x1024xf32, #tpu.memory_space<vmem>>, vector<16x512xf32>
    %465 = vector.extract_strided_slice %463 {offsets = [0, 0], sizes = [16, 512], strides = [1, 1]} : vector<16x1024xf32> to vector<16x512xf32>
    %466 = arith.addf %464, %465 : vector<16x512xf32>
    %c16_181 = arith.constant 16 : index
    %c512_182 = arith.constant 512 : index
    %467 = vector.load %arg8[%c16_181, %c512_182] : memref<128x1024xf32, #tpu.memory_space<vmem>>, vector<16x512xf32>
    %468 = vector.extract_strided_slice %463 {offsets = [0, 512], sizes = [16, 512], strides = [1, 1]} : vector<16x1024xf32> to vector<16x512xf32>
    %469 = arith.addf %467, %468 : vector<16x512xf32>
    %470 = vector.extract_strided_slice %466 {offsets = [0, 0], sizes = [16, 128], strides = [1, 1]} : vector<16x512xf32> to vector<16x128xf32>
    %cst_183 = arith.constant 5.000000e-01 : f32
    %471 = vector.broadcast %cst_183 : f32 to vector<16x128xf32>
    %472 = arith.mulf %471, %470 : vector<16x128xf32>
    %473 = math.tanh %472 : vector<16x128xf32>
    %cst_184 = arith.constant 5.000000e-01 : f32
    %474 = vector.broadcast %cst_184 : f32 to vector<16x128xf32>
    %475 = arith.mulf %474, %473 : vector<16x128xf32>
    %cst_185 = arith.constant 5.000000e-01 : f32
    %476 = vector.broadcast %cst_185 : f32 to vector<16x128xf32>
    %477 = arith.addf %475, %476 : vector<16x128xf32>
    %478 = vector.extract_strided_slice %466 {offsets = [0, 128], sizes = [16, 128], strides = [1, 1]} : vector<16x512xf32> to vector<16x128xf32>
    %cst_186 = arith.constant 5.000000e-01 : f32
    %479 = vector.broadcast %cst_186 : f32 to vector<16x128xf32>
    %480 = arith.mulf %479, %478 : vector<16x128xf32>
    %481 = math.tanh %480 : vector<16x128xf32>
    %cst_187 = arith.constant 5.000000e-01 : f32
    %482 = vector.broadcast %cst_187 : f32 to vector<16x128xf32>
    %483 = arith.mulf %482, %481 : vector<16x128xf32>
    %cst_188 = arith.constant 5.000000e-01 : f32
    %484 = vector.broadcast %cst_188 : f32 to vector<16x128xf32>
    %485 = arith.addf %483, %484 : vector<16x128xf32>
    %486 = vector.extract_strided_slice %466 {offsets = [0, 256], sizes = [16, 128], strides = [1, 1]} : vector<16x512xf32> to vector<16x128xf32>
    %487 = math.tanh %486 : vector<16x128xf32>
    %488 = vector.extract_strided_slice %466 {offsets = [0, 384], sizes = [16, 128], strides = [1, 1]} : vector<16x512xf32> to vector<16x128xf32>
    %cst_189 = arith.constant 5.000000e-01 : f32
    %489 = vector.broadcast %cst_189 : f32 to vector<16x128xf32>
    %490 = arith.mulf %489, %488 : vector<16x128xf32>
    %491 = math.tanh %490 : vector<16x128xf32>
    %cst_190 = arith.constant 5.000000e-01 : f32
    %492 = vector.broadcast %cst_190 : f32 to vector<16x128xf32>
    %493 = arith.mulf %492, %491 : vector<16x128xf32>
    %cst_191 = arith.constant 5.000000e-01 : f32
    %494 = vector.broadcast %cst_191 : f32 to vector<16x128xf32>
    %495 = arith.addf %493, %494 : vector<16x128xf32>
    %496 = arith.mulf %485, %423 : vector<16x128xf32>
    %497 = arith.mulf %477, %487 : vector<16x128xf32>
    %498 = arith.addf %496, %497 : vector<16x128xf32>
    %499 = math.tanh %498 : vector<16x128xf32>
    %500 = arith.mulf %495, %499 : vector<16x128xf32>
    %501 = vector.extract_strided_slice %469 {offsets = [0, 0], sizes = [16, 128], strides = [1, 1]} : vector<16x512xf32> to vector<16x128xf32>
    %cst_192 = arith.constant 5.000000e-01 : f32
    %502 = vector.broadcast %cst_192 : f32 to vector<16x128xf32>
    %503 = arith.mulf %502, %501 : vector<16x128xf32>
    %504 = math.tanh %503 : vector<16x128xf32>
    %cst_193 = arith.constant 5.000000e-01 : f32
    %505 = vector.broadcast %cst_193 : f32 to vector<16x128xf32>
    %506 = arith.mulf %505, %504 : vector<16x128xf32>
    %cst_194 = arith.constant 5.000000e-01 : f32
    %507 = vector.broadcast %cst_194 : f32 to vector<16x128xf32>
    %508 = arith.addf %506, %507 : vector<16x128xf32>
    %509 = vector.extract_strided_slice %469 {offsets = [0, 128], sizes = [16, 128], strides = [1, 1]} : vector<16x512xf32> to vector<16x128xf32>
    %cst_195 = arith.constant 5.000000e-01 : f32
    %510 = vector.broadcast %cst_195 : f32 to vector<16x128xf32>
    %511 = arith.mulf %510, %509 : vector<16x128xf32>
    %512 = math.tanh %511 : vector<16x128xf32>
    %cst_196 = arith.constant 5.000000e-01 : f32
    %513 = vector.broadcast %cst_196 : f32 to vector<16x128xf32>
    %514 = arith.mulf %513, %512 : vector<16x128xf32>
    %cst_197 = arith.constant 5.000000e-01 : f32
    %515 = vector.broadcast %cst_197 : f32 to vector<16x128xf32>
    %516 = arith.addf %514, %515 : vector<16x128xf32>
    %517 = vector.extract_strided_slice %469 {offsets = [0, 256], sizes = [16, 128], strides = [1, 1]} : vector<16x512xf32> to vector<16x128xf32>
    %518 = math.tanh %517 : vector<16x128xf32>
    %519 = vector.extract_strided_slice %469 {offsets = [0, 384], sizes = [16, 128], strides = [1, 1]} : vector<16x512xf32> to vector<16x128xf32>
    %cst_198 = arith.constant 5.000000e-01 : f32
    %520 = vector.broadcast %cst_198 : f32 to vector<16x128xf32>
    %521 = arith.mulf %520, %519 : vector<16x128xf32>
    %522 = math.tanh %521 : vector<16x128xf32>
    %cst_199 = arith.constant 5.000000e-01 : f32
    %523 = vector.broadcast %cst_199 : f32 to vector<16x128xf32>
    %524 = arith.mulf %523, %522 : vector<16x128xf32>
    %cst_200 = arith.constant 5.000000e-01 : f32
    %525 = vector.broadcast %cst_200 : f32 to vector<16x128xf32>
    %526 = arith.addf %524, %525 : vector<16x128xf32>
    %527 = arith.mulf %516, %454 : vector<16x128xf32>
    %528 = arith.mulf %508, %518 : vector<16x128xf32>
    %529 = arith.addf %527, %528 : vector<16x128xf32>
    %530 = math.tanh %529 : vector<16x128xf32>
    %531 = arith.mulf %526, %530 : vector<16x128xf32>
    %532 = arith.truncf %500 : vector<16x128xf32> to vector<16x128xbf16>
    %533 = arith.truncf %531 : vector<16x128xf32> to vector<16x128xbf16>
    %c96_201 = arith.constant 96 : index
    %c0_202 = arith.constant 0 : index
    %534 = vector.load %arg9[%c96_201, %c0_202] : memref<128x256xbf16, #tpu.memory_space<vmem>>, vector<16x128xbf16>
    tpu.vector_store %arg9[%c96_201, %c0_202], %532 {strides = array<i32>} : memref<128x256xbf16, #tpu.memory_space<vmem>>, vector<16x128xbf16>,
    %c16_203 = arith.constant 16 : index
    %c128_204 = arith.constant 128 : index
    %535 = vector.load %arg9[%c16_203, %c128_204] : memref<128x256xbf16, #tpu.memory_space<vmem>>, vector<16x128xbf16>
    tpu.vector_store %arg9[%c16_203, %c128_204], %533 {strides = array<i32>} : memref<128x256xbf16, #tpu.memory_space<vmem>>, vector<16x128xbf16>,
    %536 = tpu.concatenate %532, %533 in 1 : vector<16x128xbf16>, vector<16x128xbf16> -> vector<16x256xbf16>
    %c0_205 = arith.constant 0 : index
    %c0_206 = arith.constant 0 : index
    %537 = vector.load %arg4[%c0_205, %c0_206] : memref<256x1024xbf16, #tpu.memory_space<vmem>>, vector<256x1024xbf16>
    %cst_207 = arith.constant dense<0.000000e+00> : vector<16x1024xf32>
    %538 = tpu.matmul %536, %537, %cst_207 {dimension_numbers = #tpu.dot_dimension_numbers<[1], [0], [0], [1], [0, 0, 1, 1], [], []>} : vector<16x256xbf16>, vector<256x1024xbf16>, vector<16x1024xf32> -> vector<16x1024xf32>
    %c112_208 = arith.constant 112 : index
    %c0_209 = arith.constant 0 : index
    %539 = vector.load %arg8[%c112_208, %c0_209] : memref<128x1024xf32, #tpu.memory_space<vmem>>, vector<16x512xf32>
    %540 = vector.extract_strided_slice %538 {offsets = [0, 0], sizes = [16, 512], strides = [1, 1]} : vector<16x1024xf32> to vector<16x512xf32>
    %541 = arith.addf %539, %540 : vector<16x512xf32>
    %c0_210 = arith.constant 0 : index
    %c512_211 = arith.constant 512 : index
    %542 = vector.load %arg8[%c0_210, %c512_211] : memref<128x1024xf32, #tpu.memory_space<vmem>>, vector<16x512xf32>
    %543 = vector.extract_strided_slice %538 {offsets = [0, 512], sizes = [16, 512], strides = [1, 1]} : vector<16x1024xf32> to vector<16x512xf32>
    %544 = arith.addf %542, %543 : vector<16x512xf32>
    %545 = vector.extract_strided_slice %541 {offsets = [0, 0], sizes = [16, 128], strides = [1, 1]} : vector<16x512xf32> to vector<16x128xf32>
    %cst_212 = arith.constant 5.000000e-01 : f32
    %546 = vector.broadcast %cst_212 : f32 to vector<16x128xf32>
    %547 = arith.mulf %546, %545 : vector<16x128xf32>
    %548 = math.tanh %547 : vector<16x128xf32>
    %cst_213 = arith.constant 5.000000e-01 : f32
    %549 = vector.broadcast %cst_213 : f32 to vector<16x128xf32>
    %550 = arith.mulf %549, %548 : vector<16x128xf32>
    %cst_214 = arith.constant 5.000000e-01 : f32
    %551 = vector.broadcast %cst_214 : f32 to vector<16x128xf32>
    %552 = arith.addf %550, %551 : vector<16x128xf32>
    %553 = vector.extract_strided_slice %541 {offsets = [0, 128], sizes = [16, 128], strides = [1, 1]} : vector<16x512xf32> to vector<16x128xf32>
    %cst_215 = arith.constant 5.000000e-01 : f32
    %554 = vector.broadcast %cst_215 : f32 to vector<16x128xf32>
    %555 = arith.mulf %554, %553 : vector<16x128xf32>
    %556 = math.tanh %555 : vector<16x128xf32>
    %cst_216 = arith.constant 5.000000e-01 : f32
    %557 = vector.broadcast %cst_216 : f32 to vector<16x128xf32>
    %558 = arith.mulf %557, %556 : vector<16x128xf32>
    %cst_217 = arith.constant 5.000000e-01 : f32
    %559 = vector.broadcast %cst_217 : f32 to vector<16x128xf32>
    %560 = arith.addf %558, %559 : vector<16x128xf32>
    %561 = vector.extract_strided_slice %541 {offsets = [0, 256], sizes = [16, 128], strides = [1, 1]} : vector<16x512xf32> to vector<16x128xf32>
    %562 = math.tanh %561 : vector<16x128xf32>
    %563 = vector.extract_strided_slice %541 {offsets = [0, 384], sizes = [16, 128], strides = [1, 1]} : vector<16x512xf32> to vector<16x128xf32>
    %cst_218 = arith.constant 5.000000e-01 : f32
    %564 = vector.broadcast %cst_218 : f32 to vector<16x128xf32>
    %565 = arith.mulf %564, %563 : vector<16x128xf32>
    %566 = math.tanh %565 : vector<16x128xf32>
    %cst_219 = arith.constant 5.000000e-01 : f32
    %567 = vector.broadcast %cst_219 : f32 to vector<16x128xf32>
    %568 = arith.mulf %567, %566 : vector<16x128xf32>
    %cst_220 = arith.constant 5.000000e-01 : f32
    %569 = vector.broadcast %cst_220 : f32 to vector<16x128xf32>
    %570 = arith.addf %568, %569 : vector<16x128xf32>
    %571 = arith.mulf %560, %498 : vector<16x128xf32>
    %572 = arith.mulf %552, %562 : vector<16x128xf32>
    %573 = arith.addf %571, %572 : vector<16x128xf32>
    %574 = math.tanh %573 : vector<16x128xf32>
    %575 = arith.mulf %570, %574 : vector<16x128xf32>
    %576 = vector.extract_strided_slice %544 {offsets = [0, 0], sizes = [16, 128], strides = [1, 1]} : vector<16x512xf32> to vector<16x128xf32>
    %cst_221 = arith.constant 5.000000e-01 : f32
    %577 = vector.broadcast %cst_221 : f32 to vector<16x128xf32>
    %578 = arith.mulf %577, %576 : vector<16x128xf32>
    %579 = math.tanh %578 : vector<16x128xf32>
    %cst_222 = arith.constant 5.000000e-01 : f32
    %580 = vector.broadcast %cst_222 : f32 to vector<16x128xf32>
    %581 = arith.mulf %580, %579 : vector<16x128xf32>
    %cst_223 = arith.constant 5.000000e-01 : f32
    %582 = vector.broadcast %cst_223 : f32 to vector<16x128xf32>
    %583 = arith.addf %581, %582 : vector<16x128xf32>
    %584 = vector.extract_strided_slice %544 {offsets = [0, 128], sizes = [16, 128], strides = [1, 1]} : vector<16x512xf32> to vector<16x128xf32>
    %cst_224 = arith.constant 5.000000e-01 : f32
    %585 = vector.broadcast %cst_224 : f32 to vector<16x128xf32>
    %586 = arith.mulf %585, %584 : vector<16x128xf32>
    %587 = math.tanh %586 : vector<16x128xf32>
    %cst_225 = arith.constant 5.000000e-01 : f32
    %588 = vector.broadcast %cst_225 : f32 to vector<16x128xf32>
    %589 = arith.mulf %588, %587 : vector<16x128xf32>
    %cst_226 = arith.constant 5.000000e-01 : f32
    %590 = vector.broadcast %cst_226 : f32 to vector<16x128xf32>
    %591 = arith.addf %589, %590 : vector<16x128xf32>
    %592 = vector.extract_strided_slice %544 {offsets = [0, 256], sizes = [16, 128], strides = [1, 1]} : vector<16x512xf32> to vector<16x128xf32>
    %593 = math.tanh %592 : vector<16x128xf32>
    %594 = vector.extract_strided_slice %544 {offsets = [0, 384], sizes = [16, 128], strides = [1, 1]} : vector<16x512xf32> to vector<16x128xf32>
    %cst_227 = arith.constant 5.000000e-01 : f32
    %595 = vector.broadcast %cst_227 : f32 to vector<16x128xf32>
    %596 = arith.mulf %595, %594 : vector<16x128xf32>
    %597 = math.tanh %596 : vector<16x128xf32>
    %cst_228 = arith.constant 5.000000e-01 : f32
    %598 = vector.broadcast %cst_228 : f32 to vector<16x128xf32>
    %599 = arith.mulf %598, %597 : vector<16x128xf32>
    %cst_229 = arith.constant 5.000000e-01 : f32
    %600 = vector.broadcast %cst_229 : f32 to vector<16x128xf32>
    %601 = arith.addf %599, %600 : vector<16x128xf32>
    %602 = arith.mulf %591, %529 : vector<16x128xf32>
    %603 = arith.mulf %583, %593 : vector<16x128xf32>
    %604 = arith.addf %602, %603 : vector<16x128xf32>
    %605 = math.tanh %604 : vector<16x128xf32>
    %606 = arith.mulf %601, %605 : vector<16x128xf32>
    %607 = arith.truncf %575 : vector<16x128xf32> to vector<16x128xbf16>
    %608 = arith.truncf %606 : vector<16x128xf32> to vector<16x128xbf16>
    %c112_230 = arith.constant 112 : index
    %c0_231 = arith.constant 0 : index
    %609 = vector.load %arg9[%c112_230, %c0_231] : memref<128x256xbf16, #tpu.memory_space<vmem>>, vector<16x128xbf16>
    tpu.vector_store %arg9[%c112_230, %c0_231], %607 {strides = array<i32>} : memref<128x256xbf16, #tpu.memory_space<vmem>>, vector<16x128xbf16>,
    %c0_232 = arith.constant 0 : index
    %c128_233 = arith.constant 128 : index
    %610 = vector.load %arg9[%c0_232, %c128_233] : memref<128x256xbf16, #tpu.memory_space<vmem>>, vector<16x128xbf16>
    tpu.vector_store %arg9[%c0_232, %c128_233], %608 {strides = array<i32>} : memref<128x256xbf16, #tpu.memory_space<vmem>>, vector<16x128xbf16>,
    %c0_234 = arith.constant 0 : index
    %c0_235 = arith.constant 0 : index
    %611 = vector.load %arg9[%c0_234, %c0_235] : memref<128x256xbf16, #tpu.memory_space<vmem>>, vector<128x256xbf16>
    %c0_236 = arith.constant 0 : index
    %c0_237 = arith.constant 0 : index
    %612 = vector.load %arg5[%c0_236, %c0_237] : memref<256x128xbf16, #tpu.memory_space<vmem>>, vector<256x128xbf16>
    %cst_238 = arith.constant dense<0.000000e+00> : vector<128x128xf32>
    %613 = tpu.matmul %611, %612, %cst_238 {dimension_numbers = #tpu.dot_dimension_numbers<[1], [0], [0], [1], [0, 0, 1, 1], [], []>} : vector<128x256xbf16>, vector<256x128xbf16>, vector<128x128xf32> -> vector<128x128xf32>
    %c0_239 = arith.constant 0 : index
    %c0_240 = arith.constant 0 : index
    %614 = vector.load %arg6[%c0_239, %c0_240] : memref<1x128xf32, #tpu.memory_space<vmem>>, vector<1x128xf32>
    %615 = vector.broadcast %614 : vector<1x128xf32> to vector<128x128xf32>
    %616 = arith.addf %613, %615 : vector<128x128xf32>
    %c0_241 = arith.constant 0 : index
    %c0_242 = arith.constant 0 : index
    %617 = vector.load %arg7[%c0_241, %c0_242] : memref<128x128xf32, #tpu.memory_space<vmem>>, vector<128x128xf32>
    tpu.vector_store %arg7[%c0_241, %c0_242], %616 {strides = array<i32>} : memref<128x128xf32, #tpu.memory_space<vmem>>, vector<128x128xf32>,
    return
  }
  func.func @transform_0(%arg0: i32) -> (i32, i32) {
    %c0_i32 = arith.constant 0 : i32
    %c0_i32_0 = arith.constant 0 : i32
    %c0_i32_1 = arith.constant 0 : i32
    return %c0_i32, %c0_i32_0 : i32, i32
  }
  func.func @transform_1(%arg0: i32) -> (i32, i32) {
    %c0_i32 = arith.constant 0 : i32
    %c0_i32_0 = arith.constant 0 : i32
    %c0_i32_1 = arith.constant 0 : i32
    return %c0_i32, %c0_i32_0 : i32, i32
  }
  func.func @transform_2(%arg0: i32) -> (i32, i32) {
    %c0_i32 = arith.constant 0 : i32
    %c0_i32_0 = arith.constant 0 : i32
    %c0_i32_1 = arith.constant 0 : i32
    return %c0_i32, %c0_i32_0 : i32, i32
  }
  func.func @transform_3(%arg0: i32) -> (i32, i32) {
    %c0_i32 = arith.constant 0 : i32
    %c0_i32_0 = arith.constant 0 : i32
    %c0_i32_1 = arith.constant 0 : i32
    return %c0_i32, %c0_i32_0 : i32, i32
  }
  func.func @transform_4(%arg0: i32) -> (i32, i32) {
    %c0_i32 = arith.constant 0 : i32
    %c0_i32_0 = arith.constant 0 : i32
    %c0_i32_1 = arith.constant 0 : i32
    return %c0_i32, %c0_i32_0 : i32, i32
  }
  func.func @transform_5(%arg0: i32) -> (i32, i32) {
    %c0_i32 = arith.constant 0 : i32
    %c0_i32_0 = arith.constant 0 : i32
    %c0_i32_1 = arith.constant 0 : i32
    return %c0_i32, %c0_i32_0 : i32, i32
  }
  func.func @transform_6(%arg0: i32) -> (i32, i32) {
    %c0_i32 = arith.constant 0 : i32
    %c0_i32_0 = arith.constant 0 : i32
    %c0_i32_1 = arith.constant 0 : i32
    return %c0_i32, %c0_i32_0 : i32, i32
  }
}

</mosaic_0001>

<llo_original>
// kernel: bidirectional_forward.1
$region0: #{bidirectional_forward.1}
  #allocation0 [shape = 'u32[]', space=smem, size = 0x4, offset = 0x4, fixed_abs, tag = 'smem constant byte address 0x4 - core index']
  #allocation1 [shape = 'u32[144,128]{1,0:T(1,128)}', space=vmem, size = 0x12000, scoped, tag = 'internal scratch']
  #allocation2 [shape = 'f32[128,1024]{1,0:T(8,128)}', space=vmem, size = 0x80000, scoped, tag = 'scratch operand']
  #allocation3 [shape = 'bf16[128,256]{1,0:T(16,128)(2,1)}', space=vmem, size = 0x10000, scoped, tag = 'scratch operand']
  %s0 = inlined_call_operand.vmem [shape: bf16[128,128], index: 0, kind: input, shape index: {}]
  %s1 = inlined_call_operand.hbm [shape: bf16[128,1024], index: 1, kind: input, shape index: {}]
  %s2 = inlined_call_operand.vmem [shape: f32[1,1024], index: 2, kind: input, shape index: {}]
  %s3 = inlined_call_operand.hbm [shape: bf16[256,1024], index: 3, kind: input, shape index: {}]
  %s4 = inlined_call_operand.vmem [shape: bf16[256,128], index: 4, kind: input, shape index: {}]
  %s5 = inlined_call_operand.vmem [shape: f32[1,128], index: 5, kind: input, shape index: {}]
  %s6 = inlined_call_operand.hbm [shape: f32[128,128], index: 6, kind: output, shape index: {}]
  %s7 = sld [smem:[#allocation0]]
  $region42: #{bidirectional_forward.1} parent=0
    _
  %s9 = ssub.s32 1, %s7
  %s10 = scalar_select 0, %s9, %s7
  $region1: #{bidirectional_forward.1} parent=0
    #allocation4 [shape = 'u8[262144]{0}', space=vmem, size = 0x40000, scoped, tag = 'input window, operand 1, single buffered']
    #allocation5 [shape = 's32[1]{0}', space=sflag, size = 0x4, scoped, tag = 'scoped memory for bidirectional_forward.1']
    #allocation6 [shape = 's32[1]{0}', space=sflag, size = 0x4, scoped, tag = 'scoped memory for bidirectional_forward.1']
    #allocation7 [shape = 'u8[524288]{0}', space=vmem, size = 0x80000, scoped, tag = 'input window, operand 3, single buffered']
    #allocation8 [shape = 's32[1]{0}', space=sflag, size = 0x4, scoped, tag = 'scoped memory for bidirectional_forward.1']
    #allocation9 [shape = 'u8[65536]{0}', space=vmem, size = 0x10000, scoped, tag = 'output window, operand 0, single buffered']
    %11 = vsyncpa [#allocation5], 0
    %12 = vsyncpa [#allocation8], 0
    %13 = vsyncpa [#allocation6], 0
    // Predicated region
    $region2: #{bidirectional_forward.1} parent=1 // pred_check
      _
    $region3: #{bidirectional_forward.1} parent=1 // pred_check_branch
      %15 = sbr.rel (0) target = $region5
    $region4: #{bidirectional_forward.1} parent=1 // pred_region
      _
    $region5: #{bidirectional_forward.1} parent=1 // pred_fallthru
      _
    // Predicated region
    $region6: #{bidirectional_forward.1} parent=1 // pred_check
      _
    $region7: #{bidirectional_forward.1} parent=1 // pred_check_branch
      %17 = sbr.rel (0) target = $region9
    $region8: #{bidirectional_forward.1} parent=1 // pred_region
      %s19 = ssub.s32 8192, 8192
      %20 = vsyncadd [#allocation5], %s19
      %s21 = sshll.u32 [#allocation4], 4
      %s22 = int_to_ptr.vmem [resolvable:$true] %s21
      %27 = dma.hbm_to_vmem [thread:$0]  %s1, 8192, %s22, [#allocation5], 512, 512, 32
    $region9: #{bidirectional_forward.1} parent=1 // pred_fallthru
      _
    // Predicated region
    $region10: #{bidirectional_forward.1} parent=1 // pred_check
      _
    $region11: #{bidirectional_forward.1} parent=1 // pred_check_branch
      %29 = sbr.rel (0) target = $region13
    $region12: #{bidirectional_forward.1} parent=1 // pred_region
      _
    $region13: #{bidirectional_forward.1} parent=1 // pred_fallthru
      _
    // Predicated region
    $region14: #{bidirectional_forward.1} parent=1 // pred_check
      _
    $region15: #{bidirectional_forward.1} parent=1 // pred_check_branch
      %31 = sbr.rel (0) target = $region17
    $region16: #{bidirectional_forward.1} parent=1 // pred_region
      %s33 = ssub.s32 16384, 16384
      %34 = vsyncadd [#allocation8], %s33
      %s35 = sshll.u32 [#allocation7], 4
      %s36 = int_to_ptr.vmem [resolvable:$true] %s35
      %41 = dma.hbm_to_vmem [thread:$0]  %s3, 16384, %s36, [#allocation8], 512, 512, 32
    $region17: #{bidirectional_forward.1} parent=1 // pred_fallthru
      _
    // Predicated region
    $region18: #{bidirectional_forward.1} parent=1 // pred_check
      _
    $region19: #{bidirectional_forward.1} parent=1 // pred_check_branch
      %43 = sbr.rel (0) target = $region21
    $region20: #{bidirectional_forward.1} parent=1 // pred_region
      _
    $region21: #{bidirectional_forward.1} parent=1 // pred_fallthru
      _
    // Predicated region
    $region22: #{bidirectional_forward.1} parent=1 // pred_check
      _
    $region23: #{bidirectional_forward.1} parent=1 // pred_check_branch
      %45 = sbr.rel (0) target = $region25
    $region24: #{bidirectional_forward.1} parent=1 // pred_region
      _
    $region25: #{bidirectional_forward.1} parent=1 // pred_fallthru
      _
    // Predicated region
    $region26: #{bidirectional_forward.1} parent=1 // pred_check
      _
    $region27: #{bidirectional_forward.1} parent=1 // pred_check_branch
      %47 = sbr.rel (0) target = $region29
    $region28: #{bidirectional_forward.1} parent=1 // pred_region
      %48 = dma.done [#allocation5], 8192
    $region29: #{bidirectional_forward.1} parent=1 // pred_fallthru
      _
    // Predicated region
    $region30: #{bidirectional_forward.1} parent=1 // pred_check
      _
    $region31: #{bidirectional_forward.1} parent=1 // pred_check_branch
      %50 = sbr.rel (0) target = $region33
    $region32: #{bidirectional_forward.1} parent=1 // pred_region
      %51 = dma.done [#allocation8], 16384
    $region33: #{bidirectional_forward.1} parent=1 // pred_fallthru
      _
    %v53 = vld [vmem:[%s0] sm:$0xf]
    %v54 = vld [vmem:[%s0 + $0x4] sm:$0xf]
    %v55 = vld [vmem:[%s0 + $0x8] sm:$0xf]
    %v56 = vld [vmem:[%s0 + $0xc] sm:$0xf]
    %v57 = vld [vmem:[%s0 + $0x10] sm:$0xf]
    %v58 = vld [vmem:[%s0 + $0x14] sm:$0xf]
    %v59 = vld [vmem:[%s0 + $0x18] sm:$0xf]
    %v60 = vld [vmem:[%s0 + $0x1c] sm:$0xf]
    %v61 = vld [vmem:[%s0 + $0x20] sm:$0xf]
    %v62 = vld [vmem:[%s0 + $0x24] sm:$0xf]
    %v63 = vld [vmem:[%s0 + $0x28] sm:$0xf]
    %v64 = vld [vmem:[%s0 + $0x2c] sm:$0xf]
    %v65 = vld [vmem:[%s0 + $0x30] sm:$0xf]
    %v66 = vld [vmem:[%s0 + $0x34] sm:$0xf]
    %v67 = vld [vmem:[%s0 + $0x38] sm:$0xf]
    %v68 = vld [vmem:[%s0 + $0x3c] sm:$0xf]
    %v69 = vld [vmem:[#allocation4] sm:$0xff]
    %v70 = vld [vmem:[#allocation4 + $0x8] sm:$0xff]
    %v71 = vld [vmem:[#allocation4 + $0x10] sm:$0xff]
    %v72 = vld [vmem:[#allocation4 + $0x18] sm:$0xff]
    %v73 = vld [vmem:[#allocation4 + $0x20] sm:$0xff]
    %v74 = vld [vmem:[#allocation4 + $0x28] sm:$0xff]
    %v75 = vld [vmem:[#allocation4 + $0x30] sm:$0xff]
    %v76 = vld [vmem:[#allocation4 + $0x38] sm:$0xff]
    %v77 = vld [vmem:[#allocation4 + $0x40] sm:$0xff]
    %v78 = vld [vmem:[#allocation4 + $0x48] sm:$0xff]
    %v79 = vld [vmem:[#allocation4 + $0x50] sm:$0xff]
    %v80 = vld [vmem:[#allocation4 + $0x58] sm:$0xff]
    %v81 = vld [vmem:[#allocation4 + $0x60] sm:$0xff]
    %v82 = vld [vmem:[#allocation4 + $0x68] sm:$0xff]
    %v83 = vld [vmem:[#allocation4 + $0x70] sm:$0xff]
    %v84 = vld [vmem:[#allocation4 + $0x78] sm:$0xff]
    %v85 = vld [vmem:[#allocation4 + $0x80] sm:$0xff]
    %v86 = vld [vmem:[#allocation4 + $0x88] sm:$0xff]
    %v87 = vld [vmem:[#allocation4 + $0x90] sm:$0xff]
    %v88 = vld [vmem:[#allocation4 + $0x98] sm:$0xff]
    %v89 = vld [vmem:[#allocation4 + $0xa0] sm:$0xff]
    %v90 = vld [vmem:[#allocation4 + $0xa8] sm:$0xff]
    %v91 = vld [vmem:[#allocation4 + $0xb0] sm:$0xff]
    %v92 = vld [vmem:[#allocation4 + $0xb8] sm:$0xff]
    %v93 = vld [vmem:[#allocation4 + $0xc0] sm:$0xff]
    %v94 = vld [vmem:[#allocation4 + $0xc8] sm:$0xff]
    %v95 = vld [vmem:[#allocation4 + $0xd0] sm:$0xff]
    %v96 = vld [vmem:[#allocation4 + $0xd8] sm:$0xff]
    %v97 = vld [vmem:[#allocation4 + $0xe0] sm:$0xff]
    %v98 = vld [vmem:[#allocation4 + $0xe8] sm:$0xff]
    %v99 = vld [vmem:[#allocation4 + $0xf0] sm:$0xff]
    %v100 = vld [vmem:[#allocation4 + $0xf8] sm:$0xff]
    %v101 = vld [vmem:[#allocation4 + $0x100] sm:$0xff]
    %v102 = vld [vmem:[#allocation4 + $0x108] sm:$0xff]
    %v103 = vld [vmem:[#allocation4 + $0x110] sm:$0xff]
    %v104 = vld [vmem:[#allocation4 + $0x118] sm:$0xff]
    %v105 = vld [vmem:[#allocation4 + $0x120] sm:$0xff]
    %v106 = vld [vmem:[#allocation4 + $0x128] sm:$0xff]
    %v107 = vld [vmem:[#allocation4 + $0x130] sm:$0xff]
    %v108 = vld [vmem:[#allocation4 + $0x138] sm:$0xff]
    %v109 = vld [vmem:[#allocation4 + $0x140] sm:$0xff]
    %v110 = vld [vmem:[#allocation4 + $0x148] sm:$0xff]
    %v111 = vld [vmem:[#allocation4 + $0x150] sm:$0xff]
    %v112 = vld [vmem:[#allocation4 + $0x158] sm:$0xff]
    %v113 = vld [vmem:[#allocation4 + $0x160] sm:$0xff]
    %v114 = vld [vmem:[#allocation4 + $0x168] sm:$0xff]
    %v115 = vld [vmem:[#allocation4 + $0x170] sm:$0xff]
    %v116 = vld [vmem:[#allocation4 + $0x178] sm:$0xff]
    %v117 = vld [vmem:[#allocation4 + $0x180] sm:$0xff]
    %v118 = vld [vmem:[#allocation4 + $0x188] sm:$0xff]
    %v119 = vld [vmem:[#allocation4 + $0x190] sm:$0xff]
    %v120 = vld [vmem:[#allocation4 + $0x198] sm:$0xff]
    %v121 = vld [vmem:[#allocation4 + $0x1a0] sm:$0xff]
    %v122 = vld [vmem:[#allocation4 + $0x1a8] sm:$0xff]
    %v123 = vld [vmem:[#allocation4 + $0x1b0] sm:$0xff]
    %v124 = vld [vmem:[#allocation4 + $0x1b8] sm:$0xff]
    %v125 = vld [vmem:[#allocation4 + $0x1c0] sm:$0xff]
    %v126 = vld [vmem:[#allocation4 + $0x1c8] sm:$0xff]
    %v127 = vld [vmem:[#allocation4 + $0x1d0] sm:$0xff]
    %v128 = vld [vmem:[#allocation4 + $0x1d8] sm:$0xff]
    %v129 = vld [vmem:[#allocation4 + $0x1e0] sm:$0xff]
    %v130 = vld [vmem:[#allocation4 + $0x1e8] sm:$0xff]
    %v131 = vld [vmem:[#allocation4 + $0x1f0] sm:$0xff]
    %v132 = vld [vmem:[#allocation4 + $0x1f8] sm:$0xff]
    %v133 = vld [vmem:[%s2] sm:$0xff]
    %v135 = vlaneseq
    %v136 = vshrl.u32 %v135, 7
    %v137 = vsub.s32 0, %v136
    %v138 = vrot.slane %v133, %v137
    %v139 = vlaneseq
    %v140 = vshrl.u32 %v139, 7
    %v141 = vsub.s32 1, %v140
    %v142 = vrot.slane %v133, %v141
    %v143 = vlaneseq
    %v144 = vshrl.u32 %v143, 7
    %v145 = vsub.s32 2, %v144
    %v146 = vrot.slane %v133, %v145
    %v147 = vlaneseq
    %v148 = vshrl.u32 %v147, 7
    %v149 = vsub.s32 3, %v148
    %v150 = vrot.slane %v133, %v149
    %v151 = vlaneseq
    %v152 = vshrl.u32 %v151, 7
    %v153 = vsub.s32 4, %v152
    %v154 = vrot.slane %v133, %v153
    %v155 = vlaneseq
    %v156 = vshrl.u32 %v155, 7
    %v157 = vsub.s32 5, %v156
    %v158 = vrot.slane %v133, %v157
    %v159 = vlaneseq
    %v160 = vshrl.u32 %v159, 7
    %v161 = vsub.s32 6, %v160
    %v162 = vrot.slane %v133, %v161
    %v163 = vlaneseq
    %v164 = vshrl.u32 %v163, 7
    %v165 = vsub.s32 7, %v164
    %v166 = vrot.slane %v133, %v165
    %v191 = vunpack.c.l.b16 %v53
    %v192 = vunpack.c.l.b16 %v54
    %v193 = vunpack.c.l.b16 %v55
    %v194 = vunpack.c.l.b16 %v56
    %v195 = vunpack.c.l.b16 %v57
    %v196 = vunpack.c.l.b16 %v58
    %v197 = vunpack.c.l.b16 %v59
    %v198 = vunpack.c.l.b16 %v60
    %v199 = vunpack.c.l.b16 %v61
    %v200 = vunpack.c.l.b16 %v62
    %v201 = vunpack.c.l.b16 %v63
    %v202 = vunpack.c.l.b16 %v64
    %v203 = vunpack.c.l.b16 %v65
    %v204 = vunpack.c.l.b16 %v66
    %v205 = vunpack.c.l.b16 %v67
    %v206 = vunpack.c.l.b16 %v68
    %v207 = vpack.c.b16 %v192, %v191
    %v208 = vpack.c.b16 %v194, %v193
    %v209 = vpack.c.b16 %v196, %v195
    %v210 = vpack.c.b16 %v198, %v197
    %v211 = vpack.c.b16 %v200, %v199
    %v212 = vpack.c.b16 %v202, %v201
    %v213 = vpack.c.b16 %v204, %v203
    %v214 = vpack.c.b16 %v206, %v205
    %v287 = vunpack.c.l.b16 %v69
    %v288 = vunpack.c.h.b16 %v69
    %v289 = vunpack.c.l.b16 %v70
    %v290 = vunpack.c.h.b16 %v70
    %v291 = vunpack.c.l.b16 %v71
    %v292 = vunpack.c.h.b16 %v71
    %v293 = vunpack.c.l.b16 %v72
    %v294 = vunpack.c.h.b16 %v72
    %v295 = vunpack.c.l.b16 %v73
    %v296 = vunpack.c.h.b16 %v73
    %v297 = vunpack.c.l.b16 %v74
    %v298 = vunpack.c.h.b16 %v74
    %v299 = vunpack.c.l.b16 %v75
    %v300 = vunpack.c.h.b16 %v75
    %v301 = vunpack.c.l.b16 %v76
    %v302 = vunpack.c.h.b16 %v76
    %v303 = vunpack.c.l.b16 %v77
    %v304 = vunpack.c.h.b16 %v77
    %v305 = vunpack.c.l.b16 %v78
    %v306 = vunpack.c.h.b16 %v78
    %v307 = vunpack.c.l.b16 %v79
    %v308 = vunpack.c.h.b16 %v79
    %v309 = vunpack.c.l.b16 %v80
    %v310 = vunpack.c.h.b16 %v80
    %v311 = vunpack.c.l.b16 %v81
    %v312 = vunpack.c.h.b16 %v81
    %v313 = vunpack.c.l.b16 %v82
    %v314 = vunpack.c.h.b16 %v82
    %v315 = vunpack.c.l.b16 %v83
    %v316 = vunpack.c.h.b16 %v83
    %v317 = vunpack.c.l.b16 %v84
    %v318 = vunpack.c.h.b16 %v84
    %v319 = vunpack.c.l.b16 %v85
    %v320 = vunpack.c.h.b16 %v85
    %v321 = vunpack.c.l.b16 %v86
    %v322 = vunpack.c.h.b16 %v86
    %v323 = vunpack.c.l.b16 %v87
    %v324 = vunpack.c.h.b16 %v87
    %v325 = vunpack.c.l.b16 %v88
    %v326 = vunpack.c.h.b16 %v88
    %v327 = vunpack.c.l.b16 %v89
    %v328 = vunpack.c.h.b16 %v89
    %v329 = vunpack.c.l.b16 %v90
    %v330 = vunpack.c.h.b16 %v90
    %v331 = vunpack.c.l.b16 %v91
    %v332 = vunpack.c.h.b16 %v91
    %v333 = vunpack.c.l.b16 %v92
    %v334 = vunpack.c.h.b16 %v92
    %v335 = vunpack.c.l.b16 %v93
    %v336 = vunpack.c.h.b16 %v93
    %v337 = vunpack.c.l.b16 %v94
    %v338 = vunpack.c.h.b16 %v94
    %v339 = vunpack.c.l.b16 %v95
    %v340 = vunpack.c.h.b16 %v95
    %v341 = vunpack.c.l.b16 %v96
    %v342 = vunpack.c.h.b16 %v96
    %v343 = vunpack.c.l.b16 %v97
    %v344 = vunpack.c.h.b16 %v97
    %v345 = vunpack.c.l.b16 %v98
    %v346 = vunpack.c.h.b16 %v98
    %v347 = vunpack.c.l.b16 %v99
    %v348 = vunpack.c.h.b16 %v99
    %v349 = vunpack.c.l.b16 %v100
    %v350 = vunpack.c.h.b16 %v100
    %v351 = vunpack.c.l.b16 %v101
    %v352 = vunpack.c.h.b16 %v101
    %v353 = vunpack.c.l.b16 %v102
    %v354 = vunpack.c.h.b16 %v102
    %v355 = vunpack.c.l.b16 %v103
    %v356 = vunpack.c.h.b16 %v103
    %v357 = vunpack.c.l.b16 %v104
    %v358 = vunpack.c.h.b16 %v104
    %v359 = vunpack.c.l.b16 %v105
    %v360 = vunpack.c.h.b16 %v105
    %v361 = vunpack.c.l.b16 %v106
    %v362 = vunpack.c.h.b16 %v106
    %v363 = vunpack.c.l.b16 %v107
    %v364 = vunpack.c.h.b16 %v107
    %v365 = vunpack.c.l.b16 %v108
    %v366 = vunpack.c.h.b16 %v108
    %v367 = vunpack.c.l.b16 %v109
    %v368 = vunpack.c.h.b16 %v109
    %v369 = vunpack.c.l.b16 %v110
    %v370 = vunpack.c.h.b16 %v110
    %v371 = vunpack.c.l.b16 %v111
    %v372 = vunpack.c.h.b16 %v111
    %v373 = vunpack.c.l.b16 %v112
    %v374 = vunpack.c.h.b16 %v112
    %v375 = vunpack.c.l.b16 %v113
    %v376 = vunpack.c.h.b16 %v113
    %v377 = vunpack.c.l.b16 %v114
    %v378 = vunpack.c.h.b16 %v114
    %v379 = vunpack.c.l.b16 %v115
    %v380 = vunpack.c.h.b16 %v115
    %v381 = vunpack.c.l.b16 %v116
    %v382 = vunpack.c.h.b16 %v116
    %v383 = vunpack.c.l.b16 %v117
    %v384 = vunpack.c.h.b16 %v117
    %v385 = vunpack.c.l.b16 %v118
    %v386 = vunpack.c.h.b16 %v118
    %v387 = vunpack.c.l.b16 %v119
    %v388 = vunpack.c.h.b16 %v119
    %v389 = vunpack.c.l.b16 %v120
    %v390 = vunpack.c.h.b16 %v120
    %v391 = vunpack.c.l.b16 %v121
    %v392 = vunpack.c.h.b16 %v121
    %v393 = vunpack.c.l.b16 %v122
    %v394 = vunpack.c.h.b16 %v122
    %v395 = vunpack.c.l.b16 %v123
    %v396 = vunpack.c.h.b16 %v123
    %v397 = vunpack.c.l.b16 %v124
    %v398 = vunpack.c.h.b16 %v124
    %v399 = vunpack.c.l.b16 %v125
    %v400 = vunpack.c.h.b16 %v125
    %v401 = vunpack.c.l.b16 %v126
    %v402 = vunpack.c.h.b16 %v126
    %v403 = vunpack.c.l.b16 %v127
    %v404 = vunpack.c.h.b16 %v127
    %v405 = vunpack.c.l.b16 %v128
    %v406 = vunpack.c.h.b16 %v128
    %v407 = vunpack.c.l.b16 %v129
    %v408 = vunpack.c.h.b16 %v129
    %v409 = vunpack.c.l.b16 %v130
    %v410 = vunpack.c.h.b16 %v130
    %v411 = vunpack.c.l.b16 %v131
    %v412 = vunpack.c.h.b16 %v131
    %v413 = vunpack.c.l.b16 %v132
    %v414 = vunpack.c.h.b16 %v132
    %v415 = vpack.c.b16 %v295, %v287
    %v416 = vpack.c.b16 %v296, %v288
    %v417 = vpack.c.b16 %v297, %v289
    %v418 = vpack.c.b16 %v298, %v290
    %v419 = vpack.c.b16 %v299, %v291
    %v420 = vpack.c.b16 %v300, %v292
    %v421 = vpack.c.b16 %v301, %v293
    %v422 = vpack.c.b16 %v302, %v294
    %v423 = vpack.c.b16 %v311, %v303
    %v424 = vpack.c.b16 %v312, %v304
    %v425 = vpack.c.b16 %v313, %v305
    %v426 = vpack.c.b16 %v314, %v306
    %v427 = vpack.c.b16 %v315, %v307
    %v428 = vpack.c.b16 %v316, %v308
    %v429 = vpack.c.b16 %v317, %v309
    %v430 = vpack.c.b16 %v318, %v310
    %v431 = vpack.c.b16 %v327, %v319
    %v432 = vpack.c.b16 %v328, %v320
    %v433 = vpack.c.b16 %v329, %v321
    %v434 = vpack.c.b16 %v330, %v322
    %v435 = vpack.c.b16 %v331, %v323
    %v436 = vpack.c.b16 %v332, %v324
    %v437 = vpack.c.b16 %v333, %v325
    %v438 = vpack.c.b16 %v334, %v326
    %v439 = vpack.c.b16 %v343, %v335
    %v440 = vpack.c.b16 %v344, %v336
    %v441 = vpack.c.b16 %v345, %v337
    %v442 = vpack.c.b16 %v346, %v338
    %v443 = vpack.c.b16 %v347, %v339
    %v444 = vpack.c.b16 %v348, %v340
    %v445 = vpack.c.b16 %v349, %v341
    %v446 = vpack.c.b16 %v350, %v342
    %v447 = vpack.c.b16 %v359, %v351
    %v448 = vpack.c.b16 %v360, %v352
    %v449 = vpack.c.b16 %v361, %v353
    %v450 = vpack.c.b16 %v362, %v354
    %v451 = vpack.c.b16 %v363, %v355
    %v452 = vpack.c.b16 %v364, %v356
    %v453 = vpack.c.b16 %v365, %v357
    %v454 = vpack.c.b16 %v366, %v358
    %v455 = vpack.c.b16 %v375, %v367
    %v456 = vpack.c.b16 %v376, %v368
    %v457 = vpack.c.b16 %v377, %v369
    %v458 = vpack.c.b16 %v378, %v370
    %v459 = vpack.c.b16 %v379, %v371
    %v460 = vpack.c.b16 %v380, %v372
    %v461 = vpack.c.b16 %v381, %v373
    %v462 = vpack.c.b16 %v382, %v374
    %v463 = vpack.c.b16 %v391, %v383
    %v464 = vpack.c.b16 %v392, %v384
    %v465 = vpack.c.b16 %v393, %v385
    %v466 = vpack.c.b16 %v394, %v386
    %v467 = vpack.c.b16 %v395, %v387
    %v468 = vpack.c.b16 %v396, %v388
    %v469 = vpack.c.b16 %v397, %v389
    %v470 = vpack.c.b16 %v398, %v390
    %v471 = vpack.c.b16 %v407, %v399
    %v472 = vpack.c.b16 %v408, %v400
    %v473 = vpack.c.b16 %v409, %v401
    %v474 = vpack.c.b16 %v410, %v402
    %v475 = vpack.c.b16 %v411, %v403
    %v476 = vpack.c.b16 %v412, %v404
    %v477 = vpack.c.b16 %v413, %v405
    %v478 = vpack.c.b16 %v414, %v406
    %543 = vmatprep.subr.bf16.mxu0 %v416
    %544 = vmatpush1.bf16.msra.mxu0 %v415
    %545 = vmatprep.subr.bf16.mxu0 %v424
    %546 = vmatpush1.bf16.msra.mxu0 %v423
    %547 = vmatprep.subr.bf16.mxu0 %v432
    %548 = vmatpush1.bf16.msra.mxu0 %v431
    %549 = vmatprep.subr.bf16.mxu0 %v440
    %550 = vmatpush1.bf16.msra.mxu0 %v439
    %551 = vmatprep.subr.bf16.mxu0 %v448
    %552 = vmatpush1.bf16.msra.mxu0 %v447
    %553 = vmatprep.subr.bf16.mxu0 %v456
    %554 = vmatpush1.bf16.msra.mxu0 %v455
    %555 = vmatprep.subr.bf16.mxu0 %v464
    %556 = vmatpush1.bf16.msra.mxu0 %v463
    %557 = vmatprep.subr.bf16.mxu0 %v472
    %558 = vmatpush1.bf16.msra.mxu0 %v471
    %559 = vmatprep.subr.bf16.mxu0 0
    %560 = vmatpush1.bf16.msra.mxu0 0
    %561 = vmatprep.subr.bf16.mxu0 0
    %562 = vmatpush1.bf16.msra.mxu0 0
    %563 = vmatprep.subr.bf16.mxu0 0
    %564 = vmatpush1.bf16.msra.mxu0 0
    %565 = vmatprep.subr.bf16.mxu0 0
    %566 = vmatpush1.bf16.msra.mxu0 0
    %567 = vmatprep.subr.bf16.mxu0 0
    %568 = vmatpush1.bf16.msra.mxu0 0
    %569 = vmatprep.subr.bf16.mxu0 0
    %570 = vmatpush1.bf16.msra.mxu0 0
    %571 = vmatprep.subr.bf16.mxu0 0
    %572 = vmatpush1.bf16.msra.mxu0 0
    %573 = vmatprep.subr.bf16.mxu0 0
    %574 = vmatpush1.bf16.msra.mxu0 0
    %575 = vmatprep.mubr.bf16.mxu0 0
    %576 = vmatmul.mubr.bf16.gmra.mrb[0].mxu0 %v207
    %v577 = vpop.f32.mrb[0].mxu0
    %v578 = vadd.f32 %v138, %v577
    %v579 = vpop.f32.mrb[0].mxu0
    %v580 = vadd.f32 %v142, %v579
    %v581 = vpop.f32.mrb[0].mxu0
    %v582 = vadd.f32 %v138, %v581
    %v583 = vpop.f32.mrb[0].mxu0
    %v584 = vadd.f32 %v142, %v583
    %585 = vmatprep.mubr.bf16.mxu0 0
    %586 = vmatmul.mubr.bf16.gmra.mrb[0].mxu0 %v208
    %v587 = vpop.f32.mrb[0].mxu0
    %v588 = vadd.f32 %v138, %v587
    %v589 = vpop.f32.mrb[0].mxu0
    %v590 = vadd.f32 %v142, %v589
    %v591 = vpop.f32.mrb[0].mxu0
    %v592 = vadd.f32 %v138, %v591
    %v593 = vpop.f32.mrb[0].mxu0
    %v594 = vadd.f32 %v142, %v593
    %595 = vmatprep.mubr.bf16.mxu0 0
    %596 = vmatmul.mubr.bf16.gmra.mrb[0].mxu0 %v209
    %v597 = vpop.f32.mrb[0].mxu0
    %v598 = vadd.f32 %v138, %v597
    %v599 = vpop.f32.mrb[0].mxu0
    %v600 = vadd.f32 %v142, %v599
    %v601 = vpop.f32.mrb[0].mxu0
    %v602 = vadd.f32 %v138, %v601
    %v603 = vpop.f32.mrb[0].mxu0
    %v604 = vadd.f32 %v142, %v603
    %605 = vmatprep.mubr.bf16.mxu0 0
    %606 = vmatmul.mubr.bf16.gmra.mrb[0].mxu0 %v210
    %v607 = vpop.f32.mrb[0].mxu0
    %v608 = vadd.f32 %v138, %v607
    %v609 = vpop.f32.mrb[0].mxu0
    %v610 = vadd.f32 %v142, %v609
    %v611 = vpop.f32.mrb[0].mxu0
    %v612 = vadd.f32 %v138, %v611
    %v613 = vpop.f32.mrb[0].mxu0
    %v614 = vadd.f32 %v142, %v613
    %615 = vmatprep.mubr.bf16.mxu0 0
    %616 = vmatmul.mubr.bf16.gmra.mrb[0].mxu0 %v211
    %v617 = vpop.f32.mrb[0].mxu0
    %v618 = vadd.f32 %v138, %v617
    %v619 = vpop.f32.mrb[0].mxu0
    %v620 = vadd.f32 %v142, %v619
    %v621 = vpop.f32.mrb[0].mxu0
    %v622 = vadd.f32 %v138, %v621
    %v623 = vpop.f32.mrb[0].mxu0
    %v624 = vadd.f32 %v142, %v623
    %625 = vmatprep.mubr.bf16.mxu0 0
    %626 = vmatmul.mubr.bf16.gmra.mrb[0].mxu0 %v212
    %v627 = vpop.f32.mrb[0].mxu0
    %v628 = vadd.f32 %v138, %v627
    %v629 = vpop.f32.mrb[0].mxu0
    %v630 = vadd.f32 %v142, %v629
    %v631 = vpop.f32.mrb[0].mxu0
    %v632 = vadd.f32 %v138, %v631
    %v633 = vpop.f32.mrb[0].mxu0
    %v634 = vadd.f32 %v142, %v633
    %635 = vmatprep.mubr.bf16.mxu0 0
    %636 = vmatmul.mubr.bf16.gmra.mrb[0].mxu0 %v213
    %v637 = vpop.f32.mrb[0].mxu0
    %v638 = vadd.f32 %v138, %v637
    %v639 = vpop.f32.mrb[0].mxu0
    %v640 = vadd.f32 %v142, %v639
    %v641 = vpop.f32.mrb[0].mxu0
    %v642 = vadd.f32 %v138, %v641
    %v643 = vpop.f32.mrb[0].mxu0
    %v644 = vadd.f32 %v142, %v643
    %645 = vmatprep.mubr.bf16.mxu0 0
    %646 = vmatmul.mubr.bf16.gmra.mrb[0].mxu0 %v214
    %v647 = vpop.f32.mrb[0].mxu0
    %v648 = vadd.f32 %v138, %v647
    %v649 = vpop.f32.mrb[0].mxu0
    %v650 = vadd.f32 %v142, %v649
    %v651 = vpop.f32.mrb[0].mxu0
    %v652 = vadd.f32 %v138, %v651
    %v653 = vpop.f32.mrb[0].mxu0
    %v654 = vadd.f32 %v142, %v653
    %655 = vdwg.mxu0
    %656 = vmatprep.subr.bf16.mxu0 %v418
    %657 = vmatpush1.bf16.msra.mxu0 %v417
    %658 = vmatprep.subr.bf16.mxu0 %v426
    %659 = vmatpush1.bf16.msra.mxu0 %v425
    %660 = vmatprep.subr.bf16.mxu0 %v434
    %661 = vmatpush1.bf16.msra.mxu0 %v433
    %662 = vmatprep.subr.bf16.mxu0 %v442
    %663 = vmatpush1.bf16.msra.mxu0 %v441
    %664 = vmatprep.subr.bf16.mxu0 %v450
    %665 = vmatpush1.bf16.msra.mxu0 %v449
    %666 = vmatprep.subr.bf16.mxu0 %v458
    %667 = vmatpush1.bf16.msra.mxu0 %v457
    %668 = vmatprep.subr.bf16.mxu0 %v466
    %669 = vmatpush1.bf16.msra.mxu0 %v465
    %670 = vmatprep.subr.bf16.mxu0 %v474
    %671 = vmatpush1.bf16.msra.mxu0 %v473
    %672 = vmatprep.subr.bf16.mxu0 0
    %673 = vmatpush1.bf16.msra.mxu0 0
    %674 = vmatprep.subr.bf16.mxu0 0
    %675 = vmatpush1.bf16.msra.mxu0 0
    %676 = vmatprep.subr.bf16.mxu0 0
    %677 = vmatpush1.bf16.msra.mxu0 0
    %678 = vmatprep.subr.bf16.mxu0 0
    %679 = vmatpush1.bf16.msra.mxu0 0
    %680 = vmatprep.subr.bf16.mxu0 0
    %681 = vmatpush1.bf16.msra.mxu0 0
    %682 = vmatprep.subr.bf16.mxu0 0
    %683 = vmatpush1.bf16.msra.mxu0 0
    %684 = vmatprep.subr.bf16.mxu0 0
    %685 = vmatpush1.bf16.msra.mxu0 0
    %686 = vmatprep.subr.bf16.mxu0 0
    %687 = vmatpush1.bf16.msra.mxu0 0
    %688 = vmatprep.mubr.bf16.mxu0 0
    %689 = vmatmul.mubr.bf16.gmra.mrb[0].mxu0 %v207
    %v690 = vpop.f32.mrb[0].mxu0
    %v691 = vadd.f32 %v146, %v690
    %v692 = vpop.f32.mrb[0].mxu0
    %v693 = vadd.f32 %v150, %v692
    %v694 = vpop.f32.mrb[0].mxu0
    %v695 = vadd.f32 %v146, %v694
    %v696 = vpop.f32.mrb[0].mxu0
    %v697 = vadd.f32 %v150, %v696
    %698 = vmatprep.mubr.bf16.mxu0 0
    %699 = vmatmul.mubr.bf16.gmra.mrb[0].mxu0 %v208
    %v700 = vpop.f32.mrb[0].mxu0
    %v701 = vadd.f32 %v146, %v700
    %v702 = vpop.f32.mrb[0].mxu0
    %v703 = vadd.f32 %v150, %v702
    %v704 = vpop.f32.mrb[0].mxu0
    %v705 = vadd.f32 %v146, %v704
    %v706 = vpop.f32.mrb[0].mxu0
    %v707 = vadd.f32 %v150, %v706
    %708 = vmatprep.mubr.bf16.mxu0 0
    %709 = vmatmul.mubr.bf16.gmra.mrb[0].mxu0 %v209
    %v710 = vpop.f32.mrb[0].mxu0
    %v711 = vadd.f32 %v146, %v710
    %v712 = vpop.f32.mrb[0].mxu0
    %v713 = vadd.f32 %v150, %v712
    %v714 = vpop.f32.mrb[0].mxu0
    %v715 = vadd.f32 %v146, %v714
    %v716 = vpop.f32.mrb[0].mxu0
    %v717 = vadd.f32 %v150, %v716
    %718 = vmatprep.mubr.bf16.mxu0 0
    %719 = vmatmul.mubr.bf16.gmra.mrb[0].mxu0 %v210
    %v720 = vpop.f32.mrb[0].mxu0
    %v721 = vadd.f32 %v146, %v720
    %v722 = vpop.f32.mrb[0].mxu0
    %v723 = vadd.f32 %v150, %v722
    %v724 = vpop.f32.mrb[0].mxu0
    %v725 = vadd.f32 %v146, %v724
    %v726 = vpop.f32.mrb[0].mxu0
    %v727 = vadd.f32 %v150, %v726
    %728 = vmatprep.mubr.bf16.mxu0 0
    %729 = vmatmul.mubr.bf16.gmra.mrb[0].mxu0 %v211
    %v730 = vpop.f32.mrb[0].mxu0
    %v731 = vadd.f32 %v146, %v730
    %v732 = vpop.f32.mrb[0].mxu0
    %v733 = vadd.f32 %v150, %v732
    %v734 = vpop.f32.mrb[0].mxu0
    %v735 = vadd.f32 %v146, %v734
    %v736 = vpop.f32.mrb[0].mxu0
    %v737 = vadd.f32 %v150, %v736
    %738 = vmatprep.mubr.bf16.mxu0 0
    %739 = vmatmul.mubr.bf16.gmra.mrb[0].mxu0 %v212
    %v740 = vpop.f32.mrb[0].mxu0
    %v741 = vadd.f32 %v146, %v740
    %v742 = vpop.f32.mrb[0].mxu0
    %v743 = vadd.f32 %v150, %v742
    %v744 = vpop.f32.mrb[0].mxu0
    %v745 = vadd.f32 %v146, %v744
    %v746 = vpop.f32.mrb[0].mxu0
    %v747 = vadd.f32 %v150, %v746
    %748 = vmatprep.mubr.bf16.mxu0 0
    %749 = vmatmul.mubr.bf16.gmra.mrb[0].mxu0 %v213
    %v750 = vpop.f32.mrb[0].mxu0
    %v751 = vadd.f32 %v146, %v750
    %v752 = vpop.f32.mrb[0].mxu0
    %v753 = vadd.f32 %v150, %v752
    %v754 = vpop.f32.mrb[0].mxu0
    %v755 = vadd.f32 %v146, %v754
    %v756 = vpop.f32.mrb[0].mxu0
    %v757 = vadd.f32 %v150, %v756
    %758 = vmatprep.mubr.bf16.mxu0 0
    %759 = vmatmul.mubr.bf16.gmra.mrb[0].mxu0 %v214
    %v760 = vpop.f32.mrb[0].mxu0
    %v761 = vadd.f32 %v146, %v760
    %v762 = vpop.f32.mrb[0].mxu0
    %v763 = vadd.f32 %v150, %v762
    %v764 = vpop.f32.mrb[0].mxu0
    %v765 = vadd.f32 %v146, %v764
    %v766 = vpop.f32.mrb[0].mxu0
    %v767 = vadd.f32 %v150, %v766
    %768 = vdwg.mxu0
    %769 = vmatprep.subr.bf16.mxu0 %v420
    %770 = vmatpush1.bf16.msra.mxu0 %v419
    %771 = vmatprep.subr.bf16.mxu0 %v428
    %772 = vmatpush1.bf16.msra.mxu0 %v427
    %773 = vmatprep.subr.bf16.mxu0 %v436
    %774 = vmatpush1.bf16.msra.mxu0 %v435
    %775 = vmatprep.subr.bf16.mxu0 %v444
    %776 = vmatpush1.bf16.msra.mxu0 %v443
    %777 = vmatprep.subr.bf16.mxu0 %v452
    %778 = vmatpush1.bf16.msra.mxu0 %v451
    %779 = vmatprep.subr.bf16.mxu0 %v460
    %780 = vmatpush1.bf16.msra.mxu0 %v459
    %781 = vmatprep.subr.bf16.mxu0 %v468
    %782 = vmatpush1.bf16.msra.mxu0 %v467
    %783 = vmatprep.subr.bf16.mxu0 %v476
    %784 = vmatpush1.bf16.msra.mxu0 %v475
    %785 = vmatprep.subr.bf16.mxu0 0
    %786 = vmatpush1.bf16.msra.mxu0 0
    %787 = vmatprep.subr.bf16.mxu0 0
    %788 = vmatpush1.bf16.msra.mxu0 0
    %789 = vmatprep.subr.bf16.mxu0 0
    %790 = vmatpush1.bf16.msra.mxu0 0
    %791 = vmatprep.subr.bf16.mxu0 0
    %792 = vmatpush1.bf16.msra.mxu0 0
    %793 = vmatprep.subr.bf16.mxu0 0
    %794 = vmatpush1.bf16.msra.mxu0 0
    %795 = vmatprep.subr.bf16.mxu0 0
    %796 = vmatpush1.bf16.msra.mxu0 0
    %797 = vmatprep.subr.bf16.mxu0 0
    %798 = vmatpush1.bf16.msra.mxu0 0
    %799 = vmatprep.subr.bf16.mxu0 0
    %800 = vmatpush1.bf16.msra.mxu0 0
    %801 = vmatprep.mubr.bf16.mxu0 0
    %802 = vmatmul.mubr.bf16.gmra.mrb[0].mxu0 %v207
    %v803 = vpop.f32.mrb[0].mxu0
    %v804 = vadd.f32 %v154, %v803
    %v805 = vpop.f32.mrb[0].mxu0
    %v806 = vadd.f32 %v158, %v805
    %v807 = vpop.f32.mrb[0].mxu0
    %v808 = vadd.f32 %v154, %v807
    %v809 = vpop.f32.mrb[0].mxu0
    %v810 = vadd.f32 %v158, %v809
    %811 = vmatprep.mubr.bf16.mxu0 0
    %812 = vmatmul.mubr.bf16.gmra.mrb[0].mxu0 %v208
    %v813 = vpop.f32.mrb[0].mxu0
    %v814 = vadd.f32 %v154, %v813
    %v815 = vpop.f32.mrb[0].mxu0
    %v816 = vadd.f32 %v158, %v815
    %v817 = vpop.f32.mrb[0].mxu0
    %v818 = vadd.f32 %v154, %v817
    %v819 = vpop.f32.mrb[0].mxu0
    %v820 = vadd.f32 %v158, %v819
    %821 = vmatprep.mubr.bf16.mxu0 0
    %822 = vmatmul.mubr.bf16.gmra.mrb[0].mxu0 %v209
    %v823 = vpop.f32.mrb[0].mxu0
    %v824 = vadd.f32 %v154, %v823
    %v825 = vpop.f32.mrb[0].mxu0
    %v826 = vadd.f32 %v158, %v825
    %v827 = vpop.f32.mrb[0].mxu0
    %v828 = vadd.f32 %v154, %v827
    %v829 = vpop.f32.mrb[0].mxu0
    %v830 = vadd.f32 %v158, %v829
    %831 = vmatprep.mubr.bf16.mxu0 0
    %832 = vmatmul.mubr.bf16.gmra.mrb[0].mxu0 %v210
    %v833 = vpop.f32.mrb[0].mxu0
    %v834 = vadd.f32 %v154, %v833
    %v835 = vpop.f32.mrb[0].mxu0
    %v836 = vadd.f32 %v158, %v835
    %v837 = vpop.f32.mrb[0].mxu0
    %v838 = vadd.f32 %v154, %v837
    %v839 = vpop.f32.mrb[0].mxu0
    %v840 = vadd.f32 %v158, %v839
    %841 = vmatprep.mubr.bf16.mxu0 0
    %842 = vmatmul.mubr.bf16.gmra.mrb[0].mxu0 %v211
    %v843 = vpop.f32.mrb[0].mxu0
    %v844 = vadd.f32 %v154, %v843
    %v845 = vpop.f32.mrb[0].mxu0
    %v846 = vadd.f32 %v158, %v845
    %v847 = vpop.f32.mrb[0].mxu0
    %v848 = vadd.f32 %v154, %v847
    %v849 = vpop.f32.mrb[0].mxu0
    %v850 = vadd.f32 %v158, %v849
    %851 = vmatprep.mubr.bf16.mxu0 0
    %852 = vmatmul.mubr.bf16.gmra.mrb[0].mxu0 %v212
    %v853 = vpop.f32.mrb[0].mxu0
    %v854 = vadd.f32 %v154, %v853
    %v855 = vpop.f32.mrb[0].mxu0
    %v856 = vadd.f32 %v158, %v855
    %v857 = vpop.f32.mrb[0].mxu0
    %v858 = vadd.f32 %v154, %v857
    %v859 = vpop.f32.mrb[0].mxu0
    %v860 = vadd.f32 %v158, %v859
    %861 = vmatprep.mubr.bf16.mxu0 0
    %862 = vmatmul.mubr.bf16.gmra.mrb[0].mxu0 %v213
    %v863 = vpop.f32.mrb[0].mxu0
    %v864 = vadd.f32 %v154, %v863
    %v865 = vpop.f32.mrb[0].mxu0
    %v866 = vadd.f32 %v158, %v865
    %v867 = vpop.f32.mrb[0].mxu0
    %v868 = vadd.f32 %v154, %v867
    %v869 = vpop.f32.mrb[0].mxu0
    %v870 = vadd.f32 %v158, %v869
    %871 = vmatprep.mubr.bf16.mxu0 0
    %872 = vmatmul.mubr.bf16.gmra.mrb[0].mxu0 %v214
    %v873 = vpop.f32.mrb[0].mxu0
    %v874 = vadd.f32 %v154, %v873
    %v875 = vpop.f32.mrb[0].mxu0
    %v876 = vadd.f32 %v158, %v875
    %v877 = vpop.f32.mrb[0].mxu0
    %v878 = vadd.f32 %v154, %v877
    %v879 = vpop.f32.mrb[0].mxu0
    %v880 = vadd.f32 %v158, %v879
    %881 = vdwg.mxu0
    %882 = vmatprep.subr.bf16.mxu0 %v422
    %883 = vmatpush1.bf16.msra.mxu0 %v421
    %884 = vmatprep.subr.bf16.mxu0 %v430
    %885 = vmatpush1.bf16.msra.mxu0 %v429
    %886 = vmatprep.subr.bf16.mxu0 %v438
    %887 = vmatpush1.bf16.msra.mxu0 %v437
    %888 = vmatprep.subr.bf16.mxu0 %v446
    %889 = vmatpush1.bf16.msra.mxu0 %v445
    %890 = vmatprep.subr.bf16.mxu0 %v454
    %891 = vmatpush1.bf16.msra.mxu0 %v453
    %892 = vmatprep.subr.bf16.mxu0 %v462
    %893 = vmatpush1.bf16.msra.mxu0 %v461
    %894 = vmatprep.subr.bf16.mxu0 %v470
    %895 = vmatpush1.bf16.msra.mxu0 %v469
    %896 = vmatprep.subr.bf16.mxu0 %v478
    %897 = vmatpush1.bf16.msra.mxu0 %v477
    %898 = vmatprep.subr.bf16.mxu0 0
    %899 = vmatpush1.bf16.msra.mxu0 0
    %900 = vmatprep.subr.bf16.mxu0 0
    %901 = vmatpush1.bf16.msra.mxu0 0
    %902 = vmatprep.subr.bf16.mxu0 0
    %903 = vmatpush1.bf16.msra.mxu0 0
    %904 = vmatprep.subr.bf16.mxu0 0
    %905 = vmatpush1.bf16.msra.mxu0 0
    %906 = vmatprep.subr.bf16.mxu0 0
    %907 = vmatpush1.bf16.msra.mxu0 0
    %908 = vmatprep.subr.bf16.mxu0 0
    %909 = vmatpush1.bf16.msra.mxu0 0
    %910 = vmatprep.subr.bf16.mxu0 0
    %911 = vmatpush1.bf16.msra.mxu0 0
    %912 = vmatprep.subr.bf16.mxu0 0
    %913 = vmatpush1.bf16.msra.mxu0 0
    %914 = vmatprep.mubr.bf16.mxu0 0
    %915 = vmatmul.mubr.bf16.gmra.mrb[0].mxu0 %v207
    %v916 = vpop.f32.mrb[0].mxu0
    %v917 = vadd.f32 %v162, %v916
    %v918 = vpop.f32.mrb[0].mxu0
    %v919 = vadd.f32 %v166, %v918
    %v920 = vpop.f32.mrb[0].mxu0
    %v921 = vadd.f32 %v162, %v920
    %v922 = vpop.f32.mrb[0].mxu0
    %v923 = vadd.f32 %v166, %v922
    %924 = vmatprep.mubr.bf16.mxu0 0
    %925 = vmatmul.mubr.bf16.gmra.mrb[0].mxu0 %v208
    %v926 = vpop.f32.mrb[0].mxu0
    %v927 = vadd.f32 %v162, %v926
    %v928 = vpop.f32.mrb[0].mxu0
    %v929 = vadd.f32 %v166, %v928
    %v930 = vpop.f32.mrb[0].mxu0
    %v931 = vadd.f32 %v162, %v930
    %v932 = vpop.f32.mrb[0].mxu0
    %v933 = vadd.f32 %v166, %v932
    %934 = vmatprep.mubr.bf16.mxu0 0
    %935 = vmatmul.mubr.bf16.gmra.mrb[0].mxu0 %v209
    %v936 = vpop.f32.mrb[0].mxu0
    %v937 = vadd.f32 %v162, %v936
    %v938 = vpop.f32.mrb[0].mxu0
    %v939 = vadd.f32 %v166, %v938
    %v940 = vpop.f32.mrb[0].mxu0
    %v941 = vadd.f32 %v162, %v940
    %v942 = vpop.f32.mrb[0].mxu0
    %v943 = vadd.f32 %v166, %v942
    %944 = vmatprep.mubr.bf16.mxu0 0
    %945 = vmatmul.mubr.bf16.gmra.mrb[0].mxu0 %v210
    %v946 = vpop.f32.mrb[0].mxu0
    %v947 = vadd.f32 %v162, %v946
    %v948 = vpop.f32.mrb[0].mxu0
    %v949 = vadd.f32 %v166, %v948
    %v950 = vpop.f32.mrb[0].mxu0
    %v951 = vadd.f32 %v162, %v950
    %v952 = vpop.f32.mrb[0].mxu0
    %v953 = vadd.f32 %v166, %v952
    %954 = vmatprep.mubr.bf16.mxu0 0
    %955 = vmatmul.mubr.bf16.gmra.mrb[0].mxu0 %v211
    %v956 = vpop.f32.mrb[0].mxu0
    %v957 = vadd.f32 %v162, %v956
    %v958 = vpop.f32.mrb[0].mxu0
    %v959 = vadd.f32 %v166, %v958
    %v960 = vpop.f32.mrb[0].mxu0
    %v961 = vadd.f32 %v162, %v960
    %v962 = vpop.f32.mrb[0].mxu0
    %v963 = vadd.f32 %v166, %v962
    %964 = vmatprep.mubr.bf16.mxu0 0
    %965 = vmatmul.mubr.bf16.gmra.mrb[0].mxu0 %v212
    %v966 = vpop.f32.mrb[0].mxu0
    %v967 = vadd.f32 %v162, %v966
    %v968 = vpop.f32.mrb[0].mxu0
    %v969 = vadd.f32 %v166, %v968
    %v970 = vpop.f32.mrb[0].mxu0
    %v971 = vadd.f32 %v162, %v970
    %v972 = vpop.f32.mrb[0].mxu0
    %v973 = vadd.f32 %v166, %v972
    %974 = vmatprep.mubr.bf16.mxu0 0
    %975 = vmatmul.mubr.bf16.gmra.mrb[0].mxu0 %v213
    %v976 = vpop.f32.mrb[0].mxu0
    %v977 = vadd.f32 %v162, %v976
    %v978 = vpop.f32.mrb[0].mxu0
    %v979 = vadd.f32 %v166, %v978
    %v980 = vpop.f32.mrb[0].mxu0
    %v981 = vadd.f32 %v162, %v980
    %v982 = vpop.f32.mrb[0].mxu0
    %v983 = vadd.f32 %v166, %v982
    %984 = vmatprep.mubr.bf16.mxu0 0
    %985 = vmatmul.mubr.bf16.gmra.mrb[0].mxu0 %v214
    %v986 = vpop.f32.mrb[0].mxu0
    %v987 = vadd.f32 %v162, %v986
    %v988 = vpop.f32.mrb[0].mxu0
    %v989 = vadd.f32 %v166, %v988
    %v990 = vpop.f32.mrb[0].mxu0
    %v991 = vadd.f32 %v162, %v990
    %v992 = vpop.f32.mrb[0].mxu0
    %v993 = vadd.f32 %v166, %v992
    %994 = vdwg.mxu0
    %995 = vst [vmem:[#allocation2] sm:$0xff] %v578
    %996 = vst [vmem:[#allocation2 + $0x8] sm:$0xff] %v580
    %997 = vst [vmem:[#allocation2 + $0x10] sm:$0xff] %v691
    %998 = vst [vmem:[#allocation2 + $0x18] sm:$0xff] %v693
    %999 = vst [vmem:[#allocation2 + $0x20] sm:$0xff] %v804
    %1000 = vst [vmem:[#allocation2 + $0x28] sm:$0xff] %v806
    %1001 = vst [vmem:[#allocation2 + $0x30] sm:$0xff] %v917
    %1002 = vst [vmem:[#allocation2 + $0x38] sm:$0xff] %v919
    %1003 = vst [vmem:[#allocation2 + $0x40] sm:$0xff] %v582
    %1004 = vst [vmem:[#allocation2 + $0x48] sm:$0xff] %v584
    %1005 = vst [vmem:[#allocation2 + $0x50] sm:$0xff] %v695
    %1006 = vst [vmem:[#allocation2 + $0x58] sm:$0xff] %v697
    %1007 = vst [vmem:[#allocation2 + $0x60] sm:$0xff] %v808
    %1008 = vst [vmem:[#allocation2 + $0x68] sm:$0xff] %v810
    %1009 = vst [vmem:[#allocation2 + $0x70] sm:$0xff] %v921
    %1010 = vst [vmem:[#allocation2 + $0x78] sm:$0xff] %v923
    %1011 = vst [vmem:[#allocation2 + $0x80] sm:$0xff] %v588
    %1012 = vst [vmem:[#allocation2 + $0x88] sm:$0xff] %v590
    %1013 = vst [vmem:[#allocation2 + $0x90] sm:$0xff] %v701
    %1014 = vst [vmem:[#allocation2 + $0x98] sm:$0xff] %v703
    %1015 = vst [vmem:[#allocation2 + $0xa0] sm:$0xff] %v814
    %1016 = vst [vmem:[#allocation2 + $0xa8] sm:$0xff] %v816
    %1017 = vst [vmem:[#allocation2 + $0xb0] sm:$0xff] %v927
    %1018 = vst [vmem:[#allocation2 + $0xb8] sm:$0xff] %v929
    %1019 = vst [vmem:[#allocation2 + $0xc0] sm:$0xff] %v592
    %1020 = vst [vmem:[#allocation2 + $0xc8] sm:$0xff] %v594
    %1021 = vst [vmem:[#allocation2 + $0xd0] sm:$0xff] %v705
    %1022 = vst [vmem:[#allocation2 + $0xd8] sm:$0xff] %v707
    %1023 = vst [vmem:[#allocation2 + $0xe0] sm:$0xff] %v818
    %1024 = vst [vmem:[#allocation2 + $0xe8] sm:$0xff] %v820
    %1025 = vst [vmem:[#allocation2 + $0xf0] sm:$0xff] %v931
    %1026 = vst [vmem:[#allocation2 + $0xf8] sm:$0xff] %v933
    %1027 = vst [vmem:[#allocation2 + $0x100] sm:$0xff] %v598
    %1028 = vst [vmem:[#allocation2 + $0x108] sm:$0xff] %v600
    %1029 = vst [vmem:[#allocation2 + $0x110] sm:$0xff] %v711
    %1030 = vst [vmem:[#allocation2 + $0x118] sm:$0xff] %v713
    %1031 = vst [vmem:[#allocation2 + $0x120] sm:$0xff] %v824
    %1032 = vst [vmem:[#allocation2 + $0x128] sm:$0xff] %v826
    %1033 = vst [vmem:[#allocation2 + $0x130] sm:$0xff] %v937
    %1034 = vst [vmem:[#allocation2 + $0x138] sm:$0xff] %v939
    %1035 = vst [vmem:[#allocation2 + $0x140] sm:$0xff] %v602
    %1036 = vst [vmem:[#allocation2 + $0x148] sm:$0xff] %v604
    %1037 = vst [vmem:[#allocation2 + $0x150] sm:$0xff] %v715
    %1038 = vst [vmem:[#allocation2 + $0x158] sm:$0xff] %v717
    %1039 = vst [vmem:[#allocation2 + $0x160] sm:$0xff] %v828
    %1040 = vst [vmem:[#allocation2 + $0x168] sm:$0xff] %v830
    %1041 = vst [vmem:[#allocation2 + $0x170] sm:$0xff] %v941
    %1042 = vst [vmem:[#allocation2 + $0x178] sm:$0xff] %v943
    %1043 = vst [vmem:[#allocation2 + $0x180] sm:$0xff] %v608
    %1044 = vst [vmem:[#allocation2 + $0x188] sm:$0xff] %v610
    %1045 = vst [vmem:[#allocation2 + $0x190] sm:$0xff] %v721
    %1046 = vst [vmem:[#allocation2 + $0x198] sm:$0xff] %v723
    %1047 = vst [vmem:[#allocation2 + $0x1a0] sm:$0xff] %v834
    %1048 = vst [vmem:[#allocation2 + $0x1a8] sm:$0xff] %v836
    %1049 = vst [vmem:[#allocation2 + $0x1b0] sm:$0xff] %v947
    %1050 = vst [vmem:[#allocation2 + $0x1b8] sm:$0xff] %v949
    %1051 = vst [vmem:[#allocation2 + $0x1c0] sm:$0xff] %v612
    %1052 = vst [vmem:[#allocation2 + $0x1c8] sm:$0xff] %v614
    %1053 = vst [vmem:[#allocation2 + $0x1d0] sm:$0xff] %v725
    %1054 = vst [vmem:[#allocation2 + $0x1d8] sm:$0xff] %v727
    %1055 = vst [vmem:[#allocation2 + $0x1e0] sm:$0xff] %v838
    %1056 = vst [vmem:[#allocation2 + $0x1e8] sm:$0xff] %v840
    %1057 = vst [vmem:[#allocation2 + $0x1f0] sm:$0xff] %v951
    %1058 = vst [vmem:[#allocation2 + $0x1f8] sm:$0xff] %v953
    %1059 = vst [vmem:[#allocation2 + $0x200] sm:$0xff] %v618
    %1060 = vst [vmem:[#allocation2 + $0x208] sm:$0xff] %v620
    %1061 = vst [vmem:[#allocation2 + $0x210] sm:$0xff] %v731
    %1062 = vst [vmem:[#allocation2 + $0x218] sm:$0xff] %v733
    %1063 = vst [vmem:[#allocation2 + $0x220] sm:$0xff] %v844
    %1064 = vst [vmem:[#allocation2 + $0x228] sm:$0xff] %v846
    %1065 = vst [vmem:[#allocation2 + $0x230] sm:$0xff] %v957
    %1066 = vst [vmem:[#allocation2 + $0x238] sm:$0xff] %v959
    %1067 = vst [vmem:[#allocation2 + $0x240] sm:$0xff] %v622
    %1068 = vst [vmem:[#allocation2 + $0x248] sm:$0xff] %v624
    %1069 = vst [vmem:[#allocation2 + $0x250] sm:$0xff] %v735
    %1070 = vst [vmem:[#allocation2 + $0x258] sm:$0xff] %v737
    %1071 = vst [vmem:[#allocation2 + $0x260] sm:$0xff] %v848
    %1072 = vst [vmem:[#allocation2 + $0x268] sm:$0xff] %v850
    %1073 = vst [vmem:[#allocation2 + $0x270] sm:$0xff] %v961
    %1074 = vst [vmem:[#allocation2 + $0x278] sm:$0xff] %v963
    %1075 = vst [vmem:[#allocation2 + $0x280] sm:$0xff] %v628
    %1076 = vst [vmem:[#allocation2 + $0x288] sm:$0xff] %v630
    %1077 = vst [vmem:[#allocation2 + $0x290] sm:$0xff] %v741
    %1078 = vst [vmem:[#allocation2 + $0x298] sm:$0xff] %v743
    %1079 = vst [vmem:[#allocation2 + $0x2a0] sm:$0xff] %v854
    %1080 = vst [vmem:[#allocation2 + $0x2a8] sm:$0xff] %v856
    %1081 = vst [vmem:[#allocation2 + $0x2b0] sm:$0xff] %v967
    %1082 = vst [vmem:[#allocation2 + $0x2b8] sm:$0xff] %v969
    %1083 = vst [vmem:[#allocation2 + $0x2c0] sm:$0xff] %v632
    %1084 = vst [vmem:[#allocation2 + $0x2c8] sm:$0xff] %v634
    %1085 = vst [vmem:[#allocation2 + $0x2d0] sm:$0xff] %v745
    %1086 = vst [vmem:[#allocation2 + $0x2d8] sm:$0xff] %v747
    %1087 = vst [vmem:[#allocation2 + $0x2e0] sm:$0xff] %v858
    %1088 = vst [vmem:[#allocation2 + $0x2e8] sm:$0xff] %v860
    %1089 = vst [vmem:[#allocation2 + $0x2f0] sm:$0xff] %v971
    %1090 = vst [vmem:[#allocation2 + $0x2f8] sm:$0xff] %v973
    %1091 = vst [vmem:[#allocation2 + $0x300] sm:$0xff] %v638
    %1092 = vst [vmem:[#allocation2 + $0x308] sm:$0xff] %v640
    %1093 = vst [vmem:[#allocation2 + $0x310] sm:$0xff] %v751
    %1094 = vst [vmem:[#allocation2 + $0x318] sm:$0xff] %v753
    %1095 = vst [vmem:[#allocation2 + $0x320] sm:$0xff] %v864
    %1096 = vst [vmem:[#allocation2 + $0x328] sm:$0xff] %v866
    %1097 = vst [vmem:[#allocation2 + $0x330] sm:$0xff] %v977
    %1098 = vst [vmem:[#allocation2 + $0x338] sm:$0xff] %v979
    %1099 = vst [vmem:[#allocation2 + $0x340] sm:$0xff] %v642
    %1100 = vst [vmem:[#allocation2 + $0x348] sm:$0xff] %v644
    %1101 = vst [vmem:[#allocation2 + $0x350] sm:$0xff] %v755
    %1102 = vst [vmem:[#allocation2 + $0x358] sm:$0xff] %v757
    %1103 = vst [vmem:[#allocation2 + $0x360] sm:$0xff] %v868
    %1104 = vst [vmem:[#allocation2 + $0x368] sm:$0xff] %v870
    %1105 = vst [vmem:[#allocation2 + $0x370] sm:$0xff] %v981
    %1106 = vst [vmem:[#allocation2 + $0x378] sm:$0xff] %v983
    %1107 = vst [vmem:[#allocation2 + $0x380] sm:$0xff] %v648
    %1108 = vst [vmem:[#allocation2 + $0x388] sm:$0xff] %v650
    %1109 = vst [vmem:[#allocation2 + $0x390] sm:$0xff] %v761
    %1110 = vst [vmem:[#allocation2 + $0x398] sm:$0xff] %v763
    %1111 = vst [vmem:[#allocation2 + $0x3a0] sm:$0xff] %v874
    %1112 = vst [vmem:[#allocation2 + $0x3a8] sm:$0xff] %v876
    %1113 = vst [vmem:[#allocation2 + $0x3b0] sm:$0xff] %v987
    %1114 = vst [vmem:[#allocation2 + $0x3b8] sm:$0xff] %v989
    %1115 = vst [vmem:[#allocation2 + $0x3c0] sm:$0xff] %v652
    %1116 = vst [vmem:[#allocation2 + $0x3c8] sm:$0xff] %v654
    %1117 = vst [vmem:[#allocation2 + $0x3d0] sm:$0xff] %v765
    %1118 = vst [vmem:[#allocation2 + $0x3d8] sm:$0xff] %v767
    %1119 = vst [vmem:[#allocation2 + $0x3e0] sm:$0xff] %v878
    %1120 = vst [vmem:[#allocation2 + $0x3e8] sm:$0xff] %v880
    %1121 = vst [vmem:[#allocation2 + $0x3f0] sm:$0xff] %v991
    %1122 = vst [vmem:[#allocation2 + $0x3f8] sm:$0xff] %v993
    %v1123 = vld [vmem:[#allocation7] sm:$0xff]
    %v1124 = vld [vmem:[#allocation7 + $0x8] sm:$0xff]
    %v1125 = vld [vmem:[#allocation7 + $0x10] sm:$0xff]
    %v1126 = vld [vmem:[#allocation7 + $0x18] sm:$0xff]
    %v1127 = vld [vmem:[#allocation7 + $0x20] sm:$0xff]
    %v1128 = vld [vmem:[#allocation7 + $0x28] sm:$0xff]
    %v1129 = vld [vmem:[#allocation7 + $0x30] sm:$0xff]
    %v1130 = vld [vmem:[#allocation7 + $0x38] sm:$0xff]
    %v1131 = vld [vmem:[#allocation7 + $0x40] sm:$0xff]
    %v1132 = vld [vmem:[#allocation7 + $0x48] sm:$0xff]
    %v1133 = vld [vmem:[#allocation7 + $0x50] sm:$0xff]
    %v1134 = vld [vmem:[#allocation7 + $0x58] sm:$0xff]
    %v1135 = vld [vmem:[#allocation7 + $0x60] sm:$0xff]
    %v1136 = vld [vmem:[#allocation7 + $0x68] sm:$0xff]
    %v1137 = vld [vmem:[#allocation7 + $0x70] sm:$0xff]
    %v1138 = vld [vmem:[#allocation7 + $0x78] sm:$0xff]
    %v1139 = vld [vmem:[#allocation7 + $0x80] sm:$0xff]
    %v1140 = vld [vmem:[#allocation7 + $0x88] sm:$0xff]
    %v1141 = vld [vmem:[#allocation7 + $0x90] sm:$0xff]
    %v1142 = vld [vmem:[#allocation7 + $0x98] sm:$0xff]
    %v1143 = vld [vmem:[#allocation7 + $0xa0] sm:$0xff]
    %v1144 = vld [vmem:[#allocation7 + $0xa8] sm:$0xff]
    %v1145 = vld [vmem:[#allocation7 + $0xb0] sm:$0xff]
    %v1146 = vld [vmem:[#allocation7 + $0xb8] sm:$0xff]
    %v1147 = vld [vmem:[#allocation7 + $0xc0] sm:$0xff]
    %v1148 = vld [vmem:[#allocation7 + $0xc8] sm:$0xff]
    %v1149 = vld [vmem:[#allocation7 + $0xd0] sm:$0xff]
    %v1150 = vld [vmem:[#allocation7 + $0xd8] sm:$0xff]
    %v1151 = vld [vmem:[#allocation7 + $0xe0] sm:$0xff]
    %v1152 = vld [vmem:[#allocation7 + $0xe8] sm:$0xff]
    %v1153 = vld [vmem:[#allocation7 + $0xf0] sm:$0xff]
    %v1154 = vld [vmem:[#allocation7 + $0xf8] sm:$0xff]
    %v1155 = vld [vmem:[#allocation7 + $0x100] sm:$0xff]
    %v1156 = vld [vmem:[#allocation7 + $0x108] sm:$0xff]
    %v1157 = vld [vmem:[#allocation7 + $0x110] sm:$0xff]
    %v1158 = vld [vmem:[#allocation7 + $0x118] sm:$0xff]
    %v1159 = vld [vmem:[#allocation7 + $0x120] sm:$0xff]
    %v1160 = vld [vmem:[#allocation7 + $0x128] sm:$0xff]
    %v1161 = vld [vmem:[#allocation7 + $0x130] sm:$0xff]
    %v1162 = vld [vmem:[#allocation7 + $0x138] sm:$0xff]
    %v1163 = vld [vmem:[#allocation7 + $0x140] sm:$0xff]
    %v1164 = vld [vmem:[#allocation7 + $0x148] sm:$0xff]
    %v1165 = vld [vmem:[#allocation7 + $0x150] sm:$0xff]
    %v1166 = vld [vmem:[#allocation7 + $0x158] sm:$0xff]
    %v1167 = vld [vmem:[#allocation7 + $0x160] sm:$0xff]
    %v1168 = vld [vmem:[#allocation7 + $0x168] sm:$0xff]
    %v1169 = vld [vmem:[#allocation7 + $0x170] sm:$0xff]
    %v1170 = vld [vmem:[#allocation7 + $0x178] sm:$0xff]
    %v1171 = vld [vmem:[#allocation7 + $0x180] sm:$0xff]
    %v1172 = vld [vmem:[#allocation7 + $0x188] sm:$0xff]
    %v1173 = vld [vmem:[#allocation7 + $0x190] sm:$0xff]
    %v1174 = vld [vmem:[#allocation7 + $0x198] sm:$0xff]
    %v1175 = vld [vmem:[#allocation7 + $0x1a0] sm:$0xff]
    %v1176 = vld [vmem:[#allocation7 + $0x1a8] sm:$0xff]
    %v1177 = vld [vmem:[#allocation7 + $0x1b0] sm:$0xff]
    %v1178 = vld [vmem:[#allocation7 + $0x1b8] sm:$0xff]
    %v1179 = vld [vmem:[#allocation7 + $0x1c0] sm:$0xff]
    %v1180 = vld [vmem:[#allocation7 + $0x1c8] sm:$0xff]
    %v1181 = vld [vmem:[#allocation7 + $0x1d0] sm:$0xff]
    %v1182 = vld [vmem:[#allocation7 + $0x1d8] sm:$0xff]
    %v1183 = vld [vmem:[#allocation7 + $0x1e0] sm:$0xff]
    %v1184 = vld [vmem:[#allocation7 + $0x1e8] sm:$0xff]
    %v1185 = vld [vmem:[#allocation7 + $0x1f0] sm:$0xff]
    %v1186 = vld [vmem:[#allocation7 + $0x1f8] sm:$0xff]
    %v1187 = vld [vmem:[#allocation7 + $0x200] sm:$0xff]
    %v1188 = vld [vmem:[#allocation7 + $0x208] sm:$0xff]
    %v1189 = vld [vmem:[#allocation7 + $0x210] sm:$0xff]
    %v1190 = vld [vmem:[#allocation7 + $0x218] sm:$0xff]
    %v1191 = vld [vmem:[#allocation7 + $0x220] sm:$0xff]
    %v1192 = vld [vmem:[#allocation7 + $0x228] sm:$0xff]
    %v1193 = vld [vmem:[#allocation7 + $0x230] sm:$0xff]
    %v1194 = vld [vmem:[#allocation7 + $0x238] sm:$0xff]
    %v1195 = vld [vmem:[#allocation7 + $0x240] sm:$0xff]
    %v1196 = vld [vmem:[#allocation7 + $0x248] sm:$0xff]
    %v1197 = vld [vmem:[#allocation7 + $0x250] sm:$0xff]
    %v1198 = vld [vmem:[#allocation7 + $0x258] sm:$0xff]
    %v1199 = vld [vmem:[#allocation7 + $0x260] sm:$0xff]
    %v1200 = vld [vmem:[#allocation7 + $0x268] sm:$0xff]
    %v1201 = vld [vmem:[#allocation7 + $0x270] sm:$0xff]
    %v1202 = vld [vmem:[#allocation7 + $0x278] sm:$0xff]
    %v1203 = vld [vmem:[#allocation7 + $0x280] sm:$0xff]
    %v1204 = vld [vmem:[#allocation7 + $0x288] sm:$0xff]
    %v1205 = vld [vmem:[#allocation7 + $0x290] sm:$0xff]
    %v1206 = vld [vmem:[#allocation7 + $0x298] sm:$0xff]
    %v1207 = vld [vmem:[#allocation7 + $0x2a0] sm:$0xff]
    %v1208 = vld [vmem:[#allocation7 + $0x2a8] sm:$0xff]
    %v1209 = vld [vmem:[#allocation7 + $0x2b0] sm:$0xff]
    %v1210 = vld [vmem:[#allocation7 + $0x2b8] sm:$0xff]
    %v1211 = vld [vmem:[#allocation7 + $0x2c0] sm:$0xff]
    %v1212 = vld [vmem:[#allocation7 + $0x2c8] sm:$0xff]
    %v1213 = vld [vmem:[#allocation7 + $0x2d0] sm:$0xff]
    %v1214 = vld [vmem:[#allocation7 + $0x2d8] sm:$0xff]
    %v1215 = vld [vmem:[#allocation7 + $0x2e0] sm:$0xff]
    %v1216 = vld [vmem:[#allocation7 + $0x2e8] sm:$0xff]
    %v1217 = vld [vmem:[#allocation7 + $0x2f0] sm:$0xff]
    %v1218 = vld [vmem:[#allocation7 + $0x2f8] sm:$0xff]
    %v1219 = vld [vmem:[#allocation7 + $0x300] sm:$0xff]
    %v1220 = vld [vmem:[#allocation7 + $0x308] sm:$0xff]
    %v1221 = vld [vmem:[#allocation7 + $0x310] sm:$0xff]
    %v1222 = vld [vmem:[#allocation7 + $0x318] sm:$0xff]
    %v1223 = vld [vmem:[#allocation7 + $0x320] sm:$0xff]
    %v1224 = vld [vmem:[#allocation7 + $0x328] sm:$0xff]
    %v1225 = vld [vmem:[#allocation7 + $0x330] sm:$0xff]
    %v1226 = vld [vmem:[#allocation7 + $0x338] sm:$0xff]
    %v1227 = vld [vmem:[#allocation7 + $0x340] sm:$0xff]
    %v1228 = vld [vmem:[#allocation7 + $0x348] sm:$0xff]
    %v1229 = vld [vmem:[#allocation7 + $0x350] sm:$0xff]
    %v1230 = vld [vmem:[#allocation7 + $0x358] sm:$0xff]
    %v1231 = vld [vmem:[#allocation7 + $0x360] sm:$0xff]
    %v1232 = vld [vmem:[#allocation7 + $0x368] sm:$0xff]
    %v1233 = vld [vmem:[#allocation7 + $0x370] sm:$0xff]
    %v1234 = vld [vmem:[#allocation7 + $0x378] sm:$0xff]
    %v1235 = vld [vmem:[#allocation7 + $0x380] sm:$0xff]
    %v1236 = vld [vmem:[#allocation7 + $0x388] sm:$0xff]
    %v1237 = vld [vmem:[#allocation7 + $0x390] sm:$0xff]
    %v1238 = vld [vmem:[#allocation7 + $0x398] sm:$0xff]
    %v1239 = vld [vmem:[#allocation7 + $0x3a0] sm:$0xff]
    %v1240 = vld [vmem:[#allocation7 + $0x3a8] sm:$0xff]
    %v1241 = vld [vmem:[#allocation7 + $0x3b0] sm:$0xff]
    %v1242 = vld [vmem:[#allocation7 + $0x3b8] sm:$0xff]
    %v1243 = vld [vmem:[#allocation7 + $0x3c0] sm:$0xff]
    %v1244 = vld [vmem:[#allocation7 + $0x3c8] sm:$0xff]
    %v1245 = vld [vmem:[#allocation7 + $0x3d0] sm:$0xff]
    %v1246 = vld [vmem:[#allocation7 + $0x3d8] sm:$0xff]
    %v1247 = vld [vmem:[#allocation7 + $0x3e0] sm:$0xff]
    %v1248 = vld [vmem:[#allocation7 + $0x3e8] sm:$0xff]
    %v1249 = vld [vmem:[#allocation7 + $0x3f0] sm:$0xff]
    %v1250 = vld [vmem:[#allocation7 + $0x3f8] sm:$0xff]
    %v1379 = vunpack.c.l.b16 %v1123
    %v1380 = vunpack.c.h.b16 %v1123
    %v1381 = vunpack.c.l.b16 %v1124
    %v1382 = vunpack.c.h.b16 %v1124
    %v1383 = vunpack.c.l.b16 %v1125
    %v1384 = vunpack.c.h.b16 %v1125
    %v1385 = vunpack.c.l.b16 %v1126
    %v1386 = vunpack.c.h.b16 %v1126
    %v1387 = vunpack.c.l.b16 %v1127
    %v1388 = vunpack.c.h.b16 %v1127
    %v1389 = vunpack.c.l.b16 %v1128
    %v1390 = vunpack.c.h.b16 %v1128
    %v1391 = vunpack.c.l.b16 %v1129
    %v1392 = vunpack.c.h.b16 %v1129
    %v1393 = vunpack.c.l.b16 %v1130
    %v1394 = vunpack.c.h.b16 %v1130
    %v1395 = vunpack.c.l.b16 %v1131
    %v1396 = vunpack.c.h.b16 %v1131
    %v1397 = vunpack.c.l.b16 %v1132
    %v1398 = vunpack.c.h.b16 %v1132
    %v1399 = vunpack.c.l.b16 %v1133
    %v1400 = vunpack.c.h.b16 %v1133
    %v1401 = vunpack.c.l.b16 %v1134
    %v1402 = vunpack.c.h.b16 %v1134
    %v1403 = vunpack.c.l.b16 %v1135
    %v1404 = vunpack.c.h.b16 %v1135
    %v1405 = vunpack.c.l.b16 %v1136
    %v1406 = vunpack.c.h.b16 %v1136
    %v1407 = vunpack.c.l.b16 %v1137
    %v1408 = vunpack.c.h.b16 %v1137
    %v1409 = vunpack.c.l.b16 %v1138
    %v1410 = vunpack.c.h.b16 %v1138
    %v1411 = vunpack.c.l.b16 %v1139
    %v1412 = vunpack.c.h.b16 %v1139
    %v1413 = vunpack.c.l.b16 %v1140
    %v1414 = vunpack.c.h.b16 %v1140
    %v1415 = vunpack.c.l.b16 %v1141
    %v1416 = vunpack.c.h.b16 %v1141
    %v1417 = vunpack.c.l.b16 %v1142
    %v1418 = vunpack.c.h.b16 %v1142
    %v1419 = vunpack.c.l.b16 %v1143
    %v1420 = vunpack.c.h.b16 %v1143
    %v1421 = vunpack.c.l.b16 %v1144
    %v1422 = vunpack.c.h.b16 %v1144
    %v1423 = vunpack.c.l.b16 %v1145
    %v1424 = vunpack.c.h.b16 %v1145
    %v1425 = vunpack.c.l.b16 %v1146
    %v1426 = vunpack.c.h.b16 %v1146
    %v1427 = vunpack.c.l.b16 %v1147
    %v1428 = vunpack.c.h.b16 %v1147
    %v1429 = vunpack.c.l.b16 %v1148
    %v1430 = vunpack.c.h.b16 %v1148
    %v1431 = vunpack.c.l.b16 %v1149
    %v1432 = vunpack.c.h.b16 %v1149
    %v1433 = vunpack.c.l.b16 %v1150
    %v1434 = vunpack.c.h.b16 %v1150
    %v1435 = vunpack.c.l.b16 %v1151
    %v1436 = vunpack.c.h.b16 %v1151
    %v1437 = vunpack.c.l.b16 %v1152
    %v1438 = vunpack.c.h.b16 %v1152
    %v1439 = vunpack.c.l.b16 %v1153
    %v1440 = vunpack.c.h.b16 %v1153
    %v1441 = vunpack.c.l.b16 %v1154
    %v1442 = vunpack.c.h.b16 %v1154
    %v1443 = vunpack.c.l.b16 %v1155
    %v1444 = vunpack.c.h.b16 %v1155
    %v1445 = vunpack.c.l.b16 %v1156
    %v1446 = vunpack.c.h.b16 %v1156
    %v1447 = vunpack.c.l.b16 %v1157
    %v1448 = vunpack.c.h.b16 %v1157
    %v1449 = vunpack.c.l.b16 %v1158
    %v1450 = vunpack.c.h.b16 %v1158
    %v1451 = vunpack.c.l.b16 %v1159
    %v1452 = vunpack.c.h.b16 %v1159
    %v1453 = vunpack.c.l.b16 %v1160
    %v1454 = vunpack.c.h.b16 %v1160
    %v1455 = vunpack.c.l.b16 %v1161
    %v1456 = vunpack.c.h.b16 %v1161
    %v1457 = vunpack.c.l.b16 %v1162
    %v1458 = vunpack.c.h.b16 %v1162
    %v1459 = vunpack.c.l.b16 %v1163
    %v1460 = vunpack.c.h.b16 %v1163
    %v1461 = vunpack.c.l.b16 %v1164
    %v1462 = vunpack.c.h.b16 %v1164
    %v1463 = vunpack.c.l.b16 %v1165
    %v1464 = vunpack.c.h.b16 %v1165
    %v1465 = vunpack.c.l.b16 %v1166
    %v1466 = vunpack.c.h.b16 %v1166
    %v1467 = vunpack.c.l.b16 %v1167
    %v1468 = vunpack.c.h.b16 %v1167
    %v1469 = vunpack.c.l.b16 %v1168
    %v1470 = vunpack.c.h.b16 %v1168
    %v1471 = vunpack.c.l.b16 %v1169
    %v1472 = vunpack.c.h.b16 %v1169
    %v1473 = vunpack.c.l.b16 %v1170
    %v1474 = vunpack.c.h.b16 %v1170
    %v1475 = vunpack.c.l.b16 %v1171
    %v1476 = vunpack.c.h.b16 %v1171
    %v1477 = vunpack.c.l.b16 %v1172
    %v1478 = vunpack.c.h.b16 %v1172
    %v1479 = vunpack.c.l.b16 %v1173
    %v1480 = vunpack.c.h.b16 %v1173
    %v1481 = vunpack.c.l.b16 %v1174
    %v1482 = vunpack.c.h.b16 %v1174
    %v1483 = vunpack.c.l.b16 %v1175
    %v1484 = vunpack.c.h.b16 %v1175
    %v1485 = vunpack.c.l.b16 %v1176
    %v1486 = vunpack.c.h.b16 %v1176
    %v1487 = vunpack.c.l.b16 %v1177
    %v1488 = vunpack.c.h.b16 %v1177
    %v1489 = vunpack.c.l.b16 %v1178
    %v1490 = vunpack.c.h.b16 %v1178
    %v1491 = vunpack.c.l.b16 %v1179
    %v1492 = vunpack.c.h.b16 %v1179
    %v1493 = vunpack.c.l.b16 %v1180
    %v1494 = vunpack.c.h.b16 %v1180
    %v1495 = vunpack.c.l.b16 %v1181
    %v1496 = vunpack.c.h.b16 %v1181
    %v1497 = vunpack.c.l.b16 %v1182
    %v1498 = vunpack.c.h.b16 %v1182
    %v1499 = vunpack.c.l.b16 %v1183
    %v1500 = vunpack.c.h.b16 %v1183
    %v1501 = vunpack.c.l.b16 %v1184
    %v1502 = vunpack.c.h.b16 %v1184
    %v1503 = vunpack.c.l.b16 %v1185
    %v1504 = vunpack.c.h.b16 %v1185
    %v1505 = vunpack.c.l.b16 %v1186
    %v1506 = vunpack.c.h.b16 %v1186
    %v1507 = vunpack.c.l.b16 %v1187
    %v1508 = vunpack.c.h.b16 %v1187
    %v1509 = vunpack.c.l.b16 %v1188
    %v1510 = vunpack.c.h.b16 %v1188
    %v1511 = vunpack.c.l.b16 %v1189
    %v1512 = vunpack.c.h.b16 %v1189
    %v1513 = vunpack.c.l.b16 %v1190
    %v1514 = vunpack.c.h.b16 %v1190
    %v1515 = vunpack.c.l.b16 %v1191
    %v1516 = vunpack.c.h.b16 %v1191
    %v1517 = vunpack.c.l.b16 %v1192
    %v1518 = vunpack.c.h.b16 %v1192
    %v1519 = vunpack.c.l.b16 %v1193
    %v1520 = vunpack.c.h.b16 %v1193
    %v1521 = vunpack.c.l.b16 %v1194
    %v1522 = vunpack.c.h.b16 %v1194
    %v1523 = vunpack.c.l.b16 %v1195
    %v1524 = vunpack.c.h.b16 %v1195
    %v1525 = vunpack.c.l.b16 %v1196
    %v1526 = vunpack.c.h.b16 %v1196
    %v1527 = vunpack.c.l.b16 %v1197
    %v1528 = vunpack.c.h.b16 %v1197
    %v1529 = vunpack.c.l.b16 %v1198
    %v1530 = vunpack.c.h.b16 %v1198
    %v1531 = vunpack.c.l.b16 %v1199
    %v1532 = vunpack.c.h.b16 %v1199
    %v1533 = vunpack.c.l.b16 %v1200
    %v1534 = vunpack.c.h.b16 %v1200
    %v1535 = vunpack.c.l.b16 %v1201
    %v1536 = vunpack.c.h.b16 %v1201
    %v1537 = vunpack.c.l.b16 %v1202
    %v1538 = vunpack.c.h.b16 %v1202
    %v1539 = vunpack.c.l.b16 %v1203
    %v1540 = vunpack.c.h.b16 %v1203
    %v1541 = vunpack.c.l.b16 %v1204
    %v1542 = vunpack.c.h.b16 %v1204
    %v1543 = vunpack.c.l.b16 %v1205
    %v1544 = vunpack.c.h.b16 %v1205
    %v1545 = vunpack.c.l.b16 %v1206
    %v1546 = vunpack.c.h.b16 %v1206
    %v1547 = vunpack.c.l.b16 %v1207
    %v1548 = vunpack.c.h.b16 %v1207
    %v1549 = vunpack.c.l.b16 %v1208
    %v1550 = vunpack.c.h.b16 %v1208
    %v1551 = vunpack.c.l.b16 %v1209
    %v1552 = vunpack.c.h.b16 %v1209
    %v1553 = vunpack.c.l.b16 %v1210
    %v1554 = vunpack.c.h.b16 %v1210
    %v1555 = vunpack.c.l.b16 %v1211
    %v1556 = vunpack.c.h.b16 %v1211
    %v1557 = vunpack.c.l.b16 %v1212
    %v1558 = vunpack.c.h.b16 %v1212
    %v1559 = vunpack.c.l.b16 %v1213
    %v1560 = vunpack.c.h.b16 %v1213
    %v1561 = vunpack.c.l.b16 %v1214
    %v1562 = vunpack.c.h.b16 %v1214
    %v1563 = vunpack.c.l.b16 %v1215
    %v1564 = vunpack.c.h.b16 %v1215
    %v1565 = vunpack.c.l.b16 %v1216
    %v1566 = vunpack.c.h.b16 %v1216
    %v1567 = vunpack.c.l.b16 %v1217
    %v1568 = vunpack.c.h.b16 %v1217
    %v1569 = vunpack.c.l.b16 %v1218
    %v1570 = vunpack.c.h.b16 %v1218
    %v1571 = vunpack.c.l.b16 %v1219
    %v1572 = vunpack.c.h.b16 %v1219
    %v1573 = vunpack.c.l.b16 %v1220
    %v1574 = vunpack.c.h.b16 %v1220
    %v1575 = vunpack.c.l.b16 %v1221
    %v1576 = vunpack.c.h.b16 %v1221
    %v1577 = vunpack.c.l.b16 %v1222
    %v1578 = vunpack.c.h.b16 %v1222
    %v1579 = vunpack.c.l.b16 %v1223
    %v1580 = vunpack.c.h.b16 %v1223
    %v1581 = vunpack.c.l.b16 %v1224
    %v1582 = vunpack.c.h.b16 %v1224
    %v1583 = vunpack.c.l.b16 %v1225
    %v1584 = vunpack.c.h.b16 %v1225
    %v1585 = vunpack.c.l.b16 %v1226
    %v1586 = vunpack.c.h.b16 %v1226
    %v1587 = vunpack.c.l.b16 %v1227
    %v1588 = vunpack.c.h.b16 %v1227
    %v1589 = vunpack.c.l.b16 %v1228
    %v1590 = vunpack.c.h.b16 %v1228
    %v1591 = vunpack.c.l.b16 %v1229
    %v1592 = vunpack.c.h.b16 %v1229
    %v1593 = vunpack.c.l.b16 %v1230
    %v1594 = vunpack.c.h.b16 %v1230
    %v1595 = vunpack.c.l.b16 %v1231
    %v1596 = vunpack.c.h.b16 %v1231
    %v1597 = vunpack.c.l.b16 %v1232
    %v1598 = vunpack.c.h.b16 %v1232
    %v1599 = vunpack.c.l.b16 %v1233
    %v1600 = vunpack.c.h.b16 %v1233
    %v1601 = vunpack.c.l.b16 %v1234
    %v1602 = vunpack.c.h.b16 %v1234
    %v1603 = vunpack.c.l.b16 %v1235
    %v1604 = vunpack.c.h.b16 %v1235
    %v1605 = vunpack.c.l.b16 %v1236
    %v1606 = vunpack.c.h.b16 %v1236
    %v1607 = vunpack.c.l.b16 %v1237
    %v1608 = vunpack.c.h.b16 %v1237
    %v1609 = vunpack.c.l.b16 %v1238
    %v1610 = vunpack.c.h.b16 %v1238
    %v1611 = vunpack.c.l.b16 %v1239
    %v1612 = vunpack.c.h.b16 %v1239
    %v1613 = vunpack.c.l.b16 %v1240
    %v1614 = vunpack.c.h.b16 %v1240
    %v1615 = vunpack.c.l.b16 %v1241
    %v1616 = vunpack.c.h.b16 %v1241
    %v1617 = vunpack.c.l.b16 %v1242
    %v1618 = vunpack.c.h.b16 %v1242
    %v1619 = vunpack.c.l.b16 %v1243
    %v1620 = vunpack.c.h.b16 %v1243
    %v1621 = vunpack.c.l.b16 %v1244
    %v1622 = vunpack.c.h.b16 %v1244
    %v1623 = vunpack.c.l.b16 %v1245
    %v1624 = vunpack.c.h.b16 %v1245
    %v1625 = vunpack.c.l.b16 %v1246
    %v1626 = vunpack.c.h.b16 %v1246
    %v1627 = vunpack.c.l.b16 %v1247
    %v1628 = vunpack.c.h.b16 %v1247
    %v1629 = vunpack.c.l.b16 %v1248
    %v1630 = vunpack.c.h.b16 %v1248
    %v1631 = vunpack.c.l.b16 %v1249
    %v1632 = vunpack.c.h.b16 %v1249
    %v1633 = vunpack.c.l.b16 %v1250
    %v1634 = vunpack.c.h.b16 %v1250
    %v1635 = vpack.c.b16 %v1387, %v1379
    %v1636 = vpack.c.b16 %v1388, %v1380
    %v1637 = vpack.c.b16 %v1389, %v1381
    %v1638 = vpack.c.b16 %v1390, %v1382
    %v1639 = vpack.c.b16 %v1391, %v1383
    %v1640 = vpack.c.b16 %v1392, %v1384
    %v1641 = vpack.c.b16 %v1393, %v1385
    %v1642 = vpack.c.b16 %v1394, %v1386
    %v1643 = vpack.c.b16 %v1403, %v1395
    %v1644 = vpack.c.b16 %v1404, %v1396
    %v1645 = vpack.c.b16 %v1405, %v1397
    %v1646 = vpack.c.b16 %v1406, %v1398
    %v1647 = vpack.c.b16 %v1407, %v1399
    %v1648 = vpack.c.b16 %v1408, %v1400
    %v1649 = vpack.c.b16 %v1409, %v1401
    %v1650 = vpack.c.b16 %v1410, %v1402
    %v1651 = vpack.c.b16 %v1419, %v1411
    %v1652 = vpack.c.b16 %v1420, %v1412
    %v1653 = vpack.c.b16 %v1421, %v1413
    %v1654 = vpack.c.b16 %v1422, %v1414
    %v1655 = vpack.c.b16 %v1423, %v1415
    %v1656 = vpack.c.b16 %v1424, %v1416
    %v1657 = vpack.c.b16 %v1425, %v1417
    %v1658 = vpack.c.b16 %v1426, %v1418
    %v1659 = vpack.c.b16 %v1435, %v1427
    %v1660 = vpack.c.b16 %v1436, %v1428
    %v1661 = vpack.c.b16 %v1437, %v1429
    %v1662 = vpack.c.b16 %v1438, %v1430
    %v1663 = vpack.c.b16 %v1439, %v1431
    %v1664 = vpack.c.b16 %v1440, %v1432
    %v1665 = vpack.c.b16 %v1441, %v1433
    %v1666 = vpack.c.b16 %v1442, %v1434
    %v1667 = vpack.c.b16 %v1451, %v1443
    %v1668 = vpack.c.b16 %v1452, %v1444
    %v1669 = vpack.c.b16 %v1453, %v1445
    %v1670 = vpack.c.b16 %v1454, %v1446
    %v1671 = vpack.c.b16 %v1455, %v1447
    %v1672 = vpack.c.b16 %v1456, %v1448
    %v1673 = vpack.c.b16 %v1457, %v1449
    %v1674 = vpack.c.b16 %v1458, %v1450
    %v1675 = vpack.c.b16 %v1467, %v1459
    %v1676 = vpack.c.b16 %v1468, %v1460
    %v1677 = vpack.c.b16 %v1469, %v1461
    %v1678 = vpack.c.b16 %v1470, %v1462
    %v1679 = vpack.c.b16 %v1471, %v1463
    %v1680 = vpack.c.b16 %v1472, %v1464
    %v1681 = vpack.c.b16 %v1473, %v1465
    %v1682 = vpack.c.b16 %v1474, %v1466
    %v1683 = vpack.c.b16 %v1483, %v1475
    %v1684 = vpack.c.b16 %v1484, %v1476
    %v1685 = vpack.c.b16 %v1485, %v1477
    %v1686 = vpack.c.b16 %v1486, %v1478
    %v1687 = vpack.c.b16 %v1487, %v1479
    %v1688 = vpack.c.b16 %v1488, %v1480
    %v1689 = vpack.c.b16 %v1489, %v1481
    %v1690 = vpack.c.b16 %v1490, %v1482
    %v1691 = vpack.c.b16 %v1499, %v1491
    %v1692 = vpack.c.b16 %v1500, %v1492
    %v1693 = vpack.c.b16 %v1501, %v1493
    %v1694 = vpack.c.b16 %v1502, %v1494
    %v1695 = vpack.c.b16 %v1503, %v1495
    %v1696 = vpack.c.b16 %v1504, %v1496
    %v1697 = vpack.c.b16 %v1505, %v1497
    %v1698 = vpack.c.b16 %v1506, %v1498
    %v1699 = vpack.c.b16 %v1515, %v1507
    %v1700 = vpack.c.b16 %v1516, %v1508
    %v1701 = vpack.c.b16 %v1517, %v1509
    %v1702 = vpack.c.b16 %v1518, %v1510
    %v1703 = vpack.c.b16 %v1519, %v1511
    %v1704 = vpack.c.b16 %v1520, %v1512
    %v1705 = vpack.c.b16 %v1521, %v1513
    %v1706 = vpack.c.b16 %v1522, %v1514
    %v1707 = vpack.c.b16 %v1531, %v1523
    %v1708 = vpack.c.b16 %v1532, %v1524
    %v1709 = vpack.c.b16 %v1533, %v1525
    %v1710 = vpack.c.b16 %v1534, %v1526
    %v1711 = vpack.c.b16 %v1535, %v1527
    %v1712 = vpack.c.b16 %v1536, %v1528
    %v1713 = vpack.c.b16 %v1537, %v1529
    %v1714 = vpack.c.b16 %v1538, %v1530
    %v1715 = vpack.c.b16 %v1547, %v1539
    %v1716 = vpack.c.b16 %v1548, %v1540
    %v1717 = vpack.c.b16 %v1549, %v1541
    %v1718 = vpack.c.b16 %v1550, %v1542
    %v1719 = vpack.c.b16 %v1551, %v1543
    %v1720 = vpack.c.b16 %v1552, %v1544
    %v1721 = vpack.c.b16 %v1553, %v1545
    %v1722 = vpack.c.b16 %v1554, %v1546
    %v1723 = vpack.c.b16 %v1563, %v1555
    %v1724 = vpack.c.b16 %v1564, %v1556
    %v1725 = vpack.c.b16 %v1565, %v1557
    %v1726 = vpack.c.b16 %v1566, %v1558
    %v1727 = vpack.c.b16 %v1567, %v1559
    %v1728 = vpack.c.b16 %v1568, %v1560
    %v1729 = vpack.c.b16 %v1569, %v1561
    %v1730 = vpack.c.b16 %v1570, %v1562
    %v1731 = vpack.c.b16 %v1579, %v1571
    %v1732 = vpack.c.b16 %v1580, %v1572
    %v1733 = vpack.c.b16 %v1581, %v1573
    %v1734 = vpack.c.b16 %v1582, %v1574
    %v1735 = vpack.c.b16 %v1583, %v1575
    %v1736 = vpack.c.b16 %v1584, %v1576
    %v1737 = vpack.c.b16 %v1585, %v1577
    %v1738 = vpack.c.b16 %v1586, %v1578
    %v1739 = vpack.c.b16 %v1595, %v1587
    %v1740 = vpack.c.b16 %v1596, %v1588
    %v1741 = vpack.c.b16 %v1597, %v1589
    %v1742 = vpack.c.b16 %v1598, %v1590
    %v1743 = vpack.c.b16 %v1599, %v1591
    %v1744 = vpack.c.b16 %v1600, %v1592
    %v1745 = vpack.c.b16 %v1601, %v1593
    %v1746 = vpack.c.b16 %v1602, %v1594
    %v1747 = vpack.c.b16 %v1611, %v1603
    %v1748 = vpack.c.b16 %v1612, %v1604
    %v1749 = vpack.c.b16 %v1613, %v1605
    %v1750 = vpack.c.b16 %v1614, %v1606
    %v1751 = vpack.c.b16 %v1615, %v1607
    %v1752 = vpack.c.b16 %v1616, %v1608
    %v1753 = vpack.c.b16 %v1617, %v1609
    %v1754 = vpack.c.b16 %v1618, %v1610
    %v1755 = vpack.c.b16 %v1627, %v1619
    %v1756 = vpack.c.b16 %v1628, %v1620
    %v1757 = vpack.c.b16 %v1629, %v1621
    %v1758 = vpack.c.b16 %v1630, %v1622
    %v1759 = vpack.c.b16 %v1631, %v1623
    %v1760 = vpack.c.b16 %v1632, %v1624
    %v1761 = vpack.c.b16 %v1633, %v1625
    %v1762 = vpack.c.b16 %v1634, %v1626
    %1891 = vmatprep.subr.bf16.mxu0 %v1636
    %1892 = vmatpush1.bf16.msra.mxu0 %v1635
    %1893 = vmatprep.subr.bf16.mxu0 %v1644
    %1894 = vmatpush1.bf16.msra.mxu0 %v1643
    %1895 = vmatprep.subr.bf16.mxu0 %v1652
    %1896 = vmatpush1.bf16.msra.mxu0 %v1651
    %1897 = vmatprep.subr.bf16.mxu0 %v1660
    %1898 = vmatpush1.bf16.msra.mxu0 %v1659
    %1899 = vmatprep.subr.bf16.mxu0 %v1668
    %1900 = vmatpush1.bf16.msra.mxu0 %v1667
    %1901 = vmatprep.subr.bf16.mxu0 %v1676
    %1902 = vmatpush1.bf16.msra.mxu0 %v1675
    %1903 = vmatprep.subr.bf16.mxu0 %v1684
    %1904 = vmatpush1.bf16.msra.mxu0 %v1683
    %1905 = vmatprep.subr.bf16.mxu0 %v1692
    %1906 = vmatpush1.bf16.msra.mxu0 %v1691
    %1907 = vmatprep.subr.bf16.mxu0 %v1700
    %1908 = vmatpush1.bf16.msra.mxu0 %v1699
    %1909 = vmatprep.subr.bf16.mxu0 %v1708
    %1910 = vmatpush1.bf16.msra.mxu0 %v1707
    %1911 = vmatprep.subr.bf16.mxu0 %v1716
    %1912 = vmatpush1.bf16.msra.mxu0 %v1715
    %1913 = vmatprep.subr.bf16.mxu0 %v1724
    %1914 = vmatpush1.bf16.msra.mxu0 %v1723
    %1915 = vmatprep.subr.bf16.mxu0 %v1732
    %1916 = vmatpush1.bf16.msra.mxu0 %v1731
    %1917 = vmatprep.subr.bf16.mxu0 %v1740
    %1918 = vmatpush1.bf16.msra.mxu0 %v1739
    %1919 = vmatprep.subr.bf16.mxu0 %v1748
    %1920 = vmatpush1.bf16.msra.mxu0 %v1747
    %1921 = vmatprep.subr.bf16.mxu0 %v1756
    %1922 = vmatpush1.bf16.msra.mxu0 %v1755
    %1923 = vmatprep.mubr.bf16.mxu0 0
    %1924 = vmatmul.mubr.bf16.gmra.mrb[0].mxu0 0
    %v1925 = vpop.f32.mrb[0].mxu0
    %v1926 = vadd.f32 0.0, %v1925
    %v1927 = vpop.f32.mrb[0].mxu0
    %v1928 = vadd.f32 0.0, %v1927
    %v1929 = vpop.f32.mrb[0].mxu0
    %v1930 = vadd.f32 0.0, %v1929
    %v1931 = vpop.f32.mrb[0].mxu0
    %v1932 = vadd.f32 0.0, %v1931
    %1933 = vdwg.mxu0
    %1934 = vmatprep.subr.bf16.mxu0 %v1638
    %1935 = vmatpush1.bf16.msra.mxu0 %v1637
    %1936 = vmatprep.subr.bf16.mxu0 %v1646
    %1937 = vmatpush1.bf16.msra.mxu0 %v1645
    %1938 = vmatprep.subr.bf16.mxu0 %v1654
    %1939 = vmatpush1.bf16.msra.mxu0 %v1653
    %1940 = vmatprep.subr.bf16.mxu0 %v1662
    %1941 = vmatpush1.bf16.msra.mxu0 %v1661
    %1942 = vmatprep.subr.bf16.mxu0 %v1670
    %1943 = vmatpush1.bf16.msra.mxu0 %v1669
    %1944 = vmatprep.subr.bf16.mxu0 %v1678
    %1945 = vmatpush1.bf16.msra.mxu0 %v1677
    %1946 = vmatprep.subr.bf16.mxu0 %v1686
    %1947 = vmatpush1.bf16.msra.mxu0 %v1685
    %1948 = vmatprep.subr.bf16.mxu0 %v1694
    %1949 = vmatpush1.bf16.msra.mxu0 %v1693
    %1950 = vmatprep.subr.bf16.mxu0 %v1702
    %1951 = vmatpush1.bf16.msra.mxu0 %v1701
    %1952 = vmatprep.subr.bf16.mxu0 %v1710
    %1953 = vmatpush1.bf16.msra.mxu0 %v1709
    %1954 = vmatprep.subr.bf16.mxu0 %v1718
    %1955 = vmatpush1.bf16.msra.mxu0 %v1717
    %1956 = vmatprep.subr.bf16.mxu0 %v1726
    %1957 = vmatpush1.bf16.msra.mxu0 %v1725
    %1958 = vmatprep.subr.bf16.mxu0 %v1734
    %1959 = vmatpush1.bf16.msra.mxu0 %v1733
    %1960 = vmatprep.subr.bf16.mxu0 %v1742
    %1961 = vmatpush1.bf16.msra.mxu0 %v1741
    %1962 = vmatprep.subr.bf16.mxu0 %v1750
    %1963 = vmatpush1.bf16.msra.mxu0 %v1749
    %1964 = vmatprep.subr.bf16.mxu0 %v1758
    %1965 = vmatpush1.bf16.msra.mxu0 %v1757
    %1966 = vmatprep.mubr.bf16.mxu0 0
    %1967 = vmatmul.mubr.bf16.gmra.mrb[0].mxu0 0
    %v1968 = vpop.f32.mrb[0].mxu0
    %v1969 = vadd.f32 0.0, %v1968
    %v1970 = vpop.f32.mrb[0].mxu0
    %v1971 = vadd.f32 0.0, %v1970
    %v1972 = vpop.f32.mrb[0].mxu0
    %v1973 = vadd.f32 0.0, %v1972
    %v1974 = vpop.f32.mrb[0].mxu0
    %v1975 = vadd.f32 0.0, %v1974
    %1976 = vdwg.mxu0
    %1977 = vmatprep.subr.bf16.mxu0 %v1640
    %1978 = vmatpush1.bf16.msra.mxu0 %v1639
    %1979 = vmatprep.subr.bf16.mxu0 %v1648
    %1980 = vmatpush1.bf16.msra.mxu0 %v1647
    %1981 = vmatprep.subr.bf16.mxu0 %v1656
    %1982 = vmatpush1.bf16.msra.mxu0 %v1655
    %1983 = vmatprep.subr.bf16.mxu0 %v1664
    %1984 = vmatpush1.bf16.msra.mxu0 %v1663
    %1985 = vmatprep.subr.bf16.mxu0 %v1672
    %1986 = vmatpush1.bf16.msra.mxu0 %v1671
    %1987 = vmatprep.subr.bf16.mxu0 %v1680
    %1988 = vmatpush1.bf16.msra.mxu0 %v1679
    %1989 = vmatprep.subr.bf16.mxu0 %v1688
    %1990 = vmatpush1.bf16.msra.mxu0 %v1687
    %1991 = vmatprep.subr.bf16.mxu0 %v1696
    %1992 = vmatpush1.bf16.msra.mxu0 %v1695
    %1993 = vmatprep.subr.bf16.mxu0 %v1704
    %1994 = vmatpush1.bf16.msra.mxu0 %v1703
    %1995 = vmatprep.subr.bf16.mxu0 %v1712
    %1996 = vmatpush1.bf16.msra.mxu0 %v1711
    %1997 = vmatprep.subr.bf16.mxu0 %v1720
    %1998 = vmatpush1.bf16.msra.mxu0 %v1719
    %1999 = vmatprep.subr.bf16.mxu0 %v1728
    %2000 = vmatpush1.bf16.msra.mxu0 %v1727
    %2001 = vmatprep.subr.bf16.mxu0 %v1736
    %2002 = vmatpush1.bf16.msra.mxu0 %v1735
    %2003 = vmatprep.subr.bf16.mxu0 %v1744
    %2004 = vmatpush1.bf16.msra.mxu0 %v1743
    %2005 = vmatprep.subr.bf16.mxu0 %v1752
    %2006 = vmatpush1.bf16.msra.mxu0 %v1751
    %2007 = vmatprep.subr.bf16.mxu0 %v1760
    %2008 = vmatpush1.bf16.msra.mxu0 %v1759
    %2009 = vmatprep.mubr.bf16.mxu0 0
    %2010 = vmatmul.mubr.bf16.gmra.mrb[0].mxu0 0
    %v2011 = vpop.f32.mrb[0].mxu0
    %v2012 = vadd.f32 0.0, %v2011
    %v2013 = vpop.f32.mrb[0].mxu0
    %v2014 = vadd.f32 0.0, %v2013
    %v2015 = vpop.f32.mrb[0].mxu0
    %v2016 = vadd.f32 0.0, %v2015
    %v2017 = vpop.f32.mrb[0].mxu0
    %v2018 = vadd.f32 0.0, %v2017
    %2019 = vdwg.mxu0
    %2020 = vmatprep.subr.bf16.mxu0 %v1642
    %2021 = vmatpush1.bf16.msra.mxu0 %v1641
    %2022 = vmatprep.subr.bf16.mxu0 %v1650
    %2023 = vmatpush1.bf16.msra.mxu0 %v1649
    %2024 = vmatprep.subr.bf16.mxu0 %v1658
    %2025 = vmatpush1.bf16.msra.mxu0 %v1657
    %2026 = vmatprep.subr.bf16.mxu0 %v1666
    %2027 = vmatpush1.bf16.msra.mxu0 %v1665
    %2028 = vmatprep.subr.bf16.mxu0 %v1674
    %2029 = vmatpush1.bf16.msra.mxu0 %v1673
    %2030 = vmatprep.subr.bf16.mxu0 %v1682
    %2031 = vmatpush1.bf16.msra.mxu0 %v1681
    %2032 = vmatprep.subr.bf16.mxu0 %v1690
    %2033 = vmatpush1.bf16.msra.mxu0 %v1689
    %2034 = vmatprep.subr.bf16.mxu0 %v1698
    %2035 = vmatpush1.bf16.msra.mxu0 %v1697
    %2036 = vmatprep.subr.bf16.mxu0 %v1706
    %2037 = vmatpush1.bf16.msra.mxu0 %v1705
    %2038 = vmatprep.subr.bf16.mxu0 %v1714
    %2039 = vmatpush1.bf16.msra.mxu0 %v1713
    %2040 = vmatprep.subr.bf16.mxu0 %v1722
    %2041 = vmatpush1.bf16.msra.mxu0 %v1721
    %2042 = vmatprep.subr.bf16.mxu0 %v1730
    %2043 = vmatpush1.bf16.msra.mxu0 %v1729
    %2044 = vmatprep.subr.bf16.mxu0 %v1738
    %2045 = vmatpush1.bf16.msra.mxu0 %v1737
    %2046 = vmatprep.subr.bf16.mxu0 %v1746
    %2047 = vmatpush1.bf16.msra.mxu0 %v1745
    %2048 = vmatprep.subr.bf16.mxu0 %v1754
    %2049 = vmatpush1.bf16.msra.mxu0 %v1753
    %2050 = vmatprep.subr.bf16.mxu0 %v1762
    %2051 = vmatpush1.bf16.msra.mxu0 %v1761
    %2052 = vmatprep.mubr.bf16.mxu0 0
    %2053 = vmatmul.mubr.bf16.gmra.mrb[0].mxu0 0
    %v2054 = vpop.f32.mrb[0].mxu0
    %v2055 = vadd.f32 0.0, %v2054
    %v2056 = vpop.f32.mrb[0].mxu0
    %v2057 = vadd.f32 0.0, %v2056
    %v2058 = vpop.f32.mrb[0].mxu0
    %v2059 = vadd.f32 0.0, %v2058
    %v2060 = vpop.f32.mrb[0].mxu0
    %v2061 = vadd.f32 0.0, %v2060
    %2062 = vdwg.mxu0
    %v2063 = vld [vmem:[#allocation2] sm:$0xff]
    %v2064 = vld [vmem:[#allocation2 + $0x8] sm:$0xff]
    %v2065 = vld [vmem:[#allocation2 + $0x10] sm:$0xff]
    %v2066 = vld [vmem:[#allocation2 + $0x18] sm:$0xff]
    %v2067 = vld [vmem:[#allocation2 + $0x40] sm:$0xff]
    %v2068 = vld [vmem:[#allocation2 + $0x48] sm:$0xff]
    %v2069 = vld [vmem:[#allocation2 + $0x50] sm:$0xff]
    %v2070 = vld [vmem:[#allocation2 + $0x58] sm:$0xff]
    %v2071 = vadd.f32 %v2063, %v1926
    %v2072 = vadd.f32 %v2064, %v1928
    %v2073 = vadd.f32 %v2065, %v1969
    %v2074 = vadd.f32 %v2066, %v1971
    %v2075 = vadd.f32 %v2067, %v1930
    %v2076 = vadd.f32 %v2068, %v1932
    %v2077 = vadd.f32 %v2069, %v1973
    %v2078 = vadd.f32 %v2070, %v1975
    %v2079 = vld [vmem:[#allocation2 + $0x3a0] sm:$0xff]
    %v2080 = vld [vmem:[#allocation2 + $0x3a8] sm:$0xff]
    %v2081 = vld [vmem:[#allocation2 + $0x3b0] sm:$0xff]
    %v2082 = vld [vmem:[#allocation2 + $0x3b8] sm:$0xff]
    %v2083 = vld [vmem:[#allocation2 + $0x3e0] sm:$0xff]
    %v2084 = vld [vmem:[#allocation2 + $0x3e8] sm:$0xff]
    %v2085 = vld [vmem:[#allocation2 + $0x3f0] sm:$0xff]
    %v2086 = vld [vmem:[#allocation2 + $0x3f8] sm:$0xff]
    %v2087 = vadd.f32 %v2079, %v2012
    %v2088 = vadd.f32 %v2080, %v2014
    %v2089 = vadd.f32 %v2081, %v2055
    %v2090 = vadd.f32 %v2082, %v2057
    %v2091 = vadd.f32 %v2083, %v2016
    %v2092 = vadd.f32 %v2084, %v2018
    %v2093 = vadd.f32 %v2085, %v2059
    %v2094 = vadd.f32 %v2086, %v2061
    %v2095 = vmul.f32 %v2071, 0.5
    %v2096 = vmul.f32 %v2075, 0.5
    %v2097 = vtanh.pop %v2095
    %v2098 = vtanh.pop %v2096
    %v2099 = vmul.f32 %v2097, 0.5
    %v2100 = vmul.f32 %v2098, 0.5
    %v2101 = vadd.f32 %v2099, 0.5
    %v2102 = vadd.f32 %v2100, 0.5
    %v2103 = vmul.f32 %v2072, 0.5
    %v2104 = vmul.f32 %v2076, 0.5
    %v2105 = vtanh.pop %v2103
    %v2106 = vtanh.pop %v2104
    %v2107 = vmul.f32 %v2105, 0.5
    %v2108 = vmul.f32 %v2106, 0.5
    %v2109 = vadd.f32 %v2107, 0.5
    %v2110 = vadd.f32 %v2108, 0.5
    %v2111 = vtanh.pop %v2073
    %v2112 = vtanh.pop %v2077
    %v2113 = vmul.f32 %v2074, 0.5
    %v2114 = vmul.f32 %v2078, 0.5
    %v2115 = vtanh.pop %v2113
    %v2116 = vtanh.pop %v2114
    %v2117 = vmul.f32 %v2115, 0.5
    %v2118 = vmul.f32 %v2116, 0.5
    %v2119 = vadd.f32 %v2117, 0.5
    %v2120 = vadd.f32 %v2118, 0.5
    %v2121 = vmul.f32 %v2109, 0.0
    %v2122 = vmul.f32 %v2110, 0.0
    %v2123 = vmul.f32 %v2101, %v2111
    %v2124 = vmul.f32 %v2102, %v2112
    %v2125 = vadd.f32 %v2121, %v2123
    %v2126 = vadd.f32 %v2122, %v2124
    %v2127 = vtanh.pop %v2125
    %v2128 = vtanh.pop %v2126
    %v2129 = vmul.f32 %v2119, %v2127
    %v2130 = vmul.f32 %v2120, %v2128
    %v2131 = vmul.f32 %v2087, 0.5
    %v2132 = vmul.f32 %v2091, 0.5
    %v2133 = vtanh.pop %v2131
    %v2134 = vtanh.pop %v2132
    %v2135 = vmul.f32 %v2133, 0.5
    %v2136 = vmul.f32 %v2134, 0.5
    %v2137 = vadd.f32 %v2135, 0.5
    %v2138 = vadd.f32 %v2136, 0.5
    %v2139 = vmul.f32 %v2088, 0.5
    %v2140 = vmul.f32 %v2092, 0.5
    %v2141 = vtanh.pop %v2139
    %v2142 = vtanh.pop %v2140
    %v2143 = vmul.f32 %v2141, 0.5
    %v2144 = vmul.f32 %v2142, 0.5
    %v2145 = vadd.f32 %v2143, 0.5
    %v2146 = vadd.f32 %v2144, 0.5
    %v2147 = vtanh.pop %v2089
    %v2148 = vtanh.pop %v2093
    %v2149 = vmul.f32 %v2090, 0.5
    %v2150 = vmul.f32 %v2094, 0.5
    %v2151 = vtanh.pop %v2149
    %v2152 = vtanh.pop %v2150
    %v2153 = vmul.f32 %v2151, 0.5
    %v2154 = vmul.f32 %v2152, 0.5
    %v2155 = vadd.f32 %v2153, 0.5
    %v2156 = vadd.f32 %v2154, 0.5
    %v2157 = vmul.f32 %v2145, 0.0
    %v2158 = vmul.f32 %v2146, 0.0
    %v2159 = vmul.f32 %v2137, %v2147
    %v2160 = vmul.f32 %v2138, %v2148
    %v2161 = vadd.f32 %v2157, %v2159
    %v2162 = vadd.f32 %v2158, %v2160
    %v2163 = vtanh.pop %v2161
    %v2164 = vtanh.pop %v2162
    %v2165 = vmul.f32 %v2155, %v2163
    %v2166 = vmul.f32 %v2156, %v2164
    %v2167 = vpack.c.bf16 %v2130, %v2129
    %v2168 = vpack.c.bf16 %v2166, %v2165
    %2169 = vst [vmem:[#allocation3] sm:$0xff] %v2167
    %2170 = vst [vmem:[#allocation3 + $0x78] sm:$0xff] %v2168
    %v2171 = vld [vmem:[#allocation7] sm:$0xff]
    %v2172 = vld [vmem:[#allocation7 + $0x8] sm:$0xff]
    %v2173 = vld [vmem:[#allocation7 + $0x10] sm:$0xff]
    %v2174 = vld [vmem:[#allocation7 + $0x18] sm:$0xff]
    %v2175 = vld [vmem:[#allocation7 + $0x20] sm:$0xff]
    %v2176 = vld [vmem:[#allocation7 + $0x28] sm:$0xff]
    %v2177 = vld [vmem:[#allocation7 + $0x30] sm:$0xff]
    %v2178 = vld [vmem:[#allocation7 + $0x38] sm:$0xff]
    %v2179 = vld [vmem:[#allocation7 + $0x40] sm:$0xff]
    %v2180 = vld [vmem:[#allocation7 + $0x48] sm:$0xff]
    %v2181 = vld [vmem:[#allocation7 + $0x50] sm:$0xff]
    %v2182 = vld [vmem:[#allocation7 + $0x58] sm:$0xff]
    %v2183 = vld [vmem:[#allocation7 + $0x60] sm:$0xff]
    %v2184 = vld [vmem:[#allocation7 + $0x68] sm:$0xff]
    %v2185 = vld [vmem:[#allocation7 + $0x70] sm:$0xff]
    %v2186 = vld [vmem:[#allocation7 + $0x78] sm:$0xff]
    %v2187 = vld [vmem:[#allocation7 + $0x80] sm:$0xff]
    %v2188 = vld [vmem:[#allocation7 + $0x88] sm:$0xff]
    %v2189 = vld [vmem:[#allocation7 + $0x90] sm:$0xff]
    %v2190 = vld [vmem:[#allocation7 + $0x98] sm:$0xff]
    %v2191 = vld [vmem:[#allocation7 + $0xa0] sm:$0xff]
    %v2192 = vld [vmem:[#allocation7 + $0xa8] sm:$0xff]
    %v2193 = vld [vmem:[#allocation7 + $0xb0] sm:$0xff]
    %v2194 = vld [vmem:[#allocation7 + $0xb8] sm:$0xff]
    %v2195 = vld [vmem:[#allocation7 + $0xc0] sm:$0xff]
    %v2196 = vld [vmem:[#allocation7 + $0xc8] sm:$0xff]
    %v2197 = vld [vmem:[#allocation7 + $0xd0] sm:$0xff]
    %v2198 = vld [vmem:[#allocation7 + $0xd8] sm:$0xff]
    %v2199 = vld [vmem:[#allocation7 + $0xe0] sm:$0xff]
    %v2200 = vld [vmem:[#allocation7 + $0xe8] sm:$0xff]
    %v2201 = vld [vmem:[#allocation7 + $0xf0] sm:$0xff]
    %v2202 = vld [vmem:[#allocation7 + $0xf8] sm:$0xff]
    %v2203 = vld [vmem:[#allocation7 + $0x100] sm:$0xff]
    %v2204 = vld [vmem:[#allocation7 + $0x108] sm:$0xff]
    %v2205 = vld [vmem:[#allocation7 + $0x110] sm:$0xff]
    %v2206 = vld [vmem:[#allocation7 + $0x118] sm:$0xff]
    %v2207 = vld [vmem:[#allocation7 + $0x120] sm:$0xff]
    %v2208 = vld [vmem:[#allocation7 + $0x128] sm:$0xff]
    %v2209 = vld [vmem:[#allocation7 + $0x130] sm:$0xff]
    %v2210 = vld [vmem:[#allocation7 + $0x138] sm:$0xff]
    %v2211 = vld [vmem:[#allocation7 + $0x140] sm:$0xff]
    %v2212 = vld [vmem:[#allocation7 + $0x148] sm:$0xff]
    %v2213 = vld [vmem:[#allocation7 + $0x150] sm:$0xff]
    %v2214 = vld [vmem:[#allocation7 + $0x158] sm:$0xff]
    %v2215 = vld [vmem:[#allocation7 + $0x160] sm:$0xff]
    %v2216 = vld [vmem:[#allocation7 + $0x168] sm:$0xff]
    %v2217 = vld [vmem:[#allocation7 + $0x170] sm:$0xff]
    %v2218 = vld [vmem:[#allocation7 + $0x178] sm:$0xff]
    %v2219 = vld [vmem:[#allocation7 + $0x180] sm:$0xff]
    %v2220 = vld [vmem:[#allocation7 + $0x188] sm:$0xff]
    %v2221 = vld [vmem:[#allocation7 + $0x190] sm:$0xff]
    %v2222 = vld [vmem:[#allocation7 + $0x198] sm:$0xff]
    %v2223 = vld [vmem:[#allocation7 + $0x1a0] sm:$0xff]
    %v2224 = vld [vmem:[#allocation7 + $0x1a8] sm:$0xff]
    %v2225 = vld [vmem:[#allocation7 + $0x1b0] sm:$0xff]
    %v2226 = vld [vmem:[#allocation7 + $0x1b8] sm:$0xff]
    %v2227 = vld [vmem:[#allocation7 + $0x1c0] sm:$0xff]
    %v2228 = vld [vmem:[#allocation7 + $0x1c8] sm:$0xff]
    %v2229 = vld [vmem:[#allocation7 + $0x1d0] sm:$0xff]
    %v2230 = vld [vmem:[#allocation7 + $0x1d8] sm:$0xff]
    %v2231 = vld [vmem:[#allocation7 + $0x1e0] sm:$0xff]
    %v2232 = vld [vmem:[#allocation7 + $0x1e8] sm:$0xff]
    %v2233 = vld [vmem:[#allocation7 + $0x1f0] sm:$0xff]
    %v2234 = vld [vmem:[#allocation7 + $0x1f8] sm:$0xff]
    %v2235 = vld [vmem:[#allocation7 + $0x200] sm:$0xff]
    %v2236 = vld [vmem:[#allocation7 + $0x208] sm:$0xff]
    %v2237 = vld [vmem:[#allocation7 + $0x210] sm:$0xff]
    %v2238 = vld [vmem:[#allocation7 + $0x218] sm:$0xff]
    %v2239 = vld [vmem:[#allocation7 + $0x220] sm:$0xff]
    %v2240 = vld [vmem:[#allocation7 + $0x228] sm:$0xff]
    %v2241 = vld [vmem:[#allocation7 + $0x230] sm:$0xff]
    %v2242 = vld [vmem:[#allocation7 + $0x238] sm:$0xff]
    %v2243 = vld [vmem:[#allocation7 + $0x240] sm:$0xff]
    %v2244 = vld [vmem:[#allocation7 + $0x248] sm:$0xff]
    %v2245 = vld [vmem:[#allocation7 + $0x250] sm:$0xff]
    %v2246 = vld [vmem:[#allocation7 + $0x258] sm:$0xff]
    %v2247 = vld [vmem:[#allocation7 + $0x260] sm:$0xff]
    %v2248 = vld [vmem:[#allocation7 + $0x268] sm:$0xff]
    %v2249 = vld [vmem:[#allocation7 + $0x270] sm:$0xff]
    %v2250 = vld [vmem:[#allocation7 + $0x278] sm:$0xff]
    %v2251 = vld [vmem:[#allocation7 + $0x280] sm:$0xff]
    %v2252 = vld [vmem:[#allocation7 + $0x288] sm:$0xff]
    %v2253 = vld [vmem:[#allocation7 + $0x290] sm:$0xff]
    %v2254 = vld [vmem:[#allocation7 + $0x298] sm:$0xff]
    %v2255 = vld [vmem:[#allocation7 + $0x2a0] sm:$0xff]
    %v2256 = vld [vmem:[#allocation7 + $0x2a8] sm:$0xff]
    %v2257 = vld [vmem:[#allocation7 + $0x2b0] sm:$0xff]
    %v2258 = vld [vmem:[#allocation7 + $0x2b8] sm:$0xff]
    %v2259 = vld [vmem:[#allocation7 + $0x2c0] sm:$0xff]
    %v2260 = vld [vmem:[#allocation7 + $0x2c8] sm:$0xff]
    %v2261 = vld [vmem:[#allocation7 + $0x2d0] sm:$0xff]
    %v2262 = vld [vmem:[#allocation7 + $0x2d8] sm:$0xff]
    %v2263 = vld [vmem:[#allocation7 + $0x2e0] sm:$0xff]
    %v2264 = vld [vmem:[#allocation7 + $0x2e8] sm:$0xff]
    %v2265 = vld [vmem:[#allocation7 + $0x2f0] sm:$0xff]
    %v2266 = vld [vmem:[#allocation7 + $0x2f8] sm:$0xff]
    %v2267 = vld [vmem:[#allocation7 + $0x300] sm:$0xff]
    %v2268 = vld [vmem:[#allocation7 + $0x308] sm:$0xff]
    %v2269 = vld [vmem:[#allocation7 + $0x310] sm:$0xff]
    %v2270 = vld [vmem:[#allocation7 + $0x318] sm:$0xff]
    %v2271 = vld [vmem:[#allocation7 + $0x320] sm:$0xff]
    %v2272 = vld [vmem:[#allocation7 + $0x328] sm:$0xff]
    %v2273 = vld [vmem:[#allocation7 + $0x330] sm:$0xff]
    %v2274 = vld [vmem:[#allocation7 + $0x338] sm:$0xff]
    %v2275 = vld [vmem:[#allocation7 + $0x340] sm:$0xff]
    %v2276 = vld [vmem:[#allocation7 + $0x348] sm:$0xff]
    %v2277 = vld [vmem:[#allocation7 + $0x350] sm:$0xff]
    %v2278 = vld [vmem:[#allocation7 + $0x358] sm:$0xff]
    %v2279 = vld [vmem:[#allocation7 + $0x360] sm:$0xff]
    %v2280 = vld [vmem:[#allocation7 + $0x368] sm:$0xff]
    %v2281 = vld [vmem:[#allocation7 + $0x370] sm:$0xff]
    %v2282 = vld [vmem:[#allocation7 + $0x378] sm:$0xff]
    %v2283 = vld [vmem:[#allocation7 + $0x380] sm:$0xff]
    %v2284 = vld [vmem:[#allocation7 + $0x388] sm:$0xff]
    %v2285 = vld [vmem:[#allocation7 + $0x390] sm:$0xff]
    %v2286 = vld [vmem:[#allocation7 + $0x398] sm:$0xff]
    %v2287 = vld [vmem:[#allocation7 + $0x3a0] sm:$0xff]
    %v2288 = vld [vmem:[#allocation7 + $0x3a8] sm:$0xff]
    %v2289 = vld [vmem:[#allocation7 + $0x3b0] sm:$0xff]
    %v2290 = vld [vmem:[#allocation7 + $0x3b8] sm:$0xff]
    %v2291 = vld [vmem:[#allocation7 + $0x3c0] sm:$0xff]
    %v2292 = vld [vmem:[#allocation7 + $0x3c8] sm:$0xff]
    %v2293 = vld [vmem:[#allocation7 + $0x3d0] sm:$0xff]
    %v2294 = vld [vmem:[#allocation7 + $0x3d8] sm:$0xff]
    %v2295 = vld [vmem:[#allocation7 + $0x3e0] sm:$0xff]
    %v2296 = vld [vmem:[#allocation7 + $0x3e8] sm:$0xff]
    %v2297 = vld [vmem:[#allocation7 + $0x3f0] sm:$0xff]
    %v2298 = vld [vmem:[#allocation7 + $0x3f8] sm:$0xff]
    %v2427 = vunpack.c.l.b16 %v2171
    %v2428 = vunpack.c.h.b16 %v2171
    %v2429 = vunpack.c.l.b16 %v2172
    %v2430 = vunpack.c.h.b16 %v2172
    %v2431 = vunpack.c.l.b16 %v2173
    %v2432 = vunpack.c.h.b16 %v2173
    %v2433 = vunpack.c.l.b16 %v2174
    %v2434 = vunpack.c.h.b16 %v2174
    %v2435 = vunpack.c.l.b16 %v2175
    %v2436 = vunpack.c.h.b16 %v2175
    %v2437 = vunpack.c.l.b16 %v2176
    %v2438 = vunpack.c.h.b16 %v2176
    %v2439 = vunpack.c.l.b16 %v2177
    %v2440 = vunpack.c.h.b16 %v2177
    %v2441 = vunpack.c.l.b16 %v2178
    %v2442 = vunpack.c.h.b16 %v2178
    %v2443 = vunpack.c.l.b16 %v2179
    %v2444 = vunpack.c.h.b16 %v2179
    %v2445 = vunpack.c.l.b16 %v2180
    %v2446 = vunpack.c.h.b16 %v2180
    %v2447 = vunpack.c.l.b16 %v2181
    %v2448 = vunpack.c.h.b16 %v2181
    %v2449 = vunpack.c.l.b16 %v2182
    %v2450 = vunpack.c.h.b16 %v2182
    %v2451 = vunpack.c.l.b16 %v2183
    %v2452 = vunpack.c.h.b16 %v2183
    %v2453 = vunpack.c.l.b16 %v2184
    %v2454 = vunpack.c.h.b16 %v2184
    %v2455 = vunpack.c.l.b16 %v2185
    %v2456 = vunpack.c.h.b16 %v2185
    %v2457 = vunpack.c.l.b16 %v2186
    %v2458 = vunpack.c.h.b16 %v2186
    %v2459 = vunpack.c.l.b16 %v2187
    %v2460 = vunpack.c.h.b16 %v2187
    %v2461 = vunpack.c.l.b16 %v2188
    %v2462 = vunpack.c.h.b16 %v2188
    %v2463 = vunpack.c.l.b16 %v2189
    %v2464 = vunpack.c.h.b16 %v2189
    %v2465 = vunpack.c.l.b16 %v2190
    %v2466 = vunpack.c.h.b16 %v2190
    %v2467 = vunpack.c.l.b16 %v2191
    %v2468 = vunpack.c.h.b16 %v2191
    %v2469 = vunpack.c.l.b16 %v2192
    %v2470 = vunpack.c.h.b16 %v2192
    %v2471 = vunpack.c.l.b16 %v2193
    %v2472 = vunpack.c.h.b16 %v2193
    %v2473 = vunpack.c.l.b16 %v2194
    %v2474 = vunpack.c.h.b16 %v2194
    %v2475 = vunpack.c.l.b16 %v2195
    %v2476 = vunpack.c.h.b16 %v2195
    %v2477 = vunpack.c.l.b16 %v2196
    %v2478 = vunpack.c.h.b16 %v2196
    %v2479 = vunpack.c.l.b16 %v2197
    %v2480 = vunpack.c.h.b16 %v2197
    %v2481 = vunpack.c.l.b16 %v2198
    %v2482 = vunpack.c.h.b16 %v2198
    %v2483 = vunpack.c.l.b16 %v2199
    %v2484 = vunpack.c.h.b16 %v2199
    %v2485 = vunpack.c.l.b16 %v2200
    %v2486 = vunpack.c.h.b16 %v2200
    %v2487 = vunpack.c.l.b16 %v2201
    %v2488 = vunpack.c.h.b16 %v2201
    %v2489 = vunpack.c.l.b16 %v2202
    %v2490 = vunpack.c.h.b16 %v2202
    %v2491 = vunpack.c.l.b16 %v2203
    %v2492 = vunpack.c.h.b16 %v2203
    %v2493 = vunpack.c.l.b16 %v2204
    %v2494 = vunpack.c.h.b16 %v2204
    %v2495 = vunpack.c.l.b16 %v2205
    %v2496 = vunpack.c.h.b16 %v2205
    %v2497 = vunpack.c.l.b16 %v2206
    %v2498 = vunpack.c.h.b16 %v2206
    %v2499 = vunpack.c.l.b16 %v2207
    %v2500 = vunpack.c.h.b16 %v2207
    %v2501 = vunpack.c.l.b16 %v2208
    %v2502 = vunpack.c.h.b16 %v2208
    %v2503 = vunpack.c.l.b16 %v2209
    %v2504 = vunpack.c.h.b16 %v2209
    %v2505 = vunpack.c.l.b16 %v2210
    %v2506 = vunpack.c.h.b16 %v2210
    %v2507 = vunpack.c.l.b16 %v2211
    %v2508 = vunpack.c.h.b16 %v2211
    %v2509 = vunpack.c.l.b16 %v2212
    %v2510 = vunpack.c.h.b16 %v2212
    %v2511 = vunpack.c.l.b16 %v2213
    %v2512 = vunpack.c.h.b16 %v2213
    %v2513 = vunpack.c.l.b16 %v2214
    %v2514 = vunpack.c.h.b16 %v2214
    %v2515 = vunpack.c.l.b16 %v2215
    %v2516 = vunpack.c.h.b16 %v2215
    %v2517 = vunpack.c.l.b16 %v2216
    %v2518 = vunpack.c.h.b16 %v2216
    %v2519 = vunpack.c.l.b16 %v2217
    %v2520 = vunpack.c.h.b16 %v2217
    %v2521 = vunpack.c.l.b16 %v2218
    %v2522 = vunpack.c.h.b16 %v2218
    %v2523 = vunpack.c.l.b16 %v2219
    %v2524 = vunpack.c.h.b16 %v2219
    %v2525 = vunpack.c.l.b16 %v2220
    %v2526 = vunpack.c.h.b16 %v2220
    %v2527 = vunpack.c.l.b16 %v2221
    %v2528 = vunpack.c.h.b16 %v2221
    %v2529 = vunpack.c.l.b16 %v2222
    %v2530 = vunpack.c.h.b16 %v2222
    %v2531 = vunpack.c.l.b16 %v2223
    %v2532 = vunpack.c.h.b16 %v2223
    %v2533 = vunpack.c.l.b16 %v2224
    %v2534 = vunpack.c.h.b16 %v2224
    %v2535 = vunpack.c.l.b16 %v2225
    %v2536 = vunpack.c.h.b16 %v2225
    %v2537 = vunpack.c.l.b16 %v2226
    %v2538 = vunpack.c.h.b16 %v2226
    %v2539 = vunpack.c.l.b16 %v2227
    %v2540 = vunpack.c.h.b16 %v2227
    %v2541 = vunpack.c.l.b16 %v2228
    %v2542 = vunpack.c.h.b16 %v2228
    %v2543 = vunpack.c.l.b16 %v2229
    %v2544 = vunpack.c.h.b16 %v2229
    %v2545 = vunpack.c.l.b16 %v2230
    %v2546 = vunpack.c.h.b16 %v2230
    %v2547 = vunpack.c.l.b16 %v2231
    %v2548 = vunpack.c.h.b16 %v2231
    %v2549 = vunpack.c.l.b16 %v2232
    %v2550 = vunpack.c.h.b16 %v2232
    %v2551 = vunpack.c.l.b16 %v2233
    %v2552 = vunpack.c.h.b16 %v2233
    %v2553 = vunpack.c.l.b16 %v2234
    %v2554 = vunpack.c.h.b16 %v2234
    %v2555 = vunpack.c.l.b16 %v2235
    %v2556 = vunpack.c.h.b16 %v2235
    %v2557 = vunpack.c.l.b16 %v2236
    %v2558 = vunpack.c.h.b16 %v2236
    %v2559 = vunpack.c.l.b16 %v2237
    %v2560 = vunpack.c.h.b16 %v2237
    %v2561 = vunpack.c.l.b16 %v2238
    %v2562 = vunpack.c.h.b16 %v2238
    %v2563 = vunpack.c.l.b16 %v2239
    %v2564 = vunpack.c.h.b16 %v2239
    %v2565 = vunpack.c.l.b16 %v2240
    %v2566 = vunpack.c.h.b16 %v2240
    %v2567 = vunpack.c.l.b16 %v2241
    %v2568 = vunpack.c.h.b16 %v2241
    %v2569 = vunpack.c.l.b16 %v2242
    %v2570 = vunpack.c.h.b16 %v2242
    %v2571 = vunpack.c.l.b16 %v2243
    %v2572 = vunpack.c.h.b16 %v2243
    %v2573 = vunpack.c.l.b16 %v2244
    %v2574 = vunpack.c.h.b16 %v2244
    %v2575 = vunpack.c.l.b16 %v2245
    %v2576 = vunpack.c.h.b16 %v2245
    %v2577 = vunpack.c.l.b16 %v2246
    %v2578 = vunpack.c.h.b16 %v2246
    %v2579 = vunpack.c.l.b16 %v2247
    %v2580 = vunpack.c.h.b16 %v2247
    %v2581 = vunpack.c.l.b16 %v2248
    %v2582 = vunpack.c.h.b16 %v2248
    %v2583 = vunpack.c.l.b16 %v2249
    %v2584 = vunpack.c.h.b16 %v2249
    %v2585 = vunpack.c.l.b16 %v2250
    %v2586 = vunpack.c.h.b16 %v2250
    %v2587 = vunpack.c.l.b16 %v2251
    %v2588 = vunpack.c.h.b16 %v2251
    %v2589 = vunpack.c.l.b16 %v2252
    %v2590 = vunpack.c.h.b16 %v2252
    %v2591 = vunpack.c.l.b16 %v2253
    %v2592 = vunpack.c.h.b16 %v2253
    %v2593 = vunpack.c.l.b16 %v2254
    %v2594 = vunpack.c.h.b16 %v2254
    %v2595 = vunpack.c.l.b16 %v2255
    %v2596 = vunpack.c.h.b16 %v2255
    %v2597 = vunpack.c.l.b16 %v2256
    %v2598 = vunpack.c.h.b16 %v2256
    %v2599 = vunpack.c.l.b16 %v2257
    %v2600 = vunpack.c.h.b16 %v2257
    %v2601 = vunpack.c.l.b16 %v2258
    %v2602 = vunpack.c.h.b16 %v2258
    %v2603 = vunpack.c.l.b16 %v2259
    %v2604 = vunpack.c.h.b16 %v2259
    %v2605 = vunpack.c.l.b16 %v2260
    %v2606 = vunpack.c.h.b16 %v2260
    %v2607 = vunpack.c.l.b16 %v2261
    %v2608 = vunpack.c.h.b16 %v2261
    %v2609 = vunpack.c.l.b16 %v2262
    %v2610 = vunpack.c.h.b16 %v2262
    %v2611 = vunpack.c.l.b16 %v2263
    %v2612 = vunpack.c.h.b16 %v2263
    %v2613 = vunpack.c.l.b16 %v2264
    %v2614 = vunpack.c.h.b16 %v2264
    %v2615 = vunpack.c.l.b16 %v2265
    %v2616 = vunpack.c.h.b16 %v2265
    %v2617 = vunpack.c.l.b16 %v2266
    %v2618 = vunpack.c.h.b16 %v2266
    %v2619 = vunpack.c.l.b16 %v2267
    %v2620 = vunpack.c.h.b16 %v2267
    %v2621 = vunpack.c.l.b16 %v2268
    %v2622 = vunpack.c.h.b16 %v2268
    %v2623 = vunpack.c.l.b16 %v2269
    %v2624 = vunpack.c.h.b16 %v2269
    %v2625 = vunpack.c.l.b16 %v2270
    %v2626 = vunpack.c.h.b16 %v2270
    %v2627 = vunpack.c.l.b16 %v2271
    %v2628 = vunpack.c.h.b16 %v2271
    %v2629 = vunpack.c.l.b16 %v2272
    %v2630 = vunpack.c.h.b16 %v2272
    %v2631 = vunpack.c.l.b16 %v2273
    %v2632 = vunpack.c.h.b16 %v2273
    %v2633 = vunpack.c.l.b16 %v2274
    %v2634 = vunpack.c.h.b16 %v2274
    %v2635 = vunpack.c.l.b16 %v2275
    %v2636 = vunpack.c.h.b16 %v2275
    %v2637 = vunpack.c.l.b16 %v2276
    %v2638 = vunpack.c.h.b16 %v2276
    %v2639 = vunpack.c.l.b16 %v2277
    %v2640 = vunpack.c.h.b16 %v2277
    %v2641 = vunpack.c.l.b16 %v2278
    %v2642 = vunpack.c.h.b16 %v2278
    %v2643 = vunpack.c.l.b16 %v2279
    %v2644 = vunpack.c.h.b16 %v2279
    %v2645 = vunpack.c.l.b16 %v2280
    %v2646 = vunpack.c.h.b16 %v2280
    %v2647 = vunpack.c.l.b16 %v2281
    %v2648 = vunpack.c.h.b16 %v2281
    %v2649 = vunpack.c.l.b16 %v2282
    %v2650 = vunpack.c.h.b16 %v2282
    %v2651 = vunpack.c.l.b16 %v2283
    %v2652 = vunpack.c.h.b16 %v2283
    %v2653 = vunpack.c.l.b16 %v2284
    %v2654 = vunpack.c.h.b16 %v2284
    %v2655 = vunpack.c.l.b16 %v2285
    %v2656 = vunpack.c.h.b16 %v2285
    %v2657 = vunpack.c.l.b16 %v2286
    %v2658 = vunpack.c.h.b16 %v2286
    %v2659 = vunpack.c.l.b16 %v2287
    %v2660 = vunpack.c.h.b16 %v2287
    %v2661 = vunpack.c.l.b16 %v2288
    %v2662 = vunpack.c.h.b16 %v2288
    %v2663 = vunpack.c.l.b16 %v2289
    %v2664 = vunpack.c.h.b16 %v2289
    %v2665 = vunpack.c.l.b16 %v2290
    %v2666 = vunpack.c.h.b16 %v2290
    %v2667 = vunpack.c.l.b16 %v2291
    %v2668 = vunpack.c.h.b16 %v2291
    %v2669 = vunpack.c.l.b16 %v2292
    %v2670 = vunpack.c.h.b16 %v2292
    %v2671 = vunpack.c.l.b16 %v2293
    %v2672 = vunpack.c.h.b16 %v2293
    %v2673 = vunpack.c.l.b16 %v2294
    %v2674 = vunpack.c.h.b16 %v2294
    %v2675 = vunpack.c.l.b16 %v2295
    %v2676 = vunpack.c.h.b16 %v2295
    %v2677 = vunpack.c.l.b16 %v2296
    %v2678 = vunpack.c.h.b16 %v2296
    %v2679 = vunpack.c.l.b16 %v2297
    %v2680 = vunpack.c.h.b16 %v2297
    %v2681 = vunpack.c.l.b16 %v2298
    %v2682 = vunpack.c.h.b16 %v2298
    %v2683 = vpack.c.b16 %v2435, %v2427
    %v2684 = vpack.c.b16 %v2436, %v2428
    %v2685 = vpack.c.b16 %v2437, %v2429
    %v2686 = vpack.c.b16 %v2438, %v2430
    %v2687 = vpack.c.b16 %v2439, %v2431
    %v2688 = vpack.c.b16 %v2440, %v2432
    %v2689 = vpack.c.b16 %v2441, %v2433
    %v2690 = vpack.c.b16 %v2442, %v2434
    %v2691 = vpack.c.b16 %v2451, %v2443
    %v2692 = vpack.c.b16 %v2452, %v2444
    %v2693 = vpack.c.b16 %v2453, %v2445
    %v2694 = vpack.c.b16 %v2454, %v2446
    %v2695 = vpack.c.b16 %v2455, %v2447
    %v2696 = vpack.c.b16 %v2456, %v2448
    %v2697 = vpack.c.b16 %v2457, %v2449
    %v2698 = vpack.c.b16 %v2458, %v2450
    %v2699 = vpack.c.b16 %v2467, %v2459
    %v2700 = vpack.c.b16 %v2468, %v2460
    %v2701 = vpack.c.b16 %v2469, %v2461
    %v2702 = vpack.c.b16 %v2470, %v2462
    %v2703 = vpack.c.b16 %v2471, %v2463
    %v2704 = vpack.c.b16 %v2472, %v2464
    %v2705 = vpack.c.b16 %v2473, %v2465
    %v2706 = vpack.c.b16 %v2474, %v2466
    %v2707 = vpack.c.b16 %v2483, %v2475
    %v2708 = vpack.c.b16 %v2484, %v2476
    %v2709 = vpack.c.b16 %v2485, %v2477
    %v2710 = vpack.c.b16 %v2486, %v2478
    %v2711 = vpack.c.b16 %v2487, %v2479
    %v2712 = vpack.c.b16 %v2488, %v2480
    %v2713 = vpack.c.b16 %v2489, %v2481
    %v2714 = vpack.c.b16 %v2490, %v2482
    %v2715 = vpack.c.b16 %v2499, %v2491
    %v2716 = vpack.c.b16 %v2500, %v2492
    %v2717 = vpack.c.b16 %v2501, %v2493
    %v2718 = vpack.c.b16 %v2502, %v2494
    %v2719 = vpack.c.b16 %v2503, %v2495
    %v2720 = vpack.c.b16 %v2504, %v2496
    %v2721 = vpack.c.b16 %v2505, %v2497
    %v2722 = vpack.c.b16 %v2506, %v2498
    %v2723 = vpack.c.b16 %v2515, %v2507
    %v2724 = vpack.c.b16 %v2516, %v2508
    %v2725 = vpack.c.b16 %v2517, %v2509
    %v2726 = vpack.c.b16 %v2518, %v2510
    %v2727 = vpack.c.b16 %v2519, %v2511
    %v2728 = vpack.c.b16 %v2520, %v2512
    %v2729 = vpack.c.b16 %v2521, %v2513
    %v2730 = vpack.c.b16 %v2522, %v2514
    %v2731 = vpack.c.b16 %v2531, %v2523
    %v2732 = vpack.c.b16 %v2532, %v2524
    %v2733 = vpack.c.b16 %v2533, %v2525
    %v2734 = vpack.c.b16 %v2534, %v2526
    %v2735 = vpack.c.b16 %v2535, %v2527
    %v2736 = vpack.c.b16 %v2536, %v2528
    %v2737 = vpack.c.b16 %v2537, %v2529
    %v2738 = vpack.c.b16 %v2538, %v2530
    %v2739 = vpack.c.b16 %v2547, %v2539
    %v2740 = vpack.c.b16 %v2548, %v2540
    %v2741 = vpack.c.b16 %v2549, %v2541
    %v2742 = vpack.c.b16 %v2550, %v2542
    %v2743 = vpack.c.b16 %v2551, %v2543
    %v2744 = vpack.c.b16 %v2552, %v2544
    %v2745 = vpack.c.b16 %v2553, %v2545
    %v2746 = vpack.c.b16 %v2554, %v2546
    %v2747 = vpack.c.b16 %v2563, %v2555
    %v2748 = vpack.c.b16 %v2564, %v2556
    %v2749 = vpack.c.b16 %v2565, %v2557
    %v2750 = vpack.c.b16 %v2566, %v2558
    %v2751 = vpack.c.b16 %v2567, %v2559
    %v2752 = vpack.c.b16 %v2568, %v2560
    %v2753 = vpack.c.b16 %v2569, %v2561
    %v2754 = vpack.c.b16 %v2570, %v2562
    %v2755 = vpack.c.b16 %v2579, %v2571
    %v2756 = vpack.c.b16 %v2580, %v2572
    %v2757 = vpack.c.b16 %v2581, %v2573
    %v2758 = vpack.c.b16 %v2582, %v2574
    %v2759 = vpack.c.b16 %v2583, %v2575
    %v2760 = vpack.c.b16 %v2584, %v2576
    %v2761 = vpack.c.b16 %v2585, %v2577
    %v2762 = vpack.c.b16 %v2586, %v2578
    %v2763 = vpack.c.b16 %v2595, %v2587
    %v2764 = vpack.c.b16 %v2596, %v2588
    %v2765 = vpack.c.b16 %v2597, %v2589
    %v2766 = vpack.c.b16 %v2598, %v2590
    %v2767 = vpack.c.b16 %v2599, %v2591
    %v2768 = vpack.c.b16 %v2600, %v2592
    %v2769 = vpack.c.b16 %v2601, %v2593
    %v2770 = vpack.c.b16 %v2602, %v2594
    %v2771 = vpack.c.b16 %v2611, %v2603
    %v2772 = vpack.c.b16 %v2612, %v2604
    %v2773 = vpack.c.b16 %v2613, %v2605
    %v2774 = vpack.c.b16 %v2614, %v2606
    %v2775 = vpack.c.b16 %v2615, %v2607
    %v2776 = vpack.c.b16 %v2616, %v2608
    %v2777 = vpack.c.b16 %v2617, %v2609
    %v2778 = vpack.c.b16 %v2618, %v2610
    %v2779 = vpack.c.b16 %v2627, %v2619
    %v2780 = vpack.c.b16 %v2628, %v2620
    %v2781 = vpack.c.b16 %v2629, %v2621
    %v2782 = vpack.c.b16 %v2630, %v2622
    %v2783 = vpack.c.b16 %v2631, %v2623
    %v2784 = vpack.c.b16 %v2632, %v2624
    %v2785 = vpack.c.b16 %v2633, %v2625
    %v2786 = vpack.c.b16 %v2634, %v2626
    %v2787 = vpack.c.b16 %v2643, %v2635
    %v2788 = vpack.c.b16 %v2644, %v2636
    %v2789 = vpack.c.b16 %v2645, %v2637
    %v2790 = vpack.c.b16 %v2646, %v2638
    %v2791 = vpack.c.b16 %v2647, %v2639
    %v2792 = vpack.c.b16 %v2648, %v2640
    %v2793 = vpack.c.b16 %v2649, %v2641
    %v2794 = vpack.c.b16 %v2650, %v2642
    %v2795 = vpack.c.b16 %v2659, %v2651
    %v2796 = vpack.c.b16 %v2660, %v2652
    %v2797 = vpack.c.b16 %v2661, %v2653
    %v2798 = vpack.c.b16 %v2662, %v2654
    %v2799 = vpack.c.b16 %v2663, %v2655
    %v2800 = vpack.c.b16 %v2664, %v2656
    %v2801 = vpack.c.b16 %v2665, %v2657
    %v2802 = vpack.c.b16 %v2666, %v2658
    %v2803 = vpack.c.b16 %v2675, %v2667
    %v2804 = vpack.c.b16 %v2676, %v2668
    %v2805 = vpack.c.b16 %v2677, %v2669
    %v2806 = vpack.c.b16 %v2678, %v2670
    %v2807 = vpack.c.b16 %v2679, %v2671
    %v2808 = vpack.c.b16 %v2680, %v2672
    %v2809 = vpack.c.b16 %v2681, %v2673
    %v2810 = vpack.c.b16 %v2682, %v2674
    %2939 = vmatprep.subr.bf16.mxu0 %v2684
    %2940 = vmatpush1.bf16.msra.mxu0 %v2683
    %2941 = vmatprep.subr.bf16.mxu0 %v2692
    %2942 = vmatpush1.bf16.msra.mxu0 %v2691
    %2943 = vmatprep.subr.bf16.mxu0 %v2700
    %2944 = vmatpush1.bf16.msra.mxu0 %v2699
    %2945 = vmatprep.subr.bf16.mxu0 %v2708
    %2946 = vmatpush1.bf16.msra.mxu0 %v2707
    %2947 = vmatprep.subr.bf16.mxu0 %v2716
    %2948 = vmatpush1.bf16.msra.mxu0 %v2715
    %2949 = vmatprep.subr.bf16.mxu0 %v2724
    %2950 = vmatpush1.bf16.msra.mxu0 %v2723
    %2951 = vmatprep.subr.bf16.mxu0 %v2732
    %2952 = vmatpush1.bf16.msra.mxu0 %v2731
    %2953 = vmatprep.subr.bf16.mxu0 %v2740
    %2954 = vmatpush1.bf16.msra.mxu0 %v2739
    %2955 = vmatprep.subr.bf16.mxu0 %v2748
    %2956 = vmatpush1.bf16.msra.mxu0 %v2747
    %2957 = vmatprep.subr.bf16.mxu0 %v2756
    %2958 = vmatpush1.bf16.msra.mxu0 %v2755
    %2959 = vmatprep.subr.bf16.mxu0 %v2764
    %2960 = vmatpush1.bf16.msra.mxu0 %v2763
    %2961 = vmatprep.subr.bf16.mxu0 %v2772
    %2962 = vmatpush1.bf16.msra.mxu0 %v2771
    %2963 = vmatprep.subr.bf16.mxu0 %v2780
    %2964 = vmatpush1.bf16.msra.mxu0 %v2779
    %2965 = vmatprep.subr.bf16.mxu0 %v2788
    %2966 = vmatpush1.bf16.msra.mxu0 %v2787
    %2967 = vmatprep.subr.bf16.mxu0 %v2796
    %2968 = vmatpush1.bf16.msra.mxu0 %v2795
    %2969 = vmatprep.subr.bf16.mxu0 %v2804
    %2970 = vmatpush1.bf16.msra.mxu0 %v2803
    %2971 = vmatprep.mubr.bf16.mxu0 %v2168
    %2972 = vmatmul.mubr.bf16.gmra.mrb[0].mxu0 %v2167
    %v2973 = vpop.f32.mrb[0].mxu0
    %v2974 = vadd.f32 0.0, %v2973
    %v2975 = vpop.f32.mrb[0].mxu0
    %v2976 = vadd.f32 0.0, %v2975
    %v2977 = vpop.f32.mrb[0].mxu0
    %v2978 = vadd.f32 0.0, %v2977
    %v2979 = vpop.f32.mrb[0].mxu0
    %v2980 = vadd.f32 0.0, %v2979
    %2981 = vdwg.mxu0
    %2982 = vmatprep.subr.bf16.mxu0 %v2686
    %2983 = vmatpush1.bf16.msra.mxu0 %v2685
    %2984 = vmatprep.subr.bf16.mxu0 %v2694
    %2985 = vmatpush1.bf16.msra.mxu0 %v2693
    %2986 = vmatprep.subr.bf16.mxu0 %v2702
    %2987 = vmatpush1.bf16.msra.mxu0 %v2701
    %2988 = vmatprep.subr.bf16.mxu0 %v2710
    %2989 = vmatpush1.bf16.msra.mxu0 %v2709
    %2990 = vmatprep.subr.bf16.mxu0 %v2718
    %2991 = vmatpush1.bf16.msra.mxu0 %v2717
    %2992 = vmatprep.subr.bf16.mxu0 %v2726
    %2993 = vmatpush1.bf16.msra.mxu0 %v2725
    %2994 = vmatprep.subr.bf16.mxu0 %v2734
    %2995 = vmatpush1.bf16.msra.mxu0 %v2733
    %2996 = vmatprep.subr.bf16.mxu0 %v2742
    %2997 = vmatpush1.bf16.msra.mxu0 %v2741
    %2998 = vmatprep.subr.bf16.mxu0 %v2750
    %2999 = vmatpush1.bf16.msra.mxu0 %v2749
    %3000 = vmatprep.subr.bf16.mxu0 %v2758
    %3001 = vmatpush1.bf16.msra.mxu0 %v2757
    %3002 = vmatprep.subr.bf16.mxu0 %v2766
    %3003 = vmatpush1.bf16.msra.mxu0 %v2765
    %3004 = vmatprep.subr.bf16.mxu0 %v2774
    %3005 = vmatpush1.bf16.msra.mxu0 %v2773
    %3006 = vmatprep.subr.bf16.mxu0 %v2782
    %3007 = vmatpush1.bf16.msra.mxu0 %v2781
    %3008 = vmatprep.subr.bf16.mxu0 %v2790
    %3009 = vmatpush1.bf16.msra.mxu0 %v2789
    %3010 = vmatprep.subr.bf16.mxu0 %v2798
    %3011 = vmatpush1.bf16.msra.mxu0 %v2797
    %3012 = vmatprep.subr.bf16.mxu0 %v2806
    %3013 = vmatpush1.bf16.msra.mxu0 %v2805
    %3014 = vmatprep.mubr.bf16.mxu0 %v2168
    %3015 = vmatmul.mubr.bf16.gmra.mrb[0].mxu0 %v2167
    %v3016 = vpop.f32.mrb[0].mxu0
    %v3017 = vadd.f32 0.0, %v3016
    %v3018 = vpop.f32.mrb[0].mxu0
    %v3019 = vadd.f32 0.0, %v3018
    %v3020 = vpop.f32.mrb[0].mxu0
    %v3021 = vadd.f32 0.0, %v3020
    %v3022 = vpop.f32.mrb[0].mxu0
    %v3023 = vadd.f32 0.0, %v3022
    %3024 = vdwg.mxu0
    %3025 = vmatprep.subr.bf16.mxu0 %v2688
    %3026 = vmatpush1.bf16.msra.mxu0 %v2687
    %3027 = vmatprep.subr.bf16.mxu0 %v2696
    %3028 = vmatpush1.bf16.msra.mxu0 %v2695
    %3029 = vmatprep.subr.bf16.mxu0 %v2704
    %3030 = vmatpush1.bf16.msra.mxu0 %v2703
    %3031 = vmatprep.subr.bf16.mxu0 %v2712
    %3032 = vmatpush1.bf16.msra.mxu0 %v2711
    %3033 = vmatprep.subr.bf16.mxu0 %v2720
    %3034 = vmatpush1.bf16.msra.mxu0 %v2719
    %3035 = vmatprep.subr.bf16.mxu0 %v2728
    %3036 = vmatpush1.bf16.msra.mxu0 %v2727
    %3037 = vmatprep.subr.bf16.mxu0 %v2736
    %3038 = vmatpush1.bf16.msra.mxu0 %v2735
    %3039 = vmatprep.subr.bf16.mxu0 %v2744
    %3040 = vmatpush1.bf16.msra.mxu0 %v2743
    %3041 = vmatprep.subr.bf16.mxu0 %v2752
    %3042 = vmatpush1.bf16.msra.mxu0 %v2751
    %3043 = vmatprep.subr.bf16.mxu0 %v2760
    %3044 = vmatpush1.bf16.msra.mxu0 %v2759
    %3045 = vmatprep.subr.bf16.mxu0 %v2768
    %3046 = vmatpush1.bf16.msra.mxu0 %v2767
    %3047 = vmatprep.subr.bf16.mxu0 %v2776
    %3048 = vmatpush1.bf16.msra.mxu0 %v2775
    %3049 = vmatprep.subr.bf16.mxu0 %v2784
    %3050 = vmatpush1.bf16.msra.mxu0 %v2783
    %3051 = vmatprep.subr.bf16.mxu0 %v2792
    %3052 = vmatpush1.bf16.msra.mxu0 %v2791
    %3053 = vmatprep.subr.bf16.mxu0 %v2800
    %3054 = vmatpush1.bf16.msra.mxu0 %v2799
    %3055 = vmatprep.subr.bf16.mxu0 %v2808
    %3056 = vmatpush1.bf16.msra.mxu0 %v2807
    %3057 = vmatprep.mubr.bf16.mxu0 %v2168
    %3058 = vmatmul.mubr.bf16.gmra.mrb[0].mxu0 %v2167
    %v3059 = vpop.f32.mrb[0].mxu0
    %v3060 = vadd.f32 0.0, %v3059
    %v3061 = vpop.f32.mrb[0].mxu0
    %v3062 = vadd.f32 0.0, %v3061
    %v3063 = vpop.f32.mrb[0].mxu0
    %v3064 = vadd.f32 0.0, %v3063
    %v3065 = vpop.f32.mrb[0].mxu0
    %v3066 = vadd.f32 0.0, %v3065
    %3067 = vdwg.mxu0
    %3068 = vmatprep.subr.bf16.mxu0 %v2690
    %3069 = vmatpush1.bf16.msra.mxu0 %v2689
    %3070 = vmatprep.subr.bf16.mxu0 %v2698
    %3071 = vmatpush1.bf16.msra.mxu0 %v2697
    %3072 = vmatprep.subr.bf16.mxu0 %v2706
    %3073 = vmatpush1.bf16.msra.mxu0 %v2705
    %3074 = vmatprep.subr.bf16.mxu0 %v2714
    %3075 = vmatpush1.bf16.msra.mxu0 %v2713
    %3076 = vmatprep.subr.bf16.mxu0 %v2722
    %3077 = vmatpush1.bf16.msra.mxu0 %v2721
    %3078 = vmatprep.subr.bf16.mxu0 %v2730
    %3079 = vmatpush1.bf16.msra.mxu0 %v2729
    %3080 = vmatprep.subr.bf16.mxu0 %v2738
    %3081 = vmatpush1.bf16.msra.mxu0 %v2737
    %3082 = vmatprep.subr.bf16.mxu0 %v2746
    %3083 = vmatpush1.bf16.msra.mxu0 %v2745
    %3084 = vmatprep.subr.bf16.mxu0 %v2754
    %3085 = vmatpush1.bf16.msra.mxu0 %v2753
    %3086 = vmatprep.subr.bf16.mxu0 %v2762
    %3087 = vmatpush1.bf16.msra.mxu0 %v2761
    %3088 = vmatprep.subr.bf16.mxu0 %v2770
    %3089 = vmatpush1.bf16.msra.mxu0 %v2769
    %3090 = vmatprep.subr.bf16.mxu0 %v2778
    %3091 = vmatpush1.bf16.msra.mxu0 %v2777
    %3092 = vmatprep.subr.bf16.mxu0 %v2786
    %3093 = vmatpush1.bf16.msra.mxu0 %v2785
    %3094 = vmatprep.subr.bf16.mxu0 %v2794
    %3095 = vmatpush1.bf16.msra.mxu0 %v2793
    %3096 = vmatprep.subr.bf16.mxu0 %v2802
    %3097 = vmatpush1.bf16.msra.mxu0 %v2801
    %3098 = vmatprep.subr.bf16.mxu0 %v2810
    %3099 = vmatpush1.bf16.msra.mxu0 %v2809
    %3100 = vmatprep.mubr.bf16.mxu0 %v2168
    %3101 = vmatmul.mubr.bf16.gmra.mrb[0].mxu0 %v2167
    %v3102 = vpop.f32.mrb[0].mxu0
    %v3103 = vadd.f32 0.0, %v3102
    %v3104 = vpop.f32.mrb[0].mxu0
    %v3105 = vadd.f32 0.0, %v3104
    %v3106 = vpop.f32.mrb[0].mxu0
    %v3107 = vadd.f32 0.0, %v3106
    %v3108 = vpop.f32.mrb[0].mxu0
    %v3109 = vadd.f32 0.0, %v3108
    %3110 = vdwg.mxu0
    %v3111 = vld [vmem:[#allocation2 + $0x80] sm:$0xff]
    %v3112 = vld [vmem:[#allocation2 + $0x88] sm:$0xff]
    %v3113 = vld [vmem:[#allocation2 + $0x90] sm:$0xff]
    %v3114 = vld [vmem:[#allocation2 + $0x98] sm:$0xff]
    %v3115 = vld [vmem:[#allocation2 + $0xc0] sm:$0xff]
    %v3116 = vld [vmem:[#allocation2 + $0xc8] sm:$0xff]
    %v3117 = vld [vmem:[#allocation2 + $0xd0] sm:$0xff]
    %v3118 = vld [vmem:[#allocation2 + $0xd8] sm:$0xff]
    %v3119 = vadd.f32 %v3111, %v2974
    %v3120 = vadd.f32 %v3112, %v2976
    %v3121 = vadd.f32 %v3113, %v3017
    %v3122 = vadd.f32 %v3114, %v3019
    %v3123 = vadd.f32 %v3115, %v2978
    %v3124 = vadd.f32 %v3116, %v2980
    %v3125 = vadd.f32 %v3117, %v3021
    %v3126 = vadd.f32 %v3118, %v3023
    %v3127 = vld [vmem:[#allocation2 + $0x320] sm:$0xff]
    %v3128 = vld [vmem:[#allocation2 + $0x328] sm:$0xff]
    %v3129 = vld [vmem:[#allocation2 + $0x330] sm:$0xff]
    %v3130 = vld [vmem:[#allocation2 + $0x338] sm:$0xff]
    %v3131 = vld [vmem:[#allocation2 + $0x360] sm:$0xff]
    %v3132 = vld [vmem:[#allocation2 + $0x368] sm:$0xff]
    %v3133 = vld [vmem:[#allocation2 + $0x370] sm:$0xff]
    %v3134 = vld [vmem:[#allocation2 + $0x378] sm:$0xff]
    %v3135 = vadd.f32 %v3127, %v3060
    %v3136 = vadd.f32 %v3128, %v3062
    %v3137 = vadd.f32 %v3129, %v3103
    %v3138 = vadd.f32 %v3130, %v3105
    %v3139 = vadd.f32 %v3131, %v3064
    %v3140 = vadd.f32 %v3132, %v3066
    %v3141 = vadd.f32 %v3133, %v3107
    %v3142 = vadd.f32 %v3134, %v3109
    %v3143 = vmul.f32 %v3119, 0.5
    %v3144 = vmul.f32 %v3123, 0.5
    %v3145 = vtanh.pop %v3143
    %v3146 = vtanh.pop %v3144
    %v3147 = vmul.f32 %v3145, 0.5
    %v3148 = vmul.f32 %v3146, 0.5
    %v3149 = vadd.f32 %v3147, 0.5
    %v3150 = vadd.f32 %v3148, 0.5
    %v3151 = vmul.f32 %v3120, 0.5
    %v3152 = vmul.f32 %v3124, 0.5
    %v3153 = vtanh.pop %v3151
    %v3154 = vtanh.pop %v3152
    %v3155 = vmul.f32 %v3153, 0.5
    %v3156 = vmul.f32 %v3154, 0.5
    %v3157 = vadd.f32 %v3155, 0.5
    %v3158 = vadd.f32 %v3156, 0.5
    %v3159 = vtanh.pop %v3121
    %v3160 = vtanh.pop %v3125
    %v3161 = vmul.f32 %v3122, 0.5
    %v3162 = vmul.f32 %v3126, 0.5
    %v3163 = vtanh.pop %v3161
    %v3164 = vtanh.pop %v3162
    %v3165 = vmul.f32 %v3163, 0.5
    %v3166 = vmul.f32 %v3164, 0.5
    %v3167 = vadd.f32 %v3165, 0.5
    %v3168 = vadd.f32 %v3166, 0.5
    %v3169 = vmul.f32 %v3157, %v2125
    %v3170 = vmul.f32 %v3158, %v2126
    %v3171 = vmul.f32 %v3149, %v3159
    %v3172 = vmul.f32 %v3150, %v3160
    %v3173 = vadd.f32 %v3169, %v3171
    %v3174 = vadd.f32 %v3170, %v3172
    %v3175 = vtanh.pop %v3173
    %v3176 = vtanh.pop %v3174
    %v3177 = vmul.f32 %v3167, %v3175
    %v3178 = vmul.f32 %v3168, %v3176
    %v3179 = vmul.f32 %v3135, 0.5
    %v3180 = vmul.f32 %v3139, 0.5
    %v3181 = vtanh.pop %v3179
    %v3182 = vtanh.pop %v3180
    %v3183 = vmul.f32 %v3181, 0.5
    %v3184 = vmul.f32 %v3182, 0.5
    %v3185 = vadd.f32 %v3183, 0.5
    %v3186 = vadd.f32 %v3184, 0.5
    %v3187 = vmul.f32 %v3136, 0.5
    %v3188 = vmul.f32 %v3140, 0.5
    %v3189 = vtanh.pop %v3187
    %v3190 = vtanh.pop %v3188
    %v3191 = vmul.f32 %v3189, 0.5
    %v3192 = vmul.f32 %v3190, 0.5
    %v3193 = vadd.f32 %v3191, 0.5
    %v3194 = vadd.f32 %v3192, 0.5
    %v3195 = vtanh.pop %v3137
    %v3196 = vtanh.pop %v3141
    %v3197 = vmul.f32 %v3138, 0.5
    %v3198 = vmul.f32 %v3142, 0.5
    %v3199 = vtanh.pop %v3197
    %v3200 = vtanh.pop %v3198
    %v3201 = vmul.f32 %v3199, 0.5
    %v3202 = vmul.f32 %v3200, 0.5
    %v3203 = vadd.f32 %v3201, 0.5
    %v3204 = vadd.f32 %v3202, 0.5
    %v3205 = vmul.f32 %v3193, %v2161
    %v3206 = vmul.f32 %v3194, %v2162
    %v3207 = vmul.f32 %v3185, %v3195
    %v3208 = vmul.f32 %v3186, %v3196
    %v3209 = vadd.f32 %v3205, %v3207
    %v3210 = vadd.f32 %v3206, %v3208
    %v3211 = vtanh.pop %v3209
    %v3212 = vtanh.pop %v3210
    %v3213 = vmul.f32 %v3203, %v3211
    %v3214 = vmul.f32 %v3204, %v3212
    %v3215 = vpack.c.bf16 %v3178, %v3177
    %v3216 = vpack.c.bf16 %v3214, %v3213
    %3217 = vst [vmem:[#allocation3 + $0x10] sm:$0xff] %v3215
    %3218 = vst [vmem:[#allocation3 + $0x68] sm:$0xff] %v3216
    %v3219 = vld [vmem:[#allocation7] sm:$0xff]
    %v3220 = vld [vmem:[#allocation7 + $0x8] sm:$0xff]
    %v3221 = vld [vmem:[#allocation7 + $0x10] sm:$0xff]
    %v3222 = vld [vmem:[#allocation7 + $0x18] sm:$0xff]
    %v3223 = vld [vmem:[#allocation7 + $0x20] sm:$0xff]
    %v3224 = vld [vmem:[#allocation7 + $0x28] sm:$0xff]
    %v3225 = vld [vmem:[#allocation7 + $0x30] sm:$0xff]
    %v3226 = vld [vmem:[#allocation7 + $0x38] sm:$0xff]
    %v3227 = vld [vmem:[#allocation7 + $0x40] sm:$0xff]
    %v3228 = vld [vmem:[#allocation7 + $0x48] sm:$0xff]
    %v3229 = vld [vmem:[#allocation7 + $0x50] sm:$0xff]
    %v3230 = vld [vmem:[#allocation7 + $0x58] sm:$0xff]
    %v3231 = vld [vmem:[#allocation7 + $0x60] sm:$0xff]
    %v3232 = vld [vmem:[#allocation7 + $0x68] sm:$0xff]
    %v3233 = vld [vmem:[#allocation7 + $0x70] sm:$0xff]
    %v3234 = vld [vmem:[#allocation7 + $0x78] sm:$0xff]
    %v3235 = vld [vmem:[#allocation7 + $0x80] sm:$0xff]
    %v3236 = vld [vmem:[#allocation7 + $0x88] sm:$0xff]
    %v3237 = vld [vmem:[#allocation7 + $0x90] sm:$0xff]
    %v3238 = vld [vmem:[#allocation7 + $0x98] sm:$0xff]
    %v3239 = vld [vmem:[#allocation7 + $0xa0] sm:$0xff]
    %v3240 = vld [vmem:[#allocation7 + $0xa8] sm:$0xff]
    %v3241 = vld [vmem:[#allocation7 + $0xb0] sm:$0xff]
    %v3242 = vld [vmem:[#allocation7 + $0xb8] sm:$0xff]
    %v3243 = vld [vmem:[#allocation7 + $0xc0] sm:$0xff]
    %v3244 = vld [vmem:[#allocation7 + $0xc8] sm:$0xff]
    %v3245 = vld [vmem:[#allocation7 + $0xd0] sm:$0xff]
    %v3246 = vld [vmem:[#allocation7 + $0xd8] sm:$0xff]
    %v3247 = vld [vmem:[#allocation7 + $0xe0] sm:$0xff]
    %v3248 = vld [vmem:[#allocation7 + $0xe8] sm:$0xff]
    %v3249 = vld [vmem:[#allocation7 + $0xf0] sm:$0xff]
    %v3250 = vld [vmem:[#allocation7 + $0xf8] sm:$0xff]
    %v3251 = vld [vmem:[#allocation7 + $0x100] sm:$0xff]
    %v3252 = vld [vmem:[#allocation7 + $0x108] sm:$0xff]
    %v3253 = vld [vmem:[#allocation7 + $0x110] sm:$0xff]
    %v3254 = vld [vmem:[#allocation7 + $0x118] sm:$0xff]
    %v3255 = vld [vmem:[#allocation7 + $0x120] sm:$0xff]
    %v3256 = vld [vmem:[#allocation7 + $0x128] sm:$0xff]
    %v3257 = vld [vmem:[#allocation7 + $0x130] sm:$0xff]
    %v3258 = vld [vmem:[#allocation7 + $0x138] sm:$0xff]
    %v3259 = vld [vmem:[#allocation7 + $0x140] sm:$0xff]
    %v3260 = vld [vmem:[#allocation7 + $0x148] sm:$0xff]
    %v3261 = vld [vmem:[#allocation7 + $0x150] sm:$0xff]
    %v3262 = vld [vmem:[#allocation7 + $0x158] sm:$0xff]
    %v3263 = vld [vmem:[#allocation7 + $0x160] sm:$0xff]
    %v3264 = vld [vmem:[#allocation7 + $0x168] sm:$0xff]
    %v3265 = vld [vmem:[#allocation7 + $0x170] sm:$0xff]
    %v3266 = vld [vmem:[#allocation7 + $0x178] sm:$0xff]
    %v3267 = vld [vmem:[#allocation7 + $0x180] sm:$0xff]
    %v3268 = vld [vmem:[#allocation7 + $0x188] sm:$0xff]
    %v3269 = vld [vmem:[#allocation7 + $0x190] sm:$0xff]
    %v3270 = vld [vmem:[#allocation7 + $0x198] sm:$0xff]
    %v3271 = vld [vmem:[#allocation7 + $0x1a0] sm:$0xff]
    %v3272 = vld [vmem:[#allocation7 + $0x1a8] sm:$0xff]
    %v3273 = vld [vmem:[#allocation7 + $0x1b0] sm:$0xff]
    %v3274 = vld [vmem:[#allocation7 + $0x1b8] sm:$0xff]
    %v3275 = vld [vmem:[#allocation7 + $0x1c0] sm:$0xff]
    %v3276 = vld [vmem:[#allocation7 + $0x1c8] sm:$0xff]
    %v3277 = vld [vmem:[#allocation7 + $0x1d0] sm:$0xff]
    %v3278 = vld [vmem:[#allocation7 + $0x1d8] sm:$0xff]
    %v3279 = vld [vmem:[#allocation7 + $0x1e0] sm:$0xff]
    %v3280 = vld [vmem:[#allocation7 + $0x1e8] sm:$0xff]
    %v3281 = vld [vmem:[#allocation7 + $0x1f0] sm:$0xff]
    %v3282 = vld [vmem:[#allocation7 + $0x1f8] sm:$0xff]
    %v3283 = vld [vmem:[#allocation7 + $0x200] sm:$0xff]
    %v3284 = vld [vmem:[#allocation7 + $0x208] sm:$0xff]
    %v3285 = vld [vmem:[#allocation7 + $0x210] sm:$0xff]
    %v3286 = vld [vmem:[#allocation7 + $0x218] sm:$0xff]
    %v3287 = vld [vmem:[#allocation7 + $0x220] sm:$0xff]
    %v3288 = vld [vmem:[#allocation7 + $0x228] sm:$0xff]
    %v3289 = vld [vmem:[#allocation7 + $0x230] sm:$0xff]
    %v3290 = vld [vmem:[#allocation7 + $0x238] sm:$0xff]
    %v3291 = vld [vmem:[#allocation7 + $0x240] sm:$0xff]
    %v3292 = vld [vmem:[#allocation7 + $0x248] sm:$0xff]
    %v3293 = vld [vmem:[#allocation7 + $0x250] sm:$0xff]
    %v3294 = vld [vmem:[#allocation7 + $0x258] sm:$0xff]
    %v3295 = vld [vmem:[#allocation7 + $0x260] sm:$0xff]
    %v3296 = vld [vmem:[#allocation7 + $0x268] sm:$0xff]
    %v3297 = vld [vmem:[#allocation7 + $0x270] sm:$0xff]
    %v3298 = vld [vmem:[#allocation7 + $0x278] sm:$0xff]
    %v3299 = vld [vmem:[#allocation7 + $0x280] sm:$0xff]
    %v3300 = vld [vmem:[#allocation7 + $0x288] sm:$0xff]
    %v3301 = vld [vmem:[#allocation7 + $0x290] sm:$0xff]
    %v3302 = vld [vmem:[#allocation7 + $0x298] sm:$0xff]
    %v3303 = vld [vmem:[#allocation7 + $0x2a0] sm:$0xff]
    %v3304 = vld [vmem:[#allocation7 + $0x2a8] sm:$0xff]
    %v3305 = vld [vmem:[#allocation7 + $0x2b0] sm:$0xff]
    %v3306 = vld [vmem:[#allocation7 + $0x2b8] sm:$0xff]
    %v3307 = vld [vmem:[#allocation7 + $0x2c0] sm:$0xff]
    %v3308 = vld [vmem:[#allocation7 + $0x2c8] sm:$0xff]
    %v3309 = vld [vmem:[#allocation7 + $0x2d0] sm:$0xff]
    %v3310 = vld [vmem:[#allocation7 + $0x2d8] sm:$0xff]
    %v3311 = vld [vmem:[#allocation7 + $0x2e0] sm:$0xff]
    %v3312 = vld [vmem:[#allocation7 + $0x2e8] sm:$0xff]
    %v3313 = vld [vmem:[#allocation7 + $0x2f0] sm:$0xff]
    %v3314 = vld [vmem:[#allocation7 + $0x2f8] sm:$0xff]
    %v3315 = vld [vmem:[#allocation7 + $0x300] sm:$0xff]
    %v3316 = vld [vmem:[#allocation7 + $0x308] sm:$0xff]
    %v3317 = vld [vmem:[#allocation7 + $0x310] sm:$0xff]
    %v3318 = vld [vmem:[#allocation7 + $0x318] sm:$0xff]
    %v3319 = vld [vmem:[#allocation7 + $0x320] sm:$0xff]
    %v3320 = vld [vmem:[#allocation7 + $0x328] sm:$0xff]
    %v3321 = vld [vmem:[#allocation7 + $0x330] sm:$0xff]
    %v3322 = vld [vmem:[#allocation7 + $0x338] sm:$0xff]
    %v3323 = vld [vmem:[#allocation7 + $0x340] sm:$0xff]
    %v3324 = vld [vmem:[#allocation7 + $0x348] sm:$0xff]
    %v3325 = vld [vmem:[#allocation7 + $0x350] sm:$0xff]
    %v3326 = vld [vmem:[#allocation7 + $0x358] sm:$0xff]
    %v3327 = vld [vmem:[#allocation7 + $0x360] sm:$0xff]
    %v3328 = vld [vmem:[#allocation7 + $0x368] sm:$0xff]
    %v3329 = vld [vmem:[#allocation7 + $0x370] sm:$0xff]
    %v3330 = vld [vmem:[#allocation7 + $0x378] sm:$0xff]
    %v3331 = vld [vmem:[#allocation7 + $0x380] sm:$0xff]
    %v3332 = vld [vmem:[#allocation7 + $0x388] sm:$0xff]
    %v3333 = vld [vmem:[#allocation7 + $0x390] sm:$0xff]
    %v3334 = vld [vmem:[#allocation7 + $0x398] sm:$0xff]
    %v3335 = vld [vmem:[#allocation7 + $0x3a0] sm:$0xff]
    %v3336 = vld [vmem:[#allocation7 + $0x3a8] sm:$0xff]
    %v3337 = vld [vmem:[#allocation7 + $0x3b0] sm:$0xff]
    %v3338 = vld [vmem:[#allocation7 + $0x3b8] sm:$0xff]
    %v3339 = vld [vmem:[#allocation7 + $0x3c0] sm:$0xff]
    %v3340 = vld [vmem:[#allocation7 + $0x3c8] sm:$0xff]
    %v3341 = vld [vmem:[#allocation7 + $0x3d0] sm:$0xff]
    %v3342 = vld [vmem:[#allocation7 + $0x3d8] sm:$0xff]
    %v3343 = vld [vmem:[#allocation7 + $0x3e0] sm:$0xff]
    %v3344 = vld [vmem:[#allocation7 + $0x3e8] sm:$0xff]
    %v3345 = vld [vmem:[#allocation7 + $0x3f0] sm:$0xff]
    %v3346 = vld [vmem:[#allocation7 + $0x3f8] sm:$0xff]
    %v3475 = vunpack.c.l.b16 %v3219
    %v3476 = vunpack.c.h.b16 %v3219
    %v3477 = vunpack.c.l.b16 %v3220
    %v3478 = vunpack.c.h.b16 %v3220
    %v3479 = vunpack.c.l.b16 %v3221
    %v3480 = vunpack.c.h.b16 %v3221
    %v3481 = vunpack.c.l.b16 %v3222
    %v3482 = vunpack.c.h.b16 %v3222
    %v3483 = vunpack.c.l.b16 %v3223
    %v3484 = vunpack.c.h.b16 %v3223
    %v3485 = vunpack.c.l.b16 %v3224
    %v3486 = vunpack.c.h.b16 %v3224
    %v3487 = vunpack.c.l.b16 %v3225
    %v3488 = vunpack.c.h.b16 %v3225
    %v3489 = vunpack.c.l.b16 %v3226
    %v3490 = vunpack.c.h.b16 %v3226
    %v3491 = vunpack.c.l.b16 %v3227
    %v3492 = vunpack.c.h.b16 %v3227
    %v3493 = vunpack.c.l.b16 %v3228
    %v3494 = vunpack.c.h.b16 %v3228
    %v3495 = vunpack.c.l.b16 %v3229
    %v3496 = vunpack.c.h.b16 %v3229
    %v3497 = vunpack.c.l.b16 %v3230
    %v3498 = vunpack.c.h.b16 %v3230
    %v3499 = vunpack.c.l.b16 %v3231
    %v3500 = vunpack.c.h.b16 %v3231
    %v3501 = vunpack.c.l.b16 %v3232
    %v3502 = vunpack.c.h.b16 %v3232
    %v3503 = vunpack.c.l.b16 %v3233
    %v3504 = vunpack.c.h.b16 %v3233
    %v3505 = vunpack.c.l.b16 %v3234
    %v3506 = vunpack.c.h.b16 %v3234
    %v3507 = vunpack.c.l.b16 %v3235
    %v3508 = vunpack.c.h.b16 %v3235
    %v3509 = vunpack.c.l.b16 %v3236
    %v3510 = vunpack.c.h.b16 %v3236
    %v3511 = vunpack.c.l.b16 %v3237
    %v3512 = vunpack.c.h.b16 %v3237
    %v3513 = vunpack.c.l.b16 %v3238
    %v3514 = vunpack.c.h.b16 %v3238
    %v3515 = vunpack.c.l.b16 %v3239
    %v3516 = vunpack.c.h.b16 %v3239
    %v3517 = vunpack.c.l.b16 %v3240
    %v3518 = vunpack.c.h.b16 %v3240
    %v3519 = vunpack.c.l.b16 %v3241
    %v3520 = vunpack.c.h.b16 %v3241
    %v3521 = vunpack.c.l.b16 %v3242
    %v3522 = vunpack.c.h.b16 %v3242
    %v3523 = vunpack.c.l.b16 %v3243
    %v3524 = vunpack.c.h.b16 %v3243
    %v3525 = vunpack.c.l.b16 %v3244
    %v3526 = vunpack.c.h.b16 %v3244
    %v3527 = vunpack.c.l.b16 %v3245
    %v3528 = vunpack.c.h.b16 %v3245
    %v3529 = vunpack.c.l.b16 %v3246
    %v3530 = vunpack.c.h.b16 %v3246
    %v3531 = vunpack.c.l.b16 %v3247
    %v3532 = vunpack.c.h.b16 %v3247
    %v3533 = vunpack.c.l.b16 %v3248
    %v3534 = vunpack.c.h.b16 %v3248
    %v3535 = vunpack.c.l.b16 %v3249
    %v3536 = vunpack.c.h.b16 %v3249
    %v3537 = vunpack.c.l.b16 %v3250
    %v3538 = vunpack.c.h.b16 %v3250
    %v3539 = vunpack.c.l.b16 %v3251
    %v3540 = vunpack.c.h.b16 %v3251
    %v3541 = vunpack.c.l.b16 %v3252
    %v3542 = vunpack.c.h.b16 %v3252
    %v3543 = vunpack.c.l.b16 %v3253
    %v3544 = vunpack.c.h.b16 %v3253
    %v3545 = vunpack.c.l.b16 %v3254
    %v3546 = vunpack.c.h.b16 %v3254
    %v3547 = vunpack.c.l.b16 %v3255
    %v3548 = vunpack.c.h.b16 %v3255
    %v3549 = vunpack.c.l.b16 %v3256
    %v3550 = vunpack.c.h.b16 %v3256
    %v3551 = vunpack.c.l.b16 %v3257
    %v3552 = vunpack.c.h.b16 %v3257
    %v3553 = vunpack.c.l.b16 %v3258
    %v3554 = vunpack.c.h.b16 %v3258
    %v3555 = vunpack.c.l.b16 %v3259
    %v3556 = vunpack.c.h.b16 %v3259
    %v3557 = vunpack.c.l.b16 %v3260
    %v3558 = vunpack.c.h.b16 %v3260
    %v3559 = vunpack.c.l.b16 %v3261
    %v3560 = vunpack.c.h.b16 %v3261
    %v3561 = vunpack.c.l.b16 %v3262
    %v3562 = vunpack.c.h.b16 %v3262
    %v3563 = vunpack.c.l.b16 %v3263
    %v3564 = vunpack.c.h.b16 %v3263
    %v3565 = vunpack.c.l.b16 %v3264
    %v3566 = vunpack.c.h.b16 %v3264
    %v3567 = vunpack.c.l.b16 %v3265
    %v3568 = vunpack.c.h.b16 %v3265
    %v3569 = vunpack.c.l.b16 %v3266
    %v3570 = vunpack.c.h.b16 %v3266
    %v3571 = vunpack.c.l.b16 %v3267
    %v3572 = vunpack.c.h.b16 %v3267
    %v3573 = vunpack.c.l.b16 %v3268
    %v3574 = vunpack.c.h.b16 %v3268
    %v3575 = vunpack.c.l.b16 %v3269
    %v3576 = vunpack.c.h.b16 %v3269
    %v3577 = vunpack.c.l.b16 %v3270
    %v3578 = vunpack.c.h.b16 %v3270
    %v3579 = vunpack.c.l.b16 %v3271
    %v3580 = vunpack.c.h.b16 %v3271
    %v3581 = vunpack.c.l.b16 %v3272
    %v3582 = vunpack.c.h.b16 %v3272
    %v3583 = vunpack.c.l.b16 %v3273
    %v3584 = vunpack.c.h.b16 %v3273
    %v3585 = vunpack.c.l.b16 %v3274
    %v3586 = vunpack.c.h.b16 %v3274
    %v3587 = vunpack.c.l.b16 %v3275
    %v3588 = vunpack.c.h.b16 %v3275
    %v3589 = vunpack.c.l.b16 %v3276
    %v3590 = vunpack.c.h.b16 %v3276
    %v3591 = vunpack.c.l.b16 %v3277
    %v3592 = vunpack.c.h.b16 %v3277
    %v3593 = vunpack.c.l.b16 %v3278
    %v3594 = vunpack.c.h.b16 %v3278
    %v3595 = vunpack.c.l.b16 %v3279
    %v3596 = vunpack.c.h.b16 %v3279
    %v3597 = vunpack.c.l.b16 %v3280
    %v3598 = vunpack.c.h.b16 %v3280
    %v3599 = vunpack.c.l.b16 %v3281
    %v3600 = vunpack.c.h.b16 %v3281
    %v3601 = vunpack.c.l.b16 %v3282
    %v3602 = vunpack.c.h.b16 %v3282
    %v3603 = vunpack.c.l.b16 %v3283
    %v3604 = vunpack.c.h.b16 %v3283
    %v3605 = vunpack.c.l.b16 %v3284
    %v3606 = vunpack.c.h.b16 %v3284
    %v3607 = vunpack.c.l.b16 %v3285
    %v3608 = vunpack.c.h.b16 %v3285
    %v3609 = vunpack.c.l.b16 %v3286
    %v3610 = vunpack.c.h.b16 %v3286
    %v3611 = vunpack.c.l.b16 %v3287
    %v3612 = vunpack.c.h.b16 %v3287
    %v3613 = vunpack.c.l.b16 %v3288
    %v3614 = vunpack.c.h.b16 %v3288
    %v3615 = vunpack.c.l.b16 %v3289
    %v3616 = vunpack.c.h.b16 %v3289
    %v3617 = vunpack.c.l.b16 %v3290
    %v3618 = vunpack.c.h.b16 %v3290
    %v3619 = vunpack.c.l.b16 %v3291
    %v3620 = vunpack.c.h.b16 %v3291
    %v3621 = vunpack.c.l.b16 %v3292
    %v3622 = vunpack.c.h.b16 %v3292
    %v3623 = vunpack.c.l.b16 %v3293
    %v3624 = vunpack.c.h.b16 %v3293
    %v3625 = vunpack.c.l.b16 %v3294
    %v3626 = vunpack.c.h.b16 %v3294
    %v3627 = vunpack.c.l.b16 %v3295
    %v3628 = vunpack.c.h.b16 %v3295
    %v3629 = vunpack.c.l.b16 %v3296
    %v3630 = vunpack.c.h.b16 %v3296
    %v3631 = vunpack.c.l.b16 %v3297
    %v3632 = vunpack.c.h.b16 %v3297
    %v3633 = vunpack.c.l.b16 %v3298
    %v3634 = vunpack.c.h.b16 %v3298
    %v3635 = vunpack.c.l.b16 %v3299
    %v3636 = vunpack.c.h.b16 %v3299
    %v3637 = vunpack.c.l.b16 %v3300
    %v3638 = vunpack.c.h.b16 %v3300
    %v3639 = vunpack.c.l.b16 %v3301
    %v3640 = vunpack.c.h.b16 %v3301
    %v3641 = vunpack.c.l.b16 %v3302
    %v3642 = vunpack.c.h.b16 %v3302
    %v3643 = vunpack.c.l.b16 %v3303
    %v3644 = vunpack.c.h.b16 %v3303
    %v3645 = vunpack.c.l.b16 %v3304
    %v3646 = vunpack.c.h.b16 %v3304
    %v3647 = vunpack.c.l.b16 %v3305
    %v3648 = vunpack.c.h.b16 %v3305
    %v3649 = vunpack.c.l.b16 %v3306
    %v3650 = vunpack.c.h.b16 %v3306
    %v3651 = vunpack.c.l.b16 %v3307
    %v3652 = vunpack.c.h.b16 %v3307
    %v3653 = vunpack.c.l.b16 %v3308
    %v3654 = vunpack.c.h.b16 %v3308
    %v3655 = vunpack.c.l.b16 %v3309
    %v3656 = vunpack.c.h.b16 %v3309
    %v3657 = vunpack.c.l.b16 %v3310
    %v3658 = vunpack.c.h.b16 %v3310
    %v3659 = vunpack.c.l.b16 %v3311
    %v3660 = vunpack.c.h.b16 %v3311
    %v3661 = vunpack.c.l.b16 %v3312
    %v3662 = vunpack.c.h.b16 %v3312
    %v3663 = vunpack.c.l.b16 %v3313
    %v3664 = vunpack.c.h.b16 %v3313
    %v3665 = vunpack.c.l.b16 %v3314
    %v3666 = vunpack.c.h.b16 %v3314
    %v3667 = vunpack.c.l.b16 %v3315
    %v3668 = vunpack.c.h.b16 %v3315
    %v3669 = vunpack.c.l.b16 %v3316
    %v3670 = vunpack.c.h.b16 %v3316
    %v3671 = vunpack.c.l.b16 %v3317
    %v3672 = vunpack.c.h.b16 %v3317
    %v3673 = vunpack.c.l.b16 %v3318
    %v3674 = vunpack.c.h.b16 %v3318
    %v3675 = vunpack.c.l.b16 %v3319
    %v3676 = vunpack.c.h.b16 %v3319
    %v3677 = vunpack.c.l.b16 %v3320
    %v3678 = vunpack.c.h.b16 %v3320
    %v3679 = vunpack.c.l.b16 %v3321
    %v3680 = vunpack.c.h.b16 %v3321
    %v3681 = vunpack.c.l.b16 %v3322
    %v3682 = vunpack.c.h.b16 %v3322
    %v3683 = vunpack.c.l.b16 %v3323
    %v3684 = vunpack.c.h.b16 %v3323
    %v3685 = vunpack.c.l.b16 %v3324
    %v3686 = vunpack.c.h.b16 %v3324
    %v3687 = vunpack.c.l.b16 %v3325
    %v3688 = vunpack.c.h.b16 %v3325
    %v3689 = vunpack.c.l.b16 %v3326
    %v3690 = vunpack.c.h.b16 %v3326
    %v3691 = vunpack.c.l.b16 %v3327
    %v3692 = vunpack.c.h.b16 %v3327
    %v3693 = vunpack.c.l.b16 %v3328
    %v3694 = vunpack.c.h.b16 %v3328
    %v3695 = vunpack.c.l.b16 %v3329
    %v3696 = vunpack.c.h.b16 %v3329
    %v3697 = vunpack.c.l.b16 %v3330
    %v3698 = vunpack.c.h.b16 %v3330
    %v3699 = vunpack.c.l.b16 %v3331
    %v3700 = vunpack.c.h.b16 %v3331
    %v3701 = vunpack.c.l.b16 %v3332
    %v3702 = vunpack.c.h.b16 %v3332
    %v3703 = vunpack.c.l.b16 %v3333
    %v3704 = vunpack.c.h.b16 %v3333
    %v3705 = vunpack.c.l.b16 %v3334
    %v3706 = vunpack.c.h.b16 %v3334
    %v3707 = vunpack.c.l.b16 %v3335
    %v3708 = vunpack.c.h.b16 %v3335
    %v3709 = vunpack.c.l.b16 %v3336
    %v3710 = vunpack.c.h.b16 %v3336
    %v3711 = vunpack.c.l.b16 %v3337
    %v3712 = vunpack.c.h.b16 %v3337
    %v3713 = vunpack.c.l.b16 %v3338
    %v3714 = vunpack.c.h.b16 %v3338
    %v3715 = vunpack.c.l.b16 %v3339
    %v3716 = vunpack.c.h.b16 %v3339
    %v3717 = vunpack.c.l.b16 %v3340
    %v3718 = vunpack.c.h.b16 %v3340
    %v3719 = vunpack.c.l.b16 %v3341
    %v3720 = vunpack.c.h.b16 %v3341
    %v3721 = vunpack.c.l.b16 %v3342
    %v3722 = vunpack.c.h.b16 %v3342
    %v3723 = vunpack.c.l.b16 %v3343
    %v3724 = vunpack.c.h.b16 %v3343
    %v3725 = vunpack.c.l.b16 %v3344
    %v3726 = vunpack.c.h.b16 %v3344
    %v3727 = vunpack.c.l.b16 %v3345
    %v3728 = vunpack.c.h.b16 %v3345
    %v3729 = vunpack.c.l.b16 %v3346
    %v3730 = vunpack.c.h.b16 %v3346
    %v3731 = vpack.c.b16 %v3483, %v3475
    %v3732 = vpack.c.b16 %v3484, %v3476
    %v3733 = vpack.c.b16 %v3485, %v3477
    %v3734 = vpack.c.b16 %v3486, %v3478
    %v3735 = vpack.c.b16 %v3487, %v3479
    %v3736 = vpack.c.b16 %v3488, %v3480
    %v3737 = vpack.c.b16 %v3489, %v3481
    %v3738 = vpack.c.b16 %v3490, %v3482
    %v3739 = vpack.c.b16 %v3499, %v3491
    %v3740 = vpack.c.b16 %v3500, %v3492
    %v3741 = vpack.c.b16 %v3501, %v3493
    %v3742 = vpack.c.b16 %v3502, %v3494
    %v3743 = vpack.c.b16 %v3503, %v3495
    %v3744 = vpack.c.b16 %v3504, %v3496
    %v3745 = vpack.c.b16 %v3505, %v3497
    %v3746 = vpack.c.b16 %v3506, %v3498
    %v3747 = vpack.c.b16 %v3515, %v3507
    %v3748 = vpack.c.b16 %v3516, %v3508
    %v3749 = vpack.c.b16 %v3517, %v3509
    %v3750 = vpack.c.b16 %v3518, %v3510
    %v3751 = vpack.c.b16 %v3519, %v3511
    %v3752 = vpack.c.b16 %v3520, %v3512
    %v3753 = vpack.c.b16 %v3521, %v3513
    %v3754 = vpack.c.b16 %v3522, %v3514
    %v3755 = vpack.c.b16 %v3531, %v3523
    %v3756 = vpack.c.b16 %v3532, %v3524
    %v3757 = vpack.c.b16 %v3533, %v3525
    %v3758 = vpack.c.b16 %v3534, %v3526
    %v3759 = vpack.c.b16 %v3535, %v3527
    %v3760 = vpack.c.b16 %v3536, %v3528
    %v3761 = vpack.c.b16 %v3537, %v3529
    %v3762 = vpack.c.b16 %v3538, %v3530
    %v3763 = vpack.c.b16 %v3547, %v3539
    %v3764 = vpack.c.b16 %v3548, %v3540
    %v3765 = vpack.c.b16 %v3549, %v3541
    %v3766 = vpack.c.b16 %v3550, %v3542
    %v3767 = vpack.c.b16 %v3551, %v3543
    %v3768 = vpack.c.b16 %v3552, %v3544
    %v3769 = vpack.c.b16 %v3553, %v3545
    %v3770 = vpack.c.b16 %v3554, %v3546
    %v3771 = vpack.c.b16 %v3563, %v3555
    %v3772 = vpack.c.b16 %v3564, %v3556
    %v3773 = vpack.c.b16 %v3565, %v3557
    %v3774 = vpack.c.b16 %v3566, %v3558
    %v3775 = vpack.c.b16 %v3567, %v3559
    %v3776 = vpack.c.b16 %v3568, %v3560
    %v3777 = vpack.c.b16 %v3569, %v3561
    %v3778 = vpack.c.b16 %v3570, %v3562
    %v3779 = vpack.c.b16 %v3579, %v3571
    %v3780 = vpack.c.b16 %v3580, %v3572
    %v3781 = vpack.c.b16 %v3581, %v3573
    %v3782 = vpack.c.b16 %v3582, %v3574
    %v3783 = vpack.c.b16 %v3583, %v3575
    %v3784 = vpack.c.b16 %v3584, %v3576
    %v3785 = vpack.c.b16 %v3585, %v3577
    %v3786 = vpack.c.b16 %v3586, %v3578
    %v3787 = vpack.c.b16 %v3595, %v3587
    %v3788 = vpack.c.b16 %v3596, %v3588
    %v3789 = vpack.c.b16 %v3597, %v3589
    %v3790 = vpack.c.b16 %v3598, %v3590
    %v3791 = vpack.c.b16 %v3599, %v3591
    %v3792 = vpack.c.b16 %v3600, %v3592
    %v3793 = vpack.c.b16 %v3601, %v3593
    %v3794 = vpack.c.b16 %v3602, %v3594
    %v3795 = vpack.c.b16 %v3611, %v3603
    %v3796 = vpack.c.b16 %v3612, %v3604
    %v3797 = vpack.c.b16 %v3613, %v3605
    %v3798 = vpack.c.b16 %v3614, %v3606
    %v3799 = vpack.c.b16 %v3615, %v3607
    %v3800 = vpack.c.b16 %v3616, %v3608
    %v3801 = vpack.c.b16 %v3617, %v3609
    %v3802 = vpack.c.b16 %v3618, %v3610
    %v3803 = vpack.c.b16 %v3627, %v3619
    %v3804 = vpack.c.b16 %v3628, %v3620
    %v3805 = vpack.c.b16 %v3629, %v3621
    %v3806 = vpack.c.b16 %v3630, %v3622
    %v3807 = vpack.c.b16 %v3631, %v3623
    %v3808 = vpack.c.b16 %v3632, %v3624
    %v3809 = vpack.c.b16 %v3633, %v3625
    %v3810 = vpack.c.b16 %v3634, %v3626
    %v3811 = vpack.c.b16 %v3643, %v3635
    %v3812 = vpack.c.b16 %v3644, %v3636
    %v3813 = vpack.c.b16 %v3645, %v3637
    %v3814 = vpack.c.b16 %v3646, %v3638
    %v3815 = vpack.c.b16 %v3647, %v3639
    %v3816 = vpack.c.b16 %v3648, %v3640
    %v3817 = vpack.c.b16 %v3649, %v3641
    %v3818 = vpack.c.b16 %v3650, %v3642
    %v3819 = vpack.c.b16 %v3659, %v3651
    %v3820 = vpack.c.b16 %v3660, %v3652
    %v3821 = vpack.c.b16 %v3661, %v3653
    %v3822 = vpack.c.b16 %v3662, %v3654
    %v3823 = vpack.c.b16 %v3663, %v3655
    %v3824 = vpack.c.b16 %v3664, %v3656
    %v3825 = vpack.c.b16 %v3665, %v3657
    %v3826 = vpack.c.b16 %v3666, %v3658
    %v3827 = vpack.c.b16 %v3675, %v3667
    %v3828 = vpack.c.b16 %v3676, %v3668
    %v3829 = vpack.c.b16 %v3677, %v3669
    %v3830 = vpack.c.b16 %v3678, %v3670
    %v3831 = vpack.c.b16 %v3679, %v3671
    %v3832 = vpack.c.b16 %v3680, %v3672
    %v3833 = vpack.c.b16 %v3681, %v3673
    %v3834 = vpack.c.b16 %v3682, %v3674
    %v3835 = vpack.c.b16 %v3691, %v3683
    %v3836 = vpack.c.b16 %v3692, %v3684
    %v3837 = vpack.c.b16 %v3693, %v3685
    %v3838 = vpack.c.b16 %v3694, %v3686
    %v3839 = vpack.c.b16 %v3695, %v3687
    %v3840 = vpack.c.b16 %v3696, %v3688
    %v3841 = vpack.c.b16 %v3697, %v3689
    %v3842 = vpack.c.b16 %v3698, %v3690
    %v3843 = vpack.c.b16 %v3707, %v3699
    %v3844 = vpack.c.b16 %v3708, %v3700
    %v3845 = vpack.c.b16 %v3709, %v3701
    %v3846 = vpack.c.b16 %v3710, %v3702
    %v3847 = vpack.c.b16 %v3711, %v3703
    %v3848 = vpack.c.b16 %v3712, %v3704
    %v3849 = vpack.c.b16 %v3713, %v3705
    %v3850 = vpack.c.b16 %v3714, %v3706
    %v3851 = vpack.c.b16 %v3723, %v3715
    %v3852 = vpack.c.b16 %v3724, %v3716
    %v3853 = vpack.c.b16 %v3725, %v3717
    %v3854 = vpack.c.b16 %v3726, %v3718
    %v3855 = vpack.c.b16 %v3727, %v3719
    %v3856 = vpack.c.b16 %v3728, %v3720
    %v3857 = vpack.c.b16 %v3729, %v3721
    %v3858 = vpack.c.b16 %v3730, %v3722
    %3987 = vmatprep.subr.bf16.mxu0 %v3732
    %3988 = vmatpush1.bf16.msra.mxu0 %v3731
    %3989 = vmatprep.subr.bf16.mxu0 %v3740
    %3990 = vmatpush1.bf16.msra.mxu0 %v3739
    %3991 = vmatprep.subr.bf16.mxu0 %v3748
    %3992 = vmatpush1.bf16.msra.mxu0 %v3747
    %3993 = vmatprep.subr.bf16.mxu0 %v3756
    %3994 = vmatpush1.bf16.msra.mxu0 %v3755
    %3995 = vmatprep.subr.bf16.mxu0 %v3764
    %3996 = vmatpush1.bf16.msra.mxu0 %v3763
    %3997 = vmatprep.subr.bf16.mxu0 %v3772
    %3998 = vmatpush1.bf16.msra.mxu0 %v3771
    %3999 = vmatprep.subr.bf16.mxu0 %v3780
    %4000 = vmatpush1.bf16.msra.mxu0 %v3779
    %4001 = vmatprep.subr.bf16.mxu0 %v3788
    %4002 = vmatpush1.bf16.msra.mxu0 %v3787
    %4003 = vmatprep.subr.bf16.mxu0 %v3796
    %4004 = vmatpush1.bf16.msra.mxu0 %v3795
    %4005 = vmatprep.subr.bf16.mxu0 %v3804
    %4006 = vmatpush1.bf16.msra.mxu0 %v3803
    %4007 = vmatprep.subr.bf16.mxu0 %v3812
    %4008 = vmatpush1.bf16.msra.mxu0 %v3811
    %4009 = vmatprep.subr.bf16.mxu0 %v3820
    %4010 = vmatpush1.bf16.msra.mxu0 %v3819
    %4011 = vmatprep.subr.bf16.mxu0 %v3828
    %4012 = vmatpush1.bf16.msra.mxu0 %v3827
    %4013 = vmatprep.subr.bf16.mxu0 %v3836
    %4014 = vmatpush1.bf16.msra.mxu0 %v3835
    %4015 = vmatprep.subr.bf16.mxu0 %v3844
    %4016 = vmatpush1.bf16.msra.mxu0 %v3843
    %4017 = vmatprep.subr.bf16.mxu0 %v3852
    %4018 = vmatpush1.bf16.msra.mxu0 %v3851
    %4019 = vmatprep.mubr.bf16.mxu0 %v3216
    %4020 = vmatmul.mubr.bf16.gmra.mrb[0].mxu0 %v3215
    %v4021 = vpop.f32.mrb[0].mxu0
    %v4022 = vadd.f32 0.0, %v4021
    %v4023 = vpop.f32.mrb[0].mxu0
    %v4024 = vadd.f32 0.0, %v4023
    %v4025 = vpop.f32.mrb[0].mxu0
    %v4026 = vadd.f32 0.0, %v4025
    %v4027 = vpop.f32.mrb[0].mxu0
    %v4028 = vadd.f32 0.0, %v4027
    %4029 = vdwg.mxu0
    %4030 = vmatprep.subr.bf16.mxu0 %v3734
    %4031 = vmatpush1.bf16.msra.mxu0 %v3733
    %4032 = vmatprep.subr.bf16.mxu0 %v3742
    %4033 = vmatpush1.bf16.msra.mxu0 %v3741
    %4034 = vmatprep.subr.bf16.mxu0 %v3750
    %4035 = vmatpush1.bf16.msra.mxu0 %v3749
    %4036 = vmatprep.subr.bf16.mxu0 %v3758
    %4037 = vmatpush1.bf16.msra.mxu0 %v3757
    %4038 = vmatprep.subr.bf16.mxu0 %v3766
    %4039 = vmatpush1.bf16.msra.mxu0 %v3765
    %4040 = vmatprep.subr.bf16.mxu0 %v3774
    %4041 = vmatpush1.bf16.msra.mxu0 %v3773
    %4042 = vmatprep.subr.bf16.mxu0 %v3782
    %4043 = vmatpush1.bf16.msra.mxu0 %v3781
    %4044 = vmatprep.subr.bf16.mxu0 %v3790
    %4045 = vmatpush1.bf16.msra.mxu0 %v3789
    %4046 = vmatprep.subr.bf16.mxu0 %v3798
    %4047 = vmatpush1.bf16.msra.mxu0 %v3797
    %4048 = vmatprep.subr.bf16.mxu0 %v3806
    %4049 = vmatpush1.bf16.msra.mxu0 %v3805
    %4050 = vmatprep.subr.bf16.mxu0 %v3814
    %4051 = vmatpush1.bf16.msra.mxu0 %v3813
    %4052 = vmatprep.subr.bf16.mxu0 %v3822
    %4053 = vmatpush1.bf16.msra.mxu0 %v3821
    %4054 = vmatprep.subr.bf16.mxu0 %v3830
    %4055 = vmatpush1.bf16.msra.mxu0 %v3829
    %4056 = vmatprep.subr.bf16.mxu0 %v3838
    %4057 = vmatpush1.bf16.msra.mxu0 %v3837
    %4058 = vmatprep.subr.bf16.mxu0 %v3846
    %4059 = vmatpush1.bf16.msra.mxu0 %v3845
    %4060 = vmatprep.subr.bf16.mxu0 %v3854
    %4061 = vmatpush1.bf16.msra.mxu0 %v3853
    %4062 = vmatprep.mubr.bf16.mxu0 %v3216
    %4063 = vmatmul.mubr.bf16.gmra.mrb[0].mxu0 %v3215
    %v4064 = vpop.f32.mrb[0].mxu0
    %v4065 = vadd.f32 0.0, %v4064
    %v4066 = vpop.f32.mrb[0].mxu0
    %v4067 = vadd.f32 0.0, %v4066
    %v4068 = vpop.f32.mrb[0].mxu0
    %v4069 = vadd.f32 0.0, %v4068
    %v4070 = vpop.f32.mrb[0].mxu0
    %v4071 = vadd.f32 0.0, %v4070
    %4072 = vdwg.mxu0
    %4073 = vmatprep.subr.bf16.mxu0 %v3736
    %4074 = vmatpush1.bf16.msra.mxu0 %v3735
    %4075 = vmatprep.subr.bf16.mxu0 %v3744
    %4076 = vmatpush1.bf16.msra.mxu0 %v3743
    %4077 = vmatprep.subr.bf16.mxu0 %v3752
    %4078 = vmatpush1.bf16.msra.mxu0 %v3751
    %4079 = vmatprep.subr.bf16.mxu0 %v3760
    %4080 = vmatpush1.bf16.msra.mxu0 %v3759
    %4081 = vmatprep.subr.bf16.mxu0 %v3768
    %4082 = vmatpush1.bf16.msra.mxu0 %v3767
    %4083 = vmatprep.subr.bf16.mxu0 %v3776
    %4084 = vmatpush1.bf16.msra.mxu0 %v3775
    %4085 = vmatprep.subr.bf16.mxu0 %v3784
    %4086 = vmatpush1.bf16.msra.mxu0 %v3783
    %4087 = vmatprep.subr.bf16.mxu0 %v3792
    %4088 = vmatpush1.bf16.msra.mxu0 %v3791
    %4089 = vmatprep.subr.bf16.mxu0 %v3800
    %4090 = vmatpush1.bf16.msra.mxu0 %v3799
    %4091 = vmatprep.subr.bf16.mxu0 %v3808
    %4092 = vmatpush1.bf16.msra.mxu0 %v3807
    %4093 = vmatprep.subr.bf16.mxu0 %v3816
    %4094 = vmatpush1.bf16.msra.mxu0 %v3815
    %4095 = vmatprep.subr.bf16.mxu0 %v3824
    %4096 = vmatpush1.bf16.msra.mxu0 %v3823
    %4097 = vmatprep.subr.bf16.mxu0 %v3832
    %4098 = vmatpush1.bf16.msra.mxu0 %v3831
    %4099 = vmatprep.subr.bf16.mxu0 %v3840
    %4100 = vmatpush1.bf16.msra.mxu0 %v3839
    %4101 = vmatprep.subr.bf16.mxu0 %v3848
    %4102 = vmatpush1.bf16.msra.mxu0 %v3847
    %4103 = vmatprep.subr.bf16.mxu0 %v3856
    %4104 = vmatpush1.bf16.msra.mxu0 %v3855
    %4105 = vmatprep.mubr.bf16.mxu0 %v3216
    %4106 = vmatmul.mubr.bf16.gmra.mrb[0].mxu0 %v3215
    %v4107 = vpop.f32.mrb[0].mxu0
    %v4108 = vadd.f32 0.0, %v4107
    %v4109 = vpop.f32.mrb[0].mxu0
    %v4110 = vadd.f32 0.0, %v4109
    %v4111 = vpop.f32.mrb[0].mxu0
    %v4112 = vadd.f32 0.0, %v4111
    %v4113 = vpop.f32.mrb[0].mxu0
    %v4114 = vadd.f32 0.0, %v4113
    %4115 = vdwg.mxu0
    %4116 = vmatprep.subr.bf16.mxu0 %v3738
    %4117 = vmatpush1.bf16.msra.mxu0 %v3737
    %4118 = vmatprep.subr.bf16.mxu0 %v3746
    %4119 = vmatpush1.bf16.msra.mxu0 %v3745
    %4120 = vmatprep.subr.bf16.mxu0 %v3754
    %4121 = vmatpush1.bf16.msra.mxu0 %v3753
    %4122 = vmatprep.subr.bf16.mxu0 %v3762
    %4123 = vmatpush1.bf16.msra.mxu0 %v3761
    %4124 = vmatprep.subr.bf16.mxu0 %v3770
    %4125 = vmatpush1.bf16.msra.mxu0 %v3769
    %4126 = vmatprep.subr.bf16.mxu0 %v3778
    %4127 = vmatpush1.bf16.msra.mxu0 %v3777
    %4128 = vmatprep.subr.bf16.mxu0 %v3786
    %4129 = vmatpush1.bf16.msra.mxu0 %v3785
    %4130 = vmatprep.subr.bf16.mxu0 %v3794
    %4131 = vmatpush1.bf16.msra.mxu0 %v3793
    %4132 = vmatprep.subr.bf16.mxu0 %v3802
    %4133 = vmatpush1.bf16.msra.mxu0 %v3801
    %4134 = vmatprep.subr.bf16.mxu0 %v3810
    %4135 = vmatpush1.bf16.msra.mxu0 %v3809
    %4136 = vmatprep.subr.bf16.mxu0 %v3818
    %4137 = vmatpush1.bf16.msra.mxu0 %v3817
    %4138 = vmatprep.subr.bf16.mxu0 %v3826
    %4139 = vmatpush1.bf16.msra.mxu0 %v3825
    %4140 = vmatprep.subr.bf16.mxu0 %v3834
    %4141 = vmatpush1.bf16.msra.mxu0 %v3833
    %4142 = vmatprep.subr.bf16.mxu0 %v3842
    %4143 = vmatpush1.bf16.msra.mxu0 %v3841
    %4144 = vmatprep.subr.bf16.mxu0 %v3850
    %4145 = vmatpush1.bf16.msra.mxu0 %v3849
    %4146 = vmatprep.subr.bf16.mxu0 %v3858
    %4147 = vmatpush1.bf16.msra.mxu0 %v3857
    %4148 = vmatprep.mubr.bf16.mxu0 %v3216
    %4149 = vmatmul.mubr.bf16.gmra.mrb[0].mxu0 %v3215
    %v4150 = vpop.f32.mrb[0].mxu0
    %v4151 = vadd.f32 0.0, %v4150
    %v4152 = vpop.f32.mrb[0].mxu0
    %v4153 = vadd.f32 0.0, %v4152
    %v4154 = vpop.f32.mrb[0].mxu0
    %v4155 = vadd.f32 0.0, %v4154
    %v4156 = vpop.f32.mrb[0].mxu0
    %v4157 = vadd.f32 0.0, %v4156
    %4158 = vdwg.mxu0
    %v4159 = vld [vmem:[#allocation2 + $0x100] sm:$0xff]
    %v4160 = vld [vmem:[#allocation2 + $0x108] sm:$0xff]
    %v4161 = vld [vmem:[#allocation2 + $0x110] sm:$0xff]
    %v4162 = vld [vmem:[#allocation2 + $0x118] sm:$0xff]
    %v4163 = vld [vmem:[#allocation2 + $0x140] sm:$0xff]
    %v4164 = vld [vmem:[#allocation2 + $0x148] sm:$0xff]
    %v4165 = vld [vmem:[#allocation2 + $0x150] sm:$0xff]
    %v4166 = vld [vmem:[#allocation2 + $0x158] sm:$0xff]
    %v4167 = vadd.f32 %v4159, %v4022
    %v4168 = vadd.f32 %v4160, %v4024
    %v4169 = vadd.f32 %v4161, %v4065
    %v4170 = vadd.f32 %v4162, %v4067
    %v4171 = vadd.f32 %v4163, %v4026
    %v4172 = vadd.f32 %v4164, %v4028
    %v4173 = vadd.f32 %v4165, %v4069
    %v4174 = vadd.f32 %v4166, %v4071
    %v4175 = vld [vmem:[#allocation2 + $0x2a0] sm:$0xff]
    %v4176 = vld [vmem:[#allocation2 + $0x2a8] sm:$0xff]
    %v4177 = vld [vmem:[#allocation2 + $0x2b0] sm:$0xff]
    %v4178 = vld [vmem:[#allocation2 + $0x2b8] sm:$0xff]
    %v4179 = vld [vmem:[#allocation2 + $0x2e0] sm:$0xff]
    %v4180 = vld [vmem:[#allocation2 + $0x2e8] sm:$0xff]
    %v4181 = vld [vmem:[#allocation2 + $0x2f0] sm:$0xff]
    %v4182 = vld [vmem:[#allocation2 + $0x2f8] sm:$0xff]
    %v4183 = vadd.f32 %v4175, %v4108
    %v4184 = vadd.f32 %v4176, %v4110
    %v4185 = vadd.f32 %v4177, %v4151
    %v4186 = vadd.f32 %v4178, %v4153
    %v4187 = vadd.f32 %v4179, %v4112
    %v4188 = vadd.f32 %v4180, %v4114
    %v4189 = vadd.f32 %v4181, %v4155
    %v4190 = vadd.f32 %v4182, %v4157
    %v4191 = vmul.f32 %v4167, 0.5
    %v4192 = vmul.f32 %v4171, 0.5
    %v4193 = vtanh.pop %v4191
    %v4194 = vtanh.pop %v4192
    %v4195 = vmul.f32 %v4193, 0.5
    %v4196 = vmul.f32 %v4194, 0.5
    %v4197 = vadd.f32 %v4195, 0.5
    %v4198 = vadd.f32 %v4196, 0.5
    %v4199 = vmul.f32 %v4168, 0.5
    %v4200 = vmul.f32 %v4172, 0.5
    %v4201 = vtanh.pop %v4199
    %v4202 = vtanh.pop %v4200
    %v4203 = vmul.f32 %v4201, 0.5
    %v4204 = vmul.f32 %v4202, 0.5
    %v4205 = vadd.f32 %v4203, 0.5
    %v4206 = vadd.f32 %v4204, 0.5
    %v4207 = vtanh.pop %v4169
    %v4208 = vtanh.pop %v4173
    %v4209 = vmul.f32 %v4170, 0.5
    %v4210 = vmul.f32 %v4174, 0.5
    %v4211 = vtanh.pop %v4209
    %v4212 = vtanh.pop %v4210
    %v4213 = vmul.f32 %v4211, 0.5
    %v4214 = vmul.f32 %v4212, 0.5
    %v4215 = vadd.f32 %v4213, 0.5
    %v4216 = vadd.f32 %v4214, 0.5
    %v4217 = vmul.f32 %v4205, %v3173
    %v4218 = vmul.f32 %v4206, %v3174
    %v4219 = vmul.f32 %v4197, %v4207
    %v4220 = vmul.f32 %v4198, %v4208
    %v4221 = vadd.f32 %v4217, %v4219
    %v4222 = vadd.f32 %v4218, %v4220
    %v4223 = vtanh.pop %v4221
    %v4224 = vtanh.pop %v4222
    %v4225 = vmul.f32 %v4215, %v4223
    %v4226 = vmul.f32 %v4216, %v4224
    %v4227 = vmul.f32 %v4183, 0.5
    %v4228 = vmul.f32 %v4187, 0.5
    %v4229 = vtanh.pop %v4227
    %v4230 = vtanh.pop %v4228
    %v4231 = vmul.f32 %v4229, 0.5
    %v4232 = vmul.f32 %v4230, 0.5
    %v4233 = vadd.f32 %v4231, 0.5
    %v4234 = vadd.f32 %v4232, 0.5
    %v4235 = vmul.f32 %v4184, 0.5
    %v4236 = vmul.f32 %v4188, 0.5
    %v4237 = vtanh.pop %v4235
    %v4238 = vtanh.pop %v4236
    %v4239 = vmul.f32 %v4237, 0.5
    %v4240 = vmul.f32 %v4238, 0.5
    %v4241 = vadd.f32 %v4239, 0.5
    %v4242 = vadd.f32 %v4240, 0.5
    %v4243 = vtanh.pop %v4185
    %v4244 = vtanh.pop %v4189
    %v4245 = vmul.f32 %v4186, 0.5
    %v4246 = vmul.f32 %v4190, 0.5
    %v4247 = vtanh.pop %v4245
    %v4248 = vtanh.pop %v4246
    %v4249 = vmul.f32 %v4247, 0.5
    %v4250 = vmul.f32 %v4248, 0.5
    %v4251 = vadd.f32 %v4249, 0.5
    %v4252 = vadd.f32 %v4250, 0.5
    %v4253 = vmul.f32 %v4241, %v3209
    %v4254 = vmul.f32 %v4242, %v3210
    %v4255 = vmul.f32 %v4233, %v4243
    %v4256 = vmul.f32 %v4234, %v4244
    %v4257 = vadd.f32 %v4253, %v4255
    %v4258 = vadd.f32 %v4254, %v4256
    %v4259 = vtanh.pop %v4257
    %v4260 = vtanh.pop %v4258
    %v4261 = vmul.f32 %v4251, %v4259
    %v4262 = vmul.f32 %v4252, %v4260
    %v4263 = vpack.c.bf16 %v4226, %v4225
    %v4264 = vpack.c.bf16 %v4262, %v4261
    %4265 = vst [vmem:[#allocation3 + $0x20] sm:$0xff] %v4263
    %4266 = vst [vmem:[#allocation3 + $0x58] sm:$0xff] %v4264
    %v4267 = vld [vmem:[#allocation7] sm:$0xff]
    %v4268 = vld [vmem:[#allocation7 + $0x8] sm:$0xff]
    %v4269 = vld [vmem:[#allocation7 + $0x10] sm:$0xff]
    %v4270 = vld [vmem:[#allocation7 + $0x18] sm:$0xff]
    %v4271 = vld [vmem:[#allocation7 + $0x20] sm:$0xff]
    %v4272 = vld [vmem:[#allocation7 + $0x28] sm:$0xff]
    %v4273 = vld [vmem:[#allocation7 + $0x30] sm:$0xff]
    %v4274 = vld [vmem:[#allocation7 + $0x38] sm:$0xff]
    %v4275 = vld [vmem:[#allocation7 + $0x40] sm:$0xff]
    %v4276 = vld [vmem:[#allocation7 + $0x48] sm:$0xff]
    %v4277 = vld [vmem:[#allocation7 + $0x50] sm:$0xff]
    %v4278 = vld [vmem:[#allocation7 + $0x58] sm:$0xff]
    %v4279 = vld [vmem:[#allocation7 + $0x60] sm:$0xff]
    %v4280 = vld [vmem:[#allocation7 + $0x68] sm:$0xff]
    %v4281 = vld [vmem:[#allocation7 + $0x70] sm:$0xff]
    %v4282 = vld [vmem:[#allocation7 + $0x78] sm:$0xff]
    %v4283 = vld [vmem:[#allocation7 + $0x80] sm:$0xff]
    %v4284 = vld [vmem:[#allocation7 + $0x88] sm:$0xff]
    %v4285 = vld [vmem:[#allocation7 + $0x90] sm:$0xff]
    %v4286 = vld [vmem:[#allocation7 + $0x98] sm:$0xff]
    %v4287 = vld [vmem:[#allocation7 + $0xa0] sm:$0xff]
    %v4288 = vld [vmem:[#allocation7 + $0xa8] sm:$0xff]
    %v4289 = vld [vmem:[#allocation7 + $0xb0] sm:$0xff]
    %v4290 = vld [vmem:[#allocation7 + $0xb8] sm:$0xff]
    %v4291 = vld [vmem:[#allocation7 + $0xc0] sm:$0xff]
    %v4292 = vld [vmem:[#allocation7 + $0xc8] sm:$0xff]
    %v4293 = vld [vmem:[#allocation7 + $0xd0] sm:$0xff]
    %v4294 = vld [vmem:[#allocation7 + $0xd8] sm:$0xff]
    %v4295 = vld [vmem:[#allocation7 + $0xe0] sm:$0xff]
    %v4296 = vld [vmem:[#allocation7 + $0xe8] sm:$0xff]
    %v4297 = vld [vmem:[#allocation7 + $0xf0] sm:$0xff]
    %v4298 = vld [vmem:[#allocation7 + $0xf8] sm:$0xff]
    %v4299 = vld [vmem:[#allocation7 + $0x100] sm:$0xff]
    %v4300 = vld [vmem:[#allocation7 + $0x108] sm:$0xff]
    %v4301 = vld [vmem:[#allocation7 + $0x110] sm:$0xff]
    %v4302 = vld [vmem:[#allocation7 + $0x118] sm:$0xff]
    %v4303 = vld [vmem:[#allocation7 + $0x120] sm:$0xff]
    %v4304 = vld [vmem:[#allocation7 + $0x128] sm:$0xff]
    %v4305 = vld [vmem:[#allocation7 + $0x130] sm:$0xff]
    %v4306 = vld [vmem:[#allocation7 + $0x138] sm:$0xff]
    %v4307 = vld [vmem:[#allocation7 + $0x140] sm:$0xff]
    %v4308 = vld [vmem:[#allocation7 + $0x148] sm:$0xff]
    %v4309 = vld [vmem:[#allocation7 + $0x150] sm:$0xff]
    %v4310 = vld [vmem:[#allocation7 + $0x158] sm:$0xff]
    %v4311 = vld [vmem:[#allocation7 + $0x160] sm:$0xff]
    %v4312 = vld [vmem:[#allocation7 + $0x168] sm:$0xff]
    %v4313 = vld [vmem:[#allocation7 + $0x170] sm:$0xff]
    %v4314 = vld [vmem:[#allocation7 + $0x178] sm:$0xff]
    %v4315 = vld [vmem:[#allocation7 + $0x180] sm:$0xff]
    %v4316 = vld [vmem:[#allocation7 + $0x188] sm:$0xff]
    %v4317 = vld [vmem:[#allocation7 + $0x190] sm:$0xff]
    %v4318 = vld [vmem:[#allocation7 + $0x198] sm:$0xff]
    %v4319 = vld [vmem:[#allocation7 + $0x1a0] sm:$0xff]
    %v4320 = vld [vmem:[#allocation7 + $0x1a8] sm:$0xff]
    %v4321 = vld [vmem:[#allocation7 + $0x1b0] sm:$0xff]
    %v4322 = vld [vmem:[#allocation7 + $0x1b8] sm:$0xff]
    %v4323 = vld [vmem:[#allocation7 + $0x1c0] sm:$0xff]
    %v4324 = vld [vmem:[#allocation7 + $0x1c8] sm:$0xff]
    %v4325 = vld [vmem:[#allocation7 + $0x1d0] sm:$0xff]
    %v4326 = vld [vmem:[#allocation7 + $0x1d8] sm:$0xff]
    %v4327 = vld [vmem:[#allocation7 + $0x1e0] sm:$0xff]
    %v4328 = vld [vmem:[#allocation7 + $0x1e8] sm:$0xff]
    %v4329 = vld [vmem:[#allocation7 + $0x1f0] sm:$0xff]
    %v4330 = vld [vmem:[#allocation7 + $0x1f8] sm:$0xff]
    %v4331 = vld [vmem:[#allocation7 + $0x200] sm:$0xff]
    %v4332 = vld [vmem:[#allocation7 + $0x208] sm:$0xff]
    %v4333 = vld [vmem:[#allocation7 + $0x210] sm:$0xff]
    %v4334 = vld [vmem:[#allocation7 + $0x218] sm:$0xff]
    %v4335 = vld [vmem:[#allocation7 + $0x220] sm:$0xff]
    %v4336 = vld [vmem:[#allocation7 + $0x228] sm:$0xff]
    %v4337 = vld [vmem:[#allocation7 + $0x230] sm:$0xff]
    %v4338 = vld [vmem:[#allocation7 + $0x238] sm:$0xff]
    %v4339 = vld [vmem:[#allocation7 + $0x240] sm:$0xff]
    %v4340 = vld [vmem:[#allocation7 + $0x248] sm:$0xff]
    %v4341 = vld [vmem:[#allocation7 + $0x250] sm:$0xff]
    %v4342 = vld [vmem:[#allocation7 + $0x258] sm:$0xff]
    %v4343 = vld [vmem:[#allocation7 + $0x260] sm:$0xff]
    %v4344 = vld [vmem:[#allocation7 + $0x268] sm:$0xff]
    %v4345 = vld [vmem:[#allocation7 + $0x270] sm:$0xff]
    %v4346 = vld [vmem:[#allocation7 + $0x278] sm:$0xff]
    %v4347 = vld [vmem:[#allocation7 + $0x280] sm:$0xff]
    %v4348 = vld [vmem:[#allocation7 + $0x288] sm:$0xff]
    %v4349 = vld [vmem:[#allocation7 + $0x290] sm:$0xff]
    %v4350 = vld [vmem:[#allocation7 + $0x298] sm:$0xff]
    %v4351 = vld [vmem:[#allocation7 + $0x2a0] sm:$0xff]
    %v4352 = vld [vmem:[#allocation7 + $0x2a8] sm:$0xff]
    %v4353 = vld [vmem:[#allocation7 + $0x2b0] sm:$0xff]
    %v4354 = vld [vmem:[#allocation7 + $0x2b8] sm:$0xff]
    %v4355 = vld [vmem:[#allocation7 + $0x2c0] sm:$0xff]
    %v4356 = vld [vmem:[#allocation7 + $0x2c8] sm:$0xff]
    %v4357 = vld [vmem:[#allocation7 + $0x2d0] sm:$0xff]
    %v4358 = vld [vmem:[#allocation7 + $0x2d8] sm:$0xff]
    %v4359 = vld [vmem:[#allocation7 + $0x2e0] sm:$0xff]
    %v4360 = vld [vmem:[#allocation7 + $0x2e8] sm:$0xff]
    %v4361 = vld [vmem:[#allocation7 + $0x2f0] sm:$0xff]
    %v4362 = vld [vmem:[#allocation7 + $0x2f8] sm:$0xff]
    %v4363 = vld [vmem:[#allocation7 + $0x300] sm:$0xff]
    %v4364 = vld [vmem:[#allocation7 + $0x308] sm:$0xff]
    %v4365 = vld [vmem:[#allocation7 + $0x310] sm:$0xff]
    %v4366 = vld [vmem:[#allocation7 + $0x318] sm:$0xff]
    %v4367 = vld [vmem:[#allocation7 + $0x320] sm:$0xff]
    %v4368 = vld [vmem:[#allocation7 + $0x328] sm:$0xff]
    %v4369 = vld [vmem:[#allocation7 + $0x330] sm:$0xff]
    %v4370 = vld [vmem:[#allocation7 + $0x338] sm:$0xff]
    %v4371 = vld [vmem:[#allocation7 + $0x340] sm:$0xff]
    %v4372 = vld [vmem:[#allocation7 + $0x348] sm:$0xff]
    %v4373 = vld [vmem:[#allocation7 + $0x350] sm:$0xff]
    %v4374 = vld [vmem:[#allocation7 + $0x358] sm:$0xff]
    %v4375 = vld [vmem:[#allocation7 + $0x360] sm:$0xff]
    %v4376 = vld [vmem:[#allocation7 + $0x368] sm:$0xff]
    %v4377 = vld [vmem:[#allocation7 + $0x370] sm:$0xff]
    %v4378 = vld [vmem:[#allocation7 + $0x378] sm:$0xff]
    %v4379 = vld [vmem:[#allocation7 + $0x380] sm:$0xff]
    %v4380 = vld [vmem:[#allocation7 + $0x388] sm:$0xff]
    %v4381 = vld [vmem:[#allocation7 + $0x390] sm:$0xff]
    %v4382 = vld [vmem:[#allocation7 + $0x398] sm:$0xff]
    %v4383 = vld [vmem:[#allocation7 + $0x3a0] sm:$0xff]
    %v4384 = vld [vmem:[#allocation7 + $0x3a8] sm:$0xff]
    %v4385 = vld [vmem:[#allocation7 + $0x3b0] sm:$0xff]
    %v4386 = vld [vmem:[#allocation7 + $0x3b8] sm:$0xff]
    %v4387 = vld [vmem:[#allocation7 + $0x3c0] sm:$0xff]
    %v4388 = vld [vmem:[#allocation7 + $0x3c8] sm:$0xff]
    %v4389 = vld [vmem:[#allocation7 + $0x3d0] sm:$0xff]
    %v4390 = vld [vmem:[#allocation7 + $0x3d8] sm:$0xff]
    %v4391 = vld [vmem:[#allocation7 + $0x3e0] sm:$0xff]
    %v4392 = vld [vmem:[#allocation7 + $0x3e8] sm:$0xff]
    %v4393 = vld [vmem:[#allocation7 + $0x3f0] sm:$0xff]
    %v4394 = vld [vmem:[#allocation7 + $0x3f8] sm:$0xff]
    %v4523 = vunpack.c.l.b16 %v4267
    %v4524 = vunpack.c.h.b16 %v4267
    %v4525 = vunpack.c.l.b16 %v4268
    %v4526 = vunpack.c.h.b16 %v4268
    %v4527 = vunpack.c.l.b16 %v4269
    %v4528 = vunpack.c.h.b16 %v4269
    %v4529 = vunpack.c.l.b16 %v4270
    %v4530 = vunpack.c.h.b16 %v4270
    %v4531 = vunpack.c.l.b16 %v4271
    %v4532 = vunpack.c.h.b16 %v4271
    %v4533 = vunpack.c.l.b16 %v4272
    %v4534 = vunpack.c.h.b16 %v4272
    %v4535 = vunpack.c.l.b16 %v4273
    %v4536 = vunpack.c.h.b16 %v4273
    %v4537 = vunpack.c.l.b16 %v4274
    %v4538 = vunpack.c.h.b16 %v4274
    %v4539 = vunpack.c.l.b16 %v4275
    %v4540 = vunpack.c.h.b16 %v4275
    %v4541 = vunpack.c.l.b16 %v4276
    %v4542 = vunpack.c.h.b16 %v4276
    %v4543 = vunpack.c.l.b16 %v4277
    %v4544 = vunpack.c.h.b16 %v4277
    %v4545 = vunpack.c.l.b16 %v4278
    %v4546 = vunpack.c.h.b16 %v4278
    %v4547 = vunpack.c.l.b16 %v4279
    %v4548 = vunpack.c.h.b16 %v4279
    %v4549 = vunpack.c.l.b16 %v4280
    %v4550 = vunpack.c.h.b16 %v4280
    %v4551 = vunpack.c.l.b16 %v4281
    %v4552 = vunpack.c.h.b16 %v4281
    %v4553 = vunpack.c.l.b16 %v4282
    %v4554 = vunpack.c.h.b16 %v4282
    %v4555 = vunpack.c.l.b16 %v4283
    %v4556 = vunpack.c.h.b16 %v4283
    %v4557 = vunpack.c.l.b16 %v4284
    %v4558 = vunpack.c.h.b16 %v4284
    %v4559 = vunpack.c.l.b16 %v4285
    %v4560 = vunpack.c.h.b16 %v4285
    %v4561 = vunpack.c.l.b16 %v4286
    %v4562 = vunpack.c.h.b16 %v4286
    %v4563 = vunpack.c.l.b16 %v4287
    %v4564 = vunpack.c.h.b16 %v4287
    %v4565 = vunpack.c.l.b16 %v4288
    %v4566 = vunpack.c.h.b16 %v4288
    %v4567 = vunpack.c.l.b16 %v4289
    %v4568 = vunpack.c.h.b16 %v4289
    %v4569 = vunpack.c.l.b16 %v4290
    %v4570 = vunpack.c.h.b16 %v4290
    %v4571 = vunpack.c.l.b16 %v4291
    %v4572 = vunpack.c.h.b16 %v4291
    %v4573 = vunpack.c.l.b16 %v4292
    %v4574 = vunpack.c.h.b16 %v4292
    %v4575 = vunpack.c.l.b16 %v4293
    %v4576 = vunpack.c.h.b16 %v4293
    %v4577 = vunpack.c.l.b16 %v4294
    %v4578 = vunpack.c.h.b16 %v4294
    %v4579 = vunpack.c.l.b16 %v4295
    %v4580 = vunpack.c.h.b16 %v4295
    %v4581 = vunpack.c.l.b16 %v4296
    %v4582 = vunpack.c.h.b16 %v4296
    %v4583 = vunpack.c.l.b16 %v4297
    %v4584 = vunpack.c.h.b16 %v4297
    %v4585 = vunpack.c.l.b16 %v4298
    %v4586 = vunpack.c.h.b16 %v4298
    %v4587 = vunpack.c.l.b16 %v4299
    %v4588 = vunpack.c.h.b16 %v4299
    %v4589 = vunpack.c.l.b16 %v4300
    %v4590 = vunpack.c.h.b16 %v4300
    %v4591 = vunpack.c.l.b16 %v4301
    %v4592 = vunpack.c.h.b16 %v4301
    %v4593 = vunpack.c.l.b16 %v4302
    %v4594 = vunpack.c.h.b16 %v4302
    %v4595 = vunpack.c.l.b16 %v4303
    %v4596 = vunpack.c.h.b16 %v4303
    %v4597 = vunpack.c.l.b16 %v4304
    %v4598 = vunpack.c.h.b16 %v4304
    %v4599 = vunpack.c.l.b16 %v4305
    %v4600 = vunpack.c.h.b16 %v4305
    %v4601 = vunpack.c.l.b16 %v4306
    %v4602 = vunpack.c.h.b16 %v4306
    %v4603 = vunpack.c.l.b16 %v4307
    %v4604 = vunpack.c.h.b16 %v4307
    %v4605 = vunpack.c.l.b16 %v4308
    %v4606 = vunpack.c.h.b16 %v4308
    %v4607 = vunpack.c.l.b16 %v4309
    %v4608 = vunpack.c.h.b16 %v4309
    %v4609 = vunpack.c.l.b16 %v4310
    %v4610 = vunpack.c.h.b16 %v4310
    %v4611 = vunpack.c.l.b16 %v4311
    %v4612 = vunpack.c.h.b16 %v4311
    %v4613 = vunpack.c.l.b16 %v4312
    %v4614 = vunpack.c.h.b16 %v4312
    %v4615 = vunpack.c.l.b16 %v4313
    %v4616 = vunpack.c.h.b16 %v4313
    %v4617 = vunpack.c.l.b16 %v4314
    %v4618 = vunpack.c.h.b16 %v4314
    %v4619 = vunpack.c.l.b16 %v4315
    %v4620 = vunpack.c.h.b16 %v4315
    %v4621 = vunpack.c.l.b16 %v4316
    %v4622 = vunpack.c.h.b16 %v4316
    %v4623 = vunpack.c.l.b16 %v4317
    %v4624 = vunpack.c.h.b16 %v4317
    %v4625 = vunpack.c.l.b16 %v4318
    %v4626 = vunpack.c.h.b16 %v4318
    %v4627 = vunpack.c.l.b16 %v4319
    %v4628 = vunpack.c.h.b16 %v4319
    %v4629 = vunpack.c.l.b16 %v4320
    %v4630 = vunpack.c.h.b16 %v4320
    %v4631 = vunpack.c.l.b16 %v4321
    %v4632 = vunpack.c.h.b16 %v4321
    %v4633 = vunpack.c.l.b16 %v4322
    %v4634 = vunpack.c.h.b16 %v4322
    %v4635 = vunpack.c.l.b16 %v4323
    %v4636 = vunpack.c.h.b16 %v4323
    %v4637 = vunpack.c.l.b16 %v4324
    %v4638 = vunpack.c.h.b16 %v4324
    %v4639 = vunpack.c.l.b16 %v4325
    %v4640 = vunpack.c.h.b16 %v4325
    %v4641 = vunpack.c.l.b16 %v4326
    %v4642 = vunpack.c.h.b16 %v4326
    %v4643 = vunpack.c.l.b16 %v4327
    %v4644 = vunpack.c.h.b16 %v4327
    %v4645 = vunpack.c.l.b16 %v4328
    %v4646 = vunpack.c.h.b16 %v4328
    %v4647 = vunpack.c.l.b16 %v4329
    %v4648 = vunpack.c.h.b16 %v4329
    %v4649 = vunpack.c.l.b16 %v4330
    %v4650 = vunpack.c.h.b16 %v4330
    %v4651 = vunpack.c.l.b16 %v4331
    %v4652 = vunpack.c.h.b16 %v4331
    %v4653 = vunpack.c.l.b16 %v4332
    %v4654 = vunpack.c.h.b16 %v4332
    %v4655 = vunpack.c.l.b16 %v4333
    %v4656 = vunpack.c.h.b16 %v4333
    %v4657 = vunpack.c.l.b16 %v4334
    %v4658 = vunpack.c.h.b16 %v4334
    %v4659 = vunpack.c.l.b16 %v4335
    %v4660 = vunpack.c.h.b16 %v4335
    %v4661 = vunpack.c.l.b16 %v4336
    %v4662 = vunpack.c.h.b16 %v4336
    %v4663 = vunpack.c.l.b16 %v4337
    %v4664 = vunpack.c.h.b16 %v4337
    %v4665 = vunpack.c.l.b16 %v4338
    %v4666 = vunpack.c.h.b16 %v4338
    %v4667 = vunpack.c.l.b16 %v4339
    %v4668 = vunpack.c.h.b16 %v4339
    %v4669 = vunpack.c.l.b16 %v4340
    %v4670 = vunpack.c.h.b16 %v4340
    %v4671 = vunpack.c.l.b16 %v4341
    %v4672 = vunpack.c.h.b16 %v4341
    %v4673 = vunpack.c.l.b16 %v4342
    %v4674 = vunpack.c.h.b16 %v4342
    %v4675 = vunpack.c.l.b16 %v4343
    %v4676 = vunpack.c.h.b16 %v4343
    %v4677 = vunpack.c.l.b16 %v4344
    %v4678 = vunpack.c.h.b16 %v4344
    %v4679 = vunpack.c.l.b16 %v4345
    %v4680 = vunpack.c.h.b16 %v4345
    %v4681 = vunpack.c.l.b16 %v4346
    %v4682 = vunpack.c.h.b16 %v4346
    %v4683 = vunpack.c.l.b16 %v4347
    %v4684 = vunpack.c.h.b16 %v4347
    %v4685 = vunpack.c.l.b16 %v4348
    %v4686 = vunpack.c.h.b16 %v4348
    %v4687 = vunpack.c.l.b16 %v4349
    %v4688 = vunpack.c.h.b16 %v4349
    %v4689 = vunpack.c.l.b16 %v4350
    %v4690 = vunpack.c.h.b16 %v4350
    %v4691 = vunpack.c.l.b16 %v4351
    %v4692 = vunpack.c.h.b16 %v4351
    %v4693 = vunpack.c.l.b16 %v4352
    %v4694 = vunpack.c.h.b16 %v4352
    %v4695 = vunpack.c.l.b16 %v4353
    %v4696 = vunpack.c.h.b16 %v4353
    %v4697 = vunpack.c.l.b16 %v4354
    %v4698 = vunpack.c.h.b16 %v4354
    %v4699 = vunpack.c.l.b16 %v4355
    %v4700 = vunpack.c.h.b16 %v4355
    %v4701 = vunpack.c.l.b16 %v4356
    %v4702 = vunpack.c.h.b16 %v4356
    %v4703 = vunpack.c.l.b16 %v4357
    %v4704 = vunpack.c.h.b16 %v4357
    %v4705 = vunpack.c.l.b16 %v4358
    %v4706 = vunpack.c.h.b16 %v4358
    %v4707 = vunpack.c.l.b16 %v4359
    %v4708 = vunpack.c.h.b16 %v4359
    %v4709 = vunpack.c.l.b16 %v4360
    %v4710 = vunpack.c.h.b16 %v4360
    %v4711 = vunpack.c.l.b16 %v4361
    %v4712 = vunpack.c.h.b16 %v4361
    %v4713 = vunpack.c.l.b16 %v4362
    %v4714 = vunpack.c.h.b16 %v4362
    %v4715 = vunpack.c.l.b16 %v4363
    %v4716 = vunpack.c.h.b16 %v4363
    %v4717 = vunpack.c.l.b16 %v4364
    %v4718 = vunpack.c.h.b16 %v4364
    %v4719 = vunpack.c.l.b16 %v4365
    %v4720 = vunpack.c.h.b16 %v4365
    %v4721 = vunpack.c.l.b16 %v4366
    %v4722 = vunpack.c.h.b16 %v4366
    %v4723 = vunpack.c.l.b16 %v4367
    %v4724 = vunpack.c.h.b16 %v4367
    %v4725 = vunpack.c.l.b16 %v4368
    %v4726 = vunpack.c.h.b16 %v4368
    %v4727 = vunpack.c.l.b16 %v4369
    %v4728 = vunpack.c.h.b16 %v4369
    %v4729 = vunpack.c.l.b16 %v4370
    %v4730 = vunpack.c.h.b16 %v4370
    %v4731 = vunpack.c.l.b16 %v4371
    %v4732 = vunpack.c.h.b16 %v4371
    %v4733 = vunpack.c.l.b16 %v4372
    %v4734 = vunpack.c.h.b16 %v4372
    %v4735 = vunpack.c.l.b16 %v4373
    %v4736 = vunpack.c.h.b16 %v4373
    %v4737 = vunpack.c.l.b16 %v4374
    %v4738 = vunpack.c.h.b16 %v4374
    %v4739 = vunpack.c.l.b16 %v4375
    %v4740 = vunpack.c.h.b16 %v4375
    %v4741 = vunpack.c.l.b16 %v4376
    %v4742 = vunpack.c.h.b16 %v4376
    %v4743 = vunpack.c.l.b16 %v4377
    %v4744 = vunpack.c.h.b16 %v4377
    %v4745 = vunpack.c.l.b16 %v4378
    %v4746 = vunpack.c.h.b16 %v4378
    %v4747 = vunpack.c.l.b16 %v4379
    %v4748 = vunpack.c.h.b16 %v4379
    %v4749 = vunpack.c.l.b16 %v4380
    %v4750 = vunpack.c.h.b16 %v4380
    %v4751 = vunpack.c.l.b16 %v4381
    %v4752 = vunpack.c.h.b16 %v4381
    %v4753 = vunpack.c.l.b16 %v4382
    %v4754 = vunpack.c.h.b16 %v4382
    %v4755 = vunpack.c.l.b16 %v4383
    %v4756 = vunpack.c.h.b16 %v4383
    %v4757 = vunpack.c.l.b16 %v4384
    %v4758 = vunpack.c.h.b16 %v4384
    %v4759 = vunpack.c.l.b16 %v4385
    %v4760 = vunpack.c.h.b16 %v4385
    %v4761 = vunpack.c.l.b16 %v4386
    %v4762 = vunpack.c.h.b16 %v4386
    %v4763 = vunpack.c.l.b16 %v4387
    %v4764 = vunpack.c.h.b16 %v4387
    %v4765 = vunpack.c.l.b16 %v4388
    %v4766 = vunpack.c.h.b16 %v4388
    %v4767 = vunpack.c.l.b16 %v4389
    %v4768 = vunpack.c.h.b16 %v4389
    %v4769 = vunpack.c.l.b16 %v4390
    %v4770 = vunpack.c.h.b16 %v4390
    %v4771 = vunpack.c.l.b16 %v4391
    %v4772 = vunpack.c.h.b16 %v4391
    %v4773 = vunpack.c.l.b16 %v4392
    %v4774 = vunpack.c.h.b16 %v4392
    %v4775 = vunpack.c.l.b16 %v4393
    %v4776 = vunpack.c.h.b16 %v4393
    %v4777 = vunpack.c.l.b16 %v4394
    %v4778 = vunpack.c.h.b16 %v4394
    %v4779 = vpack.c.b16 %v4531, %v4523
    %v4780 = vpack.c.b16 %v4532, %v4524
    %v4781 = vpack.c.b16 %v4533, %v4525
    %v4782 = vpack.c.b16 %v4534, %v4526
    %v4783 = vpack.c.b16 %v4535, %v4527
    %v4784 = vpack.c.b16 %v4536, %v4528
    %v4785 = vpack.c.b16 %v4537, %v4529
    %v4786 = vpack.c.b16 %v4538, %v4530
    %v4787 = vpack.c.b16 %v4547, %v4539
    %v4788 = vpack.c.b16 %v4548, %v4540
    %v4789 = vpack.c.b16 %v4549, %v4541
    %v4790 = vpack.c.b16 %v4550, %v4542
    %v4791 = vpack.c.b16 %v4551, %v4543
    %v4792 = vpack.c.b16 %v4552, %v4544
    %v4793 = vpack.c.b16 %v4553, %v4545
    %v4794 = vpack.c.b16 %v4554, %v4546
    %v4795 = vpack.c.b16 %v4563, %v4555
    %v4796 = vpack.c.b16 %v4564, %v4556
    %v4797 = vpack.c.b16 %v4565, %v4557
    %v4798 = vpack.c.b16 %v4566, %v4558
    %v4799 = vpack.c.b16 %v4567, %v4559
    %v4800 = vpack.c.b16 %v4568, %v4560
    %v4801 = vpack.c.b16 %v4569, %v4561
    %v4802 = vpack.c.b16 %v4570, %v4562
    %v4803 = vpack.c.b16 %v4579, %v4571
    %v4804 = vpack.c.b16 %v4580, %v4572
    %v4805 = vpack.c.b16 %v4581, %v4573
    %v4806 = vpack.c.b16 %v4582, %v4574
    %v4807 = vpack.c.b16 %v4583, %v4575
    %v4808 = vpack.c.b16 %v4584, %v4576
    %v4809 = vpack.c.b16 %v4585, %v4577
    %v4810 = vpack.c.b16 %v4586, %v4578
    %v4811 = vpack.c.b16 %v4595, %v4587
    %v4812 = vpack.c.b16 %v4596, %v4588
    %v4813 = vpack.c.b16 %v4597, %v4589
    %v4814 = vpack.c.b16 %v4598, %v4590
    %v4815 = vpack.c.b16 %v4599, %v4591
    %v4816 = vpack.c.b16 %v4600, %v4592
    %v4817 = vpack.c.b16 %v4601, %v4593
    %v4818 = vpack.c.b16 %v4602, %v4594
    %v4819 = vpack.c.b16 %v4611, %v4603
    %v4820 = vpack.c.b16 %v4612, %v4604
    %v4821 = vpack.c.b16 %v4613, %v4605
    %v4822 = vpack.c.b16 %v4614, %v4606
    %v4823 = vpack.c.b16 %v4615, %v4607
    %v4824 = vpack.c.b16 %v4616, %v4608
    %v4825 = vpack.c.b16 %v4617, %v4609
    %v4826 = vpack.c.b16 %v4618, %v4610
    %v4827 = vpack.c.b16 %v4627, %v4619
    %v4828 = vpack.c.b16 %v4628, %v4620
    %v4829 = vpack.c.b16 %v4629, %v4621
    %v4830 = vpack.c.b16 %v4630, %v4622
    %v4831 = vpack.c.b16 %v4631, %v4623
    %v4832 = vpack.c.b16 %v4632, %v4624
    %v4833 = vpack.c.b16 %v4633, %v4625
    %v4834 = vpack.c.b16 %v4634, %v4626
    %v4835 = vpack.c.b16 %v4643, %v4635
    %v4836 = vpack.c.b16 %v4644, %v4636
    %v4837 = vpack.c.b16 %v4645, %v4637
    %v4838 = vpack.c.b16 %v4646, %v4638
    %v4839 = vpack.c.b16 %v4647, %v4639
    %v4840 = vpack.c.b16 %v4648, %v4640
    %v4841 = vpack.c.b16 %v4649, %v4641
    %v4842 = vpack.c.b16 %v4650, %v4642
    %v4843 = vpack.c.b16 %v4659, %v4651
    %v4844 = vpack.c.b16 %v4660, %v4652
    %v4845 = vpack.c.b16 %v4661, %v4653
    %v4846 = vpack.c.b16 %v4662, %v4654
    %v4847 = vpack.c.b16 %v4663, %v4655
    %v4848 = vpack.c.b16 %v4664, %v4656
    %v4849 = vpack.c.b16 %v4665, %v4657
    %v4850 = vpack.c.b16 %v4666, %v4658
    %v4851 = vpack.c.b16 %v4675, %v4667
    %v4852 = vpack.c.b16 %v4676, %v4668
    %v4853 = vpack.c.b16 %v4677, %v4669
    %v4854 = vpack.c.b16 %v4678, %v4670
    %v4855 = vpack.c.b16 %v4679, %v4671
    %v4856 = vpack.c.b16 %v4680, %v4672
    %v4857 = vpack.c.b16 %v4681, %v4673
    %v4858 = vpack.c.b16 %v4682, %v4674
    %v4859 = vpack.c.b16 %v4691, %v4683
    %v4860 = vpack.c.b16 %v4692, %v4684
    %v4861 = vpack.c.b16 %v4693, %v4685
    %v4862 = vpack.c.b16 %v4694, %v4686
    %v4863 = vpack.c.b16 %v4695, %v4687
    %v4864 = vpack.c.b16 %v4696, %v4688
    %v4865 = vpack.c.b16 %v4697, %v4689
    %v4866 = vpack.c.b16 %v4698, %v4690
    %v4867 = vpack.c.b16 %v4707, %v4699
    %v4868 = vpack.c.b16 %v4708, %v4700
    %v4869 = vpack.c.b16 %v4709, %v4701
    %v4870 = vpack.c.b16 %v4710, %v4702
    %v4871 = vpack.c.b16 %v4711, %v4703
    %v4872 = vpack.c.b16 %v4712, %v4704
    %v4873 = vpack.c.b16 %v4713, %v4705
    %v4874 = vpack.c.b16 %v4714, %v4706
    %v4875 = vpack.c.b16 %v4723, %v4715
    %v4876 = vpack.c.b16 %v4724, %v4716
    %v4877 = vpack.c.b16 %v4725, %v4717
    %v4878 = vpack.c.b16 %v4726, %v4718
    %v4879 = vpack.c.b16 %v4727, %v4719
    %v4880 = vpack.c.b16 %v4728, %v4720
    %v4881 = vpack.c.b16 %v4729, %v4721
    %v4882 = vpack.c.b16 %v4730, %v4722
    %v4883 = vpack.c.b16 %v4739, %v4731
    %v4884 = vpack.c.b16 %v4740, %v4732
    %v4885 = vpack.c.b16 %v4741, %v4733
    %v4886 = vpack.c.b16 %v4742, %v4734
    %v4887 = vpack.c.b16 %v4743, %v4735
    %v4888 = vpack.c.b16 %v4744, %v4736
    %v4889 = vpack.c.b16 %v4745, %v4737
    %v4890 = vpack.c.b16 %v4746, %v4738
    %v4891 = vpack.c.b16 %v4755, %v4747
    %v4892 = vpack.c.b16 %v4756, %v4748
    %v4893 = vpack.c.b16 %v4757, %v4749
    %v4894 = vpack.c.b16 %v4758, %v4750
    %v4895 = vpack.c.b16 %v4759, %v4751
    %v4896 = vpack.c.b16 %v4760, %v4752
    %v4897 = vpack.c.b16 %v4761, %v4753
    %v4898 = vpack.c.b16 %v4762, %v4754
    %v4899 = vpack.c.b16 %v4771, %v4763
    %v4900 = vpack.c.b16 %v4772, %v4764
    %v4901 = vpack.c.b16 %v4773, %v4765
    %v4902 = vpack.c.b16 %v4774, %v4766
    %v4903 = vpack.c.b16 %v4775, %v4767
    %v4904 = vpack.c.b16 %v4776, %v4768
    %v4905 = vpack.c.b16 %v4777, %v4769
    %v4906 = vpack.c.b16 %v4778, %v4770
    %5035 = vmatprep.subr.bf16.mxu0 %v4780
    %5036 = vmatpush1.bf16.msra.mxu0 %v4779
    %5037 = vmatprep.subr.bf16.mxu0 %v4788
    %5038 = vmatpush1.bf16.msra.mxu0 %v4787
    %5039 = vmatprep.subr.bf16.mxu0 %v4796
    %5040 = vmatpush1.bf16.msra.mxu0 %v4795
    %5041 = vmatprep.subr.bf16.mxu0 %v4804
    %5042 = vmatpush1.bf16.msra.mxu0 %v4803
    %5043 = vmatprep.subr.bf16.mxu0 %v4812
    %5044 = vmatpush1.bf16.msra.mxu0 %v4811
    %5045 = vmatprep.subr.bf16.mxu0 %v4820
    %5046 = vmatpush1.bf16.msra.mxu0 %v4819
    %5047 = vmatprep.subr.bf16.mxu0 %v4828
    %5048 = vmatpush1.bf16.msra.mxu0 %v4827
    %5049 = vmatprep.subr.bf16.mxu0 %v4836
    %5050 = vmatpush1.bf16.msra.mxu0 %v4835
    %5051 = vmatprep.subr.bf16.mxu0 %v4844
    %5052 = vmatpush1.bf16.msra.mxu0 %v4843
    %5053 = vmatprep.subr.bf16.mxu0 %v4852
    %5054 = vmatpush1.bf16.msra.mxu0 %v4851
    %5055 = vmatprep.subr.bf16.mxu0 %v4860
    %5056 = vmatpush1.bf16.msra.mxu0 %v4859
    %5057 = vmatprep.subr.bf16.mxu0 %v4868
    %5058 = vmatpush1.bf16.msra.mxu0 %v4867
    %5059 = vmatprep.subr.bf16.mxu0 %v4876
    %5060 = vmatpush1.bf16.msra.mxu0 %v4875
    %5061 = vmatprep.subr.bf16.mxu0 %v4884
    %5062 = vmatpush1.bf16.msra.mxu0 %v4883
    %5063 = vmatprep.subr.bf16.mxu0 %v4892
    %5064 = vmatpush1.bf16.msra.mxu0 %v4891
    %5065 = vmatprep.subr.bf16.mxu0 %v4900
    %5066 = vmatpush1.bf16.msra.mxu0 %v4899
    %5067 = vmatprep.mubr.bf16.mxu0 %v4264
    %5068 = vmatmul.mubr.bf16.gmra.mrb[0].mxu0 %v4263
    %v5069 = vpop.f32.mrb[0].mxu0
    %v5070 = vadd.f32 0.0, %v5069
    %v5071 = vpop.f32.mrb[0].mxu0
    %v5072 = vadd.f32 0.0, %v5071
    %v5073 = vpop.f32.mrb[0].mxu0
    %v5074 = vadd.f32 0.0, %v5073
    %v5075 = vpop.f32.mrb[0].mxu0
    %v5076 = vadd.f32 0.0, %v5075
    %5077 = vdwg.mxu0
    %5078 = vmatprep.subr.bf16.mxu0 %v4782
    %5079 = vmatpush1.bf16.msra.mxu0 %v4781
    %5080 = vmatprep.subr.bf16.mxu0 %v4790
    %5081 = vmatpush1.bf16.msra.mxu0 %v4789
    %5082 = vmatprep.subr.bf16.mxu0 %v4798
    %5083 = vmatpush1.bf16.msra.mxu0 %v4797
    %5084 = vmatprep.subr.bf16.mxu0 %v4806
    %5085 = vmatpush1.bf16.msra.mxu0 %v4805
    %5086 = vmatprep.subr.bf16.mxu0 %v4814
    %5087 = vmatpush1.bf16.msra.mxu0 %v4813
    %5088 = vmatprep.subr.bf16.mxu0 %v4822
    %5089 = vmatpush1.bf16.msra.mxu0 %v4821
    %5090 = vmatprep.subr.bf16.mxu0 %v4830
    %5091 = vmatpush1.bf16.msra.mxu0 %v4829
    %5092 = vmatprep.subr.bf16.mxu0 %v4838
    %5093 = vmatpush1.bf16.msra.mxu0 %v4837
    %5094 = vmatprep.subr.bf16.mxu0 %v4846
    %5095 = vmatpush1.bf16.msra.mxu0 %v4845
    %5096 = vmatprep.subr.bf16.mxu0 %v4854
    %5097 = vmatpush1.bf16.msra.mxu0 %v4853
    %5098 = vmatprep.subr.bf16.mxu0 %v4862
    %5099 = vmatpush1.bf16.msra.mxu0 %v4861
    %5100 = vmatprep.subr.bf16.mxu0 %v4870
    %5101 = vmatpush1.bf16.msra.mxu0 %v4869
    %5102 = vmatprep.subr.bf16.mxu0 %v4878
    %5103 = vmatpush1.bf16.msra.mxu0 %v4877
    %5104 = vmatprep.subr.bf16.mxu0 %v4886
    %5105 = vmatpush1.bf16.msra.mxu0 %v4885
    %5106 = vmatprep.subr.bf16.mxu0 %v4894
    %5107 = vmatpush1.bf16.msra.mxu0 %v4893
    %5108 = vmatprep.subr.bf16.mxu0 %v4902
    %5109 = vmatpush1.bf16.msra.mxu0 %v4901
    %5110 = vmatprep.mubr.bf16.mxu0 %v4264
    %5111 = vmatmul.mubr.bf16.gmra.mrb[0].mxu0 %v4263
    %v5112 = vpop.f32.mrb[0].mxu0
    %v5113 = vadd.f32 0.0, %v5112
    %v5114 = vpop.f32.mrb[0].mxu0
    %v5115 = vadd.f32 0.0, %v5114
    %v5116 = vpop.f32.mrb[0].mxu0
    %v5117 = vadd.f32 0.0, %v5116
    %v5118 = vpop.f32.mrb[0].mxu0
    %v5119 = vadd.f32 0.0, %v5118
    %5120 = vdwg.mxu0
    %5121 = vmatprep.subr.bf16.mxu0 %v4784
    %5122 = vmatpush1.bf16.msra.mxu0 %v4783
    %5123 = vmatprep.subr.bf16.mxu0 %v4792
    %5124 = vmatpush1.bf16.msra.mxu0 %v4791
    %5125 = vmatprep.subr.bf16.mxu0 %v4800
    %5126 = vmatpush1.bf16.msra.mxu0 %v4799
    %5127 = vmatprep.subr.bf16.mxu0 %v4808
    %5128 = vmatpush1.bf16.msra.mxu0 %v4807
    %5129 = vmatprep.subr.bf16.mxu0 %v4816
    %5130 = vmatpush1.bf16.msra.mxu0 %v4815
    %5131 = vmatprep.subr.bf16.mxu0 %v4824
    %5132 = vmatpush1.bf16.msra.mxu0 %v4823
    %5133 = vmatprep.subr.bf16.mxu0 %v4832
    %5134 = vmatpush1.bf16.msra.mxu0 %v4831
    %5135 = vmatprep.subr.bf16.mxu0 %v4840
    %5136 = vmatpush1.bf16.msra.mxu0 %v4839
    %5137 = vmatprep.subr.bf16.mxu0 %v4848
    %5138 = vmatpush1.bf16.msra.mxu0 %v4847
    %5139 = vmatprep.subr.bf16.mxu0 %v4856
    %5140 = vmatpush1.bf16.msra.mxu0 %v4855
    %5141 = vmatprep.subr.bf16.mxu0 %v4864
    %5142 = vmatpush1.bf16.msra.mxu0 %v4863
    %5143 = vmatprep.subr.bf16.mxu0 %v4872
    %5144 = vmatpush1.bf16.msra.mxu0 %v4871
    %5145 = vmatprep.subr.bf16.mxu0 %v4880
    %5146 = vmatpush1.bf16.msra.mxu0 %v4879
    %5147 = vmatprep.subr.bf16.mxu0 %v4888
    %5148 = vmatpush1.bf16.msra.mxu0 %v4887
    %5149 = vmatprep.subr.bf16.mxu0 %v4896
    %5150 = vmatpush1.bf16.msra.mxu0 %v4895
    %5151 = vmatprep.subr.bf16.mxu0 %v4904
    %5152 = vmatpush1.bf16.msra.mxu0 %v4903
    %5153 = vmatprep.mubr.bf16.mxu0 %v4264
    %5154 = vmatmul.mubr.bf16.gmra.mrb[0].mxu0 %v4263
    %v5155 = vpop.f32.mrb[0].mxu0
    %v5156 = vadd.f32 0.0, %v5155
    %v5157 = vpop.f32.mrb[0].mxu0
    %v5158 = vadd.f32 0.0, %v5157
    %v5159 = vpop.f32.mrb[0].mxu0
    %v5160 = vadd.f32 0.0, %v5159
    %v5161 = vpop.f32.mrb[0].mxu0
    %v5162 = vadd.f32 0.0, %v5161
    %5163 = vdwg.mxu0
    %5164 = vmatprep.subr.bf16.mxu0 %v4786
    %5165 = vmatpush1.bf16.msra.mxu0 %v4785
    %5166 = vmatprep.subr.bf16.mxu0 %v4794
    %5167 = vmatpush1.bf16.msra.mxu0 %v4793
    %5168 = vmatprep.subr.bf16.mxu0 %v4802
    %5169 = vmatpush1.bf16.msra.mxu0 %v4801
    %5170 = vmatprep.subr.bf16.mxu0 %v4810
    %5171 = vmatpush1.bf16.msra.mxu0 %v4809
    %5172 = vmatprep.subr.bf16.mxu0 %v4818
    %5173 = vmatpush1.bf16.msra.mxu0 %v4817
    %5174 = vmatprep.subr.bf16.mxu0 %v4826
    %5175 = vmatpush1.bf16.msra.mxu0 %v4825
    %5176 = vmatprep.subr.bf16.mxu0 %v4834
    %5177 = vmatpush1.bf16.msra.mxu0 %v4833
    %5178 = vmatprep.subr.bf16.mxu0 %v4842
    %5179 = vmatpush1.bf16.msra.mxu0 %v4841
    %5180 = vmatprep.subr.bf16.mxu0 %v4850
    %5181 = vmatpush1.bf16.msra.mxu0 %v4849
    %5182 = vmatprep.subr.bf16.mxu0 %v4858
    %5183 = vmatpush1.bf16.msra.mxu0 %v4857
    %5184 = vmatprep.subr.bf16.mxu0 %v4866
    %5185 = vmatpush1.bf16.msra.mxu0 %v4865
    %5186 = vmatprep.subr.bf16.mxu0 %v4874
    %5187 = vmatpush1.bf16.msra.mxu0 %v4873
    %5188 = vmatprep.subr.bf16.mxu0 %v4882
    %5189 = vmatpush1.bf16.msra.mxu0 %v4881
    %5190 = vmatprep.subr.bf16.mxu0 %v4890
    %5191 = vmatpush1.bf16.msra.mxu0 %v4889
    %5192 = vmatprep.subr.bf16.mxu0 %v4898
    %5193 = vmatpush1.bf16.msra.mxu0 %v4897
    %5194 = vmatprep.subr.bf16.mxu0 %v4906
    %5195 = vmatpush1.bf16.msra.mxu0 %v4905
    %5196 = vmatprep.mubr.bf16.mxu0 %v4264
    %5197 = vmatmul.mubr.bf16.gmra.mrb[0].mxu0 %v4263
    %v5198 = vpop.f32.mrb[0].mxu0
    %v5199 = vadd.f32 0.0, %v5198
    %v5200 = vpop.f32.mrb[0].mxu0
    %v5201 = vadd.f32 0.0, %v5200
    %v5202 = vpop.f32.mrb[0].mxu0
    %v5203 = vadd.f32 0.0, %v5202
    %v5204 = vpop.f32.mrb[0].mxu0
    %v5205 = vadd.f32 0.0, %v5204
    %5206 = vdwg.mxu0
    %v5207 = vld [vmem:[#allocation2 + $0x180] sm:$0xff]
    %v5208 = vld [vmem:[#allocation2 + $0x188] sm:$0xff]
    %v5209 = vld [vmem:[#allocation2 + $0x190] sm:$0xff]
    %v5210 = vld [vmem:[#allocation2 + $0x198] sm:$0xff]
    %v5211 = vld [vmem:[#allocation2 + $0x1c0] sm:$0xff]
    %v5212 = vld [vmem:[#allocation2 + $0x1c8] sm:$0xff]
    %v5213 = vld [vmem:[#allocation2 + $0x1d0] sm:$0xff]
    %v5214 = vld [vmem:[#allocation2 + $0x1d8] sm:$0xff]
    %v5215 = vadd.f32 %v5207, %v5070
    %v5216 = vadd.f32 %v5208, %v5072
    %v5217 = vadd.f32 %v5209, %v5113
    %v5218 = vadd.f32 %v5210, %v5115
    %v5219 = vadd.f32 %v5211, %v5074
    %v5220 = vadd.f32 %v5212, %v5076
    %v5221 = vadd.f32 %v5213, %v5117
    %v5222 = vadd.f32 %v5214, %v5119
    %v5223 = vld [vmem:[#allocation2 + $0x220] sm:$0xff]
    %v5224 = vld [vmem:[#allocation2 + $0x228] sm:$0xff]
    %v5225 = vld [vmem:[#allocation2 + $0x230] sm:$0xff]
    %v5226 = vld [vmem:[#allocation2 + $0x238] sm:$0xff]
    %v5227 = vld [vmem:[#allocation2 + $0x260] sm:$0xff]
    %v5228 = vld [vmem:[#allocation2 + $0x268] sm:$0xff]
    %v5229 = vld [vmem:[#allocation2 + $0x270] sm:$0xff]
    %v5230 = vld [vmem:[#allocation2 + $0x278] sm:$0xff]
    %v5231 = vadd.f32 %v5223, %v5156
    %v5232 = vadd.f32 %v5224, %v5158
    %v5233 = vadd.f32 %v5225, %v5199
    %v5234 = vadd.f32 %v5226, %v5201
    %v5235 = vadd.f32 %v5227, %v5160
    %v5236 = vadd.f32 %v5228, %v5162
    %v5237 = vadd.f32 %v5229, %v5203
    %v5238 = vadd.f32 %v5230, %v5205
    %v5239 = vmul.f32 %v5215, 0.5
    %v5240 = vmul.f32 %v5219, 0.5
    %v5241 = vtanh.pop %v5239
    %v5242 = vtanh.pop %v5240
    %v5243 = vmul.f32 %v5241, 0.5
    %v5244 = vmul.f32 %v5242, 0.5
    %v5245 = vadd.f32 %v5243, 0.5
    %v5246 = vadd.f32 %v5244, 0.5
    %v5247 = vmul.f32 %v5216, 0.5
    %v5248 = vmul.f32 %v5220, 0.5
    %v5249 = vtanh.pop %v5247
    %v5250 = vtanh.pop %v5248
    %v5251 = vmul.f32 %v5249, 0.5
    %v5252 = vmul.f32 %v5250, 0.5
    %v5253 = vadd.f32 %v5251, 0.5
    %v5254 = vadd.f32 %v5252, 0.5
    %v5255 = vtanh.pop %v5217
    %v5256 = vtanh.pop %v5221
    %v5257 = vmul.f32 %v5218, 0.5
    %v5258 = vmul.f32 %v5222, 0.5
    %v5259 = vtanh.pop %v5257
    %v5260 = vtanh.pop %v5258
    %v5261 = vmul.f32 %v5259, 0.5
    %v5262 = vmul.f32 %v5260, 0.5
    %v5263 = vadd.f32 %v5261, 0.5
    %v5264 = vadd.f32 %v5262, 0.5
    %v5265 = vmul.f32 %v5253, %v4221
    %v5266 = vmul.f32 %v5254, %v4222
    %v5267 = vmul.f32 %v5245, %v5255
    %v5268 = vmul.f32 %v5246, %v5256
    %v5269 = vadd.f32 %v5265, %v5267
    %v5270 = vadd.f32 %v5266, %v5268
    %v5271 = vtanh.pop %v5269
    %v5272 = vtanh.pop %v5270
    %v5273 = vmul.f32 %v5263, %v5271
    %v5274 = vmul.f32 %v5264, %v5272
    %v5275 = vmul.f32 %v5231, 0.5
    %v5276 = vmul.f32 %v5235, 0.5
    %v5277 = vtanh.pop %v5275
    %v5278 = vtanh.pop %v5276
    %v5279 = vmul.f32 %v5277, 0.5
    %v5280 = vmul.f32 %v5278, 0.5
    %v5281 = vadd.f32 %v5279, 0.5
    %v5282 = vadd.f32 %v5280, 0.5
    %v5283 = vmul.f32 %v5232, 0.5
    %v5284 = vmul.f32 %v5236, 0.5
    %v5285 = vtanh.pop %v5283
    %v5286 = vtanh.pop %v5284
    %v5287 = vmul.f32 %v5285, 0.5
    %v5288 = vmul.f32 %v5286, 0.5
    %v5289 = vadd.f32 %v5287, 0.5
    %v5290 = vadd.f32 %v5288, 0.5
    %v5291 = vtanh.pop %v5233
    %v5292 = vtanh.pop %v5237
    %v5293 = vmul.f32 %v5234, 0.5
    %v5294 = vmul.f32 %v5238, 0.5
    %v5295 = vtanh.pop %v5293
    %v5296 = vtanh.pop %v5294
    %v5297 = vmul.f32 %v5295, 0.5
    %v5298 = vmul.f32 %v5296, 0.5
    %v5299 = vadd.f32 %v5297, 0.5
    %v5300 = vadd.f32 %v5298, 0.5
    %v5301 = vmul.f32 %v5289, %v4257
    %v5302 = vmul.f32 %v5290, %v4258
    %v5303 = vmul.f32 %v5281, %v5291
    %v5304 = vmul.f32 %v5282, %v5292
    %v5305 = vadd.f32 %v5301, %v5303
    %v5306 = vadd.f32 %v5302, %v5304
    %v5307 = vtanh.pop %v5305
    %v5308 = vtanh.pop %v5306
    %v5309 = vmul.f32 %v5299, %v5307
    %v5310 = vmul.f32 %v5300, %v5308
    %v5311 = vpack.c.bf16 %v5274, %v5273
    %v5312 = vpack.c.bf16 %v5310, %v5309
    %5313 = vst [vmem:[#allocation3 + $0x30] sm:$0xff] %v5311
    %5314 = vst [vmem:[#allocation3 + $0x48] sm:$0xff] %v5312
    %v5315 = vld [vmem:[#allocation7] sm:$0xff]
    %v5316 = vld [vmem:[#allocation7 + $0x8] sm:$0xff]
    %v5317 = vld [vmem:[#allocation7 + $0x10] sm:$0xff]
    %v5318 = vld [vmem:[#allocation7 + $0x18] sm:$0xff]
    %v5319 = vld [vmem:[#allocation7 + $0x20] sm:$0xff]
    %v5320 = vld [vmem:[#allocation7 + $0x28] sm:$0xff]
    %v5321 = vld [vmem:[#allocation7 + $0x30] sm:$0xff]
    %v5322 = vld [vmem:[#allocation7 + $0x38] sm:$0xff]
    %v5323 = vld [vmem:[#allocation7 + $0x40] sm:$0xff]
    %v5324 = vld [vmem:[#allocation7 + $0x48] sm:$0xff]
    %v5325 = vld [vmem:[#allocation7 + $0x50] sm:$0xff]
    %v5326 = vld [vmem:[#allocation7 + $0x58] sm:$0xff]
    %v5327 = vld [vmem:[#allocation7 + $0x60] sm:$0xff]
    %v5328 = vld [vmem:[#allocation7 + $0x68] sm:$0xff]
    %v5329 = vld [vmem:[#allocation7 + $0x70] sm:$0xff]
    %v5330 = vld [vmem:[#allocation7 + $0x78] sm:$0xff]
    %v5331 = vld [vmem:[#allocation7 + $0x80] sm:$0xff]
    %v5332 = vld [vmem:[#allocation7 + $0x88] sm:$0xff]
    %v5333 = vld [vmem:[#allocation7 + $0x90] sm:$0xff]
    %v5334 = vld [vmem:[#allocation7 + $0x98] sm:$0xff]
    %v5335 = vld [vmem:[#allocation7 + $0xa0] sm:$0xff]
    %v5336 = vld [vmem:[#allocation7 + $0xa8] sm:$0xff]
    %v5337 = vld [vmem:[#allocation7 + $0xb0] sm:$0xff]
    %v5338 = vld [vmem:[#allocation7 + $0xb8] sm:$0xff]
    %v5339 = vld [vmem:[#allocation7 + $0xc0] sm:$0xff]
    %v5340 = vld [vmem:[#allocation7 + $0xc8] sm:$0xff]
    %v5341 = vld [vmem:[#allocation7 + $0xd0] sm:$0xff]
    %v5342 = vld [vmem:[#allocation7 + $0xd8] sm:$0xff]
    %v5343 = vld [vmem:[#allocation7 + $0xe0] sm:$0xff]
    %v5344 = vld [vmem:[#allocation7 + $0xe8] sm:$0xff]
    %v5345 = vld [vmem:[#allocation7 + $0xf0] sm:$0xff]
    %v5346 = vld [vmem:[#allocation7 + $0xf8] sm:$0xff]
    %v5347 = vld [vmem:[#allocation7 + $0x100] sm:$0xff]
    %v5348 = vld [vmem:[#allocation7 + $0x108] sm:$0xff]
    %v5349 = vld [vmem:[#allocation7 + $0x110] sm:$0xff]
    %v5350 = vld [vmem:[#allocation7 + $0x118] sm:$0xff]
    %v5351 = vld [vmem:[#allocation7 + $0x120] sm:$0xff]
    %v5352 = vld [vmem:[#allocation7 + $0x128] sm:$0xff]
    %v5353 = vld [vmem:[#allocation7 + $0x130] sm:$0xff]
    %v5354 = vld [vmem:[#allocation7 + $0x138] sm:$0xff]
    %v5355 = vld [vmem:[#allocation7 + $0x140] sm:$0xff]
    %v5356 = vld [vmem:[#allocation7 + $0x148] sm:$0xff]
    %v5357 = vld [vmem:[#allocation7 + $0x150] sm:$0xff]
    %v5358 = vld [vmem:[#allocation7 + $0x158] sm:$0xff]
    %v5359 = vld [vmem:[#allocation7 + $0x160] sm:$0xff]
    %v5360 = vld [vmem:[#allocation7 + $0x168] sm:$0xff]
    %v5361 = vld [vmem:[#allocation7 + $0x170] sm:$0xff]
    %v5362 = vld [vmem:[#allocation7 + $0x178] sm:$0xff]
    %v5363 = vld [vmem:[#allocation7 + $0x180] sm:$0xff]
    %v5364 = vld [vmem:[#allocation7 + $0x188] sm:$0xff]
    %v5365 = vld [vmem:[#allocation7 + $0x190] sm:$0xff]
    %v5366 = vld [vmem:[#allocation7 + $0x198] sm:$0xff]
    %v5367 = vld [vmem:[#allocation7 + $0x1a0] sm:$0xff]
    %v5368 = vld [vmem:[#allocation7 + $0x1a8] sm:$0xff]
    %v5369 = vld [vmem:[#allocation7 + $0x1b0] sm:$0xff]
    %v5370 = vld [vmem:[#allocation7 + $0x1b8] sm:$0xff]
    %v5371 = vld [vmem:[#allocation7 + $0x1c0] sm:$0xff]
    %v5372 = vld [vmem:[#allocation7 + $0x1c8] sm:$0xff]
    %v5373 = vld [vmem:[#allocation7 + $0x1d0] sm:$0xff]
    %v5374 = vld [vmem:[#allocation7 + $0x1d8] sm:$0xff]
    %v5375 = vld [vmem:[#allocation7 + $0x1e0] sm:$0xff]
    %v5376 = vld [vmem:[#allocation7 + $0x1e8] sm:$0xff]
    %v5377 = vld [vmem:[#allocation7 + $0x1f0] sm:$0xff]
    %v5378 = vld [vmem:[#allocation7 + $0x1f8] sm:$0xff]
    %v5379 = vld [vmem:[#allocation7 + $0x200] sm:$0xff]
    %v5380 = vld [vmem:[#allocation7 + $0x208] sm:$0xff]
    %v5381 = vld [vmem:[#allocation7 + $0x210] sm:$0xff]
    %v5382 = vld [vmem:[#allocation7 + $0x218] sm:$0xff]
    %v5383 = vld [vmem:[#allocation7 + $0x220] sm:$0xff]
    %v5384 = vld [vmem:[#allocation7 + $0x228] sm:$0xff]
    %v5385 = vld [vmem:[#allocation7 + $0x230] sm:$0xff]
    %v5386 = vld [vmem:[#allocation7 + $0x238] sm:$0xff]
    %v5387 = vld [vmem:[#allocation7 + $0x240] sm:$0xff]
    %v5388 = vld [vmem:[#allocation7 + $0x248] sm:$0xff]
    %v5389 = vld [vmem:[#allocation7 + $0x250] sm:$0xff]
    %v5390 = vld [vmem:[#allocation7 + $0x258] sm:$0xff]
    %v5391 = vld [vmem:[#allocation7 + $0x260] sm:$0xff]
    %v5392 = vld [vmem:[#allocation7 + $0x268] sm:$0xff]
    %v5393 = vld [vmem:[#allocation7 + $0x270] sm:$0xff]
    %v5394 = vld [vmem:[#allocation7 + $0x278] sm:$0xff]
    %v5395 = vld [vmem:[#allocation7 + $0x280] sm:$0xff]
    %v5396 = vld [vmem:[#allocation7 + $0x288] sm:$0xff]
    %v5397 = vld [vmem:[#allocation7 + $0x290] sm:$0xff]
    %v5398 = vld [vmem:[#allocation7 + $0x298] sm:$0xff]
    %v5399 = vld [vmem:[#allocation7 + $0x2a0] sm:$0xff]
    %v5400 = vld [vmem:[#allocation7 + $0x2a8] sm:$0xff]
    %v5401 = vld [vmem:[#allocation7 + $0x2b0] sm:$0xff]
    %v5402 = vld [vmem:[#allocation7 + $0x2b8] sm:$0xff]
    %v5403 = vld [vmem:[#allocation7 + $0x2c0] sm:$0xff]
    %v5404 = vld [vmem:[#allocation7 + $0x2c8] sm:$0xff]
    %v5405 = vld [vmem:[#allocation7 + $0x2d0] sm:$0xff]
    %v5406 = vld [vmem:[#allocation7 + $0x2d8] sm:$0xff]
    %v5407 = vld [vmem:[#allocation7 + $0x2e0] sm:$0xff]
    %v5408 = vld [vmem:[#allocation7 + $0x2e8] sm:$0xff]
    %v5409 = vld [vmem:[#allocation7 + $0x2f0] sm:$0xff]
    %v5410 = vld [vmem:[#allocation7 + $0x2f8] sm:$0xff]
    %v5411 = vld [vmem:[#allocation7 + $0x300] sm:$0xff]
    %v5412 = vld [vmem:[#allocation7 + $0x308] sm:$0xff]
    %v5413 = vld [vmem:[#allocation7 + $0x310] sm:$0xff]
    %v5414 = vld [vmem:[#allocation7 + $0x318] sm:$0xff]
    %v5415 = vld [vmem:[#allocation7 + $0x320] sm:$0xff]
    %v5416 = vld [vmem:[#allocation7 + $0x328] sm:$0xff]
    %v5417 = vld [vmem:[#allocation7 + $0x330] sm:$0xff]
    %v5418 = vld [vmem:[#allocation7 + $0x338] sm:$0xff]
    %v5419 = vld [vmem:[#allocation7 + $0x340] sm:$0xff]
    %v5420 = vld [vmem:[#allocation7 + $0x348] sm:$0xff]
    %v5421 = vld [vmem:[#allocation7 + $0x350] sm:$0xff]
    %v5422 = vld [vmem:[#allocation7 + $0x358] sm:$0xff]
    %v5423 = vld [vmem:[#allocation7 + $0x360] sm:$0xff]
    %v5424 = vld [vmem:[#allocation7 + $0x368] sm:$0xff]
    %v5425 = vld [vmem:[#allocation7 + $0x370] sm:$0xff]
    %v5426 = vld [vmem:[#allocation7 + $0x378] sm:$0xff]
    %v5427 = vld [vmem:[#allocation7 + $0x380] sm:$0xff]
    %v5428 = vld [vmem:[#allocation7 + $0x388] sm:$0xff]
    %v5429 = vld [vmem:[#allocation7 + $0x390] sm:$0xff]
    %v5430 = vld [vmem:[#allocation7 + $0x398] sm:$0xff]
    %v5431 = vld [vmem:[#allocation7 + $0x3a0] sm:$0xff]
    %v5432 = vld [vmem:[#allocation7 + $0x3a8] sm:$0xff]
    %v5433 = vld [vmem:[#allocation7 + $0x3b0] sm:$0xff]
    %v5434 = vld [vmem:[#allocation7 + $0x3b8] sm:$0xff]
    %v5435 = vld [vmem:[#allocation7 + $0x3c0] sm:$0xff]
    %v5436 = vld [vmem:[#allocation7 + $0x3c8] sm:$0xff]
    %v5437 = vld [vmem:[#allocation7 + $0x3d0] sm:$0xff]
    %v5438 = vld [vmem:[#allocation7 + $0x3d8] sm:$0xff]
    %v5439 = vld [vmem:[#allocation7 + $0x3e0] sm:$0xff]
    %v5440 = vld [vmem:[#allocation7 + $0x3e8] sm:$0xff]
    %v5441 = vld [vmem:[#allocation7 + $0x3f0] sm:$0xff]
    %v5442 = vld [vmem:[#allocation7 + $0x3f8] sm:$0xff]
    %v5571 = vunpack.c.l.b16 %v5315
    %v5572 = vunpack.c.h.b16 %v5315
    %v5573 = vunpack.c.l.b16 %v5316
    %v5574 = vunpack.c.h.b16 %v5316
    %v5575 = vunpack.c.l.b16 %v5317
    %v5576 = vunpack.c.h.b16 %v5317
    %v5577 = vunpack.c.l.b16 %v5318
    %v5578 = vunpack.c.h.b16 %v5318
    %v5579 = vunpack.c.l.b16 %v5319
    %v5580 = vunpack.c.h.b16 %v5319
    %v5581 = vunpack.c.l.b16 %v5320
    %v5582 = vunpack.c.h.b16 %v5320
    %v5583 = vunpack.c.l.b16 %v5321
    %v5584 = vunpack.c.h.b16 %v5321
    %v5585 = vunpack.c.l.b16 %v5322
    %v5586 = vunpack.c.h.b16 %v5322
    %v5587 = vunpack.c.l.b16 %v5323
    %v5588 = vunpack.c.h.b16 %v5323
    %v5589 = vunpack.c.l.b16 %v5324
    %v5590 = vunpack.c.h.b16 %v5324
    %v5591 = vunpack.c.l.b16 %v5325
    %v5592 = vunpack.c.h.b16 %v5325
    %v5593 = vunpack.c.l.b16 %v5326
    %v5594 = vunpack.c.h.b16 %v5326
    %v5595 = vunpack.c.l.b16 %v5327
    %v5596 = vunpack.c.h.b16 %v5327
    %v5597 = vunpack.c.l.b16 %v5328
    %v5598 = vunpack.c.h.b16 %v5328
    %v5599 = vunpack.c.l.b16 %v5329
    %v5600 = vunpack.c.h.b16 %v5329
    %v5601 = vunpack.c.l.b16 %v5330
    %v5602 = vunpack.c.h.b16 %v5330
    %v5603 = vunpack.c.l.b16 %v5331
    %v5604 = vunpack.c.h.b16 %v5331
    %v5605 = vunpack.c.l.b16 %v5332
    %v5606 = vunpack.c.h.b16 %v5332
    %v5607 = vunpack.c.l.b16 %v5333
    %v5608 = vunpack.c.h.b16 %v5333
    %v5609 = vunpack.c.l.b16 %v5334
    %v5610 = vunpack.c.h.b16 %v5334
    %v5611 = vunpack.c.l.b16 %v5335
    %v5612 = vunpack.c.h.b16 %v5335
    %v5613 = vunpack.c.l.b16 %v5336
    %v5614 = vunpack.c.h.b16 %v5336
    %v5615 = vunpack.c.l.b16 %v5337
    %v5616 = vunpack.c.h.b16 %v5337
    %v5617 = vunpack.c.l.b16 %v5338
    %v5618 = vunpack.c.h.b16 %v5338
    %v5619 = vunpack.c.l.b16 %v5339
    %v5620 = vunpack.c.h.b16 %v5339
    %v5621 = vunpack.c.l.b16 %v5340
    %v5622 = vunpack.c.h.b16 %v5340
    %v5623 = vunpack.c.l.b16 %v5341
    %v5624 = vunpack.c.h.b16 %v5341
    %v5625 = vunpack.c.l.b16 %v5342
    %v5626 = vunpack.c.h.b16 %v5342
    %v5627 = vunpack.c.l.b16 %v5343
    %v5628 = vunpack.c.h.b16 %v5343
    %v5629 = vunpack.c.l.b16 %v5344
    %v5630 = vunpack.c.h.b16 %v5344
    %v5631 = vunpack.c.l.b16 %v5345
    %v5632 = vunpack.c.h.b16 %v5345
    %v5633 = vunpack.c.l.b16 %v5346
    %v5634 = vunpack.c.h.b16 %v5346
    %v5635 = vunpack.c.l.b16 %v5347
    %v5636 = vunpack.c.h.b16 %v5347
    %v5637 = vunpack.c.l.b16 %v5348
    %v5638 = vunpack.c.h.b16 %v5348
    %v5639 = vunpack.c.l.b16 %v5349
    %v5640 = vunpack.c.h.b16 %v5349
    %v5641 = vunpack.c.l.b16 %v5350
    %v5642 = vunpack.c.h.b16 %v5350
    %v5643 = vunpack.c.l.b16 %v5351
    %v5644 = vunpack.c.h.b16 %v5351
    %v5645 = vunpack.c.l.b16 %v5352
    %v5646 = vunpack.c.h.b16 %v5352
    %v5647 = vunpack.c.l.b16 %v5353
    %v5648 = vunpack.c.h.b16 %v5353
    %v5649 = vunpack.c.l.b16 %v5354
    %v5650 = vunpack.c.h.b16 %v5354
    %v5651 = vunpack.c.l.b16 %v5355
    %v5652 = vunpack.c.h.b16 %v5355
    %v5653 = vunpack.c.l.b16 %v5356
    %v5654 = vunpack.c.h.b16 %v5356
    %v5655 = vunpack.c.l.b16 %v5357
    %v5656 = vunpack.c.h.b16 %v5357
    %v5657 = vunpack.c.l.b16 %v5358
    %v5658 = vunpack.c.h.b16 %v5358
    %v5659 = vunpack.c.l.b16 %v5359
    %v5660 = vunpack.c.h.b16 %v5359
    %v5661 = vunpack.c.l.b16 %v5360
    %v5662 = vunpack.c.h.b16 %v5360
    %v5663 = vunpack.c.l.b16 %v5361
    %v5664 = vunpack.c.h.b16 %v5361
    %v5665 = vunpack.c.l.b16 %v5362
    %v5666 = vunpack.c.h.b16 %v5362
    %v5667 = vunpack.c.l.b16 %v5363
    %v5668 = vunpack.c.h.b16 %v5363
    %v5669 = vunpack.c.l.b16 %v5364
    %v5670 = vunpack.c.h.b16 %v5364
    %v5671 = vunpack.c.l.b16 %v5365
    %v5672 = vunpack.c.h.b16 %v5365
    %v5673 = vunpack.c.l.b16 %v5366
    %v5674 = vunpack.c.h.b16 %v5366
    %v5675 = vunpack.c.l.b16 %v5367
    %v5676 = vunpack.c.h.b16 %v5367
    %v5677 = vunpack.c.l.b16 %v5368
    %v5678 = vunpack.c.h.b16 %v5368
    %v5679 = vunpack.c.l.b16 %v5369
    %v5680 = vunpack.c.h.b16 %v5369
    %v5681 = vunpack.c.l.b16 %v5370
    %v5682 = vunpack.c.h.b16 %v5370
    %v5683 = vunpack.c.l.b16 %v5371
    %v5684 = vunpack.c.h.b16 %v5371
    %v5685 = vunpack.c.l.b16 %v5372
    %v5686 = vunpack.c.h.b16 %v5372
    %v5687 = vunpack.c.l.b16 %v5373
    %v5688 = vunpack.c.h.b16 %v5373
    %v5689 = vunpack.c.l.b16 %v5374
    %v5690 = vunpack.c.h.b16 %v5374
    %v5691 = vunpack.c.l.b16 %v5375
    %v5692 = vunpack.c.h.b16 %v5375
    %v5693 = vunpack.c.l.b16 %v5376
    %v5694 = vunpack.c.h.b16 %v5376
    %v5695 = vunpack.c.l.b16 %v5377
    %v5696 = vunpack.c.h.b16 %v5377
    %v5697 = vunpack.c.l.b16 %v5378
    %v5698 = vunpack.c.h.b16 %v5378
    %v5699 = vunpack.c.l.b16 %v5379
    %v5700 = vunpack.c.h.b16 %v5379
    %v5701 = vunpack.c.l.b16 %v5380
    %v5702 = vunpack.c.h.b16 %v5380
    %v5703 = vunpack.c.l.b16 %v5381
    %v5704 = vunpack.c.h.b16 %v5381
    %v5705 = vunpack.c.l.b16 %v5382
    %v5706 = vunpack.c.h.b16 %v5382
    %v5707 = vunpack.c.l.b16 %v5383
    %v5708 = vunpack.c.h.b16 %v5383
    %v5709 = vunpack.c.l.b16 %v5384
    %v5710 = vunpack.c.h.b16 %v5384
    %v5711 = vunpack.c.l.b16 %v5385
    %v5712 = vunpack.c.h.b16 %v5385
    %v5713 = vunpack.c.l.b16 %v5386
    %v5714 = vunpack.c.h.b16 %v5386
    %v5715 = vunpack.c.l.b16 %v5387
    %v5716 = vunpack.c.h.b16 %v5387
    %v5717 = vunpack.c.l.b16 %v5388
    %v5718 = vunpack.c.h.b16 %v5388
    %v5719 = vunpack.c.l.b16 %v5389
    %v5720 = vunpack.c.h.b16 %v5389
    %v5721 = vunpack.c.l.b16 %v5390
    %v5722 = vunpack.c.h.b16 %v5390
    %v5723 = vunpack.c.l.b16 %v5391
    %v5724 = vunpack.c.h.b16 %v5391
    %v5725 = vunpack.c.l.b16 %v5392
    %v5726 = vunpack.c.h.b16 %v5392
    %v5727 = vunpack.c.l.b16 %v5393
    %v5728 = vunpack.c.h.b16 %v5393
    %v5729 = vunpack.c.l.b16 %v5394
    %v5730 = vunpack.c.h.b16 %v5394
    %v5731 = vunpack.c.l.b16 %v5395
    %v5732 = vunpack.c.h.b16 %v5395
    %v5733 = vunpack.c.l.b16 %v5396
    %v5734 = vunpack.c.h.b16 %v5396
    %v5735 = vunpack.c.l.b16 %v5397
    %v5736 = vunpack.c.h.b16 %v5397
    %v5737 = vunpack.c.l.b16 %v5398
    %v5738 = vunpack.c.h.b16 %v5398
    %v5739 = vunpack.c.l.b16 %v5399
    %v5740 = vunpack.c.h.b16 %v5399
    %v5741 = vunpack.c.l.b16 %v5400
    %v5742 = vunpack.c.h.b16 %v5400
    %v5743 = vunpack.c.l.b16 %v5401
    %v5744 = vunpack.c.h.b16 %v5401
    %v5745 = vunpack.c.l.b16 %v5402
    %v5746 = vunpack.c.h.b16 %v5402
    %v5747 = vunpack.c.l.b16 %v5403
    %v5748 = vunpack.c.h.b16 %v5403
    %v5749 = vunpack.c.l.b16 %v5404
    %v5750 = vunpack.c.h.b16 %v5404
    %v5751 = vunpack.c.l.b16 %v5405
    %v5752 = vunpack.c.h.b16 %v5405
    %v5753 = vunpack.c.l.b16 %v5406
    %v5754 = vunpack.c.h.b16 %v5406
    %v5755 = vunpack.c.l.b16 %v5407
    %v5756 = vunpack.c.h.b16 %v5407
    %v5757 = vunpack.c.l.b16 %v5408
    %v5758 = vunpack.c.h.b16 %v5408
    %v5759 = vunpack.c.l.b16 %v5409
    %v5760 = vunpack.c.h.b16 %v5409
    %v5761 = vunpack.c.l.b16 %v5410
    %v5762 = vunpack.c.h.b16 %v5410
    %v5763 = vunpack.c.l.b16 %v5411
    %v5764 = vunpack.c.h.b16 %v5411
    %v5765 = vunpack.c.l.b16 %v5412
    %v5766 = vunpack.c.h.b16 %v5412
    %v5767 = vunpack.c.l.b16 %v5413
    %v5768 = vunpack.c.h.b16 %v5413
    %v5769 = vunpack.c.l.b16 %v5414
    %v5770 = vunpack.c.h.b16 %v5414
    %v5771 = vunpack.c.l.b16 %v5415
    %v5772 = vunpack.c.h.b16 %v5415
    %v5773 = vunpack.c.l.b16 %v5416
    %v5774 = vunpack.c.h.b16 %v5416
    %v5775 = vunpack.c.l.b16 %v5417
    %v5776 = vunpack.c.h.b16 %v5417
    %v5777 = vunpack.c.l.b16 %v5418
    %v5778 = vunpack.c.h.b16 %v5418
    %v5779 = vunpack.c.l.b16 %v5419
    %v5780 = vunpack.c.h.b16 %v5419
    %v5781 = vunpack.c.l.b16 %v5420
    %v5782 = vunpack.c.h.b16 %v5420
    %v5783 = vunpack.c.l.b16 %v5421
    %v5784 = vunpack.c.h.b16 %v5421
    %v5785 = vunpack.c.l.b16 %v5422
    %v5786 = vunpack.c.h.b16 %v5422
    %v5787 = vunpack.c.l.b16 %v5423
    %v5788 = vunpack.c.h.b16 %v5423
    %v5789 = vunpack.c.l.b16 %v5424
    %v5790 = vunpack.c.h.b16 %v5424
    %v5791 = vunpack.c.l.b16 %v5425
    %v5792 = vunpack.c.h.b16 %v5425
    %v5793 = vunpack.c.l.b16 %v5426
    %v5794 = vunpack.c.h.b16 %v5426
    %v5795 = vunpack.c.l.b16 %v5427
    %v5796 = vunpack.c.h.b16 %v5427
    %v5797 = vunpack.c.l.b16 %v5428
    %v5798 = vunpack.c.h.b16 %v5428
    %v5799 = vunpack.c.l.b16 %v5429
    %v5800 = vunpack.c.h.b16 %v5429
    %v5801 = vunpack.c.l.b16 %v5430
    %v5802 = vunpack.c.h.b16 %v5430
    %v5803 = vunpack.c.l.b16 %v5431
    %v5804 = vunpack.c.h.b16 %v5431
    %v5805 = vunpack.c.l.b16 %v5432
    %v5806 = vunpack.c.h.b16 %v5432
    %v5807 = vunpack.c.l.b16 %v5433
    %v5808 = vunpack.c.h.b16 %v5433
    %v5809 = vunpack.c.l.b16 %v5434
    %v5810 = vunpack.c.h.b16 %v5434
    %v5811 = vunpack.c.l.b16 %v5435
    %v5812 = vunpack.c.h.b16 %v5435
    %v5813 = vunpack.c.l.b16 %v5436
    %v5814 = vunpack.c.h.b16 %v5436
    %v5815 = vunpack.c.l.b16 %v5437
    %v5816 = vunpack.c.h.b16 %v5437
    %v5817 = vunpack.c.l.b16 %v5438
    %v5818 = vunpack.c.h.b16 %v5438
    %v5819 = vunpack.c.l.b16 %v5439
    %v5820 = vunpack.c.h.b16 %v5439
    %v5821 = vunpack.c.l.b16 %v5440
    %v5822 = vunpack.c.h.b16 %v5440
    %v5823 = vunpack.c.l.b16 %v5441
    %v5824 = vunpack.c.h.b16 %v5441
    %v5825 = vunpack.c.l.b16 %v5442
    %v5826 = vunpack.c.h.b16 %v5442
    %v5827 = vpack.c.b16 %v5579, %v5571
    %v5828 = vpack.c.b16 %v5580, %v5572
    %v5829 = vpack.c.b16 %v5581, %v5573
    %v5830 = vpack.c.b16 %v5582, %v5574
    %v5831 = vpack.c.b16 %v5583, %v5575
    %v5832 = vpack.c.b16 %v5584, %v5576
    %v5833 = vpack.c.b16 %v5585, %v5577
    %v5834 = vpack.c.b16 %v5586, %v5578
    %v5835 = vpack.c.b16 %v5595, %v5587
    %v5836 = vpack.c.b16 %v5596, %v5588
    %v5837 = vpack.c.b16 %v5597, %v5589
    %v5838 = vpack.c.b16 %v5598, %v5590
    %v5839 = vpack.c.b16 %v5599, %v5591
    %v5840 = vpack.c.b16 %v5600, %v5592
    %v5841 = vpack.c.b16 %v5601, %v5593
    %v5842 = vpack.c.b16 %v5602, %v5594
    %v5843 = vpack.c.b16 %v5611, %v5603
    %v5844 = vpack.c.b16 %v5612, %v5604
    %v5845 = vpack.c.b16 %v5613, %v5605
    %v5846 = vpack.c.b16 %v5614, %v5606
    %v5847 = vpack.c.b16 %v5615, %v5607
    %v5848 = vpack.c.b16 %v5616, %v5608
    %v5849 = vpack.c.b16 %v5617, %v5609
    %v5850 = vpack.c.b16 %v5618, %v5610
    %v5851 = vpack.c.b16 %v5627, %v5619
    %v5852 = vpack.c.b16 %v5628, %v5620
    %v5853 = vpack.c.b16 %v5629, %v5621
    %v5854 = vpack.c.b16 %v5630, %v5622
    %v5855 = vpack.c.b16 %v5631, %v5623
    %v5856 = vpack.c.b16 %v5632, %v5624
    %v5857 = vpack.c.b16 %v5633, %v5625
    %v5858 = vpack.c.b16 %v5634, %v5626
    %v5859 = vpack.c.b16 %v5643, %v5635
    %v5860 = vpack.c.b16 %v5644, %v5636
    %v5861 = vpack.c.b16 %v5645, %v5637
    %v5862 = vpack.c.b16 %v5646, %v5638
    %v5863 = vpack.c.b16 %v5647, %v5639
    %v5864 = vpack.c.b16 %v5648, %v5640
    %v5865 = vpack.c.b16 %v5649, %v5641
    %v5866 = vpack.c.b16 %v5650, %v5642
    %v5867 = vpack.c.b16 %v5659, %v5651
    %v5868 = vpack.c.b16 %v5660, %v5652
    %v5869 = vpack.c.b16 %v5661, %v5653
    %v5870 = vpack.c.b16 %v5662, %v5654
    %v5871 = vpack.c.b16 %v5663, %v5655
    %v5872 = vpack.c.b16 %v5664, %v5656
    %v5873 = vpack.c.b16 %v5665, %v5657
    %v5874 = vpack.c.b16 %v5666, %v5658
    %v5875 = vpack.c.b16 %v5675, %v5667
    %v5876 = vpack.c.b16 %v5676, %v5668
    %v5877 = vpack.c.b16 %v5677, %v5669
    %v5878 = vpack.c.b16 %v5678, %v5670
    %v5879 = vpack.c.b16 %v5679, %v5671
    %v5880 = vpack.c.b16 %v5680, %v5672
    %v5881 = vpack.c.b16 %v5681, %v5673
    %v5882 = vpack.c.b16 %v5682, %v5674
    %v5883 = vpack.c.b16 %v5691, %v5683
    %v5884 = vpack.c.b16 %v5692, %v5684
    %v5885 = vpack.c.b16 %v5693, %v5685
    %v5886 = vpack.c.b16 %v5694, %v5686
    %v5887 = vpack.c.b16 %v5695, %v5687
    %v5888 = vpack.c.b16 %v5696, %v5688
    %v5889 = vpack.c.b16 %v5697, %v5689
    %v5890 = vpack.c.b16 %v5698, %v5690
    %v5891 = vpack.c.b16 %v5707, %v5699
    %v5892 = vpack.c.b16 %v5708, %v5700
    %v5893 = vpack.c.b16 %v5709, %v5701
    %v5894 = vpack.c.b16 %v5710, %v5702
    %v5895 = vpack.c.b16 %v5711, %v5703
    %v5896 = vpack.c.b16 %v5712, %v5704
    %v5897 = vpack.c.b16 %v5713, %v5705
    %v5898 = vpack.c.b16 %v5714, %v5706
    %v5899 = vpack.c.b16 %v5723, %v5715
    %v5900 = vpack.c.b16 %v5724, %v5716
    %v5901 = vpack.c.b16 %v5725, %v5717
    %v5902 = vpack.c.b16 %v5726, %v5718
    %v5903 = vpack.c.b16 %v5727, %v5719
    %v5904 = vpack.c.b16 %v5728, %v5720
    %v5905 = vpack.c.b16 %v5729, %v5721
    %v5906 = vpack.c.b16 %v5730, %v5722
    %v5907 = vpack.c.b16 %v5739, %v5731
    %v5908 = vpack.c.b16 %v5740, %v5732
    %v5909 = vpack.c.b16 %v5741, %v5733
    %v5910 = vpack.c.b16 %v5742, %v5734
    %v5911 = vpack.c.b16 %v5743, %v5735
    %v5912 = vpack.c.b16 %v5744, %v5736
    %v5913 = vpack.c.b16 %v5745, %v5737
    %v5914 = vpack.c.b16 %v5746, %v5738
    %v5915 = vpack.c.b16 %v5755, %v5747
    %v5916 = vpack.c.b16 %v5756, %v5748
    %v5917 = vpack.c.b16 %v5757, %v5749
    %v5918 = vpack.c.b16 %v5758, %v5750
    %v5919 = vpack.c.b16 %v5759, %v5751
    %v5920 = vpack.c.b16 %v5760, %v5752
    %v5921 = vpack.c.b16 %v5761, %v5753
    %v5922 = vpack.c.b16 %v5762, %v5754
    %v5923 = vpack.c.b16 %v5771, %v5763
    %v5924 = vpack.c.b16 %v5772, %v5764
    %v5925 = vpack.c.b16 %v5773, %v5765
    %v5926 = vpack.c.b16 %v5774, %v5766
    %v5927 = vpack.c.b16 %v5775, %v5767
    %v5928 = vpack.c.b16 %v5776, %v5768
    %v5929 = vpack.c.b16 %v5777, %v5769
    %v5930 = vpack.c.b16 %v5778, %v5770
    %v5931 = vpack.c.b16 %v5787, %v5779
    %v5932 = vpack.c.b16 %v5788, %v5780
    %v5933 = vpack.c.b16 %v5789, %v5781
    %v5934 = vpack.c.b16 %v5790, %v5782
    %v5935 = vpack.c.b16 %v5791, %v5783
    %v5936 = vpack.c.b16 %v5792, %v5784
    %v5937 = vpack.c.b16 %v5793, %v5785
    %v5938 = vpack.c.b16 %v5794, %v5786
    %v5939 = vpack.c.b16 %v5803, %v5795
    %v5940 = vpack.c.b16 %v5804, %v5796
    %v5941 = vpack.c.b16 %v5805, %v5797
    %v5942 = vpack.c.b16 %v5806, %v5798
    %v5943 = vpack.c.b16 %v5807, %v5799
    %v5944 = vpack.c.b16 %v5808, %v5800
    %v5945 = vpack.c.b16 %v5809, %v5801
    %v5946 = vpack.c.b16 %v5810, %v5802
    %v5947 = vpack.c.b16 %v5819, %v5811
    %v5948 = vpack.c.b16 %v5820, %v5812
    %v5949 = vpack.c.b16 %v5821, %v5813
    %v5950 = vpack.c.b16 %v5822, %v5814
    %v5951 = vpack.c.b16 %v5823, %v5815
    %v5952 = vpack.c.b16 %v5824, %v5816
    %v5953 = vpack.c.b16 %v5825, %v5817
    %v5954 = vpack.c.b16 %v5826, %v5818
    %6083 = vmatprep.subr.bf16.mxu0 %v5828
    %6084 = vmatpush1.bf16.msra.mxu0 %v5827
    %6085 = vmatprep.subr.bf16.mxu0 %v5836
    %6086 = vmatpush1.bf16.msra.mxu0 %v5835
    %6087 = vmatprep.subr.bf16.mxu0 %v5844
    %6088 = vmatpush1.bf16.msra.mxu0 %v5843
    %6089 = vmatprep.subr.bf16.mxu0 %v5852
    %6090 = vmatpush1.bf16.msra.mxu0 %v5851
    %6091 = vmatprep.subr.bf16.mxu0 %v5860
    %6092 = vmatpush1.bf16.msra.mxu0 %v5859
    %6093 = vmatprep.subr.bf16.mxu0 %v5868
    %6094 = vmatpush1.bf16.msra.mxu0 %v5867
    %6095 = vmatprep.subr.bf16.mxu0 %v5876
    %6096 = vmatpush1.bf16.msra.mxu0 %v5875
    %6097 = vmatprep.subr.bf16.mxu0 %v5884
    %6098 = vmatpush1.bf16.msra.mxu0 %v5883
    %6099 = vmatprep.subr.bf16.mxu0 %v5892
    %6100 = vmatpush1.bf16.msra.mxu0 %v5891
    %6101 = vmatprep.subr.bf16.mxu0 %v5900
    %6102 = vmatpush1.bf16.msra.mxu0 %v5899
    %6103 = vmatprep.subr.bf16.mxu0 %v5908
    %6104 = vmatpush1.bf16.msra.mxu0 %v5907
    %6105 = vmatprep.subr.bf16.mxu0 %v5916
    %6106 = vmatpush1.bf16.msra.mxu0 %v5915
    %6107 = vmatprep.subr.bf16.mxu0 %v5924
    %6108 = vmatpush1.bf16.msra.mxu0 %v5923
    %6109 = vmatprep.subr.bf16.mxu0 %v5932
    %6110 = vmatpush1.bf16.msra.mxu0 %v5931
    %6111 = vmatprep.subr.bf16.mxu0 %v5940
    %6112 = vmatpush1.bf16.msra.mxu0 %v5939
    %6113 = vmatprep.subr.bf16.mxu0 %v5948
    %6114 = vmatpush1.bf16.msra.mxu0 %v5947
    %6115 = vmatprep.mubr.bf16.mxu0 %v5312
    %6116 = vmatmul.mubr.bf16.gmra.mrb[0].mxu0 %v5311
    %v6117 = vpop.f32.mrb[0].mxu0
    %v6118 = vadd.f32 0.0, %v6117
    %v6119 = vpop.f32.mrb[0].mxu0
    %v6120 = vadd.f32 0.0, %v6119
    %v6121 = vpop.f32.mrb[0].mxu0
    %v6122 = vadd.f32 0.0, %v6121
    %v6123 = vpop.f32.mrb[0].mxu0
    %v6124 = vadd.f32 0.0, %v6123
    %6125 = vdwg.mxu0
    %6126 = vmatprep.subr.bf16.mxu0 %v5830
    %6127 = vmatpush1.bf16.msra.mxu0 %v5829
    %6128 = vmatprep.subr.bf16.mxu0 %v5838
    %6129 = vmatpush1.bf16.msra.mxu0 %v5837
    %6130 = vmatprep.subr.bf16.mxu0 %v5846
    %6131 = vmatpush1.bf16.msra.mxu0 %v5845
    %6132 = vmatprep.subr.bf16.mxu0 %v5854
    %6133 = vmatpush1.bf16.msra.mxu0 %v5853
    %6134 = vmatprep.subr.bf16.mxu0 %v5862
    %6135 = vmatpush1.bf16.msra.mxu0 %v5861
    %6136 = vmatprep.subr.bf16.mxu0 %v5870
    %6137 = vmatpush1.bf16.msra.mxu0 %v5869
    %6138 = vmatprep.subr.bf16.mxu0 %v5878
    %6139 = vmatpush1.bf16.msra.mxu0 %v5877
    %6140 = vmatprep.subr.bf16.mxu0 %v5886
    %6141 = vmatpush1.bf16.msra.mxu0 %v5885
    %6142 = vmatprep.subr.bf16.mxu0 %v5894
    %6143 = vmatpush1.bf16.msra.mxu0 %v5893
    %6144 = vmatprep.subr.bf16.mxu0 %v5902
    %6145 = vmatpush1.bf16.msra.mxu0 %v5901
    %6146 = vmatprep.subr.bf16.mxu0 %v5910
    %6147 = vmatpush1.bf16.msra.mxu0 %v5909
    %6148 = vmatprep.subr.bf16.mxu0 %v5918
    %6149 = vmatpush1.bf16.msra.mxu0 %v5917
    %6150 = vmatprep.subr.bf16.mxu0 %v5926
    %6151 = vmatpush1.bf16.msra.mxu0 %v5925
    %6152 = vmatprep.subr.bf16.mxu0 %v5934
    %6153 = vmatpush1.bf16.msra.mxu0 %v5933
    %6154 = vmatprep.subr.bf16.mxu0 %v5942
    %6155 = vmatpush1.bf16.msra.mxu0 %v5941
    %6156 = vmatprep.subr.bf16.mxu0 %v5950
    %6157 = vmatpush1.bf16.msra.mxu0 %v5949
    %6158 = vmatprep.mubr.bf16.mxu0 %v5312
    %6159 = vmatmul.mubr.bf16.gmra.mrb[0].mxu0 %v5311
    %v6160 = vpop.f32.mrb[0].mxu0
    %v6161 = vadd.f32 0.0, %v6160
    %v6162 = vpop.f32.mrb[0].mxu0
    %v6163 = vadd.f32 0.0, %v6162
    %v6164 = vpop.f32.mrb[0].mxu0
    %v6165 = vadd.f32 0.0, %v6164
    %v6166 = vpop.f32.mrb[0].mxu0
    %v6167 = vadd.f32 0.0, %v6166
    %6168 = vdwg.mxu0
    %6169 = vmatprep.subr.bf16.mxu0 %v5832
    %6170 = vmatpush1.bf16.msra.mxu0 %v5831
    %6171 = vmatprep.subr.bf16.mxu0 %v5840
    %6172 = vmatpush1.bf16.msra.mxu0 %v5839
    %6173 = vmatprep.subr.bf16.mxu0 %v5848
    %6174 = vmatpush1.bf16.msra.mxu0 %v5847
    %6175 = vmatprep.subr.bf16.mxu0 %v5856
    %6176 = vmatpush1.bf16.msra.mxu0 %v5855
    %6177 = vmatprep.subr.bf16.mxu0 %v5864
    %6178 = vmatpush1.bf16.msra.mxu0 %v5863
    %6179 = vmatprep.subr.bf16.mxu0 %v5872
    %6180 = vmatpush1.bf16.msra.mxu0 %v5871
    %6181 = vmatprep.subr.bf16.mxu0 %v5880
    %6182 = vmatpush1.bf16.msra.mxu0 %v5879
    %6183 = vmatprep.subr.bf16.mxu0 %v5888
    %6184 = vmatpush1.bf16.msra.mxu0 %v5887
    %6185 = vmatprep.subr.bf16.mxu0 %v5896
    %6186 = vmatpush1.bf16.msra.mxu0 %v5895
    %6187 = vmatprep.subr.bf16.mxu0 %v5904
    %6188 = vmatpush1.bf16.msra.mxu0 %v5903
    %6189 = vmatprep.subr.bf16.mxu0 %v5912
    %6190 = vmatpush1.bf16.msra.mxu0 %v5911
    %6191 = vmatprep.subr.bf16.mxu0 %v5920
    %6192 = vmatpush1.bf16.msra.mxu0 %v5919
    %6193 = vmatprep.subr.bf16.mxu0 %v5928
    %6194 = vmatpush1.bf16.msra.mxu0 %v5927
    %6195 = vmatprep.subr.bf16.mxu0 %v5936
    %6196 = vmatpush1.bf16.msra.mxu0 %v5935
    %6197 = vmatprep.subr.bf16.mxu0 %v5944
    %6198 = vmatpush1.bf16.msra.mxu0 %v5943
    %6199 = vmatprep.subr.bf16.mxu0 %v5952
    %6200 = vmatpush1.bf16.msra.mxu0 %v5951
    %6201 = vmatprep.mubr.bf16.mxu0 %v5312
    %6202 = vmatmul.mubr.bf16.gmra.mrb[0].mxu0 %v5311
    %v6203 = vpop.f32.mrb[0].mxu0
    %v6204 = vadd.f32 0.0, %v6203
    %v6205 = vpop.f32.mrb[0].mxu0
    %v6206 = vadd.f32 0.0, %v6205
    %v6207 = vpop.f32.mrb[0].mxu0
    %v6208 = vadd.f32 0.0, %v6207
    %v6209 = vpop.f32.mrb[0].mxu0
    %v6210 = vadd.f32 0.0, %v6209
    %6211 = vdwg.mxu0
    %6212 = vmatprep.subr.bf16.mxu0 %v5834
    %6213 = vmatpush1.bf16.msra.mxu0 %v5833
    %6214 = vmatprep.subr.bf16.mxu0 %v5842
    %6215 = vmatpush1.bf16.msra.mxu0 %v5841
    %6216 = vmatprep.subr.bf16.mxu0 %v5850
    %6217 = vmatpush1.bf16.msra.mxu0 %v5849
    %6218 = vmatprep.subr.bf16.mxu0 %v5858
    %6219 = vmatpush1.bf16.msra.mxu0 %v5857
    %6220 = vmatprep.subr.bf16.mxu0 %v5866
    %6221 = vmatpush1.bf16.msra.mxu0 %v5865
    %6222 = vmatprep.subr.bf16.mxu0 %v5874
    %6223 = vmatpush1.bf16.msra.mxu0 %v5873
    %6224 = vmatprep.subr.bf16.mxu0 %v5882
    %6225 = vmatpush1.bf16.msra.mxu0 %v5881
    %6226 = vmatprep.subr.bf16.mxu0 %v5890
    %6227 = vmatpush1.bf16.msra.mxu0 %v5889
    %6228 = vmatprep.subr.bf16.mxu0 %v5898
    %6229 = vmatpush1.bf16.msra.mxu0 %v5897
    %6230 = vmatprep.subr.bf16.mxu0 %v5906
    %6231 = vmatpush1.bf16.msra.mxu0 %v5905
    %6232 = vmatprep.subr.bf16.mxu0 %v5914
    %6233 = vmatpush1.bf16.msra.mxu0 %v5913
    %6234 = vmatprep.subr.bf16.mxu0 %v5922
    %6235 = vmatpush1.bf16.msra.mxu0 %v5921
    %6236 = vmatprep.subr.bf16.mxu0 %v5930
    %6237 = vmatpush1.bf16.msra.mxu0 %v5929
    %6238 = vmatprep.subr.bf16.mxu0 %v5938
    %6239 = vmatpush1.bf16.msra.mxu0 %v5937
    %6240 = vmatprep.subr.bf16.mxu0 %v5946
    %6241 = vmatpush1.bf16.msra.mxu0 %v5945
    %6242 = vmatprep.subr.bf16.mxu0 %v5954
    %6243 = vmatpush1.bf16.msra.mxu0 %v5953
    %6244 = vmatprep.mubr.bf16.mxu0 %v5312
    %6245 = vmatmul.mubr.bf16.gmra.mrb[0].mxu0 %v5311
    %v6246 = vpop.f32.mrb[0].mxu0
    %v6247 = vadd.f32 0.0, %v6246
    %v6248 = vpop.f32.mrb[0].mxu0
    %v6249 = vadd.f32 0.0, %v6248
    %v6250 = vpop.f32.mrb[0].mxu0
    %v6251 = vadd.f32 0.0, %v6250
    %v6252 = vpop.f32.mrb[0].mxu0
    %v6253 = vadd.f32 0.0, %v6252
    %6254 = vdwg.mxu0
    %v6255 = vld [vmem:[#allocation2 + $0x200] sm:$0xff]
    %v6256 = vld [vmem:[#allocation2 + $0x208] sm:$0xff]
    %v6257 = vld [vmem:[#allocation2 + $0x210] sm:$0xff]
    %v6258 = vld [vmem:[#allocation2 + $0x218] sm:$0xff]
    %v6259 = vld [vmem:[#allocation2 + $0x240] sm:$0xff]
    %v6260 = vld [vmem:[#allocation2 + $0x248] sm:$0xff]
    %v6261 = vld [vmem:[#allocation2 + $0x250] sm:$0xff]
    %v6262 = vld [vmem:[#allocation2 + $0x258] sm:$0xff]
    %v6263 = vadd.f32 %v6255, %v6118
    %v6264 = vadd.f32 %v6256, %v6120
    %v6265 = vadd.f32 %v6257, %v6161
    %v6266 = vadd.f32 %v6258, %v6163
    %v6267 = vadd.f32 %v6259, %v6122
    %v6268 = vadd.f32 %v6260, %v6124
    %v6269 = vadd.f32 %v6261, %v6165
    %v6270 = vadd.f32 %v6262, %v6167
    %v6271 = vld [vmem:[#allocation2 + $0x1a0] sm:$0xff]
    %v6272 = vld [vmem:[#allocation2 + $0x1a8] sm:$0xff]
    %v6273 = vld [vmem:[#allocation2 + $0x1b0] sm:$0xff]
    %v6274 = vld [vmem:[#allocation2 + $0x1b8] sm:$0xff]
    %v6275 = vld [vmem:[#allocation2 + $0x1e0] sm:$0xff]
    %v6276 = vld [vmem:[#allocation2 + $0x1e8] sm:$0xff]
    %v6277 = vld [vmem:[#allocation2 + $0x1f0] sm:$0xff]
    %v6278 = vld [vmem:[#allocation2 + $0x1f8] sm:$0xff]
    %v6279 = vadd.f32 %v6271, %v6204
    %v6280 = vadd.f32 %v6272, %v6206
    %v6281 = vadd.f32 %v6273, %v6247
    %v6282 = vadd.f32 %v6274, %v6249
    %v6283 = vadd.f32 %v6275, %v6208
    %v6284 = vadd.f32 %v6276, %v6210
    %v6285 = vadd.f32 %v6277, %v6251
    %v6286 = vadd.f32 %v6278, %v6253
    %v6287 = vmul.f32 %v6263, 0.5
    %v6288 = vmul.f32 %v6267, 0.5
    %v6289 = vtanh.pop %v6287
    %v6290 = vtanh.pop %v6288
    %v6291 = vmul.f32 %v6289, 0.5
    %v6292 = vmul.f32 %v6290, 0.5
    %v6293 = vadd.f32 %v6291, 0.5
    %v6294 = vadd.f32 %v6292, 0.5
    %v6295 = vmul.f32 %v6264, 0.5
    %v6296 = vmul.f32 %v6268, 0.5
    %v6297 = vtanh.pop %v6295
    %v6298 = vtanh.pop %v6296
    %v6299 = vmul.f32 %v6297, 0.5
    %v6300 = vmul.f32 %v6298, 0.5
    %v6301 = vadd.f32 %v6299, 0.5
    %v6302 = vadd.f32 %v6300, 0.5
    %v6303 = vtanh.pop %v6265
    %v6304 = vtanh.pop %v6269
    %v6305 = vmul.f32 %v6266, 0.5
    %v6306 = vmul.f32 %v6270, 0.5
    %v6307 = vtanh.pop %v6305
    %v6308 = vtanh.pop %v6306
    %v6309 = vmul.f32 %v6307, 0.5
    %v6310 = vmul.f32 %v6308, 0.5
    %v6311 = vadd.f32 %v6309, 0.5
    %v6312 = vadd.f32 %v6310, 0.5
    %v6313 = vmul.f32 %v6301, %v5269
    %v6314 = vmul.f32 %v6302, %v5270
    %v6315 = vmul.f32 %v6293, %v6303
    %v6316 = vmul.f32 %v6294, %v6304
    %v6317 = vadd.f32 %v6313, %v6315
    %v6318 = vadd.f32 %v6314, %v6316
    %v6319 = vtanh.pop %v6317
    %v6320 = vtanh.pop %v6318
    %v6321 = vmul.f32 %v6311, %v6319
    %v6322 = vmul.f32 %v6312, %v6320
    %v6323 = vmul.f32 %v6279, 0.5
    %v6324 = vmul.f32 %v6283, 0.5
    %v6325 = vtanh.pop %v6323
    %v6326 = vtanh.pop %v6324
    %v6327 = vmul.f32 %v6325, 0.5
    %v6328 = vmul.f32 %v6326, 0.5
    %v6329 = vadd.f32 %v6327, 0.5
    %v6330 = vadd.f32 %v6328, 0.5
    %v6331 = vmul.f32 %v6280, 0.5
    %v6332 = vmul.f32 %v6284, 0.5
    %v6333 = vtanh.pop %v6331
    %v6334 = vtanh.pop %v6332
    %v6335 = vmul.f32 %v6333, 0.5
    %v6336 = vmul.f32 %v6334, 0.5
    %v6337 = vadd.f32 %v6335, 0.5
    %v6338 = vadd.f32 %v6336, 0.5
    %v6339 = vtanh.pop %v6281
    %v6340 = vtanh.pop %v6285
    %v6341 = vmul.f32 %v6282, 0.5
    %v6342 = vmul.f32 %v6286, 0.5
    %v6343 = vtanh.pop %v6341
    %v6344 = vtanh.pop %v6342
    %v6345 = vmul.f32 %v6343, 0.5
    %v6346 = vmul.f32 %v6344, 0.5
    %v6347 = vadd.f32 %v6345, 0.5
    %v6348 = vadd.f32 %v6346, 0.5
    %v6349 = vmul.f32 %v6337, %v5305
    %v6350 = vmul.f32 %v6338, %v5306
    %v6351 = vmul.f32 %v6329, %v6339
    %v6352 = vmul.f32 %v6330, %v6340
    %v6353 = vadd.f32 %v6349, %v6351
    %v6354 = vadd.f32 %v6350, %v6352
    %v6355 = vtanh.pop %v6353
    %v6356 = vtanh.pop %v6354
    %v6357 = vmul.f32 %v6347, %v6355
    %v6358 = vmul.f32 %v6348, %v6356
    %v6359 = vpack.c.bf16 %v6322, %v6321
    %v6360 = vpack.c.bf16 %v6358, %v6357
    %6361 = vst [vmem:[#allocation3 + $0x40] sm:$0xff] %v6359
    %6362 = vst [vmem:[#allocation3 + $0x38] sm:$0xff] %v6360
    %v6363 = vld [vmem:[#allocation7] sm:$0xff]
    %v6364 = vld [vmem:[#allocation7 + $0x8] sm:$0xff]
    %v6365 = vld [vmem:[#allocation7 + $0x10] sm:$0xff]
    %v6366 = vld [vmem:[#allocation7 + $0x18] sm:$0xff]
    %v6367 = vld [vmem:[#allocation7 + $0x20] sm:$0xff]
    %v6368 = vld [vmem:[#allocation7 + $0x28] sm:$0xff]
    %v6369 = vld [vmem:[#allocation7 + $0x30] sm:$0xff]
    %v6370 = vld [vmem:[#allocation7 + $0x38] sm:$0xff]
    %v6371 = vld [vmem:[#allocation7 + $0x40] sm:$0xff]
    %v6372 = vld [vmem:[#allocation7 + $0x48] sm:$0xff]
    %v6373 = vld [vmem:[#allocation7 + $0x50] sm:$0xff]
    %v6374 = vld [vmem:[#allocation7 + $0x58] sm:$0xff]
    %v6375 = vld [vmem:[#allocation7 + $0x60] sm:$0xff]
    %v6376 = vld [vmem:[#allocation7 + $0x68] sm:$0xff]
    %v6377 = vld [vmem:[#allocation7 + $0x70] sm:$0xff]
    %v6378 = vld [vmem:[#allocation7 + $0x78] sm:$0xff]
    %v6379 = vld [vmem:[#allocation7 + $0x80] sm:$0xff]
    %v6380 = vld [vmem:[#allocation7 + $0x88] sm:$0xff]
    %v6381 = vld [vmem:[#allocation7 + $0x90] sm:$0xff]
    %v6382 = vld [vmem:[#allocation7 + $0x98] sm:$0xff]
    %v6383 = vld [vmem:[#allocation7 + $0xa0] sm:$0xff]
    %v6384 = vld [vmem:[#allocation7 + $0xa8] sm:$0xff]
    %v6385 = vld [vmem:[#allocation7 + $0xb0] sm:$0xff]
    %v6386 = vld [vmem:[#allocation7 + $0xb8] sm:$0xff]
    %v6387 = vld [vmem:[#allocation7 + $0xc0] sm:$0xff]
    %v6388 = vld [vmem:[#allocation7 + $0xc8] sm:$0xff]
    %v6389 = vld [vmem:[#allocation7 + $0xd0] sm:$0xff]
    %v6390 = vld [vmem:[#allocation7 + $0xd8] sm:$0xff]
    %v6391 = vld [vmem:[#allocation7 + $0xe0] sm:$0xff]
    %v6392 = vld [vmem:[#allocation7 + $0xe8] sm:$0xff]
    %v6393 = vld [vmem:[#allocation7 + $0xf0] sm:$0xff]
    %v6394 = vld [vmem:[#allocation7 + $0xf8] sm:$0xff]
    %v6395 = vld [vmem:[#allocation7 + $0x100] sm:$0xff]
    %v6396 = vld [vmem:[#allocation7 + $0x108] sm:$0xff]
    %v6397 = vld [vmem:[#allocation7 + $0x110] sm:$0xff]
    %v6398 = vld [vmem:[#allocation7 + $0x118] sm:$0xff]
    %v6399 = vld [vmem:[#allocation7 + $0x120] sm:$0xff]
    %v6400 = vld [vmem:[#allocation7 + $0x128] sm:$0xff]
    %v6401 = vld [vmem:[#allocation7 + $0x130] sm:$0xff]
    %v6402 = vld [vmem:[#allocation7 + $0x138] sm:$0xff]
    %v6403 = vld [vmem:[#allocation7 + $0x140] sm:$0xff]
    %v6404 = vld [vmem:[#allocation7 + $0x148] sm:$0xff]
    %v6405 = vld [vmem:[#allocation7 + $0x150] sm:$0xff]
    %v6406 = vld [vmem:[#allocation7 + $0x158] sm:$0xff]
    %v6407 = vld [vmem:[#allocation7 + $0x160] sm:$0xff]
    %v6408 = vld [vmem:[#allocation7 + $0x168] sm:$0xff]
    %v6409 = vld [vmem:[#allocation7 + $0x170] sm:$0xff]
    %v6410 = vld [vmem:[#allocation7 + $0x178] sm:$0xff]
    %v6411 = vld [vmem:[#allocation7 + $0x180] sm:$0xff]
    %v6412 = vld [vmem:[#allocation7 + $0x188] sm:$0xff]
    %v6413 = vld [vmem:[#allocation7 + $0x190] sm:$0xff]
    %v6414 = vld [vmem:[#allocation7 + $0x198] sm:$0xff]
    %v6415 = vld [vmem:[#allocation7 + $0x1a0] sm:$0xff]
    %v6416 = vld [vmem:[#allocation7 + $0x1a8] sm:$0xff]
    %v6417 = vld [vmem:[#allocation7 + $0x1b0] sm:$0xff]
    %v6418 = vld [vmem:[#allocation7 + $0x1b8] sm:$0xff]
    %v6419 = vld [vmem:[#allocation7 + $0x1c0] sm:$0xff]
    %v6420 = vld [vmem:[#allocation7 + $0x1c8] sm:$0xff]
    %v6421 = vld [vmem:[#allocation7 + $0x1d0] sm:$0xff]
    %v6422 = vld [vmem:[#allocation7 + $0x1d8] sm:$0xff]
    %v6423 = vld [vmem:[#allocation7 + $0x1e0] sm:$0xff]
    %v6424 = vld [vmem:[#allocation7 + $0x1e8] sm:$0xff]
    %v6425 = vld [vmem:[#allocation7 + $0x1f0] sm:$0xff]
    %v6426 = vld [vmem:[#allocation7 + $0x1f8] sm:$0xff]
    %v6427 = vld [vmem:[#allocation7 + $0x200] sm:$0xff]
    %v6428 = vld [vmem:[#allocation7 + $0x208] sm:$0xff]
    %v6429 = vld [vmem:[#allocation7 + $0x210] sm:$0xff]
    %v6430 = vld [vmem:[#allocation7 + $0x218] sm:$0xff]
    %v6431 = vld [vmem:[#allocation7 + $0x220] sm:$0xff]
    %v6432 = vld [vmem:[#allocation7 + $0x228] sm:$0xff]
    %v6433 = vld [vmem:[#allocation7 + $0x230] sm:$0xff]
    %v6434 = vld [vmem:[#allocation7 + $0x238] sm:$0xff]
    %v6435 = vld [vmem:[#allocation7 + $0x240] sm:$0xff]
    %v6436 = vld [vmem:[#allocation7 + $0x248] sm:$0xff]
    %v6437 = vld [vmem:[#allocation7 + $0x250] sm:$0xff]
    %v6438 = vld [vmem:[#allocation7 + $0x258] sm:$0xff]
    %v6439 = vld [vmem:[#allocation7 + $0x260] sm:$0xff]
    %v6440 = vld [vmem:[#allocation7 + $0x268] sm:$0xff]
    %v6441 = vld [vmem:[#allocation7 + $0x270] sm:$0xff]
    %v6442 = vld [vmem:[#allocation7 + $0x278] sm:$0xff]
    %v6443 = vld [vmem:[#allocation7 + $0x280] sm:$0xff]
    %v6444 = vld [vmem:[#allocation7 + $0x288] sm:$0xff]
    %v6445 = vld [vmem:[#allocation7 + $0x290] sm:$0xff]
    %v6446 = vld [vmem:[#allocation7 + $0x298] sm:$0xff]
    %v6447 = vld [vmem:[#allocation7 + $0x2a0] sm:$0xff]
    %v6448 = vld [vmem:[#allocation7 + $0x2a8] sm:$0xff]
    %v6449 = vld [vmem:[#allocation7 + $0x2b0] sm:$0xff]
    %v6450 = vld [vmem:[#allocation7 + $0x2b8] sm:$0xff]
    %v6451 = vld [vmem:[#allocation7 + $0x2c0] sm:$0xff]
    %v6452 = vld [vmem:[#allocation7 + $0x2c8] sm:$0xff]
    %v6453 = vld [vmem:[#allocation7 + $0x2d0] sm:$0xff]
    %v6454 = vld [vmem:[#allocation7 + $0x2d8] sm:$0xff]
    %v6455 = vld [vmem:[#allocation7 + $0x2e0] sm:$0xff]
    %v6456 = vld [vmem:[#allocation7 + $0x2e8] sm:$0xff]
    %v6457 = vld [vmem:[#allocation7 + $0x2f0] sm:$0xff]
    %v6458 = vld [vmem:[#allocation7 + $0x2f8] sm:$0xff]
    %v6459 = vld [vmem:[#allocation7 + $0x300] sm:$0xff]
    %v6460 = vld [vmem:[#allocation7 + $0x308] sm:$0xff]
    %v6461 = vld [vmem:[#allocation7 + $0x310] sm:$0xff]
    %v6462 = vld [vmem:[#allocation7 + $0x318] sm:$0xff]
    %v6463 = vld [vmem:[#allocation7 + $0x320] sm:$0xff]
    %v6464 = vld [vmem:[#allocation7 + $0x328] sm:$0xff]
    %v6465 = vld [vmem:[#allocation7 + $0x330] sm:$0xff]
    %v6466 = vld [vmem:[#allocation7 + $0x338] sm:$0xff]
    %v6467 = vld [vmem:[#allocation7 + $0x340] sm:$0xff]
    %v6468 = vld [vmem:[#allocation7 + $0x348] sm:$0xff]
    %v6469 = vld [vmem:[#allocation7 + $0x350] sm:$0xff]
    %v6470 = vld [vmem:[#allocation7 + $0x358] sm:$0xff]
    %v6471 = vld [vmem:[#allocation7 + $0x360] sm:$0xff]
    %v6472 = vld [vmem:[#allocation7 + $0x368] sm:$0xff]
    %v6473 = vld [vmem:[#allocation7 + $0x370] sm:$0xff]
    %v6474 = vld [vmem:[#allocation7 + $0x378] sm:$0xff]
    %v6475 = vld [vmem:[#allocation7 + $0x380] sm:$0xff]
    %v6476 = vld [vmem:[#allocation7 + $0x388] sm:$0xff]
    %v6477 = vld [vmem:[#allocation7 + $0x390] sm:$0xff]
    %v6478 = vld [vmem:[#allocation7 + $0x398] sm:$0xff]
    %v6479 = vld [vmem:[#allocation7 + $0x3a0] sm:$0xff]
    %v6480 = vld [vmem:[#allocation7 + $0x3a8] sm:$0xff]
    %v6481 = vld [vmem:[#allocation7 + $0x3b0] sm:$0xff]
    %v6482 = vld [vmem:[#allocation7 + $0x3b8] sm:$0xff]
    %v6483 = vld [vmem:[#allocation7 + $0x3c0] sm:$0xff]
    %v6484 = vld [vmem:[#allocation7 + $0x3c8] sm:$0xff]
    %v6485 = vld [vmem:[#allocation7 + $0x3d0] sm:$0xff]
    %v6486 = vld [vmem:[#allocation7 + $0x3d8] sm:$0xff]
    %v6487 = vld [vmem:[#allocation7 + $0x3e0] sm:$0xff]
    %v6488 = vld [vmem:[#allocation7 + $0x3e8] sm:$0xff]
    %v6489 = vld [vmem:[#allocation7 + $0x3f0] sm:$0xff]
    %v6490 = vld [vmem:[#allocation7 + $0x3f8] sm:$0xff]
    %v6619 = vunpack.c.l.b16 %v6363
    %v6620 = vunpack.c.h.b16 %v6363
    %v6621 = vunpack.c.l.b16 %v6364
    %v6622 = vunpack.c.h.b16 %v6364
    %v6623 = vunpack.c.l.b16 %v6365
    %v6624 = vunpack.c.h.b16 %v6365
    %v6625 = vunpack.c.l.b16 %v6366
    %v6626 = vunpack.c.h.b16 %v6366
    %v6627 = vunpack.c.l.b16 %v6367
    %v6628 = vunpack.c.h.b16 %v6367
    %v6629 = vunpack.c.l.b16 %v6368
    %v6630 = vunpack.c.h.b16 %v6368
    %v6631 = vunpack.c.l.b16 %v6369
    %v6632 = vunpack.c.h.b16 %v6369
    %v6633 = vunpack.c.l.b16 %v6370
    %v6634 = vunpack.c.h.b16 %v6370
    %v6635 = vunpack.c.l.b16 %v6371
    %v6636 = vunpack.c.h.b16 %v6371
    %v6637 = vunpack.c.l.b16 %v6372
    %v6638 = vunpack.c.h.b16 %v6372
    %v6639 = vunpack.c.l.b16 %v6373
    %v6640 = vunpack.c.h.b16 %v6373
    %v6641 = vunpack.c.l.b16 %v6374
    %v6642 = vunpack.c.h.b16 %v6374
    %v6643 = vunpack.c.l.b16 %v6375
    %v6644 = vunpack.c.h.b16 %v6375
    %v6645 = vunpack.c.l.b16 %v6376
    %v6646 = vunpack.c.h.b16 %v6376
    %v6647 = vunpack.c.l.b16 %v6377
    %v6648 = vunpack.c.h.b16 %v6377
    %v6649 = vunpack.c.l.b16 %v6378
    %v6650 = vunpack.c.h.b16 %v6378
    %v6651 = vunpack.c.l.b16 %v6379
    %v6652 = vunpack.c.h.b16 %v6379
    %v6653 = vunpack.c.l.b16 %v6380
    %v6654 = vunpack.c.h.b16 %v6380
    %v6655 = vunpack.c.l.b16 %v6381
    %v6656 = vunpack.c.h.b16 %v6381
    %v6657 = vunpack.c.l.b16 %v6382
    %v6658 = vunpack.c.h.b16 %v6382
    %v6659 = vunpack.c.l.b16 %v6383
    %v6660 = vunpack.c.h.b16 %v6383
    %v6661 = vunpack.c.l.b16 %v6384
    %v6662 = vunpack.c.h.b16 %v6384
    %v6663 = vunpack.c.l.b16 %v6385
    %v6664 = vunpack.c.h.b16 %v6385
    %v6665 = vunpack.c.l.b16 %v6386
    %v6666 = vunpack.c.h.b16 %v6386
    %v6667 = vunpack.c.l.b16 %v6387
    %v6668 = vunpack.c.h.b16 %v6387
    %v6669 = vunpack.c.l.b16 %v6388
    %v6670 = vunpack.c.h.b16 %v6388
    %v6671 = vunpack.c.l.b16 %v6389
    %v6672 = vunpack.c.h.b16 %v6389
    %v6673 = vunpack.c.l.b16 %v6390
    %v6674 = vunpack.c.h.b16 %v6390
    %v6675 = vunpack.c.l.b16 %v6391
    %v6676 = vunpack.c.h.b16 %v6391
    %v6677 = vunpack.c.l.b16 %v6392
    %v6678 = vunpack.c.h.b16 %v6392
    %v6679 = vunpack.c.l.b16 %v6393
    %v6680 = vunpack.c.h.b16 %v6393
    %v6681 = vunpack.c.l.b16 %v6394
    %v6682 = vunpack.c.h.b16 %v6394
    %v6683 = vunpack.c.l.b16 %v6395
    %v6684 = vunpack.c.h.b16 %v6395
    %v6685 = vunpack.c.l.b16 %v6396
    %v6686 = vunpack.c.h.b16 %v6396
    %v6687 = vunpack.c.l.b16 %v6397
    %v6688 = vunpack.c.h.b16 %v6397
    %v6689 = vunpack.c.l.b16 %v6398
    %v6690 = vunpack.c.h.b16 %v6398
    %v6691 = vunpack.c.l.b16 %v6399
    %v6692 = vunpack.c.h.b16 %v6399
    %v6693 = vunpack.c.l.b16 %v6400
    %v6694 = vunpack.c.h.b16 %v6400
    %v6695 = vunpack.c.l.b16 %v6401
    %v6696 = vunpack.c.h.b16 %v6401
    %v6697 = vunpack.c.l.b16 %v6402
    %v6698 = vunpack.c.h.b16 %v6402
    %v6699 = vunpack.c.l.b16 %v6403
    %v6700 = vunpack.c.h.b16 %v6403
    %v6701 = vunpack.c.l.b16 %v6404
    %v6702 = vunpack.c.h.b16 %v6404
    %v6703 = vunpack.c.l.b16 %v6405
    %v6704 = vunpack.c.h.b16 %v6405
    %v6705 = vunpack.c.l.b16 %v6406
    %v6706 = vunpack.c.h.b16 %v6406
    %v6707 = vunpack.c.l.b16 %v6407
    %v6708 = vunpack.c.h.b16 %v6407
    %v6709 = vunpack.c.l.b16 %v6408
    %v6710 = vunpack.c.h.b16 %v6408
    %v6711 = vunpack.c.l.b16 %v6409
    %v6712 = vunpack.c.h.b16 %v6409
    %v6713 = vunpack.c.l.b16 %v6410
    %v6714 = vunpack.c.h.b16 %v6410
    %v6715 = vunpack.c.l.b16 %v6411
    %v6716 = vunpack.c.h.b16 %v6411
    %v6717 = vunpack.c.l.b16 %v6412
    %v6718 = vunpack.c.h.b16 %v6412
    %v6719 = vunpack.c.l.b16 %v6413
    %v6720 = vunpack.c.h.b16 %v6413
    %v6721 = vunpack.c.l.b16 %v6414
    %v6722 = vunpack.c.h.b16 %v6414
    %v6723 = vunpack.c.l.b16 %v6415
    %v6724 = vunpack.c.h.b16 %v6415
    %v6725 = vunpack.c.l.b16 %v6416
    %v6726 = vunpack.c.h.b16 %v6416
    %v6727 = vunpack.c.l.b16 %v6417
    %v6728 = vunpack.c.h.b16 %v6417
    %v6729 = vunpack.c.l.b16 %v6418
    %v6730 = vunpack.c.h.b16 %v6418
    %v6731 = vunpack.c.l.b16 %v6419
    %v6732 = vunpack.c.h.b16 %v6419
    %v6733 = vunpack.c.l.b16 %v6420
    %v6734 = vunpack.c.h.b16 %v6420
    %v6735 = vunpack.c.l.b16 %v6421
    %v6736 = vunpack.c.h.b16 %v6421
    %v6737 = vunpack.c.l.b16 %v6422
    %v6738 = vunpack.c.h.b16 %v6422
    %v6739 = vunpack.c.l.b16 %v6423
    %v6740 = vunpack.c.h.b16 %v6423
    %v6741 = vunpack.c.l.b16 %v6424
    %v6742 = vunpack.c.h.b16 %v6424
    %v6743 = vunpack.c.l.b16 %v6425
    %v6744 = vunpack.c.h.b16 %v6425
    %v6745 = vunpack.c.l.b16 %v6426
    %v6746 = vunpack.c.h.b16 %v6426
    %v6747 = vunpack.c.l.b16 %v6427
    %v6748 = vunpack.c.h.b16 %v6427
    %v6749 = vunpack.c.l.b16 %v6428
    %v6750 = vunpack.c.h.b16 %v6428
    %v6751 = vunpack.c.l.b16 %v6429
    %v6752 = vunpack.c.h.b16 %v6429
    %v6753 = vunpack.c.l.b16 %v6430
    %v6754 = vunpack.c.h.b16 %v6430
    %v6755 = vunpack.c.l.b16 %v6431
    %v6756 = vunpack.c.h.b16 %v6431
    %v6757 = vunpack.c.l.b16 %v6432
    %v6758 = vunpack.c.h.b16 %v6432
    %v6759 = vunpack.c.l.b16 %v6433
    %v6760 = vunpack.c.h.b16 %v6433
    %v6761 = vunpack.c.l.b16 %v6434
    %v6762 = vunpack.c.h.b16 %v6434
    %v6763 = vunpack.c.l.b16 %v6435
    %v6764 = vunpack.c.h.b16 %v6435
    %v6765 = vunpack.c.l.b16 %v6436
    %v6766 = vunpack.c.h.b16 %v6436
    %v6767 = vunpack.c.l.b16 %v6437
    %v6768 = vunpack.c.h.b16 %v6437
    %v6769 = vunpack.c.l.b16 %v6438
    %v6770 = vunpack.c.h.b16 %v6438
    %v6771 = vunpack.c.l.b16 %v6439
    %v6772 = vunpack.c.h.b16 %v6439
    %v6773 = vunpack.c.l.b16 %v6440
    %v6774 = vunpack.c.h.b16 %v6440
    %v6775 = vunpack.c.l.b16 %v6441
    %v6776 = vunpack.c.h.b16 %v6441
    %v6777 = vunpack.c.l.b16 %v6442
    %v6778 = vunpack.c.h.b16 %v6442
    %v6779 = vunpack.c.l.b16 %v6443
    %v6780 = vunpack.c.h.b16 %v6443
    %v6781 = vunpack.c.l.b16 %v6444
    %v6782 = vunpack.c.h.b16 %v6444
    %v6783 = vunpack.c.l.b16 %v6445
    %v6784 = vunpack.c.h.b16 %v6445
    %v6785 = vunpack.c.l.b16 %v6446
    %v6786 = vunpack.c.h.b16 %v6446
    %v6787 = vunpack.c.l.b16 %v6447
    %v6788 = vunpack.c.h.b16 %v6447
    %v6789 = vunpack.c.l.b16 %v6448
    %v6790 = vunpack.c.h.b16 %v6448
    %v6791 = vunpack.c.l.b16 %v6449
    %v6792 = vunpack.c.h.b16 %v6449
    %v6793 = vunpack.c.l.b16 %v6450
    %v6794 = vunpack.c.h.b16 %v6450
    %v6795 = vunpack.c.l.b16 %v6451
    %v6796 = vunpack.c.h.b16 %v6451
    %v6797 = vunpack.c.l.b16 %v6452
    %v6798 = vunpack.c.h.b16 %v6452
    %v6799 = vunpack.c.l.b16 %v6453
    %v6800 = vunpack.c.h.b16 %v6453
    %v6801 = vunpack.c.l.b16 %v6454
    %v6802 = vunpack.c.h.b16 %v6454
    %v6803 = vunpack.c.l.b16 %v6455
    %v6804 = vunpack.c.h.b16 %v6455
    %v6805 = vunpack.c.l.b16 %v6456
    %v6806 = vunpack.c.h.b16 %v6456
    %v6807 = vunpack.c.l.b16 %v6457
    %v6808 = vunpack.c.h.b16 %v6457
    %v6809 = vunpack.c.l.b16 %v6458
    %v6810 = vunpack.c.h.b16 %v6458
    %v6811 = vunpack.c.l.b16 %v6459
    %v6812 = vunpack.c.h.b16 %v6459
    %v6813 = vunpack.c.l.b16 %v6460
    %v6814 = vunpack.c.h.b16 %v6460
    %v6815 = vunpack.c.l.b16 %v6461
    %v6816 = vunpack.c.h.b16 %v6461
    %v6817 = vunpack.c.l.b16 %v6462
    %v6818 = vunpack.c.h.b16 %v6462
    %v6819 = vunpack.c.l.b16 %v6463
    %v6820 = vunpack.c.h.b16 %v6463
    %v6821 = vunpack.c.l.b16 %v6464
    %v6822 = vunpack.c.h.b16 %v6464
    %v6823 = vunpack.c.l.b16 %v6465
    %v6824 = vunpack.c.h.b16 %v6465
    %v6825 = vunpack.c.l.b16 %v6466
    %v6826 = vunpack.c.h.b16 %v6466
    %v6827 = vunpack.c.l.b16 %v6467
    %v6828 = vunpack.c.h.b16 %v6467
    %v6829 = vunpack.c.l.b16 %v6468
    %v6830 = vunpack.c.h.b16 %v6468
    %v6831 = vunpack.c.l.b16 %v6469
    %v6832 = vunpack.c.h.b16 %v6469
    %v6833 = vunpack.c.l.b16 %v6470
    %v6834 = vunpack.c.h.b16 %v6470
    %v6835 = vunpack.c.l.b16 %v6471
    %v6836 = vunpack.c.h.b16 %v6471
    %v6837 = vunpack.c.l.b16 %v6472
    %v6838 = vunpack.c.h.b16 %v6472
    %v6839 = vunpack.c.l.b16 %v6473
    %v6840 = vunpack.c.h.b16 %v6473
    %v6841 = vunpack.c.l.b16 %v6474
    %v6842 = vunpack.c.h.b16 %v6474
    %v6843 = vunpack.c.l.b16 %v6475
    %v6844 = vunpack.c.h.b16 %v6475
    %v6845 = vunpack.c.l.b16 %v6476
    %v6846 = vunpack.c.h.b16 %v6476
    %v6847 = vunpack.c.l.b16 %v6477
    %v6848 = vunpack.c.h.b16 %v6477
    %v6849 = vunpack.c.l.b16 %v6478
    %v6850 = vunpack.c.h.b16 %v6478
    %v6851 = vunpack.c.l.b16 %v6479
    %v6852 = vunpack.c.h.b16 %v6479
    %v6853 = vunpack.c.l.b16 %v6480
    %v6854 = vunpack.c.h.b16 %v6480
    %v6855 = vunpack.c.l.b16 %v6481
    %v6856 = vunpack.c.h.b16 %v6481
    %v6857 = vunpack.c.l.b16 %v6482
    %v6858 = vunpack.c.h.b16 %v6482
    %v6859 = vunpack.c.l.b16 %v6483
    %v6860 = vunpack.c.h.b16 %v6483
    %v6861 = vunpack.c.l.b16 %v6484
    %v6862 = vunpack.c.h.b16 %v6484
    %v6863 = vunpack.c.l.b16 %v6485
    %v6864 = vunpack.c.h.b16 %v6485
    %v6865 = vunpack.c.l.b16 %v6486
    %v6866 = vunpack.c.h.b16 %v6486
    %v6867 = vunpack.c.l.b16 %v6487
    %v6868 = vunpack.c.h.b16 %v6487
    %v6869 = vunpack.c.l.b16 %v6488
    %v6870 = vunpack.c.h.b16 %v6488
    %v6871 = vunpack.c.l.b16 %v6489
    %v6872 = vunpack.c.h.b16 %v6489
    %v6873 = vunpack.c.l.b16 %v6490
    %v6874 = vunpack.c.h.b16 %v6490
    %v6875 = vpack.c.b16 %v6627, %v6619
    %v6876 = vpack.c.b16 %v6628, %v6620
    %v6877 = vpack.c.b16 %v6629, %v6621
    %v6878 = vpack.c.b16 %v6630, %v6622
    %v6879 = vpack.c.b16 %v6631, %v6623
    %v6880 = vpack.c.b16 %v6632, %v6624
    %v6881 = vpack.c.b16 %v6633, %v6625
    %v6882 = vpack.c.b16 %v6634, %v6626
    %v6883 = vpack.c.b16 %v6643, %v6635
    %v6884 = vpack.c.b16 %v6644, %v6636
    %v6885 = vpack.c.b16 %v6645, %v6637
    %v6886 = vpack.c.b16 %v6646, %v6638
    %v6887 = vpack.c.b16 %v6647, %v6639
    %v6888 = vpack.c.b16 %v6648, %v6640
    %v6889 = vpack.c.b16 %v6649, %v6641
    %v6890 = vpack.c.b16 %v6650, %v6642
    %v6891 = vpack.c.b16 %v6659, %v6651
    %v6892 = vpack.c.b16 %v6660, %v6652
    %v6893 = vpack.c.b16 %v6661, %v6653
    %v6894 = vpack.c.b16 %v6662, %v6654
    %v6895 = vpack.c.b16 %v6663, %v6655
    %v6896 = vpack.c.b16 %v6664, %v6656
    %v6897 = vpack.c.b16 %v6665, %v6657
    %v6898 = vpack.c.b16 %v6666, %v6658
    %v6899 = vpack.c.b16 %v6675, %v6667
    %v6900 = vpack.c.b16 %v6676, %v6668
    %v6901 = vpack.c.b16 %v6677, %v6669
    %v6902 = vpack.c.b16 %v6678, %v6670
    %v6903 = vpack.c.b16 %v6679, %v6671
    %v6904 = vpack.c.b16 %v6680, %v6672
    %v6905 = vpack.c.b16 %v6681, %v6673
    %v6906 = vpack.c.b16 %v6682, %v6674
    %v6907 = vpack.c.b16 %v6691, %v6683
    %v6908 = vpack.c.b16 %v6692, %v6684
    %v6909 = vpack.c.b16 %v6693, %v6685
    %v6910 = vpack.c.b16 %v6694, %v6686
    %v6911 = vpack.c.b16 %v6695, %v6687
    %v6912 = vpack.c.b16 %v6696, %v6688
    %v6913 = vpack.c.b16 %v6697, %v6689
    %v6914 = vpack.c.b16 %v6698, %v6690
    %v6915 = vpack.c.b16 %v6707, %v6699
    %v6916 = vpack.c.b16 %v6708, %v6700
    %v6917 = vpack.c.b16 %v6709, %v6701
    %v6918 = vpack.c.b16 %v6710, %v6702
    %v6919 = vpack.c.b16 %v6711, %v6703
    %v6920 = vpack.c.b16 %v6712, %v6704
    %v6921 = vpack.c.b16 %v6713, %v6705
    %v6922 = vpack.c.b16 %v6714, %v6706
    %v6923 = vpack.c.b16 %v6723, %v6715
    %v6924 = vpack.c.b16 %v6724, %v6716
    %v6925 = vpack.c.b16 %v6725, %v6717
    %v6926 = vpack.c.b16 %v6726, %v6718
    %v6927 = vpack.c.b16 %v6727, %v6719
    %v6928 = vpack.c.b16 %v6728, %v6720
    %v6929 = vpack.c.b16 %v6729, %v6721
    %v6930 = vpack.c.b16 %v6730, %v6722
    %v6931 = vpack.c.b16 %v6739, %v6731
    %v6932 = vpack.c.b16 %v6740, %v6732
    %v6933 = vpack.c.b16 %v6741, %v6733
    %v6934 = vpack.c.b16 %v6742, %v6734
    %v6935 = vpack.c.b16 %v6743, %v6735
    %v6936 = vpack.c.b16 %v6744, %v6736
    %v6937 = vpack.c.b16 %v6745, %v6737
    %v6938 = vpack.c.b16 %v6746, %v6738
    %v6939 = vpack.c.b16 %v6755, %v6747
    %v6940 = vpack.c.b16 %v6756, %v6748
    %v6941 = vpack.c.b16 %v6757, %v6749
    %v6942 = vpack.c.b16 %v6758, %v6750
    %v6943 = vpack.c.b16 %v6759, %v6751
    %v6944 = vpack.c.b16 %v6760, %v6752
    %v6945 = vpack.c.b16 %v6761, %v6753
    %v6946 = vpack.c.b16 %v6762, %v6754
    %v6947 = vpack.c.b16 %v6771, %v6763
    %v6948 = vpack.c.b16 %v6772, %v6764
    %v6949 = vpack.c.b16 %v6773, %v6765
    %v6950 = vpack.c.b16 %v6774, %v6766
    %v6951 = vpack.c.b16 %v6775, %v6767
    %v6952 = vpack.c.b16 %v6776, %v6768
    %v6953 = vpack.c.b16 %v6777, %v6769
    %v6954 = vpack.c.b16 %v6778, %v6770
    %v6955 = vpack.c.b16 %v6787, %v6779
    %v6956 = vpack.c.b16 %v6788, %v6780
    %v6957 = vpack.c.b16 %v6789, %v6781
    %v6958 = vpack.c.b16 %v6790, %v6782
    %v6959 = vpack.c.b16 %v6791, %v6783
    %v6960 = vpack.c.b16 %v6792, %v6784
    %v6961 = vpack.c.b16 %v6793, %v6785
    %v6962 = vpack.c.b16 %v6794, %v6786
    %v6963 = vpack.c.b16 %v6803, %v6795
    %v6964 = vpack.c.b16 %v6804, %v6796
    %v6965 = vpack.c.b16 %v6805, %v6797
    %v6966 = vpack.c.b16 %v6806, %v6798
    %v6967 = vpack.c.b16 %v6807, %v6799
    %v6968 = vpack.c.b16 %v6808, %v6800
    %v6969 = vpack.c.b16 %v6809, %v6801
    %v6970 = vpack.c.b16 %v6810, %v6802
    %v6971 = vpack.c.b16 %v6819, %v6811
    %v6972 = vpack.c.b16 %v6820, %v6812
    %v6973 = vpack.c.b16 %v6821, %v6813
    %v6974 = vpack.c.b16 %v6822, %v6814
    %v6975 = vpack.c.b16 %v6823, %v6815
    %v6976 = vpack.c.b16 %v6824, %v6816
    %v6977 = vpack.c.b16 %v6825, %v6817
    %v6978 = vpack.c.b16 %v6826, %v6818
    %v6979 = vpack.c.b16 %v6835, %v6827
    %v6980 = vpack.c.b16 %v6836, %v6828
    %v6981 = vpack.c.b16 %v6837, %v6829
    %v6982 = vpack.c.b16 %v6838, %v6830
    %v6983 = vpack.c.b16 %v6839, %v6831
    %v6984 = vpack.c.b16 %v6840, %v6832
    %v6985 = vpack.c.b16 %v6841, %v6833
    %v6986 = vpack.c.b16 %v6842, %v6834
    %v6987 = vpack.c.b16 %v6851, %v6843
    %v6988 = vpack.c.b16 %v6852, %v6844
    %v6989 = vpack.c.b16 %v6853, %v6845
    %v6990 = vpack.c.b16 %v6854, %v6846
    %v6991 = vpack.c.b16 %v6855, %v6847
    %v6992 = vpack.c.b16 %v6856, %v6848
    %v6993 = vpack.c.b16 %v6857, %v6849
    %v6994 = vpack.c.b16 %v6858, %v6850
    %v6995 = vpack.c.b16 %v6867, %v6859
    %v6996 = vpack.c.b16 %v6868, %v6860
    %v6997 = vpack.c.b16 %v6869, %v6861
    %v6998 = vpack.c.b16 %v6870, %v6862
    %v6999 = vpack.c.b16 %v6871, %v6863
    %v7000 = vpack.c.b16 %v6872, %v6864
    %v7001 = vpack.c.b16 %v6873, %v6865
    %v7002 = vpack.c.b16 %v6874, %v6866
    %7131 = vmatprep.subr.bf16.mxu0 %v6876
    %7132 = vmatpush1.bf16.msra.mxu0 %v6875
    %7133 = vmatprep.subr.bf16.mxu0 %v6884
    %7134 = vmatpush1.bf16.msra.mxu0 %v6883
    %7135 = vmatprep.subr.bf16.mxu0 %v6892
    %7136 = vmatpush1.bf16.msra.mxu0 %v6891
    %7137 = vmatprep.subr.bf16.mxu0 %v6900
    %7138 = vmatpush1.bf16.msra.mxu0 %v6899
    %7139 = vmatprep.subr.bf16.mxu0 %v6908
    %7140 = vmatpush1.bf16.msra.mxu0 %v6907
    %7141 = vmatprep.subr.bf16.mxu0 %v6916
    %7142 = vmatpush1.bf16.msra.mxu0 %v6915
    %7143 = vmatprep.subr.bf16.mxu0 %v6924
    %7144 = vmatpush1.bf16.msra.mxu0 %v6923
    %7145 = vmatprep.subr.bf16.mxu0 %v6932
    %7146 = vmatpush1.bf16.msra.mxu0 %v6931
    %7147 = vmatprep.subr.bf16.mxu0 %v6940
    %7148 = vmatpush1.bf16.msra.mxu0 %v6939
    %7149 = vmatprep.subr.bf16.mxu0 %v6948
    %7150 = vmatpush1.bf16.msra.mxu0 %v6947
    %7151 = vmatprep.subr.bf16.mxu0 %v6956
    %7152 = vmatpush1.bf16.msra.mxu0 %v6955
    %7153 = vmatprep.subr.bf16.mxu0 %v6964
    %7154 = vmatpush1.bf16.msra.mxu0 %v6963
    %7155 = vmatprep.subr.bf16.mxu0 %v6972
    %7156 = vmatpush1.bf16.msra.mxu0 %v6971
    %7157 = vmatprep.subr.bf16.mxu0 %v6980
    %7158 = vmatpush1.bf16.msra.mxu0 %v6979
    %7159 = vmatprep.subr.bf16.mxu0 %v6988
    %7160 = vmatpush1.bf16.msra.mxu0 %v6987
    %7161 = vmatprep.subr.bf16.mxu0 %v6996
    %7162 = vmatpush1.bf16.msra.mxu0 %v6995
    %7163 = vmatprep.mubr.bf16.mxu0 %v6360
    %7164 = vmatmul.mubr.bf16.gmra.mrb[0].mxu0 %v6359
    %v7165 = vpop.f32.mrb[0].mxu0
    %v7166 = vadd.f32 0.0, %v7165
    %v7167 = vpop.f32.mrb[0].mxu0
    %v7168 = vadd.f32 0.0, %v7167
    %v7169 = vpop.f32.mrb[0].mxu0
    %v7170 = vadd.f32 0.0, %v7169
    %v7171 = vpop.f32.mrb[0].mxu0
    %v7172 = vadd.f32 0.0, %v7171
    %7173 = vdwg.mxu0
    %7174 = vmatprep.subr.bf16.mxu0 %v6878
    %7175 = vmatpush1.bf16.msra.mxu0 %v6877
    %7176 = vmatprep.subr.bf16.mxu0 %v6886
    %7177 = vmatpush1.bf16.msra.mxu0 %v6885
    %7178 = vmatprep.subr.bf16.mxu0 %v6894
    %7179 = vmatpush1.bf16.msra.mxu0 %v6893
    %7180 = vmatprep.subr.bf16.mxu0 %v6902
    %7181 = vmatpush1.bf16.msra.mxu0 %v6901
    %7182 = vmatprep.subr.bf16.mxu0 %v6910
    %7183 = vmatpush1.bf16.msra.mxu0 %v6909
    %7184 = vmatprep.subr.bf16.mxu0 %v6918
    %7185 = vmatpush1.bf16.msra.mxu0 %v6917
    %7186 = vmatprep.subr.bf16.mxu0 %v6926
    %7187 = vmatpush1.bf16.msra.mxu0 %v6925
    %7188 = vmatprep.subr.bf16.mxu0 %v6934
    %7189 = vmatpush1.bf16.msra.mxu0 %v6933
    %7190 = vmatprep.subr.bf16.mxu0 %v6942
    %7191 = vmatpush1.bf16.msra.mxu0 %v6941
    %7192 = vmatprep.subr.bf16.mxu0 %v6950
    %7193 = vmatpush1.bf16.msra.mxu0 %v6949
    %7194 = vmatprep.subr.bf16.mxu0 %v6958
    %7195 = vmatpush1.bf16.msra.mxu0 %v6957
    %7196 = vmatprep.subr.bf16.mxu0 %v6966
    %7197 = vmatpush1.bf16.msra.mxu0 %v6965
    %7198 = vmatprep.subr.bf16.mxu0 %v6974
    %7199 = vmatpush1.bf16.msra.mxu0 %v6973
    %7200 = vmatprep.subr.bf16.mxu0 %v6982
    %7201 = vmatpush1.bf16.msra.mxu0 %v6981
    %7202 = vmatprep.subr.bf16.mxu0 %v6990
    %7203 = vmatpush1.bf16.msra.mxu0 %v6989
    %7204 = vmatprep.subr.bf16.mxu0 %v6998
    %7205 = vmatpush1.bf16.msra.mxu0 %v6997
    %7206 = vmatprep.mubr.bf16.mxu0 %v6360
    %7207 = vmatmul.mubr.bf16.gmra.mrb[0].mxu0 %v6359
    %v7208 = vpop.f32.mrb[0].mxu0
    %v7209 = vadd.f32 0.0, %v7208
    %v7210 = vpop.f32.mrb[0].mxu0
    %v7211 = vadd.f32 0.0, %v7210
    %v7212 = vpop.f32.mrb[0].mxu0
    %v7213 = vadd.f32 0.0, %v7212
    %v7214 = vpop.f32.mrb[0].mxu0
    %v7215 = vadd.f32 0.0, %v7214
    %7216 = vdwg.mxu0
    %7217 = vmatprep.subr.bf16.mxu0 %v6880
    %7218 = vmatpush1.bf16.msra.mxu0 %v6879
    %7219 = vmatprep.subr.bf16.mxu0 %v6888
    %7220 = vmatpush1.bf16.msra.mxu0 %v6887
    %7221 = vmatprep.subr.bf16.mxu0 %v6896
    %7222 = vmatpush1.bf16.msra.mxu0 %v6895
    %7223 = vmatprep.subr.bf16.mxu0 %v6904
    %7224 = vmatpush1.bf16.msra.mxu0 %v6903
    %7225 = vmatprep.subr.bf16.mxu0 %v6912
    %7226 = vmatpush1.bf16.msra.mxu0 %v6911
    %7227 = vmatprep.subr.bf16.mxu0 %v6920
    %7228 = vmatpush1.bf16.msra.mxu0 %v6919
    %7229 = vmatprep.subr.bf16.mxu0 %v6928
    %7230 = vmatpush1.bf16.msra.mxu0 %v6927
    %7231 = vmatprep.subr.bf16.mxu0 %v6936
    %7232 = vmatpush1.bf16.msra.mxu0 %v6935
    %7233 = vmatprep.subr.bf16.mxu0 %v6944
    %7234 = vmatpush1.bf16.msra.mxu0 %v6943
    %7235 = vmatprep.subr.bf16.mxu0 %v6952
    %7236 = vmatpush1.bf16.msra.mxu0 %v6951
    %7237 = vmatprep.subr.bf16.mxu0 %v6960
    %7238 = vmatpush1.bf16.msra.mxu0 %v6959
    %7239 = vmatprep.subr.bf16.mxu0 %v6968
    %7240 = vmatpush1.bf16.msra.mxu0 %v6967
    %7241 = vmatprep.subr.bf16.mxu0 %v6976
    %7242 = vmatpush1.bf16.msra.mxu0 %v6975
    %7243 = vmatprep.subr.bf16.mxu0 %v6984
    %7244 = vmatpush1.bf16.msra.mxu0 %v6983
    %7245 = vmatprep.subr.bf16.mxu0 %v6992
    %7246 = vmatpush1.bf16.msra.mxu0 %v6991
    %7247 = vmatprep.subr.bf16.mxu0 %v7000
    %7248 = vmatpush1.bf16.msra.mxu0 %v6999
    %7249 = vmatprep.mubr.bf16.mxu0 %v6360
    %7250 = vmatmul.mubr.bf16.gmra.mrb[0].mxu0 %v6359
    %v7251 = vpop.f32.mrb[0].mxu0
    %v7252 = vadd.f32 0.0, %v7251
    %v7253 = vpop.f32.mrb[0].mxu0
    %v7254 = vadd.f32 0.0, %v7253
    %v7255 = vpop.f32.mrb[0].mxu0
    %v7256 = vadd.f32 0.0, %v7255
    %v7257 = vpop.f32.mrb[0].mxu0
    %v7258 = vadd.f32 0.0, %v7257
    %7259 = vdwg.mxu0
    %7260 = vmatprep.subr.bf16.mxu0 %v6882
    %7261 = vmatpush1.bf16.msra.mxu0 %v6881
    %7262 = vmatprep.subr.bf16.mxu0 %v6890
    %7263 = vmatpush1.bf16.msra.mxu0 %v6889
    %7264 = vmatprep.subr.bf16.mxu0 %v6898
    %7265 = vmatpush1.bf16.msra.mxu0 %v6897
    %7266 = vmatprep.subr.bf16.mxu0 %v6906
    %7267 = vmatpush1.bf16.msra.mxu0 %v6905
    %7268 = vmatprep.subr.bf16.mxu0 %v6914
    %7269 = vmatpush1.bf16.msra.mxu0 %v6913
    %7270 = vmatprep.subr.bf16.mxu0 %v6922
    %7271 = vmatpush1.bf16.msra.mxu0 %v6921
    %7272 = vmatprep.subr.bf16.mxu0 %v6930
    %7273 = vmatpush1.bf16.msra.mxu0 %v6929
    %7274 = vmatprep.subr.bf16.mxu0 %v6938
    %7275 = vmatpush1.bf16.msra.mxu0 %v6937
    %7276 = vmatprep.subr.bf16.mxu0 %v6946
    %7277 = vmatpush1.bf16.msra.mxu0 %v6945
    %7278 = vmatprep.subr.bf16.mxu0 %v6954
    %7279 = vmatpush1.bf16.msra.mxu0 %v6953
    %7280 = vmatprep.subr.bf16.mxu0 %v6962
    %7281 = vmatpush1.bf16.msra.mxu0 %v6961
    %7282 = vmatprep.subr.bf16.mxu0 %v6970
    %7283 = vmatpush1.bf16.msra.mxu0 %v6969
    %7284 = vmatprep.subr.bf16.mxu0 %v6978
    %7285 = vmatpush1.bf16.msra.mxu0 %v6977
    %7286 = vmatprep.subr.bf16.mxu0 %v6986
    %7287 = vmatpush1.bf16.msra.mxu0 %v6985
    %7288 = vmatprep.subr.bf16.mxu0 %v6994
    %7289 = vmatpush1.bf16.msra.mxu0 %v6993
    %7290 = vmatprep.subr.bf16.mxu0 %v7002
    %7291 = vmatpush1.bf16.msra.mxu0 %v7001
    %7292 = vmatprep.mubr.bf16.mxu0 %v6360
    %7293 = vmatmul.mubr.bf16.gmra.mrb[0].mxu0 %v6359
    %v7294 = vpop.f32.mrb[0].mxu0
    %v7295 = vadd.f32 0.0, %v7294
    %v7296 = vpop.f32.mrb[0].mxu0
    %v7297 = vadd.f32 0.0, %v7296
    %v7298 = vpop.f32.mrb[0].mxu0
    %v7299 = vadd.f32 0.0, %v7298
    %v7300 = vpop.f32.mrb[0].mxu0
    %v7301 = vadd.f32 0.0, %v7300
    %7302 = vdwg.mxu0
    %v7303 = vld [vmem:[#allocation2 + $0x280] sm:$0xff]
    %v7304 = vld [vmem:[#allocation2 + $0x288] sm:$0xff]
    %v7305 = vld [vmem:[#allocation2 + $0x290] sm:$0xff]
    %v7306 = vld [vmem:[#allocation2 + $0x298] sm:$0xff]
    %v7307 = vld [vmem:[#allocation2 + $0x2c0] sm:$0xff]
    %v7308 = vld [vmem:[#allocation2 + $0x2c8] sm:$0xff]
    %v7309 = vld [vmem:[#allocation2 + $0x2d0] sm:$0xff]
    %v7310 = vld [vmem:[#allocation2 + $0x2d8] sm:$0xff]
    %v7311 = vadd.f32 %v7303, %v7166
    %v7312 = vadd.f32 %v7304, %v7168
    %v7313 = vadd.f32 %v7305, %v7209
    %v7314 = vadd.f32 %v7306, %v7211
    %v7315 = vadd.f32 %v7307, %v7170
    %v7316 = vadd.f32 %v7308, %v7172
    %v7317 = vadd.f32 %v7309, %v7213
    %v7318 = vadd.f32 %v7310, %v7215
    %v7319 = vld [vmem:[#allocation2 + $0x120] sm:$0xff]
    %v7320 = vld [vmem:[#allocation2 + $0x128] sm:$0xff]
    %v7321 = vld [vmem:[#allocation2 + $0x130] sm:$0xff]
    %v7322 = vld [vmem:[#allocation2 + $0x138] sm:$0xff]
    %v7323 = vld [vmem:[#allocation2 + $0x160] sm:$0xff]
    %v7324 = vld [vmem:[#allocation2 + $0x168] sm:$0xff]
    %v7325 = vld [vmem:[#allocation2 + $0x170] sm:$0xff]
    %v7326 = vld [vmem:[#allocation2 + $0x178] sm:$0xff]
    %v7327 = vadd.f32 %v7319, %v7252
    %v7328 = vadd.f32 %v7320, %v7254
    %v7329 = vadd.f32 %v7321, %v7295
    %v7330 = vadd.f32 %v7322, %v7297
    %v7331 = vadd.f32 %v7323, %v7256
    %v7332 = vadd.f32 %v7324, %v7258
    %v7333 = vadd.f32 %v7325, %v7299
    %v7334 = vadd.f32 %v7326, %v7301
    %v7335 = vmul.f32 %v7311, 0.5
    %v7336 = vmul.f32 %v7315, 0.5
    %v7337 = vtanh.pop %v7335
    %v7338 = vtanh.pop %v7336
    %v7339 = vmul.f32 %v7337, 0.5
    %v7340 = vmul.f32 %v7338, 0.5
    %v7341 = vadd.f32 %v7339, 0.5
    %v7342 = vadd.f32 %v7340, 0.5
    %v7343 = vmul.f32 %v7312, 0.5
    %v7344 = vmul.f32 %v7316, 0.5
    %v7345 = vtanh.pop %v7343
    %v7346 = vtanh.pop %v7344
    %v7347 = vmul.f32 %v7345, 0.5
    %v7348 = vmul.f32 %v7346, 0.5
    %v7349 = vadd.f32 %v7347, 0.5
    %v7350 = vadd.f32 %v7348, 0.5
    %v7351 = vtanh.pop %v7313
    %v7352 = vtanh.pop %v7317
    %v7353 = vmul.f32 %v7314, 0.5
    %v7354 = vmul.f32 %v7318, 0.5
    %v7355 = vtanh.pop %v7353
    %v7356 = vtanh.pop %v7354
    %v7357 = vmul.f32 %v7355, 0.5
    %v7358 = vmul.f32 %v7356, 0.5
    %v7359 = vadd.f32 %v7357, 0.5
    %v7360 = vadd.f32 %v7358, 0.5
    %v7361 = vmul.f32 %v7349, %v6317
    %v7362 = vmul.f32 %v7350, %v6318
    %v7363 = vmul.f32 %v7341, %v7351
    %v7364 = vmul.f32 %v7342, %v7352
    %v7365 = vadd.f32 %v7361, %v7363
    %v7366 = vadd.f32 %v7362, %v7364
    %v7367 = vtanh.pop %v7365
    %v7368 = vtanh.pop %v7366
    %v7369 = vmul.f32 %v7359, %v7367
    %v7370 = vmul.f32 %v7360, %v7368
    %v7371 = vmul.f32 %v7327, 0.5
    %v7372 = vmul.f32 %v7331, 0.5
    %v7373 = vtanh.pop %v7371
    %v7374 = vtanh.pop %v7372
    %v7375 = vmul.f32 %v7373, 0.5
    %v7376 = vmul.f32 %v7374, 0.5
    %v7377 = vadd.f32 %v7375, 0.5
    %v7378 = vadd.f32 %v7376, 0.5
    %v7379 = vmul.f32 %v7328, 0.5
    %v7380 = vmul.f32 %v7332, 0.5
    %v7381 = vtanh.pop %v7379
    %v7382 = vtanh.pop %v7380
    %v7383 = vmul.f32 %v7381, 0.5
    %v7384 = vmul.f32 %v7382, 0.5
    %v7385 = vadd.f32 %v7383, 0.5
    %v7386 = vadd.f32 %v7384, 0.5
    %v7387 = vtanh.pop %v7329
    %v7388 = vtanh.pop %v7333
    %v7389 = vmul.f32 %v7330, 0.5
    %v7390 = vmul.f32 %v7334, 0.5
    %v7391 = vtanh.pop %v7389
    %v7392 = vtanh.pop %v7390
    %v7393 = vmul.f32 %v7391, 0.5
    %v7394 = vmul.f32 %v7392, 0.5
    %v7395 = vadd.f32 %v7393, 0.5
    %v7396 = vadd.f32 %v7394, 0.5
    %v7397 = vmul.f32 %v7385, %v6353
    %v7398 = vmul.f32 %v7386, %v6354
    %v7399 = vmul.f32 %v7377, %v7387
    %v7400 = vmul.f32 %v7378, %v7388
    %v7401 = vadd.f32 %v7397, %v7399
    %v7402 = vadd.f32 %v7398, %v7400
    %v7403 = vtanh.pop %v7401
    %v7404 = vtanh.pop %v7402
    %v7405 = vmul.f32 %v7395, %v7403
    %v7406 = vmul.f32 %v7396, %v7404
    %v7407 = vpack.c.bf16 %v7370, %v7369
    %v7408 = vpack.c.bf16 %v7406, %v7405
    %7409 = vst [vmem:[#allocation3 + $0x50] sm:$0xff] %v7407
    %7410 = vst [vmem:[#allocation3 + $0x28] sm:$0xff] %v7408
    %v7411 = vld [vmem:[#allocation7] sm:$0xff]
    %v7412 = vld [vmem:[#allocation7 + $0x8] sm:$0xff]
    %v7413 = vld [vmem:[#allocation7 + $0x10] sm:$0xff]
    %v7414 = vld [vmem:[#allocation7 + $0x18] sm:$0xff]
    %v7415 = vld [vmem:[#allocation7 + $0x20] sm:$0xff]
    %v7416 = vld [vmem:[#allocation7 + $0x28] sm:$0xff]
    %v7417 = vld [vmem:[#allocation7 + $0x30] sm:$0xff]
    %v7418 = vld [vmem:[#allocation7 + $0x38] sm:$0xff]
    %v7419 = vld [vmem:[#allocation7 + $0x40] sm:$0xff]
    %v7420 = vld [vmem:[#allocation7 + $0x48] sm:$0xff]
    %v7421 = vld [vmem:[#allocation7 + $0x50] sm:$0xff]
    %v7422 = vld [vmem:[#allocation7 + $0x58] sm:$0xff]
    %v7423 = vld [vmem:[#allocation7 + $0x60] sm:$0xff]
    %v7424 = vld [vmem:[#allocation7 + $0x68] sm:$0xff]
    %v7425 = vld [vmem:[#allocation7 + $0x70] sm:$0xff]
    %v7426 = vld [vmem:[#allocation7 + $0x78] sm:$0xff]
    %v7427 = vld [vmem:[#allocation7 + $0x80] sm:$0xff]
    %v7428 = vld [vmem:[#allocation7 + $0x88] sm:$0xff]
    %v7429 = vld [vmem:[#allocation7 + $0x90] sm:$0xff]
    %v7430 = vld [vmem:[#allocation7 + $0x98] sm:$0xff]
    %v7431 = vld [vmem:[#allocation7 + $0xa0] sm:$0xff]
    %v7432 = vld [vmem:[#allocation7 + $0xa8] sm:$0xff]
    %v7433 = vld [vmem:[#allocation7 + $0xb0] sm:$0xff]
    %v7434 = vld [vmem:[#allocation7 + $0xb8] sm:$0xff]
    %v7435 = vld [vmem:[#allocation7 + $0xc0] sm:$0xff]
    %v7436 = vld [vmem:[#allocation7 + $0xc8] sm:$0xff]
    %v7437 = vld [vmem:[#allocation7 + $0xd0] sm:$0xff]
    %v7438 = vld [vmem:[#allocation7 + $0xd8] sm:$0xff]
    %v7439 = vld [vmem:[#allocation7 + $0xe0] sm:$0xff]
    %v7440 = vld [vmem:[#allocation7 + $0xe8] sm:$0xff]
    %v7441 = vld [vmem:[#allocation7 + $0xf0] sm:$0xff]
    %v7442 = vld [vmem:[#allocation7 + $0xf8] sm:$0xff]
    %v7443 = vld [vmem:[#allocation7 + $0x100] sm:$0xff]
    %v7444 = vld [vmem:[#allocation7 + $0x108] sm:$0xff]
    %v7445 = vld [vmem:[#allocation7 + $0x110] sm:$0xff]
    %v7446 = vld [vmem:[#allocation7 + $0x118] sm:$0xff]
    %v7447 = vld [vmem:[#allocation7 + $0x120] sm:$0xff]
    %v7448 = vld [vmem:[#allocation7 + $0x128] sm:$0xff]
    %v7449 = vld [vmem:[#allocation7 + $0x130] sm:$0xff]
    %v7450 = vld [vmem:[#allocation7 + $0x138] sm:$0xff]
    %v7451 = vld [vmem:[#allocation7 + $0x140] sm:$0xff]
    %v7452 = vld [vmem:[#allocation7 + $0x148] sm:$0xff]
    %v7453 = vld [vmem:[#allocation7 + $0x150] sm:$0xff]
    %v7454 = vld [vmem:[#allocation7 + $0x158] sm:$0xff]
    %v7455 = vld [vmem:[#allocation7 + $0x160] sm:$0xff]
    %v7456 = vld [vmem:[#allocation7 + $0x168] sm:$0xff]
    %v7457 = vld [vmem:[#allocation7 + $0x170] sm:$0xff]
    %v7458 = vld [vmem:[#allocation7 + $0x178] sm:$0xff]
    %v7459 = vld [vmem:[#allocation7 + $0x180] sm:$0xff]
    %v7460 = vld [vmem:[#allocation7 + $0x188] sm:$0xff]
    %v7461 = vld [vmem:[#allocation7 + $0x190] sm:$0xff]
    %v7462 = vld [vmem:[#allocation7 + $0x198] sm:$0xff]
    %v7463 = vld [vmem:[#allocation7 + $0x1a0] sm:$0xff]
    %v7464 = vld [vmem:[#allocation7 + $0x1a8] sm:$0xff]
    %v7465 = vld [vmem:[#allocation7 + $0x1b0] sm:$0xff]
    %v7466 = vld [vmem:[#allocation7 + $0x1b8] sm:$0xff]
    %v7467 = vld [vmem:[#allocation7 + $0x1c0] sm:$0xff]
    %v7468 = vld [vmem:[#allocation7 + $0x1c8] sm:$0xff]
    %v7469 = vld [vmem:[#allocation7 + $0x1d0] sm:$0xff]
    %v7470 = vld [vmem:[#allocation7 + $0x1d8] sm:$0xff]
    %v7471 = vld [vmem:[#allocation7 + $0x1e0] sm:$0xff]
    %v7472 = vld [vmem:[#allocation7 + $0x1e8] sm:$0xff]
    %v7473 = vld [vmem:[#allocation7 + $0x1f0] sm:$0xff]
    %v7474 = vld [vmem:[#allocation7 + $0x1f8] sm:$0xff]
    %v7475 = vld [vmem:[#allocation7 + $0x200] sm:$0xff]
    %v7476 = vld [vmem:[#allocation7 + $0x208] sm:$0xff]
    %v7477 = vld [vmem:[#allocation7 + $0x210] sm:$0xff]
    %v7478 = vld [vmem:[#allocation7 + $0x218] sm:$0xff]
    %v7479 = vld [vmem:[#allocation7 + $0x220] sm:$0xff]
    %v7480 = vld [vmem:[#allocation7 + $0x228] sm:$0xff]
    %v7481 = vld [vmem:[#allocation7 + $0x230] sm:$0xff]
    %v7482 = vld [vmem:[#allocation7 + $0x238] sm:$0xff]
    %v7483 = vld [vmem:[#allocation7 + $0x240] sm:$0xff]
    %v7484 = vld [vmem:[#allocation7 + $0x248] sm:$0xff]
    %v7485 = vld [vmem:[#allocation7 + $0x250] sm:$0xff]
    %v7486 = vld [vmem:[#allocation7 + $0x258] sm:$0xff]
    %v7487 = vld [vmem:[#allocation7 + $0x260] sm:$0xff]
    %v7488 = vld [vmem:[#allocation7 + $0x268] sm:$0xff]
    %v7489 = vld [vmem:[#allocation7 + $0x270] sm:$0xff]
    %v7490 = vld [vmem:[#allocation7 + $0x278] sm:$0xff]
    %v7491 = vld [vmem:[#allocation7 + $0x280] sm:$0xff]
    %v7492 = vld [vmem:[#allocation7 + $0x288] sm:$0xff]
    %v7493 = vld [vmem:[#allocation7 + $0x290] sm:$0xff]
    %v7494 = vld [vmem:[#allocation7 + $0x298] sm:$0xff]
    %v7495 = vld [vmem:[#allocation7 + $0x2a0] sm:$0xff]
    %v7496 = vld [vmem:[#allocation7 + $0x2a8] sm:$0xff]
    %v7497 = vld [vmem:[#allocation7 + $0x2b0] sm:$0xff]
    %v7498 = vld [vmem:[#allocation7 + $0x2b8] sm:$0xff]
    %v7499 = vld [vmem:[#allocation7 + $0x2c0] sm:$0xff]
    %v7500 = vld [vmem:[#allocation7 + $0x2c8] sm:$0xff]
    %v7501 = vld [vmem:[#allocation7 + $0x2d0] sm:$0xff]
    %v7502 = vld [vmem:[#allocation7 + $0x2d8] sm:$0xff]
    %v7503 = vld [vmem:[#allocation7 + $0x2e0] sm:$0xff]
    %v7504 = vld [vmem:[#allocation7 + $0x2e8] sm:$0xff]
    %v7505 = vld [vmem:[#allocation7 + $0x2f0] sm:$0xff]
    %v7506 = vld [vmem:[#allocation7 + $0x2f8] sm:$0xff]
    %v7507 = vld [vmem:[#allocation7 + $0x300] sm:$0xff]
    %v7508 = vld [vmem:[#allocation7 + $0x308] sm:$0xff]
    %v7509 = vld [vmem:[#allocation7 + $0x310] sm:$0xff]
    %v7510 = vld [vmem:[#allocation7 + $0x318] sm:$0xff]
    %v7511 = vld [vmem:[#allocation7 + $0x320] sm:$0xff]
    %v7512 = vld [vmem:[#allocation7 + $0x328] sm:$0xff]
    %v7513 = vld [vmem:[#allocation7 + $0x330] sm:$0xff]
    %v7514 = vld [vmem:[#allocation7 + $0x338] sm:$0xff]
    %v7515 = vld [vmem:[#allocation7 + $0x340] sm:$0xff]
    %v7516 = vld [vmem:[#allocation7 + $0x348] sm:$0xff]
    %v7517 = vld [vmem:[#allocation7 + $0x350] sm:$0xff]
    %v7518 = vld [vmem:[#allocation7 + $0x358] sm:$0xff]
    %v7519 = vld [vmem:[#allocation7 + $0x360] sm:$0xff]
    %v7520 = vld [vmem:[#allocation7 + $0x368] sm:$0xff]
    %v7521 = vld [vmem:[#allocation7 + $0x370] sm:$0xff]
    %v7522 = vld [vmem:[#allocation7 + $0x378] sm:$0xff]
    %v7523 = vld [vmem:[#allocation7 + $0x380] sm:$0xff]
    %v7524 = vld [vmem:[#allocation7 + $0x388] sm:$0xff]
    %v7525 = vld [vmem:[#allocation7 + $0x390] sm:$0xff]
    %v7526 = vld [vmem:[#allocation7 + $0x398] sm:$0xff]
    %v7527 = vld [vmem:[#allocation7 + $0x3a0] sm:$0xff]
    %v7528 = vld [vmem:[#allocation7 + $0x3a8] sm:$0xff]
    %v7529 = vld [vmem:[#allocation7 + $0x3b0] sm:$0xff]
    %v7530 = vld [vmem:[#allocation7 + $0x3b8] sm:$0xff]
    %v7531 = vld [vmem:[#allocation7 + $0x3c0] sm:$0xff]
    %v7532 = vld [vmem:[#allocation7 + $0x3c8] sm:$0xff]
    %v7533 = vld [vmem:[#allocation7 + $0x3d0] sm:$0xff]
    %v7534 = vld [vmem:[#allocation7 + $0x3d8] sm:$0xff]
    %v7535 = vld [vmem:[#allocation7 + $0x3e0] sm:$0xff]
    %v7536 = vld [vmem:[#allocation7 + $0x3e8] sm:$0xff]
    %v7537 = vld [vmem:[#allocation7 + $0x3f0] sm:$0xff]
    %v7538 = vld [vmem:[#allocation7 + $0x3f8] sm:$0xff]
    %v7667 = vunpack.c.l.b16 %v7411
    %v7668 = vunpack.c.h.b16 %v7411
    %v7669 = vunpack.c.l.b16 %v7412
    %v7670 = vunpack.c.h.b16 %v7412
    %v7671 = vunpack.c.l.b16 %v7413
    %v7672 = vunpack.c.h.b16 %v7413
    %v7673 = vunpack.c.l.b16 %v7414
    %v7674 = vunpack.c.h.b16 %v7414
    %v7675 = vunpack.c.l.b16 %v7415
    %v7676 = vunpack.c.h.b16 %v7415
    %v7677 = vunpack.c.l.b16 %v7416
    %v7678 = vunpack.c.h.b16 %v7416
    %v7679 = vunpack.c.l.b16 %v7417
    %v7680 = vunpack.c.h.b16 %v7417
    %v7681 = vunpack.c.l.b16 %v7418
    %v7682 = vunpack.c.h.b16 %v7418
    %v7683 = vunpack.c.l.b16 %v7419
    %v7684 = vunpack.c.h.b16 %v7419
    %v7685 = vunpack.c.l.b16 %v7420
    %v7686 = vunpack.c.h.b16 %v7420
    %v7687 = vunpack.c.l.b16 %v7421
    %v7688 = vunpack.c.h.b16 %v7421
    %v7689 = vunpack.c.l.b16 %v7422
    %v7690 = vunpack.c.h.b16 %v7422
    %v7691 = vunpack.c.l.b16 %v7423
    %v7692 = vunpack.c.h.b16 %v7423
    %v7693 = vunpack.c.l.b16 %v7424
    %v7694 = vunpack.c.h.b16 %v7424
    %v7695 = vunpack.c.l.b16 %v7425
    %v7696 = vunpack.c.h.b16 %v7425
    %v7697 = vunpack.c.l.b16 %v7426
    %v7698 = vunpack.c.h.b16 %v7426
    %v7699 = vunpack.c.l.b16 %v7427
    %v7700 = vunpack.c.h.b16 %v7427
    %v7701 = vunpack.c.l.b16 %v7428
    %v7702 = vunpack.c.h.b16 %v7428
    %v7703 = vunpack.c.l.b16 %v7429
    %v7704 = vunpack.c.h.b16 %v7429
    %v7705 = vunpack.c.l.b16 %v7430
    %v7706 = vunpack.c.h.b16 %v7430
    %v7707 = vunpack.c.l.b16 %v7431
    %v7708 = vunpack.c.h.b16 %v7431
    %v7709 = vunpack.c.l.b16 %v7432
    %v7710 = vunpack.c.h.b16 %v7432
    %v7711 = vunpack.c.l.b16 %v7433
    %v7712 = vunpack.c.h.b16 %v7433
    %v7713 = vunpack.c.l.b16 %v7434
    %v7714 = vunpack.c.h.b16 %v7434
    %v7715 = vunpack.c.l.b16 %v7435
    %v7716 = vunpack.c.h.b16 %v7435
    %v7717 = vunpack.c.l.b16 %v7436
    %v7718 = vunpack.c.h.b16 %v7436
    %v7719 = vunpack.c.l.b16 %v7437
    %v7720 = vunpack.c.h.b16 %v7437
    %v7721 = vunpack.c.l.b16 %v7438
    %v7722 = vunpack.c.h.b16 %v7438
    %v7723 = vunpack.c.l.b16 %v7439
    %v7724 = vunpack.c.h.b16 %v7439
    %v7725 = vunpack.c.l.b16 %v7440
    %v7726 = vunpack.c.h.b16 %v7440
    %v7727 = vunpack.c.l.b16 %v7441
    %v7728 = vunpack.c.h.b16 %v7441
    %v7729 = vunpack.c.l.b16 %v7442
    %v7730 = vunpack.c.h.b16 %v7442
    %v7731 = vunpack.c.l.b16 %v7443
    %v7732 = vunpack.c.h.b16 %v7443
    %v7733 = vunpack.c.l.b16 %v7444
    %v7734 = vunpack.c.h.b16 %v7444
    %v7735 = vunpack.c.l.b16 %v7445
    %v7736 = vunpack.c.h.b16 %v7445
    %v7737 = vunpack.c.l.b16 %v7446
    %v7738 = vunpack.c.h.b16 %v7446
    %v7739 = vunpack.c.l.b16 %v7447
    %v7740 = vunpack.c.h.b16 %v7447
    %v7741 = vunpack.c.l.b16 %v7448
    %v7742 = vunpack.c.h.b16 %v7448
    %v7743 = vunpack.c.l.b16 %v7449
    %v7744 = vunpack.c.h.b16 %v7449
    %v7745 = vunpack.c.l.b16 %v7450
    %v7746 = vunpack.c.h.b16 %v7450
    %v7747 = vunpack.c.l.b16 %v7451
    %v7748 = vunpack.c.h.b16 %v7451
    %v7749 = vunpack.c.l.b16 %v7452
    %v7750 = vunpack.c.h.b16 %v7452
    %v7751 = vunpack.c.l.b16 %v7453
    %v7752 = vunpack.c.h.b16 %v7453
    %v7753 = vunpack.c.l.b16 %v7454
    %v7754 = vunpack.c.h.b16 %v7454
    %v7755 = vunpack.c.l.b16 %v7455
    %v7756 = vunpack.c.h.b16 %v7455
    %v7757 = vunpack.c.l.b16 %v7456
    %v7758 = vunpack.c.h.b16 %v7456
    %v7759 = vunpack.c.l.b16 %v7457
    %v7760 = vunpack.c.h.b16 %v7457
    %v7761 = vunpack.c.l.b16 %v7458
    %v7762 = vunpack.c.h.b16 %v7458
    %v7763 = vunpack.c.l.b16 %v7459
    %v7764 = vunpack.c.h.b16 %v7459
    %v7765 = vunpack.c.l.b16 %v7460
    %v7766 = vunpack.c.h.b16 %v7460
    %v7767 = vunpack.c.l.b16 %v7461
    %v7768 = vunpack.c.h.b16 %v7461
    %v7769 = vunpack.c.l.b16 %v7462
    %v7770 = vunpack.c.h.b16 %v7462
    %v7771 = vunpack.c.l.b16 %v7463
    %v7772 = vunpack.c.h.b16 %v7463
    %v7773 = vunpack.c.l.b16 %v7464
    %v7774 = vunpack.c.h.b16 %v7464
    %v7775 = vunpack.c.l.b16 %v7465
    %v7776 = vunpack.c.h.b16 %v7465
    %v7777 = vunpack.c.l.b16 %v7466
    %v7778 = vunpack.c.h.b16 %v7466
    %v7779 = vunpack.c.l.b16 %v7467
    %v7780 = vunpack.c.h.b16 %v7467
    %v7781 = vunpack.c.l.b16 %v7468
    %v7782 = vunpack.c.h.b16 %v7468
    %v7783 = vunpack.c.l.b16 %v7469
    %v7784 = vunpack.c.h.b16 %v7469
    %v7785 = vunpack.c.l.b16 %v7470
    %v7786 = vunpack.c.h.b16 %v7470
    %v7787 = vunpack.c.l.b16 %v7471
    %v7788 = vunpack.c.h.b16 %v7471
    %v7789 = vunpack.c.l.b16 %v7472
    %v7790 = vunpack.c.h.b16 %v7472
    %v7791 = vunpack.c.l.b16 %v7473
    %v7792 = vunpack.c.h.b16 %v7473
    %v7793 = vunpack.c.l.b16 %v7474
    %v7794 = vunpack.c.h.b16 %v7474
    %v7795 = vunpack.c.l.b16 %v7475
    %v7796 = vunpack.c.h.b16 %v7475
    %v7797 = vunpack.c.l.b16 %v7476
    %v7798 = vunpack.c.h.b16 %v7476
    %v7799 = vunpack.c.l.b16 %v7477
    %v7800 = vunpack.c.h.b16 %v7477
    %v7801 = vunpack.c.l.b16 %v7478
    %v7802 = vunpack.c.h.b16 %v7478
    %v7803 = vunpack.c.l.b16 %v7479
    %v7804 = vunpack.c.h.b16 %v7479
    %v7805 = vunpack.c.l.b16 %v7480
    %v7806 = vunpack.c.h.b16 %v7480
    %v7807 = vunpack.c.l.b16 %v7481
    %v7808 = vunpack.c.h.b16 %v7481
    %v7809 = vunpack.c.l.b16 %v7482
    %v7810 = vunpack.c.h.b16 %v7482
    %v7811 = vunpack.c.l.b16 %v7483
    %v7812 = vunpack.c.h.b16 %v7483
    %v7813 = vunpack.c.l.b16 %v7484
    %v7814 = vunpack.c.h.b16 %v7484
    %v7815 = vunpack.c.l.b16 %v7485
    %v7816 = vunpack.c.h.b16 %v7485
    %v7817 = vunpack.c.l.b16 %v7486
    %v7818 = vunpack.c.h.b16 %v7486
    %v7819 = vunpack.c.l.b16 %v7487
    %v7820 = vunpack.c.h.b16 %v7487
    %v7821 = vunpack.c.l.b16 %v7488
    %v7822 = vunpack.c.h.b16 %v7488
    %v7823 = vunpack.c.l.b16 %v7489
    %v7824 = vunpack.c.h.b16 %v7489
    %v7825 = vunpack.c.l.b16 %v7490
    %v7826 = vunpack.c.h.b16 %v7490
    %v7827 = vunpack.c.l.b16 %v7491
    %v7828 = vunpack.c.h.b16 %v7491
    %v7829 = vunpack.c.l.b16 %v7492
    %v7830 = vunpack.c.h.b16 %v7492
    %v7831 = vunpack.c.l.b16 %v7493
    %v7832 = vunpack.c.h.b16 %v7493
    %v7833 = vunpack.c.l.b16 %v7494
    %v7834 = vunpack.c.h.b16 %v7494
    %v7835 = vunpack.c.l.b16 %v7495
    %v7836 = vunpack.c.h.b16 %v7495
    %v7837 = vunpack.c.l.b16 %v7496
    %v7838 = vunpack.c.h.b16 %v7496
    %v7839 = vunpack.c.l.b16 %v7497
    %v7840 = vunpack.c.h.b16 %v7497
    %v7841 = vunpack.c.l.b16 %v7498
    %v7842 = vunpack.c.h.b16 %v7498
    %v7843 = vunpack.c.l.b16 %v7499
    %v7844 = vunpack.c.h.b16 %v7499
    %v7845 = vunpack.c.l.b16 %v7500
    %v7846 = vunpack.c.h.b16 %v7500
    %v7847 = vunpack.c.l.b16 %v7501
    %v7848 = vunpack.c.h.b16 %v7501
    %v7849 = vunpack.c.l.b16 %v7502
    %v7850 = vunpack.c.h.b16 %v7502
    %v7851 = vunpack.c.l.b16 %v7503
    %v7852 = vunpack.c.h.b16 %v7503
    %v7853 = vunpack.c.l.b16 %v7504
    %v7854 = vunpack.c.h.b16 %v7504
    %v7855 = vunpack.c.l.b16 %v7505
    %v7856 = vunpack.c.h.b16 %v7505
    %v7857 = vunpack.c.l.b16 %v7506
    %v7858 = vunpack.c.h.b16 %v7506
    %v7859 = vunpack.c.l.b16 %v7507
    %v7860 = vunpack.c.h.b16 %v7507
    %v7861 = vunpack.c.l.b16 %v7508
    %v7862 = vunpack.c.h.b16 %v7508
    %v7863 = vunpack.c.l.b16 %v7509
    %v7864 = vunpack.c.h.b16 %v7509
    %v7865 = vunpack.c.l.b16 %v7510
    %v7866 = vunpack.c.h.b16 %v7510
    %v7867 = vunpack.c.l.b16 %v7511
    %v7868 = vunpack.c.h.b16 %v7511
    %v7869 = vunpack.c.l.b16 %v7512
    %v7870 = vunpack.c.h.b16 %v7512
    %v7871 = vunpack.c.l.b16 %v7513
    %v7872 = vunpack.c.h.b16 %v7513
    %v7873 = vunpack.c.l.b16 %v7514
    %v7874 = vunpack.c.h.b16 %v7514
    %v7875 = vunpack.c.l.b16 %v7515
    %v7876 = vunpack.c.h.b16 %v7515
    %v7877 = vunpack.c.l.b16 %v7516
    %v7878 = vunpack.c.h.b16 %v7516
    %v7879 = vunpack.c.l.b16 %v7517
    %v7880 = vunpack.c.h.b16 %v7517
    %v7881 = vunpack.c.l.b16 %v7518
    %v7882 = vunpack.c.h.b16 %v7518
    %v7883 = vunpack.c.l.b16 %v7519
    %v7884 = vunpack.c.h.b16 %v7519
    %v7885 = vunpack.c.l.b16 %v7520
    %v7886 = vunpack.c.h.b16 %v7520
    %v7887 = vunpack.c.l.b16 %v7521
    %v7888 = vunpack.c.h.b16 %v7521
    %v7889 = vunpack.c.l.b16 %v7522
    %v7890 = vunpack.c.h.b16 %v7522
    %v7891 = vunpack.c.l.b16 %v7523
    %v7892 = vunpack.c.h.b16 %v7523
    %v7893 = vunpack.c.l.b16 %v7524
    %v7894 = vunpack.c.h.b16 %v7524
    %v7895 = vunpack.c.l.b16 %v7525
    %v7896 = vunpack.c.h.b16 %v7525
    %v7897 = vunpack.c.l.b16 %v7526
    %v7898 = vunpack.c.h.b16 %v7526
    %v7899 = vunpack.c.l.b16 %v7527
    %v7900 = vunpack.c.h.b16 %v7527
    %v7901 = vunpack.c.l.b16 %v7528
    %v7902 = vunpack.c.h.b16 %v7528
    %v7903 = vunpack.c.l.b16 %v7529
    %v7904 = vunpack.c.h.b16 %v7529
    %v7905 = vunpack.c.l.b16 %v7530
    %v7906 = vunpack.c.h.b16 %v7530
    %v7907 = vunpack.c.l.b16 %v7531
    %v7908 = vunpack.c.h.b16 %v7531
    %v7909 = vunpack.c.l.b16 %v7532
    %v7910 = vunpack.c.h.b16 %v7532
    %v7911 = vunpack.c.l.b16 %v7533
    %v7912 = vunpack.c.h.b16 %v7533
    %v7913 = vunpack.c.l.b16 %v7534
    %v7914 = vunpack.c.h.b16 %v7534
    %v7915 = vunpack.c.l.b16 %v7535
    %v7916 = vunpack.c.h.b16 %v7535
    %v7917 = vunpack.c.l.b16 %v7536
    %v7918 = vunpack.c.h.b16 %v7536
    %v7919 = vunpack.c.l.b16 %v7537
    %v7920 = vunpack.c.h.b16 %v7537
    %v7921 = vunpack.c.l.b16 %v7538
    %v7922 = vunpack.c.h.b16 %v7538
    %v7923 = vpack.c.b16 %v7675, %v7667
    %v7924 = vpack.c.b16 %v7676, %v7668
    %v7925 = vpack.c.b16 %v7677, %v7669
    %v7926 = vpack.c.b16 %v7678, %v7670
    %v7927 = vpack.c.b16 %v7679, %v7671
    %v7928 = vpack.c.b16 %v7680, %v7672
    %v7929 = vpack.c.b16 %v7681, %v7673
    %v7930 = vpack.c.b16 %v7682, %v7674
    %v7931 = vpack.c.b16 %v7691, %v7683
    %v7932 = vpack.c.b16 %v7692, %v7684
    %v7933 = vpack.c.b16 %v7693, %v7685
    %v7934 = vpack.c.b16 %v7694, %v7686
    %v7935 = vpack.c.b16 %v7695, %v7687
    %v7936 = vpack.c.b16 %v7696, %v7688
    %v7937 = vpack.c.b16 %v7697, %v7689
    %v7938 = vpack.c.b16 %v7698, %v7690
    %v7939 = vpack.c.b16 %v7707, %v7699
    %v7940 = vpack.c.b16 %v7708, %v7700
    %v7941 = vpack.c.b16 %v7709, %v7701
    %v7942 = vpack.c.b16 %v7710, %v7702
    %v7943 = vpack.c.b16 %v7711, %v7703
    %v7944 = vpack.c.b16 %v7712, %v7704
    %v7945 = vpack.c.b16 %v7713, %v7705
    %v7946 = vpack.c.b16 %v7714, %v7706
    %v7947 = vpack.c.b16 %v7723, %v7715
    %v7948 = vpack.c.b16 %v7724, %v7716
    %v7949 = vpack.c.b16 %v7725, %v7717
    %v7950 = vpack.c.b16 %v7726, %v7718
    %v7951 = vpack.c.b16 %v7727, %v7719
    %v7952 = vpack.c.b16 %v7728, %v7720
    %v7953 = vpack.c.b16 %v7729, %v7721
    %v7954 = vpack.c.b16 %v7730, %v7722
    %v7955 = vpack.c.b16 %v7739, %v7731
    %v7956 = vpack.c.b16 %v7740, %v7732
    %v7957 = vpack.c.b16 %v7741, %v7733
    %v7958 = vpack.c.b16 %v7742, %v7734
    %v7959 = vpack.c.b16 %v7743, %v7735
    %v7960 = vpack.c.b16 %v7744, %v7736
    %v7961 = vpack.c.b16 %v7745, %v7737
    %v7962 = vpack.c.b16 %v7746, %v7738
    %v7963 = vpack.c.b16 %v7755, %v7747
    %v7964 = vpack.c.b16 %v7756, %v7748
    %v7965 = vpack.c.b16 %v7757, %v7749
    %v7966 = vpack.c.b16 %v7758, %v7750
    %v7967 = vpack.c.b16 %v7759, %v7751
    %v7968 = vpack.c.b16 %v7760, %v7752
    %v7969 = vpack.c.b16 %v7761, %v7753
    %v7970 = vpack.c.b16 %v7762, %v7754
    %v7971 = vpack.c.b16 %v7771, %v7763
    %v7972 = vpack.c.b16 %v7772, %v7764
    %v7973 = vpack.c.b16 %v7773, %v7765
    %v7974 = vpack.c.b16 %v7774, %v7766
    %v7975 = vpack.c.b16 %v7775, %v7767
    %v7976 = vpack.c.b16 %v7776, %v7768
    %v7977 = vpack.c.b16 %v7777, %v7769
    %v7978 = vpack.c.b16 %v7778, %v7770
    %v7979 = vpack.c.b16 %v7787, %v7779
    %v7980 = vpack.c.b16 %v7788, %v7780
    %v7981 = vpack.c.b16 %v7789, %v7781
    %v7982 = vpack.c.b16 %v7790, %v7782
    %v7983 = vpack.c.b16 %v7791, %v7783
    %v7984 = vpack.c.b16 %v7792, %v7784
    %v7985 = vpack.c.b16 %v7793, %v7785
    %v7986 = vpack.c.b16 %v7794, %v7786
    %v7987 = vpack.c.b16 %v7803, %v7795
    %v7988 = vpack.c.b16 %v7804, %v7796
    %v7989 = vpack.c.b16 %v7805, %v7797
    %v7990 = vpack.c.b16 %v7806, %v7798
    %v7991 = vpack.c.b16 %v7807, %v7799
    %v7992 = vpack.c.b16 %v7808, %v7800
    %v7993 = vpack.c.b16 %v7809, %v7801
    %v7994 = vpack.c.b16 %v7810, %v7802
    %v7995 = vpack.c.b16 %v7819, %v7811
    %v7996 = vpack.c.b16 %v7820, %v7812
    %v7997 = vpack.c.b16 %v7821, %v7813
    %v7998 = vpack.c.b16 %v7822, %v7814
    %v7999 = vpack.c.b16 %v7823, %v7815
    %v8000 = vpack.c.b16 %v7824, %v7816
    %v8001 = vpack.c.b16 %v7825, %v7817
    %v8002 = vpack.c.b16 %v7826, %v7818
    %v8003 = vpack.c.b16 %v7835, %v7827
    %v8004 = vpack.c.b16 %v7836, %v7828
    %v8005 = vpack.c.b16 %v7837, %v7829
    %v8006 = vpack.c.b16 %v7838, %v7830
    %v8007 = vpack.c.b16 %v7839, %v7831
    %v8008 = vpack.c.b16 %v7840, %v7832
    %v8009 = vpack.c.b16 %v7841, %v7833
    %v8010 = vpack.c.b16 %v7842, %v7834
    %v8011 = vpack.c.b16 %v7851, %v7843
    %v8012 = vpack.c.b16 %v7852, %v7844
    %v8013 = vpack.c.b16 %v7853, %v7845
    %v8014 = vpack.c.b16 %v7854, %v7846
    %v8015 = vpack.c.b16 %v7855, %v7847
    %v8016 = vpack.c.b16 %v7856, %v7848
    %v8017 = vpack.c.b16 %v7857, %v7849
    %v8018 = vpack.c.b16 %v7858, %v7850
    %v8019 = vpack.c.b16 %v7867, %v7859
    %v8020 = vpack.c.b16 %v7868, %v7860
    %v8021 = vpack.c.b16 %v7869, %v7861
    %v8022 = vpack.c.b16 %v7870, %v7862
    %v8023 = vpack.c.b16 %v7871, %v7863
    %v8024 = vpack.c.b16 %v7872, %v7864
    %v8025 = vpack.c.b16 %v7873, %v7865
    %v8026 = vpack.c.b16 %v7874, %v7866
    %v8027 = vpack.c.b16 %v7883, %v7875
    %v8028 = vpack.c.b16 %v7884, %v7876
    %v8029 = vpack.c.b16 %v7885, %v7877
    %v8030 = vpack.c.b16 %v7886, %v7878
    %v8031 = vpack.c.b16 %v7887, %v7879
    %v8032 = vpack.c.b16 %v7888, %v7880
    %v8033 = vpack.c.b16 %v7889, %v7881
    %v8034 = vpack.c.b16 %v7890, %v7882
    %v8035 = vpack.c.b16 %v7899, %v7891
    %v8036 = vpack.c.b16 %v7900, %v7892
    %v8037 = vpack.c.b16 %v7901, %v7893
    %v8038 = vpack.c.b16 %v7902, %v7894
    %v8039 = vpack.c.b16 %v7903, %v7895
    %v8040 = vpack.c.b16 %v7904, %v7896
    %v8041 = vpack.c.b16 %v7905, %v7897
    %v8042 = vpack.c.b16 %v7906, %v7898
    %v8043 = vpack.c.b16 %v7915, %v7907
    %v8044 = vpack.c.b16 %v7916, %v7908
    %v8045 = vpack.c.b16 %v7917, %v7909
    %v8046 = vpack.c.b16 %v7918, %v7910
    %v8047 = vpack.c.b16 %v7919, %v7911
    %v8048 = vpack.c.b16 %v7920, %v7912
    %v8049 = vpack.c.b16 %v7921, %v7913
    %v8050 = vpack.c.b16 %v7922, %v7914
    %8179 = vmatprep.subr.bf16.mxu0 %v7924
    %8180 = vmatpush1.bf16.msra.mxu0 %v7923
    %8181 = vmatprep.subr.bf16.mxu0 %v7932
    %8182 = vmatpush1.bf16.msra.mxu0 %v7931
    %8183 = vmatprep.subr.bf16.mxu0 %v7940
    %8184 = vmatpush1.bf16.msra.mxu0 %v7939
    %8185 = vmatprep.subr.bf16.mxu0 %v7948
    %8186 = vmatpush1.bf16.msra.mxu0 %v7947
    %8187 = vmatprep.subr.bf16.mxu0 %v7956
    %8188 = vmatpush1.bf16.msra.mxu0 %v7955
    %8189 = vmatprep.subr.bf16.mxu0 %v7964
    %8190 = vmatpush1.bf16.msra.mxu0 %v7963
    %8191 = vmatprep.subr.bf16.mxu0 %v7972
    %8192 = vmatpush1.bf16.msra.mxu0 %v7971
    %8193 = vmatprep.subr.bf16.mxu0 %v7980
    %8194 = vmatpush1.bf16.msra.mxu0 %v7979
    %8195 = vmatprep.subr.bf16.mxu0 %v7988
    %8196 = vmatpush1.bf16.msra.mxu0 %v7987
    %8197 = vmatprep.subr.bf16.mxu0 %v7996
    %8198 = vmatpush1.bf16.msra.mxu0 %v7995
    %8199 = vmatprep.subr.bf16.mxu0 %v8004
    %8200 = vmatpush1.bf16.msra.mxu0 %v8003
    %8201 = vmatprep.subr.bf16.mxu0 %v8012
    %8202 = vmatpush1.bf16.msra.mxu0 %v8011
    %8203 = vmatprep.subr.bf16.mxu0 %v8020
    %8204 = vmatpush1.bf16.msra.mxu0 %v8019
    %8205 = vmatprep.subr.bf16.mxu0 %v8028
    %8206 = vmatpush1.bf16.msra.mxu0 %v8027
    %8207 = vmatprep.subr.bf16.mxu0 %v8036
    %8208 = vmatpush1.bf16.msra.mxu0 %v8035
    %8209 = vmatprep.subr.bf16.mxu0 %v8044
    %8210 = vmatpush1.bf16.msra.mxu0 %v8043
    %8211 = vmatprep.mubr.bf16.mxu0 %v7408
    %8212 = vmatmul.mubr.bf16.gmra.mrb[0].mxu0 %v7407
    %v8213 = vpop.f32.mrb[0].mxu0
    %v8214 = vadd.f32 0.0, %v8213
    %v8215 = vpop.f32.mrb[0].mxu0
    %v8216 = vadd.f32 0.0, %v8215
    %v8217 = vpop.f32.mrb[0].mxu0
    %v8218 = vadd.f32 0.0, %v8217
    %v8219 = vpop.f32.mrb[0].mxu0
    %v8220 = vadd.f32 0.0, %v8219
    %8221 = vdwg.mxu0
    %8222 = vmatprep.subr.bf16.mxu0 %v7926
    %8223 = vmatpush1.bf16.msra.mxu0 %v7925
    %8224 = vmatprep.subr.bf16.mxu0 %v7934
    %8225 = vmatpush1.bf16.msra.mxu0 %v7933
    %8226 = vmatprep.subr.bf16.mxu0 %v7942
    %8227 = vmatpush1.bf16.msra.mxu0 %v7941
    %8228 = vmatprep.subr.bf16.mxu0 %v7950
    %8229 = vmatpush1.bf16.msra.mxu0 %v7949
    %8230 = vmatprep.subr.bf16.mxu0 %v7958
    %8231 = vmatpush1.bf16.msra.mxu0 %v7957
    %8232 = vmatprep.subr.bf16.mxu0 %v7966
    %8233 = vmatpush1.bf16.msra.mxu0 %v7965
    %8234 = vmatprep.subr.bf16.mxu0 %v7974
    %8235 = vmatpush1.bf16.msra.mxu0 %v7973
    %8236 = vmatprep.subr.bf16.mxu0 %v7982
    %8237 = vmatpush1.bf16.msra.mxu0 %v7981
    %8238 = vmatprep.subr.bf16.mxu0 %v7990
    %8239 = vmatpush1.bf16.msra.mxu0 %v7989
    %8240 = vmatprep.subr.bf16.mxu0 %v7998
    %8241 = vmatpush1.bf16.msra.mxu0 %v7997
    %8242 = vmatprep.subr.bf16.mxu0 %v8006
    %8243 = vmatpush1.bf16.msra.mxu0 %v8005
    %8244 = vmatprep.subr.bf16.mxu0 %v8014
    %8245 = vmatpush1.bf16.msra.mxu0 %v8013
    %8246 = vmatprep.subr.bf16.mxu0 %v8022
    %8247 = vmatpush1.bf16.msra.mxu0 %v8021
    %8248 = vmatprep.subr.bf16.mxu0 %v8030
    %8249 = vmatpush1.bf16.msra.mxu0 %v8029
    %8250 = vmatprep.subr.bf16.mxu0 %v8038
    %8251 = vmatpush1.bf16.msra.mxu0 %v8037
    %8252 = vmatprep.subr.bf16.mxu0 %v8046
    %8253 = vmatpush1.bf16.msra.mxu0 %v8045
    %8254 = vmatprep.mubr.bf16.mxu0 %v7408
    %8255 = vmatmul.mubr.bf16.gmra.mrb[0].mxu0 %v7407
    %v8256 = vpop.f32.mrb[0].mxu0
    %v8257 = vadd.f32 0.0, %v8256
    %v8258 = vpop.f32.mrb[0].mxu0
    %v8259 = vadd.f32 0.0, %v8258
    %v8260 = vpop.f32.mrb[0].mxu0
    %v8261 = vadd.f32 0.0, %v8260
    %v8262 = vpop.f32.mrb[0].mxu0
    %v8263 = vadd.f32 0.0, %v8262
    %8264 = vdwg.mxu0
    %8265 = vmatprep.subr.bf16.mxu0 %v7928
    %8266 = vmatpush1.bf16.msra.mxu0 %v7927
    %8267 = vmatprep.subr.bf16.mxu0 %v7936
    %8268 = vmatpush1.bf16.msra.mxu0 %v7935
    %8269 = vmatprep.subr.bf16.mxu0 %v7944
    %8270 = vmatpush1.bf16.msra.mxu0 %v7943
    %8271 = vmatprep.subr.bf16.mxu0 %v7952
    %8272 = vmatpush1.bf16.msra.mxu0 %v7951
    %8273 = vmatprep.subr.bf16.mxu0 %v7960
    %8274 = vmatpush1.bf16.msra.mxu0 %v7959
    %8275 = vmatprep.subr.bf16.mxu0 %v7968
    %8276 = vmatpush1.bf16.msra.mxu0 %v7967
    %8277 = vmatprep.subr.bf16.mxu0 %v7976
    %8278 = vmatpush1.bf16.msra.mxu0 %v7975
    %8279 = vmatprep.subr.bf16.mxu0 %v7984
    %8280 = vmatpush1.bf16.msra.mxu0 %v7983
    %8281 = vmatprep.subr.bf16.mxu0 %v7992
    %8282 = vmatpush1.bf16.msra.mxu0 %v7991
    %8283 = vmatprep.subr.bf16.mxu0 %v8000
    %8284 = vmatpush1.bf16.msra.mxu0 %v7999
    %8285 = vmatprep.subr.bf16.mxu0 %v8008
    %8286 = vmatpush1.bf16.msra.mxu0 %v8007
    %8287 = vmatprep.subr.bf16.mxu0 %v8016
    %8288 = vmatpush1.bf16.msra.mxu0 %v8015
    %8289 = vmatprep.subr.bf16.mxu0 %v8024
    %8290 = vmatpush1.bf16.msra.mxu0 %v8023
    %8291 = vmatprep.subr.bf16.mxu0 %v8032
    %8292 = vmatpush1.bf16.msra.mxu0 %v8031
    %8293 = vmatprep.subr.bf16.mxu0 %v8040
    %8294 = vmatpush1.bf16.msra.mxu0 %v8039
    %8295 = vmatprep.subr.bf16.mxu0 %v8048
    %8296 = vmatpush1.bf16.msra.mxu0 %v8047
    %8297 = vmatprep.mubr.bf16.mxu0 %v7408
    %8298 = vmatmul.mubr.bf16.gmra.mrb[0].mxu0 %v7407
    %v8299 = vpop.f32.mrb[0].mxu0
    %v8300 = vadd.f32 0.0, %v8299
    %v8301 = vpop.f32.mrb[0].mxu0
    %v8302 = vadd.f32 0.0, %v8301
    %v8303 = vpop.f32.mrb[0].mxu0
    %v8304 = vadd.f32 0.0, %v8303
    %v8305 = vpop.f32.mrb[0].mxu0
    %v8306 = vadd.f32 0.0, %v8305
    %8307 = vdwg.mxu0
    %8308 = vmatprep.subr.bf16.mxu0 %v7930
    %8309 = vmatpush1.bf16.msra.mxu0 %v7929
    %8310 = vmatprep.subr.bf16.mxu0 %v7938
    %8311 = vmatpush1.bf16.msra.mxu0 %v7937
    %8312 = vmatprep.subr.bf16.mxu0 %v7946
    %8313 = vmatpush1.bf16.msra.mxu0 %v7945
    %8314 = vmatprep.subr.bf16.mxu0 %v7954
    %8315 = vmatpush1.bf16.msra.mxu0 %v7953
    %8316 = vmatprep.subr.bf16.mxu0 %v7962
    %8317 = vmatpush1.bf16.msra.mxu0 %v7961
    %8318 = vmatprep.subr.bf16.mxu0 %v7970
    %8319 = vmatpush1.bf16.msra.mxu0 %v7969
    %8320 = vmatprep.subr.bf16.mxu0 %v7978
    %8321 = vmatpush1.bf16.msra.mxu0 %v7977
    %8322 = vmatprep.subr.bf16.mxu0 %v7986
    %8323 = vmatpush1.bf16.msra.mxu0 %v7985
    %8324 = vmatprep.subr.bf16.mxu0 %v7994
    %8325 = vmatpush1.bf16.msra.mxu0 %v7993
    %8326 = vmatprep.subr.bf16.mxu0 %v8002
    %8327 = vmatpush1.bf16.msra.mxu0 %v8001
    %8328 = vmatprep.subr.bf16.mxu0 %v8010
    %8329 = vmatpush1.bf16.msra.mxu0 %v8009
    %8330 = vmatprep.subr.bf16.mxu0 %v8018
    %8331 = vmatpush1.bf16.msra.mxu0 %v8017
    %8332 = vmatprep.subr.bf16.mxu0 %v8026
    %8333 = vmatpush1.bf16.msra.mxu0 %v8025
    %8334 = vmatprep.subr.bf16.mxu0 %v8034
    %8335 = vmatpush1.bf16.msra.mxu0 %v8033
    %8336 = vmatprep.subr.bf16.mxu0 %v8042
    %8337 = vmatpush1.bf16.msra.mxu0 %v8041
    %8338 = vmatprep.subr.bf16.mxu0 %v8050
    %8339 = vmatpush1.bf16.msra.mxu0 %v8049
    %8340 = vmatprep.mubr.bf16.mxu0 %v7408
    %8341 = vmatmul.mubr.bf16.gmra.mrb[0].mxu0 %v7407
    %v8342 = vpop.f32.mrb[0].mxu0
    %v8343 = vadd.f32 0.0, %v8342
    %v8344 = vpop.f32.mrb[0].mxu0
    %v8345 = vadd.f32 0.0, %v8344
    %v8346 = vpop.f32.mrb[0].mxu0
    %v8347 = vadd.f32 0.0, %v8346
    %v8348 = vpop.f32.mrb[0].mxu0
    %v8349 = vadd.f32 0.0, %v8348
    %8350 = vdwg.mxu0
    %v8351 = vld [vmem:[#allocation2 + $0x300] sm:$0xff]
    %v8352 = vld [vmem:[#allocation2 + $0x308] sm:$0xff]
    %v8353 = vld [vmem:[#allocation2 + $0x310] sm:$0xff]
    %v8354 = vld [vmem:[#allocation2 + $0x318] sm:$0xff]
    %v8355 = vld [vmem:[#allocation2 + $0x340] sm:$0xff]
    %v8356 = vld [vmem:[#allocation2 + $0x348] sm:$0xff]
    %v8357 = vld [vmem:[#allocation2 + $0x350] sm:$0xff]
    %v8358 = vld [vmem:[#allocation2 + $0x358] sm:$0xff]
    %v8359 = vadd.f32 %v8351, %v8214
    %v8360 = vadd.f32 %v8352, %v8216
    %v8361 = vadd.f32 %v8353, %v8257
    %v8362 = vadd.f32 %v8354, %v8259
    %v8363 = vadd.f32 %v8355, %v8218
    %v8364 = vadd.f32 %v8356, %v8220
    %v8365 = vadd.f32 %v8357, %v8261
    %v8366 = vadd.f32 %v8358, %v8263
    %v8367 = vld [vmem:[#allocation2 + $0xa0] sm:$0xff]
    %v8368 = vld [vmem:[#allocation2 + $0xa8] sm:$0xff]
    %v8369 = vld [vmem:[#allocation2 + $0xb0] sm:$0xff]
    %v8370 = vld [vmem:[#allocation2 + $0xb8] sm:$0xff]
    %v8371 = vld [vmem:[#allocation2 + $0xe0] sm:$0xff]
    %v8372 = vld [vmem:[#allocation2 + $0xe8] sm:$0xff]
    %v8373 = vld [vmem:[#allocation2 + $0xf0] sm:$0xff]
    %v8374 = vld [vmem:[#allocation2 + $0xf8] sm:$0xff]
    %v8375 = vadd.f32 %v8367, %v8300
    %v8376 = vadd.f32 %v8368, %v8302
    %v8377 = vadd.f32 %v8369, %v8343
    %v8378 = vadd.f32 %v8370, %v8345
    %v8379 = vadd.f32 %v8371, %v8304
    %v8380 = vadd.f32 %v8372, %v8306
    %v8381 = vadd.f32 %v8373, %v8347
    %v8382 = vadd.f32 %v8374, %v8349
    %v8383 = vmul.f32 %v8359, 0.5
    %v8384 = vmul.f32 %v8363, 0.5
    %v8385 = vtanh.pop %v8383
    %v8386 = vtanh.pop %v8384
    %v8387 = vmul.f32 %v8385, 0.5
    %v8388 = vmul.f32 %v8386, 0.5
    %v8389 = vadd.f32 %v8387, 0.5
    %v8390 = vadd.f32 %v8388, 0.5
    %v8391 = vmul.f32 %v8360, 0.5
    %v8392 = vmul.f32 %v8364, 0.5
    %v8393 = vtanh.pop %v8391
    %v8394 = vtanh.pop %v8392
    %v8395 = vmul.f32 %v8393, 0.5
    %v8396 = vmul.f32 %v8394, 0.5
    %v8397 = vadd.f32 %v8395, 0.5
    %v8398 = vadd.f32 %v8396, 0.5
    %v8399 = vtanh.pop %v8361
    %v8400 = vtanh.pop %v8365
    %v8401 = vmul.f32 %v8362, 0.5
    %v8402 = vmul.f32 %v8366, 0.5
    %v8403 = vtanh.pop %v8401
    %v8404 = vtanh.pop %v8402
    %v8405 = vmul.f32 %v8403, 0.5
    %v8406 = vmul.f32 %v8404, 0.5
    %v8407 = vadd.f32 %v8405, 0.5
    %v8408 = vadd.f32 %v8406, 0.5
    %v8409 = vmul.f32 %v8397, %v7365
    %v8410 = vmul.f32 %v8398, %v7366
    %v8411 = vmul.f32 %v8389, %v8399
    %v8412 = vmul.f32 %v8390, %v8400
    %v8413 = vadd.f32 %v8409, %v8411
    %v8414 = vadd.f32 %v8410, %v8412
    %v8415 = vtanh.pop %v8413
    %v8416 = vtanh.pop %v8414
    %v8417 = vmul.f32 %v8407, %v8415
    %v8418 = vmul.f32 %v8408, %v8416
    %v8419 = vmul.f32 %v8375, 0.5
    %v8420 = vmul.f32 %v8379, 0.5
    %v8421 = vtanh.pop %v8419
    %v8422 = vtanh.pop %v8420
    %v8423 = vmul.f32 %v8421, 0.5
    %v8424 = vmul.f32 %v8422, 0.5
    %v8425 = vadd.f32 %v8423, 0.5
    %v8426 = vadd.f32 %v8424, 0.5
    %v8427 = vmul.f32 %v8376, 0.5
    %v8428 = vmul.f32 %v8380, 0.5
    %v8429 = vtanh.pop %v8427
    %v8430 = vtanh.pop %v8428
    %v8431 = vmul.f32 %v8429, 0.5
    %v8432 = vmul.f32 %v8430, 0.5
    %v8433 = vadd.f32 %v8431, 0.5
    %v8434 = vadd.f32 %v8432, 0.5
    %v8435 = vtanh.pop %v8377
    %v8436 = vtanh.pop %v8381
    %v8437 = vmul.f32 %v8378, 0.5
    %v8438 = vmul.f32 %v8382, 0.5
    %v8439 = vtanh.pop %v8437
    %v8440 = vtanh.pop %v8438
    %v8441 = vmul.f32 %v8439, 0.5
    %v8442 = vmul.f32 %v8440, 0.5
    %v8443 = vadd.f32 %v8441, 0.5
    %v8444 = vadd.f32 %v8442, 0.5
    %v8445 = vmul.f32 %v8433, %v7401
    %v8446 = vmul.f32 %v8434, %v7402
    %v8447 = vmul.f32 %v8425, %v8435
    %v8448 = vmul.f32 %v8426, %v8436
    %v8449 = vadd.f32 %v8445, %v8447
    %v8450 = vadd.f32 %v8446, %v8448
    %v8451 = vtanh.pop %v8449
    %v8452 = vtanh.pop %v8450
    %v8453 = vmul.f32 %v8443, %v8451
    %v8454 = vmul.f32 %v8444, %v8452
    %v8455 = vpack.c.bf16 %v8418, %v8417
    %v8456 = vpack.c.bf16 %v8454, %v8453
    %8457 = vst [vmem:[#allocation3 + $0x60] sm:$0xff] %v8455
    %8458 = vst [vmem:[#allocation3 + $0x18] sm:$0xff] %v8456
    %v8459 = vld [vmem:[#allocation7] sm:$0xff]
    %v8460 = vld [vmem:[#allocation7 + $0x8] sm:$0xff]
    %v8461 = vld [vmem:[#allocation7 + $0x10] sm:$0xff]
    %v8462 = vld [vmem:[#allocation7 + $0x18] sm:$0xff]
    %v8463 = vld [vmem:[#allocation7 + $0x20] sm:$0xff]
    %v8464 = vld [vmem:[#allocation7 + $0x28] sm:$0xff]
    %v8465 = vld [vmem:[#allocation7 + $0x30] sm:$0xff]
    %v8466 = vld [vmem:[#allocation7 + $0x38] sm:$0xff]
    %v8467 = vld [vmem:[#allocation7 + $0x40] sm:$0xff]
    %v8468 = vld [vmem:[#allocation7 + $0x48] sm:$0xff]
    %v8469 = vld [vmem:[#allocation7 + $0x50] sm:$0xff]
    %v8470 = vld [vmem:[#allocation7 + $0x58] sm:$0xff]
    %v8471 = vld [vmem:[#allocation7 + $0x60] sm:$0xff]
    %v8472 = vld [vmem:[#allocation7 + $0x68] sm:$0xff]
    %v8473 = vld [vmem:[#allocation7 + $0x70] sm:$0xff]
    %v8474 = vld [vmem:[#allocation7 + $0x78] sm:$0xff]
    %v8475 = vld [vmem:[#allocation7 + $0x80] sm:$0xff]
    %v8476 = vld [vmem:[#allocation7 + $0x88] sm:$0xff]
    %v8477 = vld [vmem:[#allocation7 + $0x90] sm:$0xff]
    %v8478 = vld [vmem:[#allocation7 + $0x98] sm:$0xff]
    %v8479 = vld [vmem:[#allocation7 + $0xa0] sm:$0xff]
    %v8480 = vld [vmem:[#allocation7 + $0xa8] sm:$0xff]
    %v8481 = vld [vmem:[#allocation7 + $0xb0] sm:$0xff]
    %v8482 = vld [vmem:[#allocation7 + $0xb8] sm:$0xff]
    %v8483 = vld [vmem:[#allocation7 + $0xc0] sm:$0xff]
    %v8484 = vld [vmem:[#allocation7 + $0xc8] sm:$0xff]
    %v8485 = vld [vmem:[#allocation7 + $0xd0] sm:$0xff]
    %v8486 = vld [vmem:[#allocation7 + $0xd8] sm:$0xff]
    %v8487 = vld [vmem:[#allocation7 + $0xe0] sm:$0xff]
    %v8488 = vld [vmem:[#allocation7 + $0xe8] sm:$0xff]
    %v8489 = vld [vmem:[#allocation7 + $0xf0] sm:$0xff]
    %v8490 = vld [vmem:[#allocation7 + $0xf8] sm:$0xff]
    %v8491 = vld [vmem:[#allocation7 + $0x100] sm:$0xff]
    %v8492 = vld [vmem:[#allocation7 + $0x108] sm:$0xff]
    %v8493 = vld [vmem:[#allocation7 + $0x110] sm:$0xff]
    %v8494 = vld [vmem:[#allocation7 + $0x118] sm:$0xff]
    %v8495 = vld [vmem:[#allocation7 + $0x120] sm:$0xff]
    %v8496 = vld [vmem:[#allocation7 + $0x128] sm:$0xff]
    %v8497 = vld [vmem:[#allocation7 + $0x130] sm:$0xff]
    %v8498 = vld [vmem:[#allocation7 + $0x138] sm:$0xff]
    %v8499 = vld [vmem:[#allocation7 + $0x140] sm:$0xff]
    %v8500 = vld [vmem:[#allocation7 + $0x148] sm:$0xff]
    %v8501 = vld [vmem:[#allocation7 + $0x150] sm:$0xff]
    %v8502 = vld [vmem:[#allocation7 + $0x158] sm:$0xff]
    %v8503 = vld [vmem:[#allocation7 + $0x160] sm:$0xff]
    %v8504 = vld [vmem:[#allocation7 + $0x168] sm:$0xff]
    %v8505 = vld [vmem:[#allocation7 + $0x170] sm:$0xff]
    %v8506 = vld [vmem:[#allocation7 + $0x178] sm:$0xff]
    %v8507 = vld [vmem:[#allocation7 + $0x180] sm:$0xff]
    %v8508 = vld [vmem:[#allocation7 + $0x188] sm:$0xff]
    %v8509 = vld [vmem:[#allocation7 + $0x190] sm:$0xff]
    %v8510 = vld [vmem:[#allocation7 + $0x198] sm:$0xff]
    %v8511 = vld [vmem:[#allocation7 + $0x1a0] sm:$0xff]
    %v8512 = vld [vmem:[#allocation7 + $0x1a8] sm:$0xff]
    %v8513 = vld [vmem:[#allocation7 + $0x1b0] sm:$0xff]
    %v8514 = vld [vmem:[#allocation7 + $0x1b8] sm:$0xff]
    %v8515 = vld [vmem:[#allocation7 + $0x1c0] sm:$0xff]
    %v8516 = vld [vmem:[#allocation7 + $0x1c8] sm:$0xff]
    %v8517 = vld [vmem:[#allocation7 + $0x1d0] sm:$0xff]
    %v8518 = vld [vmem:[#allocation7 + $0x1d8] sm:$0xff]
    %v8519 = vld [vmem:[#allocation7 + $0x1e0] sm:$0xff]
    %v8520 = vld [vmem:[#allocation7 + $0x1e8] sm:$0xff]
    %v8521 = vld [vmem:[#allocation7 + $0x1f0] sm:$0xff]
    %v8522 = vld [vmem:[#allocation7 + $0x1f8] sm:$0xff]
    %v8523 = vld [vmem:[#allocation7 + $0x200] sm:$0xff]
    %v8524 = vld [vmem:[#allocation7 + $0x208] sm:$0xff]
    %v8525 = vld [vmem:[#allocation7 + $0x210] sm:$0xff]
    %v8526 = vld [vmem:[#allocation7 + $0x218] sm:$0xff]
    %v8527 = vld [vmem:[#allocation7 + $0x220] sm:$0xff]
    %v8528 = vld [vmem:[#allocation7 + $0x228] sm:$0xff]
    %v8529 = vld [vmem:[#allocation7 + $0x230] sm:$0xff]
    %v8530 = vld [vmem:[#allocation7 + $0x238] sm:$0xff]
    %v8531 = vld [vmem:[#allocation7 + $0x240] sm:$0xff]
    %v8532 = vld [vmem:[#allocation7 + $0x248] sm:$0xff]
    %v8533 = vld [vmem:[#allocation7 + $0x250] sm:$0xff]
    %v8534 = vld [vmem:[#allocation7 + $0x258] sm:$0xff]
    %v8535 = vld [vmem:[#allocation7 + $0x260] sm:$0xff]
    %v8536 = vld [vmem:[#allocation7 + $0x268] sm:$0xff]
    %v8537 = vld [vmem:[#allocation7 + $0x270] sm:$0xff]
    %v8538 = vld [vmem:[#allocation7 + $0x278] sm:$0xff]
    %v8539 = vld [vmem:[#allocation7 + $0x280] sm:$0xff]
    %v8540 = vld [vmem:[#allocation7 + $0x288] sm:$0xff]
    %v8541 = vld [vmem:[#allocation7 + $0x290] sm:$0xff]
    %v8542 = vld [vmem:[#allocation7 + $0x298] sm:$0xff]
    %v8543 = vld [vmem:[#allocation7 + $0x2a0] sm:$0xff]
    %v8544 = vld [vmem:[#allocation7 + $0x2a8] sm:$0xff]
    %v8545 = vld [vmem:[#allocation7 + $0x2b0] sm:$0xff]
    %v8546 = vld [vmem:[#allocation7 + $0x2b8] sm:$0xff]
    %v8547 = vld [vmem:[#allocation7 + $0x2c0] sm:$0xff]
    %v8548 = vld [vmem:[#allocation7 + $0x2c8] sm:$0xff]
    %v8549 = vld [vmem:[#allocation7 + $0x2d0] sm:$0xff]
    %v8550 = vld [vmem:[#allocation7 + $0x2d8] sm:$0xff]
    %v8551 = vld [vmem:[#allocation7 + $0x2e0] sm:$0xff]
    %v8552 = vld [vmem:[#allocation7 + $0x2e8] sm:$0xff]
    %v8553 = vld [vmem:[#allocation7 + $0x2f0] sm:$0xff]
    %v8554 = vld [vmem:[#allocation7 + $0x2f8] sm:$0xff]
    %v8555 = vld [vmem:[#allocation7 + $0x300] sm:$0xff]
    %v8556 = vld [vmem:[#allocation7 + $0x308] sm:$0xff]
    %v8557 = vld [vmem:[#allocation7 + $0x310] sm:$0xff]
    %v8558 = vld [vmem:[#allocation7 + $0x318] sm:$0xff]
    %v8559 = vld [vmem:[#allocation7 + $0x320] sm:$0xff]
    %v8560 = vld [vmem:[#allocation7 + $0x328] sm:$0xff]
    %v8561 = vld [vmem:[#allocation7 + $0x330] sm:$0xff]
    %v8562 = vld [vmem:[#allocation7 + $0x338] sm:$0xff]
    %v8563 = vld [vmem:[#allocation7 + $0x340] sm:$0xff]
    %v8564 = vld [vmem:[#allocation7 + $0x348] sm:$0xff]
    %v8565 = vld [vmem:[#allocation7 + $0x350] sm:$0xff]
    %v8566 = vld [vmem:[#allocation7 + $0x358] sm:$0xff]
    %v8567 = vld [vmem:[#allocation7 + $0x360] sm:$0xff]
    %v8568 = vld [vmem:[#allocation7 + $0x368] sm:$0xff]
    %v8569 = vld [vmem:[#allocation7 + $0x370] sm:$0xff]
    %v8570 = vld [vmem:[#allocation7 + $0x378] sm:$0xff]
    %v8571 = vld [vmem:[#allocation7 + $0x380] sm:$0xff]
    %v8572 = vld [vmem:[#allocation7 + $0x388] sm:$0xff]
    %v8573 = vld [vmem:[#allocation7 + $0x390] sm:$0xff]
    %v8574 = vld [vmem:[#allocation7 + $0x398] sm:$0xff]
    %v8575 = vld [vmem:[#allocation7 + $0x3a0] sm:$0xff]
    %v8576 = vld [vmem:[#allocation7 + $0x3a8] sm:$0xff]
    %v8577 = vld [vmem:[#allocation7 + $0x3b0] sm:$0xff]
    %v8578 = vld [vmem:[#allocation7 + $0x3b8] sm:$0xff]
    %v8579 = vld [vmem:[#allocation7 + $0x3c0] sm:$0xff]
    %v8580 = vld [vmem:[#allocation7 + $0x3c8] sm:$0xff]
    %v8581 = vld [vmem:[#allocation7 + $0x3d0] sm:$0xff]
    %v8582 = vld [vmem:[#allocation7 + $0x3d8] sm:$0xff]
    %v8583 = vld [vmem:[#allocation7 + $0x3e0] sm:$0xff]
    %v8584 = vld [vmem:[#allocation7 + $0x3e8] sm:$0xff]
    %v8585 = vld [vmem:[#allocation7 + $0x3f0] sm:$0xff]
    %v8586 = vld [vmem:[#allocation7 + $0x3f8] sm:$0xff]
    %v8715 = vunpack.c.l.b16 %v8459
    %v8716 = vunpack.c.h.b16 %v8459
    %v8717 = vunpack.c.l.b16 %v8460
    %v8718 = vunpack.c.h.b16 %v8460
    %v8719 = vunpack.c.l.b16 %v8461
    %v8720 = vunpack.c.h.b16 %v8461
    %v8721 = vunpack.c.l.b16 %v8462
    %v8722 = vunpack.c.h.b16 %v8462
    %v8723 = vunpack.c.l.b16 %v8463
    %v8724 = vunpack.c.h.b16 %v8463
    %v8725 = vunpack.c.l.b16 %v8464
    %v8726 = vunpack.c.h.b16 %v8464
    %v8727 = vunpack.c.l.b16 %v8465
    %v8728 = vunpack.c.h.b16 %v8465
    %v8729 = vunpack.c.l.b16 %v8466
    %v8730 = vunpack.c.h.b16 %v8466
    %v8731 = vunpack.c.l.b16 %v8467
    %v8732 = vunpack.c.h.b16 %v8467
    %v8733 = vunpack.c.l.b16 %v8468
    %v8734 = vunpack.c.h.b16 %v8468
    %v8735 = vunpack.c.l.b16 %v8469
    %v8736 = vunpack.c.h.b16 %v8469
    %v8737 = vunpack.c.l.b16 %v8470
    %v8738 = vunpack.c.h.b16 %v8470
    %v8739 = vunpack.c.l.b16 %v8471
    %v8740 = vunpack.c.h.b16 %v8471
    %v8741 = vunpack.c.l.b16 %v8472
    %v8742 = vunpack.c.h.b16 %v8472
    %v8743 = vunpack.c.l.b16 %v8473
    %v8744 = vunpack.c.h.b16 %v8473
    %v8745 = vunpack.c.l.b16 %v8474
    %v8746 = vunpack.c.h.b16 %v8474
    %v8747 = vunpack.c.l.b16 %v8475
    %v8748 = vunpack.c.h.b16 %v8475
    %v8749 = vunpack.c.l.b16 %v8476
    %v8750 = vunpack.c.h.b16 %v8476
    %v8751 = vunpack.c.l.b16 %v8477
    %v8752 = vunpack.c.h.b16 %v8477
    %v8753 = vunpack.c.l.b16 %v8478
    %v8754 = vunpack.c.h.b16 %v8478
    %v8755 = vunpack.c.l.b16 %v8479
    %v8756 = vunpack.c.h.b16 %v8479
    %v8757 = vunpack.c.l.b16 %v8480
    %v8758 = vunpack.c.h.b16 %v8480
    %v8759 = vunpack.c.l.b16 %v8481
    %v8760 = vunpack.c.h.b16 %v8481
    %v8761 = vunpack.c.l.b16 %v8482
    %v8762 = vunpack.c.h.b16 %v8482
    %v8763 = vunpack.c.l.b16 %v8483
    %v8764 = vunpack.c.h.b16 %v8483
    %v8765 = vunpack.c.l.b16 %v8484
    %v8766 = vunpack.c.h.b16 %v8484
    %v8767 = vunpack.c.l.b16 %v8485
    %v8768 = vunpack.c.h.b16 %v8485
    %v8769 = vunpack.c.l.b16 %v8486
    %v8770 = vunpack.c.h.b16 %v8486
    %v8771 = vunpack.c.l.b16 %v8487
    %v8772 = vunpack.c.h.b16 %v8487
    %v8773 = vunpack.c.l.b16 %v8488
    %v8774 = vunpack.c.h.b16 %v8488
    %v8775 = vunpack.c.l.b16 %v8489
    %v8776 = vunpack.c.h.b16 %v8489
    %v8777 = vunpack.c.l.b16 %v8490
    %v8778 = vunpack.c.h.b16 %v8490
    %v8779 = vunpack.c.l.b16 %v8491
    %v8780 = vunpack.c.h.b16 %v8491
    %v8781 = vunpack.c.l.b16 %v8492
    %v8782 = vunpack.c.h.b16 %v8492
    %v8783 = vunpack.c.l.b16 %v8493
    %v8784 = vunpack.c.h.b16 %v8493
    %v8785 = vunpack.c.l.b16 %v8494
    %v8786 = vunpack.c.h.b16 %v8494
    %v8787 = vunpack.c.l.b16 %v8495
    %v8788 = vunpack.c.h.b16 %v8495
    %v8789 = vunpack.c.l.b16 %v8496
    %v8790 = vunpack.c.h.b16 %v8496
    %v8791 = vunpack.c.l.b16 %v8497
    %v8792 = vunpack.c.h.b16 %v8497
    %v8793 = vunpack.c.l.b16 %v8498
    %v8794 = vunpack.c.h.b16 %v8498
    %v8795 = vunpack.c.l.b16 %v8499
    %v8796 = vunpack.c.h.b16 %v8499
    %v8797 = vunpack.c.l.b16 %v8500
    %v8798 = vunpack.c.h.b16 %v8500
    %v8799 = vunpack.c.l.b16 %v8501
    %v8800 = vunpack.c.h.b16 %v8501
    %v8801 = vunpack.c.l.b16 %v8502
    %v8802 = vunpack.c.h.b16 %v8502
    %v8803 = vunpack.c.l.b16 %v8503
    %v8804 = vunpack.c.h.b16 %v8503
    %v8805 = vunpack.c.l.b16 %v8504
    %v8806 = vunpack.c.h.b16 %v8504
    %v8807 = vunpack.c.l.b16 %v8505
    %v8808 = vunpack.c.h.b16 %v8505
    %v8809 = vunpack.c.l.b16 %v8506
    %v8810 = vunpack.c.h.b16 %v8506
    %v8811 = vunpack.c.l.b16 %v8507
    %v8812 = vunpack.c.h.b16 %v8507
    %v8813 = vunpack.c.l.b16 %v8508
    %v8814 = vunpack.c.h.b16 %v8508
    %v8815 = vunpack.c.l.b16 %v8509
    %v8816 = vunpack.c.h.b16 %v8509
    %v8817 = vunpack.c.l.b16 %v8510
    %v8818 = vunpack.c.h.b16 %v8510
    %v8819 = vunpack.c.l.b16 %v8511
    %v8820 = vunpack.c.h.b16 %v8511
    %v8821 = vunpack.c.l.b16 %v8512
    %v8822 = vunpack.c.h.b16 %v8512
    %v8823 = vunpack.c.l.b16 %v8513
    %v8824 = vunpack.c.h.b16 %v8513
    %v8825 = vunpack.c.l.b16 %v8514
    %v8826 = vunpack.c.h.b16 %v8514
    %v8827 = vunpack.c.l.b16 %v8515
    %v8828 = vunpack.c.h.b16 %v8515
    %v8829 = vunpack.c.l.b16 %v8516
    %v8830 = vunpack.c.h.b16 %v8516
    %v8831 = vunpack.c.l.b16 %v8517
    %v8832 = vunpack.c.h.b16 %v8517
    %v8833 = vunpack.c.l.b16 %v8518
    %v8834 = vunpack.c.h.b16 %v8518
    %v8835 = vunpack.c.l.b16 %v8519
    %v8836 = vunpack.c.h.b16 %v8519
    %v8837 = vunpack.c.l.b16 %v8520
    %v8838 = vunpack.c.h.b16 %v8520
    %v8839 = vunpack.c.l.b16 %v8521
    %v8840 = vunpack.c.h.b16 %v8521
    %v8841 = vunpack.c.l.b16 %v8522
    %v8842 = vunpack.c.h.b16 %v8522
    %v8843 = vunpack.c.l.b16 %v8523
    %v8844 = vunpack.c.h.b16 %v8523
    %v8845 = vunpack.c.l.b16 %v8524
    %v8846 = vunpack.c.h.b16 %v8524
    %v8847 = vunpack.c.l.b16 %v8525
    %v8848 = vunpack.c.h.b16 %v8525
    %v8849 = vunpack.c.l.b16 %v8526
    %v8850 = vunpack.c.h.b16 %v8526
    %v8851 = vunpack.c.l.b16 %v8527
    %v8852 = vunpack.c.h.b16 %v8527
    %v8853 = vunpack.c.l.b16 %v8528
    %v8854 = vunpack.c.h.b16 %v8528
    %v8855 = vunpack.c.l.b16 %v8529
    %v8856 = vunpack.c.h.b16 %v8529
    %v8857 = vunpack.c.l.b16 %v8530
    %v8858 = vunpack.c.h.b16 %v8530
    %v8859 = vunpack.c.l.b16 %v8531
    %v8860 = vunpack.c.h.b16 %v8531
    %v8861 = vunpack.c.l.b16 %v8532
    %v8862 = vunpack.c.h.b16 %v8532
    %v8863 = vunpack.c.l.b16 %v8533
    %v8864 = vunpack.c.h.b16 %v8533
    %v8865 = vunpack.c.l.b16 %v8534
    %v8866 = vunpack.c.h.b16 %v8534
    %v8867 = vunpack.c.l.b16 %v8535
    %v8868 = vunpack.c.h.b16 %v8535
    %v8869 = vunpack.c.l.b16 %v8536
    %v8870 = vunpack.c.h.b16 %v8536
    %v8871 = vunpack.c.l.b16 %v8537
    %v8872 = vunpack.c.h.b16 %v8537
    %v8873 = vunpack.c.l.b16 %v8538
    %v8874 = vunpack.c.h.b16 %v8538
    %v8875 = vunpack.c.l.b16 %v8539
    %v8876 = vunpack.c.h.b16 %v8539
    %v8877 = vunpack.c.l.b16 %v8540
    %v8878 = vunpack.c.h.b16 %v8540
    %v8879 = vunpack.c.l.b16 %v8541
    %v8880 = vunpack.c.h.b16 %v8541
    %v8881 = vunpack.c.l.b16 %v8542
    %v8882 = vunpack.c.h.b16 %v8542
    %v8883 = vunpack.c.l.b16 %v8543
    %v8884 = vunpack.c.h.b16 %v8543
    %v8885 = vunpack.c.l.b16 %v8544
    %v8886 = vunpack.c.h.b16 %v8544
    %v8887 = vunpack.c.l.b16 %v8545
    %v8888 = vunpack.c.h.b16 %v8545
    %v8889 = vunpack.c.l.b16 %v8546
    %v8890 = vunpack.c.h.b16 %v8546
    %v8891 = vunpack.c.l.b16 %v8547
    %v8892 = vunpack.c.h.b16 %v8547
    %v8893 = vunpack.c.l.b16 %v8548
    %v8894 = vunpack.c.h.b16 %v8548
    %v8895 = vunpack.c.l.b16 %v8549
    %v8896 = vunpack.c.h.b16 %v8549
    %v8897 = vunpack.c.l.b16 %v8550
    %v8898 = vunpack.c.h.b16 %v8550
    %v8899 = vunpack.c.l.b16 %v8551
    %v8900 = vunpack.c.h.b16 %v8551
    %v8901 = vunpack.c.l.b16 %v8552
    %v8902 = vunpack.c.h.b16 %v8552
    %v8903 = vunpack.c.l.b16 %v8553
    %v8904 = vunpack.c.h.b16 %v8553
    %v8905 = vunpack.c.l.b16 %v8554
    %v8906 = vunpack.c.h.b16 %v8554
    %v8907 = vunpack.c.l.b16 %v8555
    %v8908 = vunpack.c.h.b16 %v8555
    %v8909 = vunpack.c.l.b16 %v8556
    %v8910 = vunpack.c.h.b16 %v8556
    %v8911 = vunpack.c.l.b16 %v8557
    %v8912 = vunpack.c.h.b16 %v8557
    %v8913 = vunpack.c.l.b16 %v8558
    %v8914 = vunpack.c.h.b16 %v8558
    %v8915 = vunpack.c.l.b16 %v8559
    %v8916 = vunpack.c.h.b16 %v8559
    %v8917 = vunpack.c.l.b16 %v8560
    %v8918 = vunpack.c.h.b16 %v8560
    %v8919 = vunpack.c.l.b16 %v8561
    %v8920 = vunpack.c.h.b16 %v8561
    %v8921 = vunpack.c.l.b16 %v8562
    %v8922 = vunpack.c.h.b16 %v8562
    %v8923 = vunpack.c.l.b16 %v8563
    %v8924 = vunpack.c.h.b16 %v8563
    %v8925 = vunpack.c.l.b16 %v8564
    %v8926 = vunpack.c.h.b16 %v8564
    %v8927 = vunpack.c.l.b16 %v8565
    %v8928 = vunpack.c.h.b16 %v8565
    %v8929 = vunpack.c.l.b16 %v8566
    %v8930 = vunpack.c.h.b16 %v8566
    %v8931 = vunpack.c.l.b16 %v8567
    %v8932 = vunpack.c.h.b16 %v8567
    %v8933 = vunpack.c.l.b16 %v8568
    %v8934 = vunpack.c.h.b16 %v8568
    %v8935 = vunpack.c.l.b16 %v8569
    %v8936 = vunpack.c.h.b16 %v8569
    %v8937 = vunpack.c.l.b16 %v8570
    %v8938 = vunpack.c.h.b16 %v8570
    %v8939 = vunpack.c.l.b16 %v8571
    %v8940 = vunpack.c.h.b16 %v8571
    %v8941 = vunpack.c.l.b16 %v8572
    %v8942 = vunpack.c.h.b16 %v8572
    %v8943 = vunpack.c.l.b16 %v8573
    %v8944 = vunpack.c.h.b16 %v8573
    %v8945 = vunpack.c.l.b16 %v8574
    %v8946 = vunpack.c.h.b16 %v8574
    %v8947 = vunpack.c.l.b16 %v8575
    %v8948 = vunpack.c.h.b16 %v8575
    %v8949 = vunpack.c.l.b16 %v8576
    %v8950 = vunpack.c.h.b16 %v8576
    %v8951 = vunpack.c.l.b16 %v8577
    %v8952 = vunpack.c.h.b16 %v8577
    %v8953 = vunpack.c.l.b16 %v8578
    %v8954 = vunpack.c.h.b16 %v8578
    %v8955 = vunpack.c.l.b16 %v8579
    %v8956 = vunpack.c.h.b16 %v8579
    %v8957 = vunpack.c.l.b16 %v8580
    %v8958 = vunpack.c.h.b16 %v8580
    %v8959 = vunpack.c.l.b16 %v8581
    %v8960 = vunpack.c.h.b16 %v8581
    %v8961 = vunpack.c.l.b16 %v8582
    %v8962 = vunpack.c.h.b16 %v8582
    %v8963 = vunpack.c.l.b16 %v8583
    %v8964 = vunpack.c.h.b16 %v8583
    %v8965 = vunpack.c.l.b16 %v8584
    %v8966 = vunpack.c.h.b16 %v8584
    %v8967 = vunpack.c.l.b16 %v8585
    %v8968 = vunpack.c.h.b16 %v8585
    %v8969 = vunpack.c.l.b16 %v8586
    %v8970 = vunpack.c.h.b16 %v8586
    %v8971 = vpack.c.b16 %v8723, %v8715
    %v8972 = vpack.c.b16 %v8724, %v8716
    %v8973 = vpack.c.b16 %v8725, %v8717
    %v8974 = vpack.c.b16 %v8726, %v8718
    %v8975 = vpack.c.b16 %v8727, %v8719
    %v8976 = vpack.c.b16 %v8728, %v8720
    %v8977 = vpack.c.b16 %v8729, %v8721
    %v8978 = vpack.c.b16 %v8730, %v8722
    %v8979 = vpack.c.b16 %v8739, %v8731
    %v8980 = vpack.c.b16 %v8740, %v8732
    %v8981 = vpack.c.b16 %v8741, %v8733
    %v8982 = vpack.c.b16 %v8742, %v8734
    %v8983 = vpack.c.b16 %v8743, %v8735
    %v8984 = vpack.c.b16 %v8744, %v8736
    %v8985 = vpack.c.b16 %v8745, %v8737
    %v8986 = vpack.c.b16 %v8746, %v8738
    %v8987 = vpack.c.b16 %v8755, %v8747
    %v8988 = vpack.c.b16 %v8756, %v8748
    %v8989 = vpack.c.b16 %v8757, %v8749
    %v8990 = vpack.c.b16 %v8758, %v8750
    %v8991 = vpack.c.b16 %v8759, %v8751
    %v8992 = vpack.c.b16 %v8760, %v8752
    %v8993 = vpack.c.b16 %v8761, %v8753
    %v8994 = vpack.c.b16 %v8762, %v8754
    %v8995 = vpack.c.b16 %v8771, %v8763
    %v8996 = vpack.c.b16 %v8772, %v8764
    %v8997 = vpack.c.b16 %v8773, %v8765
    %v8998 = vpack.c.b16 %v8774, %v8766
    %v8999 = vpack.c.b16 %v8775, %v8767
    %v9000 = vpack.c.b16 %v8776, %v8768
    %v9001 = vpack.c.b16 %v8777, %v8769
    %v9002 = vpack.c.b16 %v8778, %v8770
    %v9003 = vpack.c.b16 %v8787, %v8779
    %v9004 = vpack.c.b16 %v8788, %v8780
    %v9005 = vpack.c.b16 %v8789, %v8781
    %v9006 = vpack.c.b16 %v8790, %v8782
    %v9007 = vpack.c.b16 %v8791, %v8783
    %v9008 = vpack.c.b16 %v8792, %v8784
    %v9009 = vpack.c.b16 %v8793, %v8785
    %v9010 = vpack.c.b16 %v8794, %v8786
    %v9011 = vpack.c.b16 %v8803, %v8795
    %v9012 = vpack.c.b16 %v8804, %v8796
    %v9013 = vpack.c.b16 %v8805, %v8797
    %v9014 = vpack.c.b16 %v8806, %v8798
    %v9015 = vpack.c.b16 %v8807, %v8799
    %v9016 = vpack.c.b16 %v8808, %v8800
    %v9017 = vpack.c.b16 %v8809, %v8801
    %v9018 = vpack.c.b16 %v8810, %v8802
    %v9019 = vpack.c.b16 %v8819, %v8811
    %v9020 = vpack.c.b16 %v8820, %v8812
    %v9021 = vpack.c.b16 %v8821, %v8813
    %v9022 = vpack.c.b16 %v8822, %v8814
    %v9023 = vpack.c.b16 %v8823, %v8815
    %v9024 = vpack.c.b16 %v8824, %v8816
    %v9025 = vpack.c.b16 %v8825, %v8817
    %v9026 = vpack.c.b16 %v8826, %v8818
    %v9027 = vpack.c.b16 %v8835, %v8827
    %v9028 = vpack.c.b16 %v8836, %v8828
    %v9029 = vpack.c.b16 %v8837, %v8829
    %v9030 = vpack.c.b16 %v8838, %v8830
    %v9031 = vpack.c.b16 %v8839, %v8831
    %v9032 = vpack.c.b16 %v8840, %v8832
    %v9033 = vpack.c.b16 %v8841, %v8833
    %v9034 = vpack.c.b16 %v8842, %v8834
    %v9035 = vpack.c.b16 %v8851, %v8843
    %v9036 = vpack.c.b16 %v8852, %v8844
    %v9037 = vpack.c.b16 %v8853, %v8845
    %v9038 = vpack.c.b16 %v8854, %v8846
    %v9039 = vpack.c.b16 %v8855, %v8847
    %v9040 = vpack.c.b16 %v8856, %v8848
    %v9041 = vpack.c.b16 %v8857, %v8849
    %v9042 = vpack.c.b16 %v8858, %v8850
    %v9043 = vpack.c.b16 %v8867, %v8859
    %v9044 = vpack.c.b16 %v8868, %v8860
    %v9045 = vpack.c.b16 %v8869, %v8861
    %v9046 = vpack.c.b16 %v8870, %v8862
    %v9047 = vpack.c.b16 %v8871, %v8863
    %v9048 = vpack.c.b16 %v8872, %v8864
    %v9049 = vpack.c.b16 %v8873, %v8865
    %v9050 = vpack.c.b16 %v8874, %v8866
    %v9051 = vpack.c.b16 %v8883, %v8875
    %v9052 = vpack.c.b16 %v8884, %v8876
    %v9053 = vpack.c.b16 %v8885, %v8877
    %v9054 = vpack.c.b16 %v8886, %v8878
    %v9055 = vpack.c.b16 %v8887, %v8879
    %v9056 = vpack.c.b16 %v8888, %v8880
    %v9057 = vpack.c.b16 %v8889, %v8881
    %v9058 = vpack.c.b16 %v8890, %v8882
    %v9059 = vpack.c.b16 %v8899, %v8891
    %v9060 = vpack.c.b16 %v8900, %v8892
    %v9061 = vpack.c.b16 %v8901, %v8893
    %v9062 = vpack.c.b16 %v8902, %v8894
    %v9063 = vpack.c.b16 %v8903, %v8895
    %v9064 = vpack.c.b16 %v8904, %v8896
    %v9065 = vpack.c.b16 %v8905, %v8897
    %v9066 = vpack.c.b16 %v8906, %v8898
    %v9067 = vpack.c.b16 %v8915, %v8907
    %v9068 = vpack.c.b16 %v8916, %v8908
    %v9069 = vpack.c.b16 %v8917, %v8909
    %v9070 = vpack.c.b16 %v8918, %v8910
    %v9071 = vpack.c.b16 %v8919, %v8911
    %v9072 = vpack.c.b16 %v8920, %v8912
    %v9073 = vpack.c.b16 %v8921, %v8913
    %v9074 = vpack.c.b16 %v8922, %v8914
    %v9075 = vpack.c.b16 %v8931, %v8923
    %v9076 = vpack.c.b16 %v8932, %v8924
    %v9077 = vpack.c.b16 %v8933, %v8925
    %v9078 = vpack.c.b16 %v8934, %v8926
    %v9079 = vpack.c.b16 %v8935, %v8927
    %v9080 = vpack.c.b16 %v8936, %v8928
    %v9081 = vpack.c.b16 %v8937, %v8929
    %v9082 = vpack.c.b16 %v8938, %v8930
    %v9083 = vpack.c.b16 %v8947, %v8939
    %v9084 = vpack.c.b16 %v8948, %v8940
    %v9085 = vpack.c.b16 %v8949, %v8941
    %v9086 = vpack.c.b16 %v8950, %v8942
    %v9087 = vpack.c.b16 %v8951, %v8943
    %v9088 = vpack.c.b16 %v8952, %v8944
    %v9089 = vpack.c.b16 %v8953, %v8945
    %v9090 = vpack.c.b16 %v8954, %v8946
    %v9091 = vpack.c.b16 %v8963, %v8955
    %v9092 = vpack.c.b16 %v8964, %v8956
    %v9093 = vpack.c.b16 %v8965, %v8957
    %v9094 = vpack.c.b16 %v8966, %v8958
    %v9095 = vpack.c.b16 %v8967, %v8959
    %v9096 = vpack.c.b16 %v8968, %v8960
    %v9097 = vpack.c.b16 %v8969, %v8961
    %v9098 = vpack.c.b16 %v8970, %v8962
    %9227 = vmatprep.subr.bf16.mxu0 %v8972
    %9228 = vmatpush1.bf16.msra.mxu0 %v8971
    %9229 = vmatprep.subr.bf16.mxu0 %v8980
    %9230 = vmatpush1.bf16.msra.mxu0 %v8979
    %9231 = vmatprep.subr.bf16.mxu0 %v8988
    %9232 = vmatpush1.bf16.msra.mxu0 %v8987
    %9233 = vmatprep.subr.bf16.mxu0 %v8996
    %9234 = vmatpush1.bf16.msra.mxu0 %v8995
    %9235 = vmatprep.subr.bf16.mxu0 %v9004
    %9236 = vmatpush1.bf16.msra.mxu0 %v9003
    %9237 = vmatprep.subr.bf16.mxu0 %v9012
    %9238 = vmatpush1.bf16.msra.mxu0 %v9011
    %9239 = vmatprep.subr.bf16.mxu0 %v9020
    %9240 = vmatpush1.bf16.msra.mxu0 %v9019
    %9241 = vmatprep.subr.bf16.mxu0 %v9028
    %9242 = vmatpush1.bf16.msra.mxu0 %v9027
    %9243 = vmatprep.subr.bf16.mxu0 %v9036
    %9244 = vmatpush1.bf16.msra.mxu0 %v9035
    %9245 = vmatprep.subr.bf16.mxu0 %v9044
    %9246 = vmatpush1.bf16.msra.mxu0 %v9043
    %9247 = vmatprep.subr.bf16.mxu0 %v9052
    %9248 = vmatpush1.bf16.msra.mxu0 %v9051
    %9249 = vmatprep.subr.bf16.mxu0 %v9060
    %9250 = vmatpush1.bf16.msra.mxu0 %v9059
    %9251 = vmatprep.subr.bf16.mxu0 %v9068
    %9252 = vmatpush1.bf16.msra.mxu0 %v9067
    %9253 = vmatprep.subr.bf16.mxu0 %v9076
    %9254 = vmatpush1.bf16.msra.mxu0 %v9075
    %9255 = vmatprep.subr.bf16.mxu0 %v9084
    %9256 = vmatpush1.bf16.msra.mxu0 %v9083
    %9257 = vmatprep.subr.bf16.mxu0 %v9092
    %9258 = vmatpush1.bf16.msra.mxu0 %v9091
    %9259 = vmatprep.mubr.bf16.mxu0 %v8456
    %9260 = vmatmul.mubr.bf16.gmra.mrb[0].mxu0 %v8455
    %v9261 = vpop.f32.mrb[0].mxu0
    %v9262 = vadd.f32 0.0, %v9261
    %v9263 = vpop.f32.mrb[0].mxu0
    %v9264 = vadd.f32 0.0, %v9263
    %v9265 = vpop.f32.mrb[0].mxu0
    %v9266 = vadd.f32 0.0, %v9265
    %v9267 = vpop.f32.mrb[0].mxu0
    %v9268 = vadd.f32 0.0, %v9267
    %9269 = vdwg.mxu0
    %9270 = vmatprep.subr.bf16.mxu0 %v8974
    %9271 = vmatpush1.bf16.msra.mxu0 %v8973
    %9272 = vmatprep.subr.bf16.mxu0 %v8982
    %9273 = vmatpush1.bf16.msra.mxu0 %v8981
    %9274 = vmatprep.subr.bf16.mxu0 %v8990
    %9275 = vmatpush1.bf16.msra.mxu0 %v8989
    %9276 = vmatprep.subr.bf16.mxu0 %v8998
    %9277 = vmatpush1.bf16.msra.mxu0 %v8997
    %9278 = vmatprep.subr.bf16.mxu0 %v9006
    %9279 = vmatpush1.bf16.msra.mxu0 %v9005
    %9280 = vmatprep.subr.bf16.mxu0 %v9014
    %9281 = vmatpush1.bf16.msra.mxu0 %v9013
    %9282 = vmatprep.subr.bf16.mxu0 %v9022
    %9283 = vmatpush1.bf16.msra.mxu0 %v9021
    %9284 = vmatprep.subr.bf16.mxu0 %v9030
    %9285 = vmatpush1.bf16.msra.mxu0 %v9029
    %9286 = vmatprep.subr.bf16.mxu0 %v9038
    %9287 = vmatpush1.bf16.msra.mxu0 %v9037
    %9288 = vmatprep.subr.bf16.mxu0 %v9046
    %9289 = vmatpush1.bf16.msra.mxu0 %v9045
    %9290 = vmatprep.subr.bf16.mxu0 %v9054
    %9291 = vmatpush1.bf16.msra.mxu0 %v9053
    %9292 = vmatprep.subr.bf16.mxu0 %v9062
    %9293 = vmatpush1.bf16.msra.mxu0 %v9061
    %9294 = vmatprep.subr.bf16.mxu0 %v9070
    %9295 = vmatpush1.bf16.msra.mxu0 %v9069
    %9296 = vmatprep.subr.bf16.mxu0 %v9078
    %9297 = vmatpush1.bf16.msra.mxu0 %v9077
    %9298 = vmatprep.subr.bf16.mxu0 %v9086
    %9299 = vmatpush1.bf16.msra.mxu0 %v9085
    %9300 = vmatprep.subr.bf16.mxu0 %v9094
    %9301 = vmatpush1.bf16.msra.mxu0 %v9093
    %9302 = vmatprep.mubr.bf16.mxu0 %v8456
    %9303 = vmatmul.mubr.bf16.gmra.mrb[0].mxu0 %v8455
    %v9304 = vpop.f32.mrb[0].mxu0
    %v9305 = vadd.f32 0.0, %v9304
    %v9306 = vpop.f32.mrb[0].mxu0
    %v9307 = vadd.f32 0.0, %v9306
    %v9308 = vpop.f32.mrb[0].mxu0
    %v9309 = vadd.f32 0.0, %v9308
    %v9310 = vpop.f32.mrb[0].mxu0
    %v9311 = vadd.f32 0.0, %v9310
    %9312 = vdwg.mxu0
    %9313 = vmatprep.subr.bf16.mxu0 %v8976
    %9314 = vmatpush1.bf16.msra.mxu0 %v8975
    %9315 = vmatprep.subr.bf16.mxu0 %v8984
    %9316 = vmatpush1.bf16.msra.mxu0 %v8983
    %9317 = vmatprep.subr.bf16.mxu0 %v8992
    %9318 = vmatpush1.bf16.msra.mxu0 %v8991
    %9319 = vmatprep.subr.bf16.mxu0 %v9000
    %9320 = vmatpush1.bf16.msra.mxu0 %v8999
    %9321 = vmatprep.subr.bf16.mxu0 %v9008
    %9322 = vmatpush1.bf16.msra.mxu0 %v9007
    %9323 = vmatprep.subr.bf16.mxu0 %v9016
    %9324 = vmatpush1.bf16.msra.mxu0 %v9015
    %9325 = vmatprep.subr.bf16.mxu0 %v9024
    %9326 = vmatpush1.bf16.msra.mxu0 %v9023
    %9327 = vmatprep.subr.bf16.mxu0 %v9032
    %9328 = vmatpush1.bf16.msra.mxu0 %v9031
    %9329 = vmatprep.subr.bf16.mxu0 %v9040
    %9330 = vmatpush1.bf16.msra.mxu0 %v9039
    %9331 = vmatprep.subr.bf16.mxu0 %v9048
    %9332 = vmatpush1.bf16.msra.mxu0 %v9047
    %9333 = vmatprep.subr.bf16.mxu0 %v9056
    %9334 = vmatpush1.bf16.msra.mxu0 %v9055
    %9335 = vmatprep.subr.bf16.mxu0 %v9064
    %9336 = vmatpush1.bf16.msra.mxu0 %v9063
    %9337 = vmatprep.subr.bf16.mxu0 %v9072
    %9338 = vmatpush1.bf16.msra.mxu0 %v9071
    %9339 = vmatprep.subr.bf16.mxu0 %v9080
    %9340 = vmatpush1.bf16.msra.mxu0 %v9079
    %9341 = vmatprep.subr.bf16.mxu0 %v9088
    %9342 = vmatpush1.bf16.msra.mxu0 %v9087
    %9343 = vmatprep.subr.bf16.mxu0 %v9096
    %9344 = vmatpush1.bf16.msra.mxu0 %v9095
    %9345 = vmatprep.mubr.bf16.mxu0 %v8456
    %9346 = vmatmul.mubr.bf16.gmra.mrb[0].mxu0 %v8455
    %v9347 = vpop.f32.mrb[0].mxu0
    %v9348 = vadd.f32 0.0, %v9347
    %v9349 = vpop.f32.mrb[0].mxu0
    %v9350 = vadd.f32 0.0, %v9349
    %v9351 = vpop.f32.mrb[0].mxu0
    %v9352 = vadd.f32 0.0, %v9351
    %v9353 = vpop.f32.mrb[0].mxu0
    %v9354 = vadd.f32 0.0, %v9353
    %9355 = vdwg.mxu0
    %9356 = vmatprep.subr.bf16.mxu0 %v8978
    %9357 = vmatpush1.bf16.msra.mxu0 %v8977
    %9358 = vmatprep.subr.bf16.mxu0 %v8986
    %9359 = vmatpush1.bf16.msra.mxu0 %v8985
    %9360 = vmatprep.subr.bf16.mxu0 %v8994
    %9361 = vmatpush1.bf16.msra.mxu0 %v8993
    %9362 = vmatprep.subr.bf16.mxu0 %v9002
    %9363 = vmatpush1.bf16.msra.mxu0 %v9001
    %9364 = vmatprep.subr.bf16.mxu0 %v9010
    %9365 = vmatpush1.bf16.msra.mxu0 %v9009
    %9366 = vmatprep.subr.bf16.mxu0 %v9018
    %9367 = vmatpush1.bf16.msra.mxu0 %v9017
    %9368 = vmatprep.subr.bf16.mxu0 %v9026
    %9369 = vmatpush1.bf16.msra.mxu0 %v9025
    %9370 = vmatprep.subr.bf16.mxu0 %v9034
    %9371 = vmatpush1.bf16.msra.mxu0 %v9033
    %9372 = vmatprep.subr.bf16.mxu0 %v9042
    %9373 = vmatpush1.bf16.msra.mxu0 %v9041
    %9374 = vmatprep.subr.bf16.mxu0 %v9050
    %9375 = vmatpush1.bf16.msra.mxu0 %v9049
    %9376 = vmatprep.subr.bf16.mxu0 %v9058
    %9377 = vmatpush1.bf16.msra.mxu0 %v9057
    %9378 = vmatprep.subr.bf16.mxu0 %v9066
    %9379 = vmatpush1.bf16.msra.mxu0 %v9065
    %9380 = vmatprep.subr.bf16.mxu0 %v9074
    %9381 = vmatpush1.bf16.msra.mxu0 %v9073
    %9382 = vmatprep.subr.bf16.mxu0 %v9082
    %9383 = vmatpush1.bf16.msra.mxu0 %v9081
    %9384 = vmatprep.subr.bf16.mxu0 %v9090
    %9385 = vmatpush1.bf16.msra.mxu0 %v9089
    %9386 = vmatprep.subr.bf16.mxu0 %v9098
    %9387 = vmatpush1.bf16.msra.mxu0 %v9097
    %9388 = vmatprep.mubr.bf16.mxu0 %v8456
    %9389 = vmatmul.mubr.bf16.gmra.mrb[0].mxu0 %v8455
    %v9390 = vpop.f32.mrb[0].mxu0
    %v9391 = vadd.f32 0.0, %v9390
    %v9392 = vpop.f32.mrb[0].mxu0
    %v9393 = vadd.f32 0.0, %v9392
    %v9394 = vpop.f32.mrb[0].mxu0
    %v9395 = vadd.f32 0.0, %v9394
    %v9396 = vpop.f32.mrb[0].mxu0
    %v9397 = vadd.f32 0.0, %v9396
    %9398 = vdwg.mxu0
    %v9399 = vld [vmem:[#allocation2 + $0x380] sm:$0xff]
    %v9400 = vld [vmem:[#allocation2 + $0x388] sm:$0xff]
    %v9401 = vld [vmem:[#allocation2 + $0x390] sm:$0xff]
    %v9402 = vld [vmem:[#allocation2 + $0x398] sm:$0xff]
    %v9403 = vld [vmem:[#allocation2 + $0x3c0] sm:$0xff]
    %v9404 = vld [vmem:[#allocation2 + $0x3c8] sm:$0xff]
    %v9405 = vld [vmem:[#allocation2 + $0x3d0] sm:$0xff]
    %v9406 = vld [vmem:[#allocation2 + $0x3d8] sm:$0xff]
    %v9407 = vadd.f32 %v9399, %v9262
    %v9408 = vadd.f32 %v9400, %v9264
    %v9409 = vadd.f32 %v9401, %v9305
    %v9410 = vadd.f32 %v9402, %v9307
    %v9411 = vadd.f32 %v9403, %v9266
    %v9412 = vadd.f32 %v9404, %v9268
    %v9413 = vadd.f32 %v9405, %v9309
    %v9414 = vadd.f32 %v9406, %v9311
    %v9415 = vld [vmem:[#allocation2 + $0x20] sm:$0xff]
    %v9416 = vld [vmem:[#allocation2 + $0x28] sm:$0xff]
    %v9417 = vld [vmem:[#allocation2 + $0x30] sm:$0xff]
    %v9418 = vld [vmem:[#allocation2 + $0x38] sm:$0xff]
    %v9419 = vld [vmem:[#allocation2 + $0x60] sm:$0xff]
    %v9420 = vld [vmem:[#allocation2 + $0x68] sm:$0xff]
    %v9421 = vld [vmem:[#allocation2 + $0x70] sm:$0xff]
    %v9422 = vld [vmem:[#allocation2 + $0x78] sm:$0xff]
    %v9423 = vadd.f32 %v9415, %v9348
    %v9424 = vadd.f32 %v9416, %v9350
    %v9425 = vadd.f32 %v9417, %v9391
    %v9426 = vadd.f32 %v9418, %v9393
    %v9427 = vadd.f32 %v9419, %v9352
    %v9428 = vadd.f32 %v9420, %v9354
    %v9429 = vadd.f32 %v9421, %v9395
    %v9430 = vadd.f32 %v9422, %v9397
    %v9431 = vmul.f32 %v9407, 0.5
    %v9432 = vmul.f32 %v9411, 0.5
    %v9433 = vtanh.pop %v9431
    %v9434 = vtanh.pop %v9432
    %v9435 = vmul.f32 %v9433, 0.5
    %v9436 = vmul.f32 %v9434, 0.5
    %v9437 = vadd.f32 %v9435, 0.5
    %v9438 = vadd.f32 %v9436, 0.5
    %v9439 = vmul.f32 %v9408, 0.5
    %v9440 = vmul.f32 %v9412, 0.5
    %v9441 = vtanh.pop %v9439
    %v9442 = vtanh.pop %v9440
    %v9443 = vmul.f32 %v9441, 0.5
    %v9444 = vmul.f32 %v9442, 0.5
    %v9445 = vadd.f32 %v9443, 0.5
    %v9446 = vadd.f32 %v9444, 0.5
    %v9447 = vtanh.pop %v9409
    %v9448 = vtanh.pop %v9413
    %v9449 = vmul.f32 %v9410, 0.5
    %v9450 = vmul.f32 %v9414, 0.5
    %v9451 = vtanh.pop %v9449
    %v9452 = vtanh.pop %v9450
    %v9453 = vmul.f32 %v9451, 0.5
    %v9454 = vmul.f32 %v9452, 0.5
    %v9455 = vadd.f32 %v9453, 0.5
    %v9456 = vadd.f32 %v9454, 0.5
    %v9457 = vmul.f32 %v9445, %v8413
    %v9458 = vmul.f32 %v9446, %v8414
    %v9459 = vmul.f32 %v9437, %v9447
    %v9460 = vmul.f32 %v9438, %v9448
    %v9461 = vadd.f32 %v9457, %v9459
    %v9462 = vadd.f32 %v9458, %v9460
    %v9463 = vtanh.pop %v9461
    %v9464 = vtanh.pop %v9462
    %v9465 = vmul.f32 %v9455, %v9463
    %v9466 = vmul.f32 %v9456, %v9464
    %v9467 = vmul.f32 %v9423, 0.5
    %v9468 = vmul.f32 %v9427, 0.5
    %v9469 = vtanh.pop %v9467
    %v9470 = vtanh.pop %v9468
    %v9471 = vmul.f32 %v9469, 0.5
    %v9472 = vmul.f32 %v9470, 0.5
    %v9473 = vadd.f32 %v9471, 0.5
    %v9474 = vadd.f32 %v9472, 0.5
    %v9475 = vmul.f32 %v9424, 0.5
    %v9476 = vmul.f32 %v9428, 0.5
    %v9477 = vtanh.pop %v9475
    %v9478 = vtanh.pop %v9476
    %v9479 = vmul.f32 %v9477, 0.5
    %v9480 = vmul.f32 %v9478, 0.5
    %v9481 = vadd.f32 %v9479, 0.5
    %v9482 = vadd.f32 %v9480, 0.5
    %v9483 = vtanh.pop %v9425
    %v9484 = vtanh.pop %v9429
    %v9485 = vmul.f32 %v9426, 0.5
    %v9486 = vmul.f32 %v9430, 0.5
    %v9487 = vtanh.pop %v9485
    %v9488 = vtanh.pop %v9486
    %v9489 = vmul.f32 %v9487, 0.5
    %v9490 = vmul.f32 %v9488, 0.5
    %v9491 = vadd.f32 %v9489, 0.5
    %v9492 = vadd.f32 %v9490, 0.5
    %v9493 = vmul.f32 %v9481, %v8449
    %v9494 = vmul.f32 %v9482, %v8450
    %v9495 = vmul.f32 %v9473, %v9483
    %v9496 = vmul.f32 %v9474, %v9484
    %v9497 = vadd.f32 %v9493, %v9495
    %v9498 = vadd.f32 %v9494, %v9496
    %v9499 = vtanh.pop %v9497
    %v9500 = vtanh.pop %v9498
    %v9501 = vmul.f32 %v9491, %v9499
    %v9502 = vmul.f32 %v9492, %v9500
    %v9503 = vpack.c.bf16 %v9466, %v9465
    %v9504 = vpack.c.bf16 %v9502, %v9501
    %9505 = vst [vmem:[#allocation3 + $0x70] sm:$0xff] %v9503
    %9506 = vst [vmem:[#allocation3 + $0x8] sm:$0xff] %v9504
    %v9507 = vld [vmem:[#allocation3] sm:$0xff]
    %v9508 = vld [vmem:[#allocation3 + $0x8] sm:$0xff]
    %v9509 = vld [vmem:[#allocation3 + $0x10] sm:$0xff]
    %v9510 = vld [vmem:[#allocation3 + $0x18] sm:$0xff]
    %v9511 = vld [vmem:[#allocation3 + $0x20] sm:$0xff]
    %v9512 = vld [vmem:[#allocation3 + $0x28] sm:$0xff]
    %v9513 = vld [vmem:[#allocation3 + $0x30] sm:$0xff]
    %v9514 = vld [vmem:[#allocation3 + $0x38] sm:$0xff]
    %v9515 = vld [vmem:[#allocation3 + $0x40] sm:$0xff]
    %v9516 = vld [vmem:[#allocation3 + $0x48] sm:$0xff]
    %v9517 = vld [vmem:[#allocation3 + $0x50] sm:$0xff]
    %v9518 = vld [vmem:[#allocation3 + $0x58] sm:$0xff]
    %v9519 = vld [vmem:[#allocation3 + $0x60] sm:$0xff]
    %v9520 = vld [vmem:[#allocation3 + $0x68] sm:$0xff]
    %v9521 = vld [vmem:[#allocation3 + $0x70] sm:$0xff]
    %v9522 = vld [vmem:[#allocation3 + $0x78] sm:$0xff]
    %v9523 = vld [vmem:[%s4] sm:$0xf]
    %v9524 = vld [vmem:[%s4 + $0x4] sm:$0xf]
    %v9525 = vld [vmem:[%s4 + $0x8] sm:$0xf]
    %v9526 = vld [vmem:[%s4 + $0xc] sm:$0xf]
    %v9527 = vld [vmem:[%s4 + $0x10] sm:$0xf]
    %v9528 = vld [vmem:[%s4 + $0x14] sm:$0xf]
    %v9529 = vld [vmem:[%s4 + $0x18] sm:$0xf]
    %v9530 = vld [vmem:[%s4 + $0x1c] sm:$0xf]
    %v9531 = vld [vmem:[%s4 + $0x20] sm:$0xf]
    %v9532 = vld [vmem:[%s4 + $0x24] sm:$0xf]
    %v9533 = vld [vmem:[%s4 + $0x28] sm:$0xf]
    %v9534 = vld [vmem:[%s4 + $0x2c] sm:$0xf]
    %v9535 = vld [vmem:[%s4 + $0x30] sm:$0xf]
    %v9536 = vld [vmem:[%s4 + $0x34] sm:$0xf]
    %v9537 = vld [vmem:[%s4 + $0x38] sm:$0xf]
    %v9538 = vld [vmem:[%s4 + $0x3c] sm:$0xf]
    %v9539 = vld [vmem:[%s4 + $0x40] sm:$0xf]
    %v9540 = vld [vmem:[%s4 + $0x44] sm:$0xf]
    %v9541 = vld [vmem:[%s4 + $0x48] sm:$0xf]
    %v9542 = vld [vmem:[%s4 + $0x4c] sm:$0xf]
    %v9543 = vld [vmem:[%s4 + $0x50] sm:$0xf]
    %v9544 = vld [vmem:[%s4 + $0x54] sm:$0xf]
    %v9545 = vld [vmem:[%s4 + $0x58] sm:$0xf]
    %v9546 = vld [vmem:[%s4 + $0x5c] sm:$0xf]
    %v9547 = vld [vmem:[%s4 + $0x60] sm:$0xf]
    %v9548 = vld [vmem:[%s4 + $0x64] sm:$0xf]
    %v9549 = vld [vmem:[%s4 + $0x68] sm:$0xf]
    %v9550 = vld [vmem:[%s4 + $0x6c] sm:$0xf]
    %v9551 = vld [vmem:[%s4 + $0x70] sm:$0xf]
    %v9552 = vld [vmem:[%s4 + $0x74] sm:$0xf]
    %v9553 = vld [vmem:[%s4 + $0x78] sm:$0xf]
    %v9554 = vld [vmem:[%s4 + $0x7c] sm:$0xf]
    %v9555 = vld [vmem:[%s5] sm:$0x1]
    %v9557 = vlaneseq
    %v9558 = vshrl.u32 %v9557, 7
    %v9559 = vsub.s32 0, %v9558
    %v9560 = vrot.slane %v9555, %v9559
    %v9594 = vunpack.c.l.b16 %v9523
    %v9595 = vunpack.c.l.b16 %v9524
    %v9596 = vunpack.c.l.b16 %v9525
    %v9597 = vunpack.c.l.b16 %v9526
    %v9598 = vunpack.c.l.b16 %v9527
    %v9599 = vunpack.c.l.b16 %v9528
    %v9600 = vunpack.c.l.b16 %v9529
    %v9601 = vunpack.c.l.b16 %v9530
    %v9602 = vunpack.c.l.b16 %v9531
    %v9603 = vunpack.c.l.b16 %v9532
    %v9604 = vunpack.c.l.b16 %v9533
    %v9605 = vunpack.c.l.b16 %v9534
    %v9606 = vunpack.c.l.b16 %v9535
    %v9607 = vunpack.c.l.b16 %v9536
    %v9608 = vunpack.c.l.b16 %v9537
    %v9609 = vunpack.c.l.b16 %v9538
    %v9610 = vunpack.c.l.b16 %v9539
    %v9611 = vunpack.c.l.b16 %v9540
    %v9612 = vunpack.c.l.b16 %v9541
    %v9613 = vunpack.c.l.b16 %v9542
    %v9614 = vunpack.c.l.b16 %v9543
    %v9615 = vunpack.c.l.b16 %v9544
    %v9616 = vunpack.c.l.b16 %v9545
    %v9617 = vunpack.c.l.b16 %v9546
    %v9618 = vunpack.c.l.b16 %v9547
    %v9619 = vunpack.c.l.b16 %v9548
    %v9620 = vunpack.c.l.b16 %v9549
    %v9621 = vunpack.c.l.b16 %v9550
    %v9622 = vunpack.c.l.b16 %v9551
    %v9623 = vunpack.c.l.b16 %v9552
    %v9624 = vunpack.c.l.b16 %v9553
    %v9625 = vunpack.c.l.b16 %v9554
    %v9626 = vpack.c.b16 %v9595, %v9594
    %v9627 = vpack.c.b16 %v9597, %v9596
    %v9628 = vpack.c.b16 %v9599, %v9598
    %v9629 = vpack.c.b16 %v9601, %v9600
    %v9630 = vpack.c.b16 %v9603, %v9602
    %v9631 = vpack.c.b16 %v9605, %v9604
    %v9632 = vpack.c.b16 %v9607, %v9606
    %v9633 = vpack.c.b16 %v9609, %v9608
    %v9634 = vpack.c.b16 %v9611, %v9610
    %v9635 = vpack.c.b16 %v9613, %v9612
    %v9636 = vpack.c.b16 %v9615, %v9614
    %v9637 = vpack.c.b16 %v9617, %v9616
    %v9638 = vpack.c.b16 %v9619, %v9618
    %v9639 = vpack.c.b16 %v9621, %v9620
    %v9640 = vpack.c.b16 %v9623, %v9622
    %v9641 = vpack.c.b16 %v9625, %v9624
    %9658 = vmatprep.subr.bf16.mxu0 0
    %9659 = vmatpush1.bf16.msra.mxu0 %v9626
    %9660 = vmatprep.subr.bf16.mxu0 0
    %9661 = vmatpush1.bf16.msra.mxu0 %v9627
    %9662 = vmatprep.subr.bf16.mxu0 0
    %9663 = vmatpush1.bf16.msra.mxu0 %v9628
    %9664 = vmatprep.subr.bf16.mxu0 0
    %9665 = vmatpush1.bf16.msra.mxu0 %v9629
    %9666 = vmatprep.subr.bf16.mxu0 0
    %9667 = vmatpush1.bf16.msra.mxu0 %v9630
    %9668 = vmatprep.subr.bf16.mxu0 0
    %9669 = vmatpush1.bf16.msra.mxu0 %v9631
    %9670 = vmatprep.subr.bf16.mxu0 0
    %9671 = vmatpush1.bf16.msra.mxu0 %v9632
    %9672 = vmatprep.subr.bf16.mxu0 0
    %9673 = vmatpush1.bf16.msra.mxu0 %v9633
    %9674 = vmatprep.subr.bf16.mxu0 0
    %9675 = vmatpush1.bf16.msra.mxu0 %v9634
    %9676 = vmatprep.subr.bf16.mxu0 0
    %9677 = vmatpush1.bf16.msra.mxu0 %v9635
    %9678 = vmatprep.subr.bf16.mxu0 0
    %9679 = vmatpush1.bf16.msra.mxu0 %v9636
    %9680 = vmatprep.subr.bf16.mxu0 0
    %9681 = vmatpush1.bf16.msra.mxu0 %v9637
    %9682 = vmatprep.subr.bf16.mxu0 0
    %9683 = vmatpush1.bf16.msra.mxu0 %v9638
    %9684 = vmatprep.subr.bf16.mxu0 0
    %9685 = vmatpush1.bf16.msra.mxu0 %v9639
    %9686 = vmatprep.subr.bf16.mxu0 0
    %9687 = vmatpush1.bf16.msra.mxu0 %v9640
    %9688 = vmatprep.subr.bf16.mxu0 0
    %9689 = vmatpush1.bf16.msra.mxu0 %v9641
    %9690 = vmatprep.mubr.bf16.mxu0 %v9508
    %9691 = vmatmul.mubr.bf16.gmra.mrb[0].mxu0 %v9507
    %v9692 = vpop.f32.mrb[0].mxu0
    %v9693 = vadd.f32 %v9560, %v9692
    %v9694 = vpop.f32.mrb[0].mxu0
    %v9695 = vpop.f32.mrb[0].mxu0
    %v9696 = vadd.f32 %v9560, %v9695
    %v9697 = vpop.f32.mrb[0].mxu0
    %9698 = vmatprep.mubr.bf16.mxu0 %v9510
    %9699 = vmatmul.mubr.bf16.gmra.mrb[0].mxu0 %v9509
    %v9700 = vpop.f32.mrb[0].mxu0
    %v9701 = vadd.f32 %v9560, %v9700
    %v9702 = vpop.f32.mrb[0].mxu0
    %v9703 = vpop.f32.mrb[0].mxu0
    %v9704 = vadd.f32 %v9560, %v9703
    %v9705 = vpop.f32.mrb[0].mxu0
    %9706 = vmatprep.mubr.bf16.mxu0 %v9512
    %9707 = vmatmul.mubr.bf16.gmra.mrb[0].mxu0 %v9511
    %v9708 = vpop.f32.mrb[0].mxu0
    %v9709 = vadd.f32 %v9560, %v9708
    %v9710 = vpop.f32.mrb[0].mxu0
    %v9711 = vpop.f32.mrb[0].mxu0
    %v9712 = vadd.f32 %v9560, %v9711
    %v9713 = vpop.f32.mrb[0].mxu0
    %9714 = vmatprep.mubr.bf16.mxu0 %v9514
    %9715 = vmatmul.mubr.bf16.gmra.mrb[0].mxu0 %v9513
    %v9716 = vpop.f32.mrb[0].mxu0
    %v9717 = vadd.f32 %v9560, %v9716
    %v9718 = vpop.f32.mrb[0].mxu0
    %v9719 = vpop.f32.mrb[0].mxu0
    %v9720 = vadd.f32 %v9560, %v9719
    %v9721 = vpop.f32.mrb[0].mxu0
    %9722 = vmatprep.mubr.bf16.mxu0 %v9516
    %9723 = vmatmul.mubr.bf16.gmra.mrb[0].mxu0 %v9515
    %v9724 = vpop.f32.mrb[0].mxu0
    %v9725 = vadd.f32 %v9560, %v9724
    %v9726 = vpop.f32.mrb[0].mxu0
    %v9727 = vpop.f32.mrb[0].mxu0
    %v9728 = vadd.f32 %v9560, %v9727
    %v9729 = vpop.f32.mrb[0].mxu0
    %9730 = vmatprep.mubr.bf16.mxu0 %v9518
    %9731 = vmatmul.mubr.bf16.gmra.mrb[0].mxu0 %v9517
    %v9732 = vpop.f32.mrb[0].mxu0
    %v9733 = vadd.f32 %v9560, %v9732
    %v9734 = vpop.f32.mrb[0].mxu0
    %v9735 = vpop.f32.mrb[0].mxu0
    %v9736 = vadd.f32 %v9560, %v9735
    %v9737 = vpop.f32.mrb[0].mxu0
    %9738 = vmatprep.mubr.bf16.mxu0 %v9520
    %9739 = vmatmul.mubr.bf16.gmra.mrb[0].mxu0 %v9519
    %v9740 = vpop.f32.mrb[0].mxu0
    %v9741 = vadd.f32 %v9560, %v9740
    %v9742 = vpop.f32.mrb[0].mxu0
    %v9743 = vpop.f32.mrb[0].mxu0
    %v9744 = vadd.f32 %v9560, %v9743
    %v9745 = vpop.f32.mrb[0].mxu0
    %9746 = vmatprep.mubr.bf16.mxu0 %v9522
    %9747 = vmatmul.mubr.bf16.gmra.mrb[0].mxu0 %v9521
    %v9748 = vpop.f32.mrb[0].mxu0
    %v9749 = vadd.f32 %v9560, %v9748
    %v9750 = vpop.f32.mrb[0].mxu0
    %v9751 = vpop.f32.mrb[0].mxu0
    %v9752 = vadd.f32 %v9560, %v9751
    %v9753 = vpop.f32.mrb[0].mxu0
    %9754 = vdwg.mxu0
    %9755 = vst [vmem:[#allocation9] sm:$0xff] %v9693
    %9756 = vst [vmem:[#allocation9 + $0x8] sm:$0xff] %v9696
    %9757 = vst [vmem:[#allocation9 + $0x10] sm:$0xff] %v9701
    %9758 = vst [vmem:[#allocation9 + $0x18] sm:$0xff] %v9704
    %9759 = vst [vmem:[#allocation9 + $0x20] sm:$0xff] %v9709
    %9760 = vst [vmem:[#allocation9 + $0x28] sm:$0xff] %v9712
    %9761 = vst [vmem:[#allocation9 + $0x30] sm:$0xff] %v9717
    %9762 = vst [vmem:[#allocation9 + $0x38] sm:$0xff] %v9720
    %9763 = vst [vmem:[#allocation9 + $0x40] sm:$0xff] %v9725
    %9764 = vst [vmem:[#allocation9 + $0x48] sm:$0xff] %v9728
    %9765 = vst [vmem:[#allocation9 + $0x50] sm:$0xff] %v9733
    %9766 = vst [vmem:[#allocation9 + $0x58] sm:$0xff] %v9736
    %9767 = vst [vmem:[#allocation9 + $0x60] sm:$0xff] %v9741
    %9768 = vst [vmem:[#allocation9 + $0x68] sm:$0xff] %v9744
    %9769 = vst [vmem:[#allocation9 + $0x70] sm:$0xff] %v9749
    %9770 = vst [vmem:[#allocation9 + $0x78] sm:$0xff] %v9752
    // Predicated region
    $region34: #{bidirectional_forward.1} parent=1 // pred_check
      _
    $region35: #{bidirectional_forward.1} parent=1 // pred_check_branch
      %9772 = sbr.rel (0) target = $region37
    $region36: #{bidirectional_forward.1} parent=1 // pred_region
      %s9774 = ssub.s32 2048, 2048
      %9775 = vsyncadd [#allocation6], %s9774
      %s9776 = sshll.u32 [#allocation9], 4
      %s9777 = int_to_ptr.vmem [resolvable:$true] %s9776
      %9782 = dma.vmem_to_hbm [thread:$0]  %s9777, 2048, %s6, [#allocation6], 128, 128, 8
    $region37: #{bidirectional_forward.1} parent=1 // pred_fallthru
      _
    // Predicated region
    $region38: #{bidirectional_forward.1} parent=1 // pred_check
      _
    $region39: #{bidirectional_forward.1} parent=1 // pred_check_branch
      %9784 = sbr.rel (0) target = $region41
    $region40: #{bidirectional_forward.1} parent=1 // pred_region
      %9785 = dma.done [#allocation6], 2048
    $region41: #{bidirectional_forward.1} parent=1 // pred_fallthru
      _
    %9786 = vsyncpa [#allocation5], 1
    %9787 = vsyncpa [#allocation8], 1
    %9788 = vsyncpa [#allocation6], 1

</llo_original>
